<compile_context>
chip_gen: v7x
topology: tpu7x:2x2x1
jax: 0.10.0
libtpu: 0.0.40
codegen_flags: <defaults>
</compile_context>

<pallas_src>
import functools

import jax
import jax.numpy as jnp
from jax.experimental import pallas as pl
from jax.experimental.pallas import tpu as pltpu

D = 1024  # hidden width fixed by the module (2*1024 -> 1024 -> 1024 -> 1)


def _round_up(x, m):
    return (x + m - 1) // m * m


def _cdiv(a, b):
    return (a + b - 1) // b


@functools.lru_cache(maxsize=1)
def _tpu_config():
    """Generation-dependent tiling / dtype choices (safe fallback if unknown)."""
    kind = ""
    try:
        kind = (getattr(jax.devices()[0], "device_kind", "") or "").lower()
    except Exception:
        pass
    if "v7" in kind:
        # 2 TensorCores/chip split the parallel grid axis; 64 MiB VMEM per TC.
        return {"cap": 512, "elu_bf16": True, "split_cores": True}
    if "v6" in kind:
        # 918 TF/s: 512-row tile halves the per-grid-step overhead ratio;
        # bf16-native VPU/EUP.
        return {"cap": 512, "elu_bf16": True, "split_cores": False}
    # v5e / v5p / older / unknown: no bf16 VPU/EUP assumed; a 256-row tile is
    # already ~8 us of MXU work at 197 TF/s, hiding the step overhead.
    return {"cap": 256, "elu_bf16": False, "split_cores": False}


def _elu(x):
    """ELU(alpha=1) in x.dtype.

    Negative branch = expm1, built only from exp/mul/add/where (no dedicated
    expm1 lowering needed) with a Taylor fallback for small |x| so the
    exp(x)-1 cancellation never bites.
    """
    dt = x.dtype
    zero = jnp.zeros((), dt)
    one = jnp.ones((), dt)
    xn = jnp.minimum(x, zero)                     # exp never overflows
    em1 = jnp.exp(xn) - one
    taylor = xn * (one + xn * (jnp.asarray(0.5, dt) + xn * jnp.asarray(1.0 / 6.0, dt)))
    neg = jnp.where(xn > jnp.asarray(-0.02, dt), taylor, em1)
    return jnp.where(x > zero, x, neg)


def _make_contact_kernel(elu_in_bf16):
    def kernel(m1_ref, m2_ref, w0a_ref, w0b_ref, b0_ref, w1_ref, b1_ref,
               w2_ref, b2_ref, out_ref):
        m1 = m1_ref[...].astype(jnp.bfloat16)
        m2 = m2_ref[...].astype(jnp.bfloat16)

        # --- layer 0: cat(m1, m2) @ W0 + b0 == m1 @ W0[:D] + m2 @ W0[D:] + b0
        # (W0 pre-split at prepare time so no in-kernel slice of the resident
        #  buffer; on v7x the two dots should accumulate in the MRB — verify in
        #  a bundle dump before restructuring further.)
        h0 = (jnp.dot(m1, w0a_ref[...], preferred_element_type=jnp.float32)
              + jnp.dot(m2, w0b_ref[...], preferred_element_type=jnp.float32)
              + b0_ref[...])
        if elu_in_bf16:
            h = _elu(h0.astype(jnp.bfloat16))            # bf16 EUP/VPU (v6e/v7x)
        else:
            h = _elu(h0).astype(jnp.bfloat16)            # f32 ELU (v5e path)

        # --- layer 1
        h1 = jnp.dot(h, w1_ref[...], preferred_element_type=jnp.float32) + b1_ref[...]
        if elu_in_bf16:
            h2 = _elu(h1.astype(jnp.bfloat16)).astype(jnp.float32)
        else:
            h2 = _elu(h1)

        # --- layer 2 (1024 -> 1): VPU multiply + lane reduce (no N=1 MXU matmul)
        y = jnp.sum(h2 * w2_ref[...], axis=-1, keepdims=True) + b2_ref[...]
        out_ref[...] = y.astype(out_ref.dtype)

    return kernel


def prepare_params(params):
    """One-time conversion of raw f32 params to the kernel's layout/dtypes.

    Call this ONCE after init / checkpoint load; pass the result to
    contact_forward so no per-call cast pass over the weights is paid.
    """
    w0, b0, w1, b1, w2, b2 = params
    w0 = jnp.asarray(w0, jnp.float32)
    return (
        w0[:D].astype(jnp.bfloat16),                     # W0 half acting on m1
        w0[D:2 * D].astype(jnp.bfloat16),                # W0 half acting on m2
        jnp.asarray(b0, jnp.float32).reshape(1, D),
        jnp.asarray(w1, jnp.float32).astype(jnp.bfloat16),
        jnp.asarray(b1, jnp.float32).reshape(1, D),
        jnp.asarray(w2, jnp.float32).reshape(1, D),      # (D,1) column -> (1,D) row
        jnp.asarray(b2, jnp.float32).reshape(1, 1),
    )


def contact_forward(m1, m2, prepared_params, *, block_m=None, elu_in_bf16=None):
    """Forward pass. m1/m2 may be f32 or (preferably, from the producer) bf16."""
    w0a, w0b, b0r, w1b, b1r, w2r, b2r = prepared_params
    B = m1.shape[0]
    assert m1.shape == (B, D) and m2.shape == (B, D)

    cfg = _tpu_config()
    if elu_in_bf16 is None:
        elu_in_bf16 = cfg["elu_bf16"]

    # Batch tile: sublane-aligned, generation-tuned, never (much) bigger than B.
    B8 = _round_up(max(B, 1), 8)
    if block_m is not None:
        BM = block_m
    else:
        BM = cfg["cap"]
        if cfg["split_cores"]:
            # v7x: make the parallel grid axis yield >= 2 tiles so both
            # TensorCores get work (each holds its own resident weight copy).
            BM = min(BM, _round_up(_cdiv(B8, 2), 8))
    BM = max(8, min(_round_up(BM, 8), B8))

    # No wrapper-side padding: cdiv grid; the ragged last tile (if any) is
    # masked by Pallas (garbage input rows never reach valid output rows, and
    # the out-of-bounds part of the output block is not stored).
    grid = (_cdiv(B, BM),)

    resident = pl.Buffered(1)  # constant index_map => single resident copy
    in_specs = [
        pl.BlockSpec((BM, D), lambda i: (i, 0)),                              # m1 tile
        pl.BlockSpec((BM, D), lambda i: (i, 0)),                              # m2 tile
        pl.BlockSpec((D, D), lambda i: (0, 0), pipeline_mode=resident),       # W0[:D]  (bf16)
        pl.BlockSpec((D, D), lambda i: (0, 0), pipeline_mode=resident),       # W0[D:]  (bf16)
        pl.BlockSpec((1, D), lambda i: (0, 0)),                               # b0
        pl.BlockSpec((D, D), lambda i: (0, 0), pipeline_mode=resident),       # W1      (bf16)
        pl.BlockSpec((1, D), lambda i: (0, 0)),                               # b1
        pl.BlockSpec((1, D), lambda i: (0, 0)),                               # W2 row
        pl.BlockSpec((1, 1), lambda i: (0, 0)),                               # b2
    ]
    out_spec = pl.BlockSpec((BM, 1), lambda i: (i, 0))

    return pl.pallas_call(
        _make_contact_kernel(elu_in_bf16),
        out_shape=jax.ShapeDtypeStruct((B, 1), jnp.float32),
        grid_spec=pltpu.PrefetchScalarGridSpec(
            num_scalar_prefetch=0,
            grid=grid,
            in_specs=in_specs,
            out_specs=out_spec,
        ),
        compiler_params=pltpu.CompilerParams(
            dimension_semantics=("parallel",),
            # BM=512 f32 inputs: 2 x 2 MiB x 2 buffers + 6 MiB resident bf16
            # weights + ~8 MiB f32/bf16 intermediates  ->  ~26-30 MiB.
            # 48 MiB leaves headroom and fits v7x's 64 MiB physical VMEM/TC.
            vmem_limit_bytes=48 * 1024 * 1024,
        ),
    )(m1, m2, w0a, w0b, b0r, w1b, b1r, w2r, b2r)


def init_params(key):
    """nn.Linear-style init: U(-1/sqrt(fan_in), 1/sqrt(fan_in)); weights stored [in, out]."""
    k0, k1, k2, k3, k4, k5 = jax.random.split(key, 6)

    def unif(k, shape, fan_in):
        bound = 1.0 / jnp.sqrt(fan_in)
        return jax.random.uniform(k, shape, jnp.float32, -bound, bound)

    w0 = unif(k0, (2 * D, D), 2 * D)
    b0 = unif(k1, (1, D), 2 * D)
    w1 = unif(k2, (D, D), D)
    b1 = unif(k3, (1, D), D)
    w2 = unif(k4, (D, 1), D)
    b2 = unif(k5, (1, 1), D)
    return (w0, b0, w1, b1, w2, b2)


def reference_f32(m1, m2, params):
    """Pure-JAX reference with the module's math (f32 end to end)."""
    w0, b0, w1, b1, w2, b2 = params
    h = jnp.concatenate([m1, m2], axis=1)
    h = jax.nn.elu(h @ w0 + b0.reshape(1, D))
    h = jax.nn.elu(h @ w1 + b1.reshape(1, D))
    return h @ w2 + b2.reshape(1, 1)


def reference_matched(m1, m2, prepared_params, elu_in_bf16):
    """Numerics-matched reference: same bf16/f32 cast order as the kernel."""
    w0a, w0b, b0r, w1b, b1r, w2r, b2r = prepared_params
    m1b = m1.astype(jnp.bfloat16)
    m2b = m2.astype(jnp.bfloat16)
    h0 = (jnp.dot(m1b, w0a, preferred_element_type=jnp.float32)
          + jnp.dot(m2b, w0b, preferred_element_type=jnp.float32) + b0r)
    h = _elu(h0.astype(jnp.bfloat16)) if elu_in_bf16 else _elu(h0).astype(jnp.bfloat16)
    h1 = jnp.dot(h, w1b, preferred_element_type=jnp.float32) + b1r
    h2 = _elu(h1.astype(jnp.bfloat16)).astype(jnp.float32) if elu_in_bf16 else _elu(h1)
    return jnp.sum(h2 * w2r, axis=-1, keepdims=True) + b2r


if __name__ == "__main__":
    key = jax.random.PRNGKey(0)
    kp, km1, km2 = jax.random.split(key, 3)

    params = init_params(kp)
    prepared = prepare_params(params)        # one-time cast, hoisted off the hot path
    elu_bf16 = _tpu_config()["elu_bf16"]

    B = 20                                   # small test batch; D=1024 fixed by the module
    m1 = jax.random.normal(km1, (B, D), jnp.float32)
    m2 = jax.random.normal(km2, (B, D), jnp.float32)

    # 1) generation-tuned default tiling (single masked tile at this tiny B).
    out = jax.block_until_ready(contact_forward(m1, m2, prepared))
    assert out.shape == (B, 1)

    # 2) small tile so the grid has >1 step and the last tile is ragged/masked
    #    (exercises the pipelining + resident-weight + boundary-mask paths).
    out_small = jax.block_until_ready(contact_forward(m1, m2, prepared, block_m=16))
    assert out_small.shape == (B, 1)

    ref_m = jax.block_until_ready(reference_matched(m1, m2, prepared, elu_bf16))
    ref_f = jax.block_until_ready(reference_f32(m1, m2, params))

    assert jnp.allclose(out, ref_m, atol=1e-2, rtol=1e-2), \
        float(jnp.max(jnp.abs(out - ref_m)))
    assert jnp.allclose(out_small, ref_m, atol=1e-2, rtol=1e-2), \
        float(jnp.max(jnp.abs(out_small - ref_m)))
    assert jnp.allclose(out, ref_f, atol=5e-2, rtol=5e-2), \
        float(jnp.max(jnp.abs(out - ref_f)))

    print("KERNEL_OK")
</pallas_src>

<mosaic_0001>
module attributes {stable_mosaic.version = 11 : i64} {
  func.func @kernel(%arg0: i32, %arg1: memref<24x1024xf32, #tpu.memory_space<vmem>>, %arg2: memref<24x1024xf32, #tpu.memory_space<vmem>>, %arg3: memref<1024x1024xbf16, #tpu.memory_space<vmem>>, %arg4: memref<1024x1024xbf16, #tpu.memory_space<vmem>>, %arg5: memref<1x1024xf32, #tpu.memory_space<vmem>>, %arg6: memref<1024x1024xbf16, #tpu.memory_space<vmem>>, %arg7: memref<1x1024xf32, #tpu.memory_space<vmem>>, %arg8: memref<1x1024xf32, #tpu.memory_space<vmem>>, %arg9: memref<1x1xf32, #tpu.memory_space<vmem>>, %arg10: memref<24x1xf32, #tpu.memory_space<vmem>>) attributes {dimension_semantics = [#tpu.dimension_semantics<parallel>], iteration_bounds = array<i64: 1>, scalar_prefetch = 0 : i64, scratch_operands = 0 : i64, tpu.core_type = #tpu.core_type<tc>, window_params = [{transform_indices = @transform_0, window_bounds = array<i64: 24, 1024>}, {transform_indices = @transform_1, window_bounds = array<i64: 24, 1024>}, {pipeline_mode = #tpu.pipeline_mode<synchronous>, transform_indices = @transform_2, window_bounds = array<i64: 1024, 1024>}, {pipeline_mode = #tpu.pipeline_mode<synchronous>, transform_indices = @transform_3, window_bounds = array<i64: 1024, 1024>}, {pipeline_mode = #tpu.pipeline_mode<synchronous>, transform_indices = @transform_4, window_bounds = array<i64: 1, 1024>}, {pipeline_mode = #tpu.pipeline_mode<synchronous>, transform_indices = @transform_5, window_bounds = array<i64: 1024, 1024>}, {pipeline_mode = #tpu.pipeline_mode<synchronous>, transform_indices = @transform_6, window_bounds = array<i64: 1, 1024>}, {pipeline_mode = #tpu.pipeline_mode<synchronous>, transform_indices = @transform_7, window_bounds = array<i64: 1, 1024>}, {pipeline_mode = #tpu.pipeline_mode<synchronous>, transform_indices = @transform_8, window_bounds = array<i64: 1, 1>}, {transform_indices = @transform_9, window_bounds = array<i64: 24, 1>}]} {
    %c0 = arith.constant 0 : index
    %c0_0 = arith.constant 0 : index
    %0 = vector.load %arg1[%c0, %c0_0] : memref<24x1024xf32, #tpu.memory_space<vmem>>, vector<24x1024xf32>
    %1 = arith.truncf %0 : vector<24x1024xf32> to vector<24x1024xbf16>
    %c0_1 = arith.constant 0 : index
    %c0_2 = arith.constant 0 : index
    %2 = vector.load %arg2[%c0_1, %c0_2] : memref<24x1024xf32, #tpu.memory_space<vmem>>, vector<24x1024xf32>
    %3 = arith.truncf %2 : vector<24x1024xf32> to vector<24x1024xbf16>
    %c0_3 = arith.constant 0 : index
    %c0_4 = arith.constant 0 : index
    %4 = vector.load %arg3[%c0_3, %c0_4] : memref<1024x1024xbf16, #tpu.memory_space<vmem>>, vector<1024x1024xbf16>
    %cst = arith.constant dense<0.000000e+00> : vector<24x1024xf32>
    %5 = tpu.matmul %1, %4, %cst {dimension_numbers = #tpu.dot_dimension_numbers<[1], [0], [0], [1], [0, 0, 1, 1], [], []>} : vector<24x1024xbf16>, vector<1024x1024xbf16>, vector<24x1024xf32> -> vector<24x1024xf32>
    %c0_5 = arith.constant 0 : index
    %c0_6 = arith.constant 0 : index
    %6 = vector.load %arg4[%c0_5, %c0_6] : memref<1024x1024xbf16, #tpu.memory_space<vmem>>, vector<1024x1024xbf16>
    %cst_7 = arith.constant dense<0.000000e+00> : vector<24x1024xf32>
    %7 = tpu.matmul %3, %6, %cst_7 {dimension_numbers = #tpu.dot_dimension_numbers<[1], [0], [0], [1], [0, 0, 1, 1], [], []>} : vector<24x1024xbf16>, vector<1024x1024xbf16>, vector<24x1024xf32> -> vector<24x1024xf32>
    %8 = arith.addf %5, %7 : vector<24x1024xf32>
    %c0_8 = arith.constant 0 : index
    %c0_9 = arith.constant 0 : index
    %9 = vector.load %arg5[%c0_8, %c0_9] : memref<1x1024xf32, #tpu.memory_space<vmem>>, vector<1x1024xf32>
    %10 = vector.broadcast %9 : vector<1x1024xf32> to vector<24x1024xf32>
    %11 = arith.addf %8, %10 : vector<24x1024xf32>
    %cst_10 = arith.constant 0.000000e+00 : f32
    %12 = vector.broadcast %cst_10 : f32 to vector<24x1024xf32>
    %13 = arith.minimumf %11, %12 : vector<24x1024xf32>
    %14 = math.exp %13 : vector<24x1024xf32>
    %cst_11 = arith.constant 1.000000e+00 : f32
    %15 = vector.broadcast %cst_11 : f32 to vector<24x1024xf32>
    %16 = arith.subf %14, %15 : vector<24x1024xf32>
    %cst_12 = arith.constant 0.166666672 : f32
    %17 = vector.broadcast %cst_12 : f32 to vector<24x1024xf32>
    %18 = arith.mulf %13, %17 : vector<24x1024xf32>
    %cst_13 = arith.constant 5.000000e-01 : f32
    %19 = vector.broadcast %cst_13 : f32 to vector<24x1024xf32>
    %20 = arith.addf %19, %18 : vector<24x1024xf32>
    %21 = arith.mulf %13, %20 : vector<24x1024xf32>
    %cst_14 = arith.constant 1.000000e+00 : f32
    %22 = vector.broadcast %cst_14 : f32 to vector<24x1024xf32>
    %23 = arith.addf %22, %21 : vector<24x1024xf32>
    %24 = arith.mulf %13, %23 : vector<24x1024xf32>
    %cst_15 = arith.constant -2.000000e-02 : f32
    %25 = vector.broadcast %cst_15 : f32 to vector<24x1024xf32>
    %26 = arith.cmpf ogt, %13, %25 : vector<24x1024xf32>
    %27 = arith.select %26, %24, %16 : vector<24x1024xi1>, vector<24x1024xf32>
    %cst_16 = arith.constant 0.000000e+00 : f32
    %28 = vector.broadcast %cst_16 : f32 to vector<24x1024xf32>
    %29 = arith.cmpf ogt, %11, %28 : vector<24x1024xf32>
    %30 = arith.select %29, %11, %27 : vector<24x1024xi1>, vector<24x1024xf32>
    %31 = arith.truncf %30 : vector<24x1024xf32> to vector<24x1024xbf16>
    %c0_17 = arith.constant 0 : index
    %c0_18 = arith.constant 0 : index
    %32 = vector.load %arg6[%c0_17, %c0_18] : memref<1024x1024xbf16, #tpu.memory_space<vmem>>, vector<1024x1024xbf16>
    %cst_19 = arith.constant dense<0.000000e+00> : vector<24x1024xf32>
    %33 = tpu.matmul %31, %32, %cst_19 {dimension_numbers = #tpu.dot_dimension_numbers<[1], [0], [0], [1], [0, 0, 1, 1], [], []>} : vector<24x1024xbf16>, vector<1024x1024xbf16>, vector<24x1024xf32> -> vector<24x1024xf32>
    %c0_20 = arith.constant 0 : index
    %c0_21 = arith.constant 0 : index
    %34 = vector.load %arg7[%c0_20, %c0_21] : memref<1x1024xf32, #tpu.memory_space<vmem>>, vector<1x1024xf32>
    %35 = vector.broadcast %34 : vector<1x1024xf32> to vector<24x1024xf32>
    %36 = arith.addf %33, %35 : vector<24x1024xf32>
    %cst_22 = arith.constant 0.000000e+00 : f32
    %37 = vector.broadcast %cst_22 : f32 to vector<24x1024xf32>
    %38 = arith.minimumf %36, %37 : vector<24x1024xf32>
    %39 = math.exp %38 : vector<24x1024xf32>
    %cst_23 = arith.constant 1.000000e+00 : f32
    %40 = vector.broadcast %cst_23 : f32 to vector<24x1024xf32>
    %41 = arith.subf %39, %40 : vector<24x1024xf32>
    %cst_24 = arith.constant 0.166666672 : f32
    %42 = vector.broadcast %cst_24 : f32 to vector<24x1024xf32>
    %43 = arith.mulf %38, %42 : vector<24x1024xf32>
    %cst_25 = arith.constant 5.000000e-01 : f32
    %44 = vector.broadcast %cst_25 : f32 to vector<24x1024xf32>
    %45 = arith.addf %44, %43 : vector<24x1024xf32>
    %46 = arith.mulf %38, %45 : vector<24x1024xf32>
    %cst_26 = arith.constant 1.000000e+00 : f32
    %47 = vector.broadcast %cst_26 : f32 to vector<24x1024xf32>
    %48 = arith.addf %47, %46 : vector<24x1024xf32>
    %49 = arith.mulf %38, %48 : vector<24x1024xf32>
    %cst_27 = arith.constant -2.000000e-02 : f32
    %50 = vector.broadcast %cst_27 : f32 to vector<24x1024xf32>
    %51 = arith.cmpf ogt, %38, %50 : vector<24x1024xf32>
    %52 = arith.select %51, %49, %41 : vector<24x1024xi1>, vector<24x1024xf32>
    %cst_28 = arith.constant 0.000000e+00 : f32
    %53 = vector.broadcast %cst_28 : f32 to vector<24x1024xf32>
    %54 = arith.cmpf ogt, %36, %53 : vector<24x1024xf32>
    %55 = arith.select %54, %36, %52 : vector<24x1024xi1>, vector<24x1024xf32>
    %c0_29 = arith.constant 0 : index
    %c0_30 = arith.constant 0 : index
    %56 = vector.load %arg8[%c0_29, %c0_30] : memref<1x1024xf32, #tpu.memory_space<vmem>>, vector<1x1024xf32>
    %57 = vector.broadcast %56 : vector<1x1024xf32> to vector<24x1024xf32>
    %58 = arith.mulf %55, %57 : vector<24x1024xf32>
    %cst_31 = arith.constant dense<0.000000e+00> : vector<24xf32>
    %59 = vector.multi_reduction <add>, %58, %cst_31 [1] : vector<24x1024xf32> to vector<24xf32>
    %60 = vector.shape_cast %59 : vector<24xf32> to vector<24x1xf32>
    %c0_32 = arith.constant 0 : index
    %c0_33 = arith.constant 0 : index
    %61 = vector.load %arg9[%c0_32, %c0_33] : memref<1x1xf32, #tpu.memory_space<vmem>>, vector<1x1xf32>
    %62 = vector.broadcast %61 : vector<1x1xf32> to vector<24x1xf32>
    %63 = arith.addf %60, %62 : vector<24x1xf32>
    %c0_34 = arith.constant 0 : index
    %c0_35 = arith.constant 0 : index
    %64 = vector.load %arg10[%c0_34, %c0_35] : memref<24x1xf32, #tpu.memory_space<vmem>>, vector<24x1xf32>
    tpu.vector_store %arg10[%c0_34, %c0_35], %63 {strides = array<i32>} : memref<24x1xf32, #tpu.memory_space<vmem>>, vector<24x1xf32>,
    return
  }
  func.func @transform_0(%arg0: i32) -> (i32, i32) {
    %c0_i32 = arith.constant 0 : i32
    %c0_i32_0 = arith.constant 0 : i32
    return %arg0, %c0_i32 : i32, i32
  }
  func.func @transform_1(%arg0: i32) -> (i32, i32) {
    %c0_i32 = arith.constant 0 : i32
    %c0_i32_0 = arith.constant 0 : i32
    return %arg0, %c0_i32 : i32, i32
  }
  func.func @transform_2(%arg0: i32) -> (i32, i32) {
    %c0_i32 = arith.constant 0 : i32
    %c0_i32_0 = arith.constant 0 : i32
    %c0_i32_1 = arith.constant 0 : i32
    return %c0_i32, %c0_i32_0 : i32, i32
  }
  func.func @transform_3(%arg0: i32) -> (i32, i32) {
    %c0_i32 = arith.constant 0 : i32
    %c0_i32_0 = arith.constant 0 : i32
    %c0_i32_1 = arith.constant 0 : i32
    return %c0_i32, %c0_i32_0 : i32, i32
  }
  func.func @transform_4(%arg0: i32) -> (i32, i32) {
    %c0_i32 = arith.constant 0 : i32
    %c0_i32_0 = arith.constant 0 : i32
    %c0_i32_1 = arith.constant 0 : i32
    return %c0_i32, %c0_i32_0 : i32, i32
  }
  func.func @transform_5(%arg0: i32) -> (i32, i32) {
    %c0_i32 = arith.constant 0 : i32
    %c0_i32_0 = arith.constant 0 : i32
    %c0_i32_1 = arith.constant 0 : i32
    return %c0_i32, %c0_i32_0 : i32, i32
  }
  func.func @transform_6(%arg0: i32) -> (i32, i32) {
    %c0_i32 = arith.constant 0 : i32
    %c0_i32_0 = arith.constant 0 : i32
    %c0_i32_1 = arith.constant 0 : i32
    return %c0_i32, %c0_i32_0 : i32, i32
  }
  func.func @transform_7(%arg0: i32) -> (i32, i32) {
    %c0_i32 = arith.constant 0 : i32
    %c0_i32_0 = arith.constant 0 : i32
    %c0_i32_1 = arith.constant 0 : i32
    return %c0_i32, %c0_i32_0 : i32, i32
  }
  func.func @transform_8(%arg0: i32) -> (i32, i32) {
    %c0_i32 = arith.constant 0 : i32
    %c0_i32_0 = arith.constant 0 : i32
    %c0_i32_1 = arith.constant 0 : i32
    return %c0_i32, %c0_i32_0 : i32, i32
  }
  func.func @transform_9(%arg0: i32) -> (i32, i32) {
    %c0_i32 = arith.constant 0 : i32
    %c0_i32_0 = arith.constant 0 : i32
    return %arg0, %c0_i32 : i32, i32
  }
}

</mosaic_0001>

<llo_original>
// kernel: tpu_custom_call.1
$region0: #{tpu_custom_call.1}
  #allocation0 [shape = 'u32[]', space=smem, size = 0x4, offset = 0x4, fixed_abs, tag = 'smem constant byte address 0x4 - core index']
  #allocation1 [shape = 'u32[144,128]{1,0:T(1,128)}', space=vmem, size = 0x12000, scoped, tag = 'internal scratch']
  #allocation2 [shape = 'f32[1,1]{1,0:T(1,128)S(1)}', space=vmem, size = 0x200, scoped, tag = 'scoped memory for tpu_custom_call.1']
  %s0 = inlined_call_operand.hbm [shape: f32[20,1024], index: 0, kind: input, shape index: {}]
  %s1 = inlined_call_operand.hbm [shape: f32[20,1024], index: 1, kind: input, shape index: {}]
  %s2 = inlined_call_operand.hbm [shape: bf16[1024,1024], index: 2, kind: input, shape index: {}]
  %s3 = inlined_call_operand.hbm [shape: bf16[1024,1024], index: 3, kind: input, shape index: {}]
  %s4 = inlined_call_operand.hbm [shape: f32[1,1024], index: 4, kind: input, shape index: {}]
  %s5 = inlined_call_operand.hbm [shape: bf16[1024,1024], index: 5, kind: input, shape index: {}]
  %s6 = inlined_call_operand.hbm [shape: f32[1,1024], index: 6, kind: input, shape index: {}]
  %s7 = inlined_call_operand.hbm [shape: f32[1,1024], index: 7, kind: input, shape index: {}]
  %s8 = inlined_call_operand.<no memory space> [shape: f32[1,1], index: 8, kind: input, shape index: {}]
  %s9 = inlined_call_operand.vmem [shape: f32[20,1], index: 9, kind: output, shape index: {}]
  %s10 = sld [smem:[#allocation0]]
  $region78: #{tpu_custom_call.1} parent=0
    _
  %s12 = ssub.s32 1, %s10
  %s13 = scalar_select 0, %s12, %s10
  %v14 = vstv %s8
  %15 = vst [vmem:[#allocation2] sm:$0x1] %v14
  $region1: #{tpu_custom_call.1} parent=0
    #allocation3 [shape = 'u8[98304]{0}', space=vmem, size = 0x18000, scoped, tag = 'input window, operand 0, single buffered']
    #allocation4 [shape = 's32[1]{0}', space=sflag, size = 0x4, scoped, tag = 'scoped memory for tpu_custom_call.1']
    #allocation5 [shape = 'u8[98304]{0}', space=vmem, size = 0x18000, scoped, tag = 'input window, operand 1, single buffered']
    #allocation6 [shape = 's32[1]{0}', space=sflag, size = 0x4, scoped, tag = 'scoped memory for tpu_custom_call.1']
    #allocation7 [shape = 'u8[2097152]{0}', space=vmem, size = 0x200000, scoped, tag = 'input window, operand 2, single buffered']
    #allocation8 [shape = 'u8[2097152]{0}', space=vmem, size = 0x200000, scoped, tag = 'input window, operand 3, single buffered']
    #allocation9 [shape = 's32[1]{0}', space=sflag, size = 0x4, scoped, tag = 'scoped memory for tpu_custom_call.1']
    #allocation10 [shape = 'u8[4096]{0}', space=vmem, size = 0x1000, scoped, tag = 'input window, operand 4, single buffered']
    #allocation11 [shape = 'u8[2097152]{0}', space=vmem, size = 0x200000, scoped, tag = 'input window, operand 5, single buffered']
    #allocation12 [shape = 's32[1]{0}', space=sflag, size = 0x4, scoped, tag = 'scoped memory for tpu_custom_call.1']
    #allocation13 [shape = 'u8[4096]{0}', space=vmem, size = 0x1000, scoped, tag = 'input window, operand 6, single buffered']
    #allocation14 [shape = 'u8[4096]{0}', space=vmem, size = 0x1000, scoped, tag = 'input window, operand 7, single buffered']
    #allocation15 [shape = 's32[1]{0}', space=sflag, size = 0x4, scoped, tag = 'scoped memory for tpu_custom_call.1']
    %16 = vsyncpa [#allocation4], 0
    %17 = vsyncpa [#allocation6], 0
    %18 = vsyncpa [#allocation9], 0
    %19 = vsyncpa [#allocation12], 0
    %20 = vsyncpa [#allocation15], 0
    // Predicated region
    $region2: #{tpu_custom_call.1} parent=1 // pred_check
      _
    $region3: #{tpu_custom_call.1} parent=1 // pred_check_branch
      %22 = sbr.rel (0) target = $region5
    $region4: #{tpu_custom_call.1} parent=1 // pred_region
      %s24 = ssub.s32 3072, 3072
      %25 = vsyncadd [#allocation4], %s24
      %s26 = sshll.u32 [#allocation3], 4
      %s27 = int_to_ptr.vmem [resolvable:$true] %s26
      %32 = dma.hbm_to_vmem [thread:$0]  %s0, 3072, %s27, [#allocation4], 1024, 1024, 64
    $region5: #{tpu_custom_call.1} parent=1 // pred_fallthru
      _
    // Predicated region
    $region6: #{tpu_custom_call.1} parent=1 // pred_check
      _
    $region7: #{tpu_custom_call.1} parent=1 // pred_check_branch
      %34 = sbr.rel (0) target = $region9
    $region8: #{tpu_custom_call.1} parent=1 // pred_region
      %s36 = ssub.s32 3072, 3072
      %37 = vsyncadd [#allocation6], %s36
      %s38 = sshll.u32 [#allocation5], 4
      %s39 = int_to_ptr.vmem [resolvable:$true] %s38
      %44 = dma.hbm_to_vmem [thread:$0]  %s1, 3072, %s39, [#allocation6], 1024, 1024, 64
    $region9: #{tpu_custom_call.1} parent=1 // pred_fallthru
      _
    // Predicated region
    $region10: #{tpu_custom_call.1} parent=1 // pred_check
      _
    $region11: #{tpu_custom_call.1} parent=1 // pred_check_branch
      %46 = sbr.rel (0) target = $region13
    $region12: #{tpu_custom_call.1} parent=1 // pred_region
      %s48 = ssub.s32 65536, 65536
      %49 = vsyncadd [#allocation6], %s48
      %s50 = sshll.u32 [#allocation7], 4
      %s51 = int_to_ptr.vmem [resolvable:$true] %s50
      %56 = dma.hbm_to_vmem [thread:$0]  %s2, 65536, %s51, [#allocation6], 512, 512, 32
    $region13: #{tpu_custom_call.1} parent=1 // pred_fallthru
      _
    // Predicated region
    $region14: #{tpu_custom_call.1} parent=1 // pred_check
      _
    $region15: #{tpu_custom_call.1} parent=1 // pred_check_branch
      %58 = sbr.rel (0) target = $region17
    $region16: #{tpu_custom_call.1} parent=1 // pred_region
      %s60 = ssub.s32 65536, 65536
      %61 = vsyncadd [#allocation9], %s60
      %s62 = sshll.u32 [#allocation8], 4
      %s63 = int_to_ptr.vmem [resolvable:$true] %s62
      %68 = dma.hbm_to_vmem [thread:$0]  %s3, 65536, %s63, [#allocation9], 512, 512, 32
    $region17: #{tpu_custom_call.1} parent=1 // pred_fallthru
      _
    // Predicated region
    $region18: #{tpu_custom_call.1} parent=1 // pred_check
      _
    $region19: #{tpu_custom_call.1} parent=1 // pred_check_branch
      %70 = sbr.rel (0) target = $region21
    $region20: #{tpu_custom_call.1} parent=1 // pred_region
      %s72 = ssub.s32 128, 128
      %73 = vsyncadd [#allocation9], %s72
      %s75 = sshll.u32 [#allocation10], 4
      %s76 = int_to_ptr.vmem [resolvable:$true] %s75
      %78 = dma.hbm_to_vmem [thread:$0]  %s4, 128, %s76, [#allocation9]
    $region21: #{tpu_custom_call.1} parent=1 // pred_fallthru
      _
    // Predicated region
    $region22: #{tpu_custom_call.1} parent=1 // pred_check
      _
    $region23: #{tpu_custom_call.1} parent=1 // pred_check_branch
      %80 = sbr.rel (0) target = $region25
    $region24: #{tpu_custom_call.1} parent=1 // pred_region
      %s82 = ssub.s32 65536, 65536
      %83 = vsyncadd [#allocation12], %s82
      %s84 = sshll.u32 [#allocation11], 4
      %s85 = int_to_ptr.vmem [resolvable:$true] %s84
      %90 = dma.hbm_to_vmem [thread:$0]  %s5, 65536, %s85, [#allocation12], 512, 512, 32
    $region25: #{tpu_custom_call.1} parent=1 // pred_fallthru
      _
    // Predicated region
    $region26: #{tpu_custom_call.1} parent=1 // pred_check
      _
    $region27: #{tpu_custom_call.1} parent=1 // pred_check_branch
      %92 = sbr.rel (0) target = $region29
    $region28: #{tpu_custom_call.1} parent=1 // pred_region
      %s94 = ssub.s32 128, 128
      %95 = vsyncadd [#allocation12], %s94
      %s97 = sshll.u32 [#allocation13], 4
      %s98 = int_to_ptr.vmem [resolvable:$true] %s97
      %100 = dma.hbm_to_vmem [thread:$0]  %s6, 128, %s98, [#allocation12]
    $region29: #{tpu_custom_call.1} parent=1 // pred_fallthru
      _
    // Predicated region
    $region30: #{tpu_custom_call.1} parent=1 // pred_check
      _
    $region31: #{tpu_custom_call.1} parent=1 // pred_check_branch
      %102 = sbr.rel (0) target = $region33
    $region32: #{tpu_custom_call.1} parent=1 // pred_region
      %s104 = ssub.s32 128, 128
      %105 = vsyncadd [#allocation15], %s104
      %s107 = sshll.u32 [#allocation14], 4
      %s108 = int_to_ptr.vmem [resolvable:$true] %s107
      %110 = dma.hbm_to_vmem [thread:$0]  %s7, 128, %s108, [#allocation15]
    $region33: #{tpu_custom_call.1} parent=1 // pred_fallthru
      _
    // Predicated region
    $region34: #{tpu_custom_call.1} parent=1 // pred_check
      _
    $region35: #{tpu_custom_call.1} parent=1 // pred_check_branch
      %112 = sbr.rel (0) target = $region37
    $region36: #{tpu_custom_call.1} parent=1 // pred_region
      _
    $region37: #{tpu_custom_call.1} parent=1 // pred_fallthru
      _
    // Predicated region
    $region38: #{tpu_custom_call.1} parent=1 // pred_check
      _
    $region39: #{tpu_custom_call.1} parent=1 // pred_check_branch
      %114 = sbr.rel (0) target = $region41
    $region40: #{tpu_custom_call.1} parent=1 // pred_region
      %115 = dma.done [#allocation4], 3072
    $region41: #{tpu_custom_call.1} parent=1 // pred_fallthru
      _
    // Predicated region
    $region42: #{tpu_custom_call.1} parent=1 // pred_check
      _
    $region43: #{tpu_custom_call.1} parent=1 // pred_check_branch
      %117 = sbr.rel (0) target = $region45
    $region44: #{tpu_custom_call.1} parent=1 // pred_region
      %118 = dma.done [#allocation6], 3072
    $region45: #{tpu_custom_call.1} parent=1 // pred_fallthru
      _
    // Predicated region
    $region46: #{tpu_custom_call.1} parent=1 // pred_check
      _
    $region47: #{tpu_custom_call.1} parent=1 // pred_check_branch
      %120 = sbr.rel (0) target = $region49
    $region48: #{tpu_custom_call.1} parent=1 // pred_region
      %121 = dma.done [#allocation6], 65536
    $region49: #{tpu_custom_call.1} parent=1 // pred_fallthru
      _
    // Predicated region
    $region50: #{tpu_custom_call.1} parent=1 // pred_check
      _
    $region51: #{tpu_custom_call.1} parent=1 // pred_check_branch
      %123 = sbr.rel (0) target = $region53
    $region52: #{tpu_custom_call.1} parent=1 // pred_region
      %124 = dma.done [#allocation9], 65536
    $region53: #{tpu_custom_call.1} parent=1 // pred_fallthru
      _
    // Predicated region
    $region54: #{tpu_custom_call.1} parent=1 // pred_check
      _
    $region55: #{tpu_custom_call.1} parent=1 // pred_check_branch
      %126 = sbr.rel (0) target = $region57
    $region56: #{tpu_custom_call.1} parent=1 // pred_region
      %127 = dma.done [#allocation9], 128
    $region57: #{tpu_custom_call.1} parent=1 // pred_fallthru
      _
    // Predicated region
    $region58: #{tpu_custom_call.1} parent=1 // pred_check
      _
    $region59: #{tpu_custom_call.1} parent=1 // pred_check_branch
      %129 = sbr.rel (0) target = $region61
    $region60: #{tpu_custom_call.1} parent=1 // pred_region
      %130 = dma.done [#allocation12], 65536
    $region61: #{tpu_custom_call.1} parent=1 // pred_fallthru
      _
    // Predicated region
    $region62: #{tpu_custom_call.1} parent=1 // pred_check
      _
    $region63: #{tpu_custom_call.1} parent=1 // pred_check_branch
      %132 = sbr.rel (0) target = $region65
    $region64: #{tpu_custom_call.1} parent=1 // pred_region
      %133 = dma.done [#allocation12], 128
    $region65: #{tpu_custom_call.1} parent=1 // pred_fallthru
      _
    // Predicated region
    $region66: #{tpu_custom_call.1} parent=1 // pred_check
      _
    $region67: #{tpu_custom_call.1} parent=1 // pred_check_branch
      %135 = sbr.rel (0) target = $region69
    $region68: #{tpu_custom_call.1} parent=1 // pred_region
      %136 = dma.done [#allocation15], 128
    $region69: #{tpu_custom_call.1} parent=1 // pred_fallthru
      _
    %v137 = vld [vmem:[#allocation3] sm:$0xff]
    %v138 = vld [vmem:[#allocation3 + $0x8] sm:$0xff]
    %v139 = vld [vmem:[#allocation3 + $0x10] sm:$0xff]
    %v140 = vld [vmem:[#allocation3 + $0x18] sm:$0xff]
    %v141 = vld [vmem:[#allocation3 + $0x20] sm:$0xff]
    %v142 = vld [vmem:[#allocation3 + $0x28] sm:$0xff]
    %v143 = vld [vmem:[#allocation3 + $0x30] sm:$0xff]
    %v144 = vld [vmem:[#allocation3 + $0x38] sm:$0xff]
    %v145 = vld [vmem:[#allocation3 + $0x40] sm:$0xff]
    %v146 = vld [vmem:[#allocation3 + $0x48] sm:$0xff]
    %v147 = vld [vmem:[#allocation3 + $0x50] sm:$0xff]
    %v148 = vld [vmem:[#allocation3 + $0x58] sm:$0xff]
    %v149 = vld [vmem:[#allocation3 + $0x60] sm:$0xff]
    %v150 = vld [vmem:[#allocation3 + $0x68] sm:$0xff]
    %v151 = vld [vmem:[#allocation3 + $0x70] sm:$0xff]
    %v152 = vld [vmem:[#allocation3 + $0x78] sm:$0xff]
    %v153 = vld [vmem:[#allocation3 + $0x80] sm:$0xff]
    %v154 = vld [vmem:[#allocation3 + $0x88] sm:$0xff]
    %v155 = vld [vmem:[#allocation3 + $0x90] sm:$0xff]
    %v156 = vld [vmem:[#allocation3 + $0x98] sm:$0xff]
    %v157 = vld [vmem:[#allocation3 + $0xa0] sm:$0xff]
    %v158 = vld [vmem:[#allocation3 + $0xa8] sm:$0xff]
    %v159 = vld [vmem:[#allocation3 + $0xb0] sm:$0xff]
    %v160 = vld [vmem:[#allocation3 + $0xb8] sm:$0xff]
    %v161 = vpack.c.bf16 %v145, %v137
    %v162 = vpack.c.bf16 %v146, %v138
    %v163 = vpack.c.bf16 %v147, %v139
    %v164 = vpack.c.bf16 %v148, %v140
    %v165 = vpack.c.bf16 %v149, %v141
    %v166 = vpack.c.bf16 %v150, %v142
    %v167 = vpack.c.bf16 %v151, %v143
    %v168 = vpack.c.bf16 %v152, %v144
    %v169 = vpack.c.bf16 %v153, %v153
    %v170 = vpack.c.bf16 %v154, %v154
    %v171 = vpack.c.bf16 %v155, %v155
    %v172 = vpack.c.bf16 %v156, %v156
    %v173 = vpack.c.bf16 %v157, %v157
    %v174 = vpack.c.bf16 %v158, %v158
    %v175 = vpack.c.bf16 %v159, %v159
    %v176 = vpack.c.bf16 %v160, %v160
    %v177 = vld [vmem:[#allocation5] sm:$0xff]
    %v178 = vld [vmem:[#allocation5 + $0x8] sm:$0xff]
    %v179 = vld [vmem:[#allocation5 + $0x10] sm:$0xff]
    %v180 = vld [vmem:[#allocation5 + $0x18] sm:$0xff]
    %v181 = vld [vmem:[#allocation5 + $0x20] sm:$0xff]
    %v182 = vld [vmem:[#allocation5 + $0x28] sm:$0xff]
    %v183 = vld [vmem:[#allocation5 + $0x30] sm:$0xff]
    %v184 = vld [vmem:[#allocation5 + $0x38] sm:$0xff]
    %v185 = vld [vmem:[#allocation5 + $0x40] sm:$0xff]
    %v186 = vld [vmem:[#allocation5 + $0x48] sm:$0xff]
    %v187 = vld [vmem:[#allocation5 + $0x50] sm:$0xff]
    %v188 = vld [vmem:[#allocation5 + $0x58] sm:$0xff]
    %v189 = vld [vmem:[#allocation5 + $0x60] sm:$0xff]
    %v190 = vld [vmem:[#allocation5 + $0x68] sm:$0xff]
    %v191 = vld [vmem:[#allocation5 + $0x70] sm:$0xff]
    %v192 = vld [vmem:[#allocation5 + $0x78] sm:$0xff]
    %v193 = vld [vmem:[#allocation5 + $0x80] sm:$0xff]
    %v194 = vld [vmem:[#allocation5 + $0x88] sm:$0xff]
    %v195 = vld [vmem:[#allocation5 + $0x90] sm:$0xff]
    %v196 = vld [vmem:[#allocation5 + $0x98] sm:$0xff]
    %v197 = vld [vmem:[#allocation5 + $0xa0] sm:$0xff]
    %v198 = vld [vmem:[#allocation5 + $0xa8] sm:$0xff]
    %v199 = vld [vmem:[#allocation5 + $0xb0] sm:$0xff]
    %v200 = vld [vmem:[#allocation5 + $0xb8] sm:$0xff]
    %v201 = vpack.c.bf16 %v185, %v177
    %v202 = vpack.c.bf16 %v186, %v178
    %v203 = vpack.c.bf16 %v187, %v179
    %v204 = vpack.c.bf16 %v188, %v180
    %v205 = vpack.c.bf16 %v189, %v181
    %v206 = vpack.c.bf16 %v190, %v182
    %v207 = vpack.c.bf16 %v191, %v183
    %v208 = vpack.c.bf16 %v192, %v184
    %v209 = vpack.c.bf16 %v193, %v193
    %v210 = vpack.c.bf16 %v194, %v194
    %v211 = vpack.c.bf16 %v195, %v195
    %v212 = vpack.c.bf16 %v196, %v196
    %v213 = vpack.c.bf16 %v197, %v197
    %v214 = vpack.c.bf16 %v198, %v198
    %v215 = vpack.c.bf16 %v199, %v199
    %v216 = vpack.c.bf16 %v200, %v200
    %v217 = vld [vmem:[#allocation7] sm:$0xff]
    %v218 = vld [vmem:[#allocation7 + $0x8] sm:$0xff]
    %v219 = vld [vmem:[#allocation7 + $0x10] sm:$0xff]
    %v220 = vld [vmem:[#allocation7 + $0x18] sm:$0xff]
    %v221 = vld [vmem:[#allocation7 + $0x20] sm:$0xff]
    %v222 = vld [vmem:[#allocation7 + $0x28] sm:$0xff]
    %v223 = vld [vmem:[#allocation7 + $0x30] sm:$0xff]
    %v224 = vld [vmem:[#allocation7 + $0x38] sm:$0xff]
    %v225 = vld [vmem:[#allocation7 + $0x40] sm:$0xff]
    %v226 = vld [vmem:[#allocation7 + $0x48] sm:$0xff]
    %v227 = vld [vmem:[#allocation7 + $0x50] sm:$0xff]
    %v228 = vld [vmem:[#allocation7 + $0x58] sm:$0xff]
    %v229 = vld [vmem:[#allocation7 + $0x60] sm:$0xff]
    %v230 = vld [vmem:[#allocation7 + $0x68] sm:$0xff]
    %v231 = vld [vmem:[#allocation7 + $0x70] sm:$0xff]
    %v232 = vld [vmem:[#allocation7 + $0x78] sm:$0xff]
    %v233 = vld [vmem:[#allocation7 + $0x80] sm:$0xff]
    %v234 = vld [vmem:[#allocation7 + $0x88] sm:$0xff]
    %v235 = vld [vmem:[#allocation7 + $0x90] sm:$0xff]
    %v236 = vld [vmem:[#allocation7 + $0x98] sm:$0xff]
    %v237 = vld [vmem:[#allocation7 + $0xa0] sm:$0xff]
    %v238 = vld [vmem:[#allocation7 + $0xa8] sm:$0xff]
    %v239 = vld [vmem:[#allocation7 + $0xb0] sm:$0xff]
    %v240 = vld [vmem:[#allocation7 + $0xb8] sm:$0xff]
    %v241 = vld [vmem:[#allocation7 + $0xc0] sm:$0xff]
    %v242 = vld [vmem:[#allocation7 + $0xc8] sm:$0xff]
    %v243 = vld [vmem:[#allocation7 + $0xd0] sm:$0xff]
    %v244 = vld [vmem:[#allocation7 + $0xd8] sm:$0xff]
    %v245 = vld [vmem:[#allocation7 + $0xe0] sm:$0xff]
    %v246 = vld [vmem:[#allocation7 + $0xe8] sm:$0xff]
    %v247 = vld [vmem:[#allocation7 + $0xf0] sm:$0xff]
    %v248 = vld [vmem:[#allocation7 + $0xf8] sm:$0xff]
    %v249 = vld [vmem:[#allocation7 + $0x100] sm:$0xff]
    %v250 = vld [vmem:[#allocation7 + $0x108] sm:$0xff]
    %v251 = vld [vmem:[#allocation7 + $0x110] sm:$0xff]
    %v252 = vld [vmem:[#allocation7 + $0x118] sm:$0xff]
    %v253 = vld [vmem:[#allocation7 + $0x120] sm:$0xff]
    %v254 = vld [vmem:[#allocation7 + $0x128] sm:$0xff]
    %v255 = vld [vmem:[#allocation7 + $0x130] sm:$0xff]
    %v256 = vld [vmem:[#allocation7 + $0x138] sm:$0xff]
    %v257 = vld [vmem:[#allocation7 + $0x140] sm:$0xff]
    %v258 = vld [vmem:[#allocation7 + $0x148] sm:$0xff]
    %v259 = vld [vmem:[#allocation7 + $0x150] sm:$0xff]
    %v260 = vld [vmem:[#allocation7 + $0x158] sm:$0xff]
    %v261 = vld [vmem:[#allocation7 + $0x160] sm:$0xff]
    %v262 = vld [vmem:[#allocation7 + $0x168] sm:$0xff]
    %v263 = vld [vmem:[#allocation7 + $0x170] sm:$0xff]
    %v264 = vld [vmem:[#allocation7 + $0x178] sm:$0xff]
    %v265 = vld [vmem:[#allocation7 + $0x180] sm:$0xff]
    %v266 = vld [vmem:[#allocation7 + $0x188] sm:$0xff]
    %v267 = vld [vmem:[#allocation7 + $0x190] sm:$0xff]
    %v268 = vld [vmem:[#allocation7 + $0x198] sm:$0xff]
    %v269 = vld [vmem:[#allocation7 + $0x1a0] sm:$0xff]
    %v270 = vld [vmem:[#allocation7 + $0x1a8] sm:$0xff]
    %v271 = vld [vmem:[#allocation7 + $0x1b0] sm:$0xff]
    %v272 = vld [vmem:[#allocation7 + $0x1b8] sm:$0xff]
    %v273 = vld [vmem:[#allocation7 + $0x1c0] sm:$0xff]
    %v274 = vld [vmem:[#allocation7 + $0x1c8] sm:$0xff]
    %v275 = vld [vmem:[#allocation7 + $0x1d0] sm:$0xff]
    %v276 = vld [vmem:[#allocation7 + $0x1d8] sm:$0xff]
    %v277 = vld [vmem:[#allocation7 + $0x1e0] sm:$0xff]
    %v278 = vld [vmem:[#allocation7 + $0x1e8] sm:$0xff]
    %v279 = vld [vmem:[#allocation7 + $0x1f0] sm:$0xff]
    %v280 = vld [vmem:[#allocation7 + $0x1f8] sm:$0xff]
    %v281 = vld [vmem:[#allocation7 + $0x200] sm:$0xff]
    %v282 = vld [vmem:[#allocation7 + $0x208] sm:$0xff]
    %v283 = vld [vmem:[#allocation7 + $0x210] sm:$0xff]
    %v284 = vld [vmem:[#allocation7 + $0x218] sm:$0xff]
    %v285 = vld [vmem:[#allocation7 + $0x220] sm:$0xff]
    %v286 = vld [vmem:[#allocation7 + $0x228] sm:$0xff]
    %v287 = vld [vmem:[#allocation7 + $0x230] sm:$0xff]
    %v288 = vld [vmem:[#allocation7 + $0x238] sm:$0xff]
    %v289 = vld [vmem:[#allocation7 + $0x240] sm:$0xff]
    %v290 = vld [vmem:[#allocation7 + $0x248] sm:$0xff]
    %v291 = vld [vmem:[#allocation7 + $0x250] sm:$0xff]
    %v292 = vld [vmem:[#allocation7 + $0x258] sm:$0xff]
    %v293 = vld [vmem:[#allocation7 + $0x260] sm:$0xff]
    %v294 = vld [vmem:[#allocation7 + $0x268] sm:$0xff]
    %v295 = vld [vmem:[#allocation7 + $0x270] sm:$0xff]
    %v296 = vld [vmem:[#allocation7 + $0x278] sm:$0xff]
    %v297 = vld [vmem:[#allocation7 + $0x280] sm:$0xff]
    %v298 = vld [vmem:[#allocation7 + $0x288] sm:$0xff]
    %v299 = vld [vmem:[#allocation7 + $0x290] sm:$0xff]
    %v300 = vld [vmem:[#allocation7 + $0x298] sm:$0xff]
    %v301 = vld [vmem:[#allocation7 + $0x2a0] sm:$0xff]
    %v302 = vld [vmem:[#allocation7 + $0x2a8] sm:$0xff]
    %v303 = vld [vmem:[#allocation7 + $0x2b0] sm:$0xff]
    %v304 = vld [vmem:[#allocation7 + $0x2b8] sm:$0xff]
    %v305 = vld [vmem:[#allocation7 + $0x2c0] sm:$0xff]
    %v306 = vld [vmem:[#allocation7 + $0x2c8] sm:$0xff]
    %v307 = vld [vmem:[#allocation7 + $0x2d0] sm:$0xff]
    %v308 = vld [vmem:[#allocation7 + $0x2d8] sm:$0xff]
    %v309 = vld [vmem:[#allocation7 + $0x2e0] sm:$0xff]
    %v310 = vld [vmem:[#allocation7 + $0x2e8] sm:$0xff]
    %v311 = vld [vmem:[#allocation7 + $0x2f0] sm:$0xff]
    %v312 = vld [vmem:[#allocation7 + $0x2f8] sm:$0xff]
    %v313 = vld [vmem:[#allocation7 + $0x300] sm:$0xff]
    %v314 = vld [vmem:[#allocation7 + $0x308] sm:$0xff]
    %v315 = vld [vmem:[#allocation7 + $0x310] sm:$0xff]
    %v316 = vld [vmem:[#allocation7 + $0x318] sm:$0xff]
    %v317 = vld [vmem:[#allocation7 + $0x320] sm:$0xff]
    %v318 = vld [vmem:[#allocation7 + $0x328] sm:$0xff]
    %v319 = vld [vmem:[#allocation7 + $0x330] sm:$0xff]
    %v320 = vld [vmem:[#allocation7 + $0x338] sm:$0xff]
    %v321 = vld [vmem:[#allocation7 + $0x340] sm:$0xff]
    %v322 = vld [vmem:[#allocation7 + $0x348] sm:$0xff]
    %v323 = vld [vmem:[#allocation7 + $0x350] sm:$0xff]
    %v324 = vld [vmem:[#allocation7 + $0x358] sm:$0xff]
    %v325 = vld [vmem:[#allocation7 + $0x360] sm:$0xff]
    %v326 = vld [vmem:[#allocation7 + $0x368] sm:$0xff]
    %v327 = vld [vmem:[#allocation7 + $0x370] sm:$0xff]
    %v328 = vld [vmem:[#allocation7 + $0x378] sm:$0xff]
    %v329 = vld [vmem:[#allocation7 + $0x380] sm:$0xff]
    %v330 = vld [vmem:[#allocation7 + $0x388] sm:$0xff]
    %v331 = vld [vmem:[#allocation7 + $0x390] sm:$0xff]
    %v332 = vld [vmem:[#allocation7 + $0x398] sm:$0xff]
    %v333 = vld [vmem:[#allocation7 + $0x3a0] sm:$0xff]
    %v334 = vld [vmem:[#allocation7 + $0x3a8] sm:$0xff]
    %v335 = vld [vmem:[#allocation7 + $0x3b0] sm:$0xff]
    %v336 = vld [vmem:[#allocation7 + $0x3b8] sm:$0xff]
    %v337 = vld [vmem:[#allocation7 + $0x3c0] sm:$0xff]
    %v338 = vld [vmem:[#allocation7 + $0x3c8] sm:$0xff]
    %v339 = vld [vmem:[#allocation7 + $0x3d0] sm:$0xff]
    %v340 = vld [vmem:[#allocation7 + $0x3d8] sm:$0xff]
    %v341 = vld [vmem:[#allocation7 + $0x3e0] sm:$0xff]
    %v342 = vld [vmem:[#allocation7 + $0x3e8] sm:$0xff]
    %v343 = vld [vmem:[#allocation7 + $0x3f0] sm:$0xff]
    %v344 = vld [vmem:[#allocation7 + $0x3f8] sm:$0xff]
    %v345 = vld [vmem:[#allocation7 + $0x400] sm:$0xff]
    %v346 = vld [vmem:[#allocation7 + $0x408] sm:$0xff]
    %v347 = vld [vmem:[#allocation7 + $0x410] sm:$0xff]
    %v348 = vld [vmem:[#allocation7 + $0x418] sm:$0xff]
    %v349 = vld [vmem:[#allocation7 + $0x420] sm:$0xff]
    %v350 = vld [vmem:[#allocation7 + $0x428] sm:$0xff]
    %v351 = vld [vmem:[#allocation7 + $0x430] sm:$0xff]
    %v352 = vld [vmem:[#allocation7 + $0x438] sm:$0xff]
    %v353 = vld [vmem:[#allocation7 + $0x440] sm:$0xff]
    %v354 = vld [vmem:[#allocation7 + $0x448] sm:$0xff]
    %v355 = vld [vmem:[#allocation7 + $0x450] sm:$0xff]
    %v356 = vld [vmem:[#allocation7 + $0x458] sm:$0xff]
    %v357 = vld [vmem:[#allocation7 + $0x460] sm:$0xff]
    %v358 = vld [vmem:[#allocation7 + $0x468] sm:$0xff]
    %v359 = vld [vmem:[#allocation7 + $0x470] sm:$0xff]
    %v360 = vld [vmem:[#allocation7 + $0x478] sm:$0xff]
    %v361 = vld [vmem:[#allocation7 + $0x480] sm:$0xff]
    %v362 = vld [vmem:[#allocation7 + $0x488] sm:$0xff]
    %v363 = vld [vmem:[#allocation7 + $0x490] sm:$0xff]
    %v364 = vld [vmem:[#allocation7 + $0x498] sm:$0xff]
    %v365 = vld [vmem:[#allocation7 + $0x4a0] sm:$0xff]
    %v366 = vld [vmem:[#allocation7 + $0x4a8] sm:$0xff]
    %v367 = vld [vmem:[#allocation7 + $0x4b0] sm:$0xff]
    %v368 = vld [vmem:[#allocation7 + $0x4b8] sm:$0xff]
    %v369 = vld [vmem:[#allocation7 + $0x4c0] sm:$0xff]
    %v370 = vld [vmem:[#allocation7 + $0x4c8] sm:$0xff]
    %v371 = vld [vmem:[#allocation7 + $0x4d0] sm:$0xff]
    %v372 = vld [vmem:[#allocation7 + $0x4d8] sm:$0xff]
    %v373 = vld [vmem:[#allocation7 + $0x4e0] sm:$0xff]
    %v374 = vld [vmem:[#allocation7 + $0x4e8] sm:$0xff]
    %v375 = vld [vmem:[#allocation7 + $0x4f0] sm:$0xff]
    %v376 = vld [vmem:[#allocation7 + $0x4f8] sm:$0xff]
    %v377 = vld [vmem:[#allocation7 + $0x500] sm:$0xff]
    %v378 = vld [vmem:[#allocation7 + $0x508] sm:$0xff]
    %v379 = vld [vmem:[#allocation7 + $0x510] sm:$0xff]
    %v380 = vld [vmem:[#allocation7 + $0x518] sm:$0xff]
    %v381 = vld [vmem:[#allocation7 + $0x520] sm:$0xff]
    %v382 = vld [vmem:[#allocation7 + $0x528] sm:$0xff]
    %v383 = vld [vmem:[#allocation7 + $0x530] sm:$0xff]
    %v384 = vld [vmem:[#allocation7 + $0x538] sm:$0xff]
    %v385 = vld [vmem:[#allocation7 + $0x540] sm:$0xff]
    %v386 = vld [vmem:[#allocation7 + $0x548] sm:$0xff]
    %v387 = vld [vmem:[#allocation7 + $0x550] sm:$0xff]
    %v388 = vld [vmem:[#allocation7 + $0x558] sm:$0xff]
    %v389 = vld [vmem:[#allocation7 + $0x560] sm:$0xff]
    %v390 = vld [vmem:[#allocation7 + $0x568] sm:$0xff]
    %v391 = vld [vmem:[#allocation7 + $0x570] sm:$0xff]
    %v392 = vld [vmem:[#allocation7 + $0x578] sm:$0xff]
    %v393 = vld [vmem:[#allocation7 + $0x580] sm:$0xff]
    %v394 = vld [vmem:[#allocation7 + $0x588] sm:$0xff]
    %v395 = vld [vmem:[#allocation7 + $0x590] sm:$0xff]
    %v396 = vld [vmem:[#allocation7 + $0x598] sm:$0xff]
    %v397 = vld [vmem:[#allocation7 + $0x5a0] sm:$0xff]
    %v398 = vld [vmem:[#allocation7 + $0x5a8] sm:$0xff]
    %v399 = vld [vmem:[#allocation7 + $0x5b0] sm:$0xff]
    %v400 = vld [vmem:[#allocation7 + $0x5b8] sm:$0xff]
    %v401 = vld [vmem:[#allocation7 + $0x5c0] sm:$0xff]
    %v402 = vld [vmem:[#allocation7 + $0x5c8] sm:$0xff]
    %v403 = vld [vmem:[#allocation7 + $0x5d0] sm:$0xff]
    %v404 = vld [vmem:[#allocation7 + $0x5d8] sm:$0xff]
    %v405 = vld [vmem:[#allocation7 + $0x5e0] sm:$0xff]
    %v406 = vld [vmem:[#allocation7 + $0x5e8] sm:$0xff]
    %v407 = vld [vmem:[#allocation7 + $0x5f0] sm:$0xff]
    %v408 = vld [vmem:[#allocation7 + $0x5f8] sm:$0xff]
    %v409 = vld [vmem:[#allocation7 + $0x600] sm:$0xff]
    %v410 = vld [vmem:[#allocation7 + $0x608] sm:$0xff]
    %v411 = vld [vmem:[#allocation7 + $0x610] sm:$0xff]
    %v412 = vld [vmem:[#allocation7 + $0x618] sm:$0xff]
    %v413 = vld [vmem:[#allocation7 + $0x620] sm:$0xff]
    %v414 = vld [vmem:[#allocation7 + $0x628] sm:$0xff]
    %v415 = vld [vmem:[#allocation7 + $0x630] sm:$0xff]
    %v416 = vld [vmem:[#allocation7 + $0x638] sm:$0xff]
    %v417 = vld [vmem:[#allocation7 + $0x640] sm:$0xff]
    %v418 = vld [vmem:[#allocation7 + $0x648] sm:$0xff]
    %v419 = vld [vmem:[#allocation7 + $0x650] sm:$0xff]
    %v420 = vld [vmem:[#allocation7 + $0x658] sm:$0xff]
    %v421 = vld [vmem:[#allocation7 + $0x660] sm:$0xff]
    %v422 = vld [vmem:[#allocation7 + $0x668] sm:$0xff]
    %v423 = vld [vmem:[#allocation7 + $0x670] sm:$0xff]
    %v424 = vld [vmem:[#allocation7 + $0x678] sm:$0xff]
    %v425 = vld [vmem:[#allocation7 + $0x680] sm:$0xff]
    %v426 = vld [vmem:[#allocation7 + $0x688] sm:$0xff]
    %v427 = vld [vmem:[#allocation7 + $0x690] sm:$0xff]
    %v428 = vld [vmem:[#allocation7 + $0x698] sm:$0xff]
    %v429 = vld [vmem:[#allocation7 + $0x6a0] sm:$0xff]
    %v430 = vld [vmem:[#allocation7 + $0x6a8] sm:$0xff]
    %v431 = vld [vmem:[#allocation7 + $0x6b0] sm:$0xff]
    %v432 = vld [vmem:[#allocation7 + $0x6b8] sm:$0xff]
    %v433 = vld [vmem:[#allocation7 + $0x6c0] sm:$0xff]
    %v434 = vld [vmem:[#allocation7 + $0x6c8] sm:$0xff]
    %v435 = vld [vmem:[#allocation7 + $0x6d0] sm:$0xff]
    %v436 = vld [vmem:[#allocation7 + $0x6d8] sm:$0xff]
    %v437 = vld [vmem:[#allocation7 + $0x6e0] sm:$0xff]
    %v438 = vld [vmem:[#allocation7 + $0x6e8] sm:$0xff]
    %v439 = vld [vmem:[#allocation7 + $0x6f0] sm:$0xff]
    %v440 = vld [vmem:[#allocation7 + $0x6f8] sm:$0xff]
    %v441 = vld [vmem:[#allocation7 + $0x700] sm:$0xff]
    %v442 = vld [vmem:[#allocation7 + $0x708] sm:$0xff]
    %v443 = vld [vmem:[#allocation7 + $0x710] sm:$0xff]
    %v444 = vld [vmem:[#allocation7 + $0x718] sm:$0xff]
    %v445 = vld [vmem:[#allocation7 + $0x720] sm:$0xff]
    %v446 = vld [vmem:[#allocation7 + $0x728] sm:$0xff]
    %v447 = vld [vmem:[#allocation7 + $0x730] sm:$0xff]
    %v448 = vld [vmem:[#allocation7 + $0x738] sm:$0xff]
    %v449 = vld [vmem:[#allocation7 + $0x740] sm:$0xff]
    %v450 = vld [vmem:[#allocation7 + $0x748] sm:$0xff]
    %v451 = vld [vmem:[#allocation7 + $0x750] sm:$0xff]
    %v452 = vld [vmem:[#allocation7 + $0x758] sm:$0xff]
    %v453 = vld [vmem:[#allocation7 + $0x760] sm:$0xff]
    %v454 = vld [vmem:[#allocation7 + $0x768] sm:$0xff]
    %v455 = vld [vmem:[#allocation7 + $0x770] sm:$0xff]
    %v456 = vld [vmem:[#allocation7 + $0x778] sm:$0xff]
    %v457 = vld [vmem:[#allocation7 + $0x780] sm:$0xff]
    %v458 = vld [vmem:[#allocation7 + $0x788] sm:$0xff]
    %v459 = vld [vmem:[#allocation7 + $0x790] sm:$0xff]
    %v460 = vld [vmem:[#allocation7 + $0x798] sm:$0xff]
    %v461 = vld [vmem:[#allocation7 + $0x7a0] sm:$0xff]
    %v462 = vld [vmem:[#allocation7 + $0x7a8] sm:$0xff]
    %v463 = vld [vmem:[#allocation7 + $0x7b0] sm:$0xff]
    %v464 = vld [vmem:[#allocation7 + $0x7b8] sm:$0xff]
    %v465 = vld [vmem:[#allocation7 + $0x7c0] sm:$0xff]
    %v466 = vld [vmem:[#allocation7 + $0x7c8] sm:$0xff]
    %v467 = vld [vmem:[#allocation7 + $0x7d0] sm:$0xff]
    %v468 = vld [vmem:[#allocation7 + $0x7d8] sm:$0xff]
    %v469 = vld [vmem:[#allocation7 + $0x7e0] sm:$0xff]
    %v470 = vld [vmem:[#allocation7 + $0x7e8] sm:$0xff]
    %v471 = vld [vmem:[#allocation7 + $0x7f0] sm:$0xff]
    %v472 = vld [vmem:[#allocation7 + $0x7f8] sm:$0xff]
    %v473 = vld [vmem:[#allocation7 + $0x800] sm:$0xff]
    %v474 = vld [vmem:[#allocation7 + $0x808] sm:$0xff]
    %v475 = vld [vmem:[#allocation7 + $0x810] sm:$0xff]
    %v476 = vld [vmem:[#allocation7 + $0x818] sm:$0xff]
    %v477 = vld [vmem:[#allocation7 + $0x820] sm:$0xff]
    %v478 = vld [vmem:[#allocation7 + $0x828] sm:$0xff]
    %v479 = vld [vmem:[#allocation7 + $0x830] sm:$0xff]
    %v480 = vld [vmem:[#allocation7 + $0x838] sm:$0xff]
    %v481 = vld [vmem:[#allocation7 + $0x840] sm:$0xff]
    %v482 = vld [vmem:[#allocation7 + $0x848] sm:$0xff]
    %v483 = vld [vmem:[#allocation7 + $0x850] sm:$0xff]
    %v484 = vld [vmem:[#allocation7 + $0x858] sm:$0xff]
    %v485 = vld [vmem:[#allocation7 + $0x860] sm:$0xff]
    %v486 = vld [vmem:[#allocation7 + $0x868] sm:$0xff]
    %v487 = vld [vmem:[#allocation7 + $0x870] sm:$0xff]
    %v488 = vld [vmem:[#allocation7 + $0x878] sm:$0xff]
    %v489 = vld [vmem:[#allocation7 + $0x880] sm:$0xff]
    %v490 = vld [vmem:[#allocation7 + $0x888] sm:$0xff]
    %v491 = vld [vmem:[#allocation7 + $0x890] sm:$0xff]
    %v492 = vld [vmem:[#allocation7 + $0x898] sm:$0xff]
    %v493 = vld [vmem:[#allocation7 + $0x8a0] sm:$0xff]
    %v494 = vld [vmem:[#allocation7 + $0x8a8] sm:$0xff]
    %v495 = vld [vmem:[#allocation7 + $0x8b0] sm:$0xff]
    %v496 = vld [vmem:[#allocation7 + $0x8b8] sm:$0xff]
    %v497 = vld [vmem:[#allocation7 + $0x8c0] sm:$0xff]
    %v498 = vld [vmem:[#allocation7 + $0x8c8] sm:$0xff]
    %v499 = vld [vmem:[#allocation7 + $0x8d0] sm:$0xff]
    %v500 = vld [vmem:[#allocation7 + $0x8d8] sm:$0xff]
    %v501 = vld [vmem:[#allocation7 + $0x8e0] sm:$0xff]
    %v502 = vld [vmem:[#allocation7 + $0x8e8] sm:$0xff]
    %v503 = vld [vmem:[#allocation7 + $0x8f0] sm:$0xff]
    %v504 = vld [vmem:[#allocation7 + $0x8f8] sm:$0xff]
    %v505 = vld [vmem:[#allocation7 + $0x900] sm:$0xff]
    %v506 = vld [vmem:[#allocation7 + $0x908] sm:$0xff]
    %v507 = vld [vmem:[#allocation7 + $0x910] sm:$0xff]
    %v508 = vld [vmem:[#allocation7 + $0x918] sm:$0xff]
    %v509 = vld [vmem:[#allocation7 + $0x920] sm:$0xff]
    %v510 = vld [vmem:[#allocation7 + $0x928] sm:$0xff]
    %v511 = vld [vmem:[#allocation7 + $0x930] sm:$0xff]
    %v512 = vld [vmem:[#allocation7 + $0x938] sm:$0xff]
    %v513 = vld [vmem:[#allocation7 + $0x940] sm:$0xff]
    %v514 = vld [vmem:[#allocation7 + $0x948] sm:$0xff]
    %v515 = vld [vmem:[#allocation7 + $0x950] sm:$0xff]
    %v516 = vld [vmem:[#allocation7 + $0x958] sm:$0xff]
    %v517 = vld [vmem:[#allocation7 + $0x960] sm:$0xff]
    %v518 = vld [vmem:[#allocation7 + $0x968] sm:$0xff]
    %v519 = vld [vmem:[#allocation7 + $0x970] sm:$0xff]
    %v520 = vld [vmem:[#allocation7 + $0x978] sm:$0xff]
    %v521 = vld [vmem:[#allocation7 + $0x980] sm:$0xff]
    %v522 = vld [vmem:[#allocation7 + $0x988] sm:$0xff]
    %v523 = vld [vmem:[#allocation7 + $0x990] sm:$0xff]
    %v524 = vld [vmem:[#allocation7 + $0x998] sm:$0xff]
    %v525 = vld [vmem:[#allocation7 + $0x9a0] sm:$0xff]
    %v526 = vld [vmem:[#allocation7 + $0x9a8] sm:$0xff]
    %v527 = vld [vmem:[#allocation7 + $0x9b0] sm:$0xff]
    %v528 = vld [vmem:[#allocation7 + $0x9b8] sm:$0xff]
    %v529 = vld [vmem:[#allocation7 + $0x9c0] sm:$0xff]
    %v530 = vld [vmem:[#allocation7 + $0x9c8] sm:$0xff]
    %v531 = vld [vmem:[#allocation7 + $0x9d0] sm:$0xff]
    %v532 = vld [vmem:[#allocation7 + $0x9d8] sm:$0xff]
    %v533 = vld [vmem:[#allocation7 + $0x9e0] sm:$0xff]
    %v534 = vld [vmem:[#allocation7 + $0x9e8] sm:$0xff]
    %v535 = vld [vmem:[#allocation7 + $0x9f0] sm:$0xff]
    %v536 = vld [vmem:[#allocation7 + $0x9f8] sm:$0xff]
    %v537 = vld [vmem:[#allocation7 + $0xa00] sm:$0xff]
    %v538 = vld [vmem:[#allocation7 + $0xa08] sm:$0xff]
    %v539 = vld [vmem:[#allocation7 + $0xa10] sm:$0xff]
    %v540 = vld [vmem:[#allocation7 + $0xa18] sm:$0xff]
    %v541 = vld [vmem:[#allocation7 + $0xa20] sm:$0xff]
    %v542 = vld [vmem:[#allocation7 + $0xa28] sm:$0xff]
    %v543 = vld [vmem:[#allocation7 + $0xa30] sm:$0xff]
    %v544 = vld [vmem:[#allocation7 + $0xa38] sm:$0xff]
    %v545 = vld [vmem:[#allocation7 + $0xa40] sm:$0xff]
    %v546 = vld [vmem:[#allocation7 + $0xa48] sm:$0xff]
    %v547 = vld [vmem:[#allocation7 + $0xa50] sm:$0xff]
    %v548 = vld [vmem:[#allocation7 + $0xa58] sm:$0xff]
    %v549 = vld [vmem:[#allocation7 + $0xa60] sm:$0xff]
    %v550 = vld [vmem:[#allocation7 + $0xa68] sm:$0xff]
    %v551 = vld [vmem:[#allocation7 + $0xa70] sm:$0xff]
    %v552 = vld [vmem:[#allocation7 + $0xa78] sm:$0xff]
    %v553 = vld [vmem:[#allocation7 + $0xa80] sm:$0xff]
    %v554 = vld [vmem:[#allocation7 + $0xa88] sm:$0xff]
    %v555 = vld [vmem:[#allocation7 + $0xa90] sm:$0xff]
    %v556 = vld [vmem:[#allocation7 + $0xa98] sm:$0xff]
    %v557 = vld [vmem:[#allocation7 + $0xaa0] sm:$0xff]
    %v558 = vld [vmem:[#allocation7 + $0xaa8] sm:$0xff]
    %v559 = vld [vmem:[#allocation7 + $0xab0] sm:$0xff]
    %v560 = vld [vmem:[#allocation7 + $0xab8] sm:$0xff]
    %v561 = vld [vmem:[#allocation7 + $0xac0] sm:$0xff]
    %v562 = vld [vmem:[#allocation7 + $0xac8] sm:$0xff]
    %v563 = vld [vmem:[#allocation7 + $0xad0] sm:$0xff]
    %v564 = vld [vmem:[#allocation7 + $0xad8] sm:$0xff]
    %v565 = vld [vmem:[#allocation7 + $0xae0] sm:$0xff]
    %v566 = vld [vmem:[#allocation7 + $0xae8] sm:$0xff]
    %v567 = vld [vmem:[#allocation7 + $0xaf0] sm:$0xff]
    %v568 = vld [vmem:[#allocation7 + $0xaf8] sm:$0xff]
    %v569 = vld [vmem:[#allocation7 + $0xb00] sm:$0xff]
    %v570 = vld [vmem:[#allocation7 + $0xb08] sm:$0xff]
    %v571 = vld [vmem:[#allocation7 + $0xb10] sm:$0xff]
    %v572 = vld [vmem:[#allocation7 + $0xb18] sm:$0xff]
    %v573 = vld [vmem:[#allocation7 + $0xb20] sm:$0xff]
    %v574 = vld [vmem:[#allocation7 + $0xb28] sm:$0xff]
    %v575 = vld [vmem:[#allocation7 + $0xb30] sm:$0xff]
    %v576 = vld [vmem:[#allocation7 + $0xb38] sm:$0xff]
    %v577 = vld [vmem:[#allocation7 + $0xb40] sm:$0xff]
    %v578 = vld [vmem:[#allocation7 + $0xb48] sm:$0xff]
    %v579 = vld [vmem:[#allocation7 + $0xb50] sm:$0xff]
    %v580 = vld [vmem:[#allocation7 + $0xb58] sm:$0xff]
    %v581 = vld [vmem:[#allocation7 + $0xb60] sm:$0xff]
    %v582 = vld [vmem:[#allocation7 + $0xb68] sm:$0xff]
    %v583 = vld [vmem:[#allocation7 + $0xb70] sm:$0xff]
    %v584 = vld [vmem:[#allocation7 + $0xb78] sm:$0xff]
    %v585 = vld [vmem:[#allocation7 + $0xb80] sm:$0xff]
    %v586 = vld [vmem:[#allocation7 + $0xb88] sm:$0xff]
    %v587 = vld [vmem:[#allocation7 + $0xb90] sm:$0xff]
    %v588 = vld [vmem:[#allocation7 + $0xb98] sm:$0xff]
    %v589 = vld [vmem:[#allocation7 + $0xba0] sm:$0xff]
    %v590 = vld [vmem:[#allocation7 + $0xba8] sm:$0xff]
    %v591 = vld [vmem:[#allocation7 + $0xbb0] sm:$0xff]
    %v592 = vld [vmem:[#allocation7 + $0xbb8] sm:$0xff]
    %v593 = vld [vmem:[#allocation7 + $0xbc0] sm:$0xff]
    %v594 = vld [vmem:[#allocation7 + $0xbc8] sm:$0xff]
    %v595 = vld [vmem:[#allocation7 + $0xbd0] sm:$0xff]
    %v596 = vld [vmem:[#allocation7 + $0xbd8] sm:$0xff]
    %v597 = vld [vmem:[#allocation7 + $0xbe0] sm:$0xff]
    %v598 = vld [vmem:[#allocation7 + $0xbe8] sm:$0xff]
    %v599 = vld [vmem:[#allocation7 + $0xbf0] sm:$0xff]
    %v600 = vld [vmem:[#allocation7 + $0xbf8] sm:$0xff]
    %v601 = vld [vmem:[#allocation7 + $0xc00] sm:$0xff]
    %v602 = vld [vmem:[#allocation7 + $0xc08] sm:$0xff]
    %v603 = vld [vmem:[#allocation7 + $0xc10] sm:$0xff]
    %v604 = vld [vmem:[#allocation7 + $0xc18] sm:$0xff]
    %v605 = vld [vmem:[#allocation7 + $0xc20] sm:$0xff]
    %v606 = vld [vmem:[#allocation7 + $0xc28] sm:$0xff]
    %v607 = vld [vmem:[#allocation7 + $0xc30] sm:$0xff]
    %v608 = vld [vmem:[#allocation7 + $0xc38] sm:$0xff]
    %v609 = vld [vmem:[#allocation7 + $0xc40] sm:$0xff]
    %v610 = vld [vmem:[#allocation7 + $0xc48] sm:$0xff]
    %v611 = vld [vmem:[#allocation7 + $0xc50] sm:$0xff]
    %v612 = vld [vmem:[#allocation7 + $0xc58] sm:$0xff]
    %v613 = vld [vmem:[#allocation7 + $0xc60] sm:$0xff]
    %v614 = vld [vmem:[#allocation7 + $0xc68] sm:$0xff]
    %v615 = vld [vmem:[#allocation7 + $0xc70] sm:$0xff]
    %v616 = vld [vmem:[#allocation7 + $0xc78] sm:$0xff]
    %v617 = vld [vmem:[#allocation7 + $0xc80] sm:$0xff]
    %v618 = vld [vmem:[#allocation7 + $0xc88] sm:$0xff]
    %v619 = vld [vmem:[#allocation7 + $0xc90] sm:$0xff]
    %v620 = vld [vmem:[#allocation7 + $0xc98] sm:$0xff]
    %v621 = vld [vmem:[#allocation7 + $0xca0] sm:$0xff]
    %v622 = vld [vmem:[#allocation7 + $0xca8] sm:$0xff]
    %v623 = vld [vmem:[#allocation7 + $0xcb0] sm:$0xff]
    %v624 = vld [vmem:[#allocation7 + $0xcb8] sm:$0xff]
    %v625 = vld [vmem:[#allocation7 + $0xcc0] sm:$0xff]
    %v626 = vld [vmem:[#allocation7 + $0xcc8] sm:$0xff]
    %v627 = vld [vmem:[#allocation7 + $0xcd0] sm:$0xff]
    %v628 = vld [vmem:[#allocation7 + $0xcd8] sm:$0xff]
    %v629 = vld [vmem:[#allocation7 + $0xce0] sm:$0xff]
    %v630 = vld [vmem:[#allocation7 + $0xce8] sm:$0xff]
    %v631 = vld [vmem:[#allocation7 + $0xcf0] sm:$0xff]
    %v632 = vld [vmem:[#allocation7 + $0xcf8] sm:$0xff]
    %v633 = vld [vmem:[#allocation7 + $0xd00] sm:$0xff]
    %v634 = vld [vmem:[#allocation7 + $0xd08] sm:$0xff]
    %v635 = vld [vmem:[#allocation7 + $0xd10] sm:$0xff]
    %v636 = vld [vmem:[#allocation7 + $0xd18] sm:$0xff]
    %v637 = vld [vmem:[#allocation7 + $0xd20] sm:$0xff]
    %v638 = vld [vmem:[#allocation7 + $0xd28] sm:$0xff]
    %v639 = vld [vmem:[#allocation7 + $0xd30] sm:$0xff]
    %v640 = vld [vmem:[#allocation7 + $0xd38] sm:$0xff]
    %v641 = vld [vmem:[#allocation7 + $0xd40] sm:$0xff]
    %v642 = vld [vmem:[#allocation7 + $0xd48] sm:$0xff]
    %v643 = vld [vmem:[#allocation7 + $0xd50] sm:$0xff]
    %v644 = vld [vmem:[#allocation7 + $0xd58] sm:$0xff]
    %v645 = vld [vmem:[#allocation7 + $0xd60] sm:$0xff]
    %v646 = vld [vmem:[#allocation7 + $0xd68] sm:$0xff]
    %v647 = vld [vmem:[#allocation7 + $0xd70] sm:$0xff]
    %v648 = vld [vmem:[#allocation7 + $0xd78] sm:$0xff]
    %v649 = vld [vmem:[#allocation7 + $0xd80] sm:$0xff]
    %v650 = vld [vmem:[#allocation7 + $0xd88] sm:$0xff]
    %v651 = vld [vmem:[#allocation7 + $0xd90] sm:$0xff]
    %v652 = vld [vmem:[#allocation7 + $0xd98] sm:$0xff]
    %v653 = vld [vmem:[#allocation7 + $0xda0] sm:$0xff]
    %v654 = vld [vmem:[#allocation7 + $0xda8] sm:$0xff]
    %v655 = vld [vmem:[#allocation7 + $0xdb0] sm:$0xff]
    %v656 = vld [vmem:[#allocation7 + $0xdb8] sm:$0xff]
    %v657 = vld [vmem:[#allocation7 + $0xdc0] sm:$0xff]
    %v658 = vld [vmem:[#allocation7 + $0xdc8] sm:$0xff]
    %v659 = vld [vmem:[#allocation7 + $0xdd0] sm:$0xff]
    %v660 = vld [vmem:[#allocation7 + $0xdd8] sm:$0xff]
    %v661 = vld [vmem:[#allocation7 + $0xde0] sm:$0xff]
    %v662 = vld [vmem:[#allocation7 + $0xde8] sm:$0xff]
    %v663 = vld [vmem:[#allocation7 + $0xdf0] sm:$0xff]
    %v664 = vld [vmem:[#allocation7 + $0xdf8] sm:$0xff]
    %v665 = vld [vmem:[#allocation7 + $0xe00] sm:$0xff]
    %v666 = vld [vmem:[#allocation7 + $0xe08] sm:$0xff]
    %v667 = vld [vmem:[#allocation7 + $0xe10] sm:$0xff]
    %v668 = vld [vmem:[#allocation7 + $0xe18] sm:$0xff]
    %v669 = vld [vmem:[#allocation7 + $0xe20] sm:$0xff]
    %v670 = vld [vmem:[#allocation7 + $0xe28] sm:$0xff]
    %v671 = vld [vmem:[#allocation7 + $0xe30] sm:$0xff]
    %v672 = vld [vmem:[#allocation7 + $0xe38] sm:$0xff]
    %v673 = vld [vmem:[#allocation7 + $0xe40] sm:$0xff]
    %v674 = vld [vmem:[#allocation7 + $0xe48] sm:$0xff]
    %v675 = vld [vmem:[#allocation7 + $0xe50] sm:$0xff]
    %v676 = vld [vmem:[#allocation7 + $0xe58] sm:$0xff]
    %v677 = vld [vmem:[#allocation7 + $0xe60] sm:$0xff]
    %v678 = vld [vmem:[#allocation7 + $0xe68] sm:$0xff]
    %v679 = vld [vmem:[#allocation7 + $0xe70] sm:$0xff]
    %v680 = vld [vmem:[#allocation7 + $0xe78] sm:$0xff]
    %v681 = vld [vmem:[#allocation7 + $0xe80] sm:$0xff]
    %v682 = vld [vmem:[#allocation7 + $0xe88] sm:$0xff]
    %v683 = vld [vmem:[#allocation7 + $0xe90] sm:$0xff]
    %v684 = vld [vmem:[#allocation7 + $0xe98] sm:$0xff]
    %v685 = vld [vmem:[#allocation7 + $0xea0] sm:$0xff]
    %v686 = vld [vmem:[#allocation7 + $0xea8] sm:$0xff]
    %v687 = vld [vmem:[#allocation7 + $0xeb0] sm:$0xff]
    %v688 = vld [vmem:[#allocation7 + $0xeb8] sm:$0xff]
    %v689 = vld [vmem:[#allocation7 + $0xec0] sm:$0xff]
    %v690 = vld [vmem:[#allocation7 + $0xec8] sm:$0xff]
    %v691 = vld [vmem:[#allocation7 + $0xed0] sm:$0xff]
    %v692 = vld [vmem:[#allocation7 + $0xed8] sm:$0xff]
    %v693 = vld [vmem:[#allocation7 + $0xee0] sm:$0xff]
    %v694 = vld [vmem:[#allocation7 + $0xee8] sm:$0xff]
    %v695 = vld [vmem:[#allocation7 + $0xef0] sm:$0xff]
    %v696 = vld [vmem:[#allocation7 + $0xef8] sm:$0xff]
    %v697 = vld [vmem:[#allocation7 + $0xf00] sm:$0xff]
    %v698 = vld [vmem:[#allocation7 + $0xf08] sm:$0xff]
    %v699 = vld [vmem:[#allocation7 + $0xf10] sm:$0xff]
    %v700 = vld [vmem:[#allocation7 + $0xf18] sm:$0xff]
    %v701 = vld [vmem:[#allocation7 + $0xf20] sm:$0xff]
    %v702 = vld [vmem:[#allocation7 + $0xf28] sm:$0xff]
    %v703 = vld [vmem:[#allocation7 + $0xf30] sm:$0xff]
    %v704 = vld [vmem:[#allocation7 + $0xf38] sm:$0xff]
    %v705 = vld [vmem:[#allocation7 + $0xf40] sm:$0xff]
    %v706 = vld [vmem:[#allocation7 + $0xf48] sm:$0xff]
    %v707 = vld [vmem:[#allocation7 + $0xf50] sm:$0xff]
    %v708 = vld [vmem:[#allocation7 + $0xf58] sm:$0xff]
    %v709 = vld [vmem:[#allocation7 + $0xf60] sm:$0xff]
    %v710 = vld [vmem:[#allocation7 + $0xf68] sm:$0xff]
    %v711 = vld [vmem:[#allocation7 + $0xf70] sm:$0xff]
    %v712 = vld [vmem:[#allocation7 + $0xf78] sm:$0xff]
    %v713 = vld [vmem:[#allocation7 + $0xf80] sm:$0xff]
    %v714 = vld [vmem:[#allocation7 + $0xf88] sm:$0xff]
    %v715 = vld [vmem:[#allocation7 + $0xf90] sm:$0xff]
    %v716 = vld [vmem:[#allocation7 + $0xf98] sm:$0xff]
    %v717 = vld [vmem:[#allocation7 + $0xfa0] sm:$0xff]
    %v718 = vld [vmem:[#allocation7 + $0xfa8] sm:$0xff]
    %v719 = vld [vmem:[#allocation7 + $0xfb0] sm:$0xff]
    %v720 = vld [vmem:[#allocation7 + $0xfb8] sm:$0xff]
    %v721 = vld [vmem:[#allocation7 + $0xfc0] sm:$0xff]
    %v722 = vld [vmem:[#allocation7 + $0xfc8] sm:$0xff]
    %v723 = vld [vmem:[#allocation7 + $0xfd0] sm:$0xff]
    %v724 = vld [vmem:[#allocation7 + $0xfd8] sm:$0xff]
    %v725 = vld [vmem:[#allocation7 + $0xfe0] sm:$0xff]
    %v726 = vld [vmem:[#allocation7 + $0xfe8] sm:$0xff]
    %v727 = vld [vmem:[#allocation7 + $0xff0] sm:$0xff]
    %v728 = vld [vmem:[#allocation7 + $0xff8] sm:$0xff]
    %v729 = vld [vmem:[#allocation8] sm:$0xff]
    %v730 = vld [vmem:[#allocation8 + $0x8] sm:$0xff]
    %v731 = vld [vmem:[#allocation8 + $0x10] sm:$0xff]
    %v732 = vld [vmem:[#allocation8 + $0x18] sm:$0xff]
    %v733 = vld [vmem:[#allocation8 + $0x20] sm:$0xff]
    %v734 = vld [vmem:[#allocation8 + $0x28] sm:$0xff]
    %v735 = vld [vmem:[#allocation8 + $0x30] sm:$0xff]
    %v736 = vld [vmem:[#allocation8 + $0x38] sm:$0xff]
    %v737 = vld [vmem:[#allocation8 + $0x40] sm:$0xff]
    %v738 = vld [vmem:[#allocation8 + $0x48] sm:$0xff]
    %v739 = vld [vmem:[#allocation8 + $0x50] sm:$0xff]
    %v740 = vld [vmem:[#allocation8 + $0x58] sm:$0xff]
    %v741 = vld [vmem:[#allocation8 + $0x60] sm:$0xff]
    %v742 = vld [vmem:[#allocation8 + $0x68] sm:$0xff]
    %v743 = vld [vmem:[#allocation8 + $0x70] sm:$0xff]
    %v744 = vld [vmem:[#allocation8 + $0x78] sm:$0xff]
    %v745 = vld [vmem:[#allocation8 + $0x80] sm:$0xff]
    %v746 = vld [vmem:[#allocation8 + $0x88] sm:$0xff]
    %v747 = vld [vmem:[#allocation8 + $0x90] sm:$0xff]
    %v748 = vld [vmem:[#allocation8 + $0x98] sm:$0xff]
    %v749 = vld [vmem:[#allocation8 + $0xa0] sm:$0xff]
    %v750 = vld [vmem:[#allocation8 + $0xa8] sm:$0xff]
    %v751 = vld [vmem:[#allocation8 + $0xb0] sm:$0xff]
    %v752 = vld [vmem:[#allocation8 + $0xb8] sm:$0xff]
    %v753 = vld [vmem:[#allocation8 + $0xc0] sm:$0xff]
    %v754 = vld [vmem:[#allocation8 + $0xc8] sm:$0xff]
    %v755 = vld [vmem:[#allocation8 + $0xd0] sm:$0xff]
    %v756 = vld [vmem:[#allocation8 + $0xd8] sm:$0xff]
    %v757 = vld [vmem:[#allocation8 + $0xe0] sm:$0xff]
    %v758 = vld [vmem:[#allocation8 + $0xe8] sm:$0xff]
    %v759 = vld [vmem:[#allocation8 + $0xf0] sm:$0xff]
    %v760 = vld [vmem:[#allocation8 + $0xf8] sm:$0xff]
    %v761 = vld [vmem:[#allocation8 + $0x100] sm:$0xff]
    %v762 = vld [vmem:[#allocation8 + $0x108] sm:$0xff]
    %v763 = vld [vmem:[#allocation8 + $0x110] sm:$0xff]
    %v764 = vld [vmem:[#allocation8 + $0x118] sm:$0xff]
    %v765 = vld [vmem:[#allocation8 + $0x120] sm:$0xff]
    %v766 = vld [vmem:[#allocation8 + $0x128] sm:$0xff]
    %v767 = vld [vmem:[#allocation8 + $0x130] sm:$0xff]
    %v768 = vld [vmem:[#allocation8 + $0x138] sm:$0xff]
    %v769 = vld [vmem:[#allocation8 + $0x140] sm:$0xff]
    %v770 = vld [vmem:[#allocation8 + $0x148] sm:$0xff]
    %v771 = vld [vmem:[#allocation8 + $0x150] sm:$0xff]
    %v772 = vld [vmem:[#allocation8 + $0x158] sm:$0xff]
    %v773 = vld [vmem:[#allocation8 + $0x160] sm:$0xff]
    %v774 = vld [vmem:[#allocation8 + $0x168] sm:$0xff]
    %v775 = vld [vmem:[#allocation8 + $0x170] sm:$0xff]
    %v776 = vld [vmem:[#allocation8 + $0x178] sm:$0xff]
    %v777 = vld [vmem:[#allocation8 + $0x180] sm:$0xff]
    %v778 = vld [vmem:[#allocation8 + $0x188] sm:$0xff]
    %v779 = vld [vmem:[#allocation8 + $0x190] sm:$0xff]
    %v780 = vld [vmem:[#allocation8 + $0x198] sm:$0xff]
    %v781 = vld [vmem:[#allocation8 + $0x1a0] sm:$0xff]
    %v782 = vld [vmem:[#allocation8 + $0x1a8] sm:$0xff]
    %v783 = vld [vmem:[#allocation8 + $0x1b0] sm:$0xff]
    %v784 = vld [vmem:[#allocation8 + $0x1b8] sm:$0xff]
    %v785 = vld [vmem:[#allocation8 + $0x1c0] sm:$0xff]
    %v786 = vld [vmem:[#allocation8 + $0x1c8] sm:$0xff]
    %v787 = vld [vmem:[#allocation8 + $0x1d0] sm:$0xff]
    %v788 = vld [vmem:[#allocation8 + $0x1d8] sm:$0xff]
    %v789 = vld [vmem:[#allocation8 + $0x1e0] sm:$0xff]
    %v790 = vld [vmem:[#allocation8 + $0x1e8] sm:$0xff]
    %v791 = vld [vmem:[#allocation8 + $0x1f0] sm:$0xff]
    %v792 = vld [vmem:[#allocation8 + $0x1f8] sm:$0xff]
    %v793 = vld [vmem:[#allocation8 + $0x200] sm:$0xff]
    %v794 = vld [vmem:[#allocation8 + $0x208] sm:$0xff]
    %v795 = vld [vmem:[#allocation8 + $0x210] sm:$0xff]
    %v796 = vld [vmem:[#allocation8 + $0x218] sm:$0xff]
    %v797 = vld [vmem:[#allocation8 + $0x220] sm:$0xff]
    %v798 = vld [vmem:[#allocation8 + $0x228] sm:$0xff]
    %v799 = vld [vmem:[#allocation8 + $0x230] sm:$0xff]
    %v800 = vld [vmem:[#allocation8 + $0x238] sm:$0xff]
    %v801 = vld [vmem:[#allocation8 + $0x240] sm:$0xff]
    %v802 = vld [vmem:[#allocation8 + $0x248] sm:$0xff]
    %v803 = vld [vmem:[#allocation8 + $0x250] sm:$0xff]
    %v804 = vld [vmem:[#allocation8 + $0x258] sm:$0xff]
    %v805 = vld [vmem:[#allocation8 + $0x260] sm:$0xff]
    %v806 = vld [vmem:[#allocation8 + $0x268] sm:$0xff]
    %v807 = vld [vmem:[#allocation8 + $0x270] sm:$0xff]
    %v808 = vld [vmem:[#allocation8 + $0x278] sm:$0xff]
    %v809 = vld [vmem:[#allocation8 + $0x280] sm:$0xff]
    %v810 = vld [vmem:[#allocation8 + $0x288] sm:$0xff]
    %v811 = vld [vmem:[#allocation8 + $0x290] sm:$0xff]
    %v812 = vld [vmem:[#allocation8 + $0x298] sm:$0xff]
    %v813 = vld [vmem:[#allocation8 + $0x2a0] sm:$0xff]
    %v814 = vld [vmem:[#allocation8 + $0x2a8] sm:$0xff]
    %v815 = vld [vmem:[#allocation8 + $0x2b0] sm:$0xff]
    %v816 = vld [vmem:[#allocation8 + $0x2b8] sm:$0xff]
    %v817 = vld [vmem:[#allocation8 + $0x2c0] sm:$0xff]
    %v818 = vld [vmem:[#allocation8 + $0x2c8] sm:$0xff]
    %v819 = vld [vmem:[#allocation8 + $0x2d0] sm:$0xff]
    %v820 = vld [vmem:[#allocation8 + $0x2d8] sm:$0xff]
    %v821 = vld [vmem:[#allocation8 + $0x2e0] sm:$0xff]
    %v822 = vld [vmem:[#allocation8 + $0x2e8] sm:$0xff]
    %v823 = vld [vmem:[#allocation8 + $0x2f0] sm:$0xff]
    %v824 = vld [vmem:[#allocation8 + $0x2f8] sm:$0xff]
    %v825 = vld [vmem:[#allocation8 + $0x300] sm:$0xff]
    %v826 = vld [vmem:[#allocation8 + $0x308] sm:$0xff]
    %v827 = vld [vmem:[#allocation8 + $0x310] sm:$0xff]
    %v828 = vld [vmem:[#allocation8 + $0x318] sm:$0xff]
    %v829 = vld [vmem:[#allocation8 + $0x320] sm:$0xff]
    %v830 = vld [vmem:[#allocation8 + $0x328] sm:$0xff]
    %v831 = vld [vmem:[#allocation8 + $0x330] sm:$0xff]
    %v832 = vld [vmem:[#allocation8 + $0x338] sm:$0xff]
    %v833 = vld [vmem:[#allocation8 + $0x340] sm:$0xff]
    %v834 = vld [vmem:[#allocation8 + $0x348] sm:$0xff]
    %v835 = vld [vmem:[#allocation8 + $0x350] sm:$0xff]
    %v836 = vld [vmem:[#allocation8 + $0x358] sm:$0xff]
    %v837 = vld [vmem:[#allocation8 + $0x360] sm:$0xff]
    %v838 = vld [vmem:[#allocation8 + $0x368] sm:$0xff]
    %v839 = vld [vmem:[#allocation8 + $0x370] sm:$0xff]
    %v840 = vld [vmem:[#allocation8 + $0x378] sm:$0xff]
    %v841 = vld [vmem:[#allocation8 + $0x380] sm:$0xff]
    %v842 = vld [vmem:[#allocation8 + $0x388] sm:$0xff]
    %v843 = vld [vmem:[#allocation8 + $0x390] sm:$0xff]
    %v844 = vld [vmem:[#allocation8 + $0x398] sm:$0xff]
    %v845 = vld [vmem:[#allocation8 + $0x3a0] sm:$0xff]
    %v846 = vld [vmem:[#allocation8 + $0x3a8] sm:$0xff]
    %v847 = vld [vmem:[#allocation8 + $0x3b0] sm:$0xff]
    %v848 = vld [vmem:[#allocation8 + $0x3b8] sm:$0xff]
    %v849 = vld [vmem:[#allocation8 + $0x3c0] sm:$0xff]
    %v850 = vld [vmem:[#allocation8 + $0x3c8] sm:$0xff]
    %v851 = vld [vmem:[#allocation8 + $0x3d0] sm:$0xff]
    %v852 = vld [vmem:[#allocation8 + $0x3d8] sm:$0xff]
    %v853 = vld [vmem:[#allocation8 + $0x3e0] sm:$0xff]
    %v854 = vld [vmem:[#allocation8 + $0x3e8] sm:$0xff]
    %v855 = vld [vmem:[#allocation8 + $0x3f0] sm:$0xff]
    %v856 = vld [vmem:[#allocation8 + $0x3f8] sm:$0xff]
    %v857 = vld [vmem:[#allocation8 + $0x400] sm:$0xff]
    %v858 = vld [vmem:[#allocation8 + $0x408] sm:$0xff]
    %v859 = vld [vmem:[#allocation8 + $0x410] sm:$0xff]
    %v860 = vld [vmem:[#allocation8 + $0x418] sm:$0xff]
    %v861 = vld [vmem:[#allocation8 + $0x420] sm:$0xff]
    %v862 = vld [vmem:[#allocation8 + $0x428] sm:$0xff]
    %v863 = vld [vmem:[#allocation8 + $0x430] sm:$0xff]
    %v864 = vld [vmem:[#allocation8 + $0x438] sm:$0xff]
    %v865 = vld [vmem:[#allocation8 + $0x440] sm:$0xff]
    %v866 = vld [vmem:[#allocation8 + $0x448] sm:$0xff]
    %v867 = vld [vmem:[#allocation8 + $0x450] sm:$0xff]
    %v868 = vld [vmem:[#allocation8 + $0x458] sm:$0xff]
    %v869 = vld [vmem:[#allocation8 + $0x460] sm:$0xff]
    %v870 = vld [vmem:[#allocation8 + $0x468] sm:$0xff]
    %v871 = vld [vmem:[#allocation8 + $0x470] sm:$0xff]
    %v872 = vld [vmem:[#allocation8 + $0x478] sm:$0xff]
    %v873 = vld [vmem:[#allocation8 + $0x480] sm:$0xff]
    %v874 = vld [vmem:[#allocation8 + $0x488] sm:$0xff]
    %v875 = vld [vmem:[#allocation8 + $0x490] sm:$0xff]
    %v876 = vld [vmem:[#allocation8 + $0x498] sm:$0xff]
    %v877 = vld [vmem:[#allocation8 + $0x4a0] sm:$0xff]
    %v878 = vld [vmem:[#allocation8 + $0x4a8] sm:$0xff]
    %v879 = vld [vmem:[#allocation8 + $0x4b0] sm:$0xff]
    %v880 = vld [vmem:[#allocation8 + $0x4b8] sm:$0xff]
    %v881 = vld [vmem:[#allocation8 + $0x4c0] sm:$0xff]
    %v882 = vld [vmem:[#allocation8 + $0x4c8] sm:$0xff]
    %v883 = vld [vmem:[#allocation8 + $0x4d0] sm:$0xff]
    %v884 = vld [vmem:[#allocation8 + $0x4d8] sm:$0xff]
    %v885 = vld [vmem:[#allocation8 + $0x4e0] sm:$0xff]
    %v886 = vld [vmem:[#allocation8 + $0x4e8] sm:$0xff]
    %v887 = vld [vmem:[#allocation8 + $0x4f0] sm:$0xff]
    %v888 = vld [vmem:[#allocation8 + $0x4f8] sm:$0xff]
    %v889 = vld [vmem:[#allocation8 + $0x500] sm:$0xff]
    %v890 = vld [vmem:[#allocation8 + $0x508] sm:$0xff]
    %v891 = vld [vmem:[#allocation8 + $0x510] sm:$0xff]
    %v892 = vld [vmem:[#allocation8 + $0x518] sm:$0xff]
    %v893 = vld [vmem:[#allocation8 + $0x520] sm:$0xff]
    %v894 = vld [vmem:[#allocation8 + $0x528] sm:$0xff]
    %v895 = vld [vmem:[#allocation8 + $0x530] sm:$0xff]
    %v896 = vld [vmem:[#allocation8 + $0x538] sm:$0xff]
    %v897 = vld [vmem:[#allocation8 + $0x540] sm:$0xff]
    %v898 = vld [vmem:[#allocation8 + $0x548] sm:$0xff]
    %v899 = vld [vmem:[#allocation8 + $0x550] sm:$0xff]
    %v900 = vld [vmem:[#allocation8 + $0x558] sm:$0xff]
    %v901 = vld [vmem:[#allocation8 + $0x560] sm:$0xff]
    %v902 = vld [vmem:[#allocation8 + $0x568] sm:$0xff]
    %v903 = vld [vmem:[#allocation8 + $0x570] sm:$0xff]
    %v904 = vld [vmem:[#allocation8 + $0x578] sm:$0xff]
    %v905 = vld [vmem:[#allocation8 + $0x580] sm:$0xff]
    %v906 = vld [vmem:[#allocation8 + $0x588] sm:$0xff]
    %v907 = vld [vmem:[#allocation8 + $0x590] sm:$0xff]
    %v908 = vld [vmem:[#allocation8 + $0x598] sm:$0xff]
    %v909 = vld [vmem:[#allocation8 + $0x5a0] sm:$0xff]
    %v910 = vld [vmem:[#allocation8 + $0x5a8] sm:$0xff]
    %v911 = vld [vmem:[#allocation8 + $0x5b0] sm:$0xff]
    %v912 = vld [vmem:[#allocation8 + $0x5b8] sm:$0xff]
    %v913 = vld [vmem:[#allocation8 + $0x5c0] sm:$0xff]
    %v914 = vld [vmem:[#allocation8 + $0x5c8] sm:$0xff]
    %v915 = vld [vmem:[#allocation8 + $0x5d0] sm:$0xff]
    %v916 = vld [vmem:[#allocation8 + $0x5d8] sm:$0xff]
    %v917 = vld [vmem:[#allocation8 + $0x5e0] sm:$0xff]
    %v918 = vld [vmem:[#allocation8 + $0x5e8] sm:$0xff]
    %v919 = vld [vmem:[#allocation8 + $0x5f0] sm:$0xff]
    %v920 = vld [vmem:[#allocation8 + $0x5f8] sm:$0xff]
    %v921 = vld [vmem:[#allocation8 + $0x600] sm:$0xff]
    %v922 = vld [vmem:[#allocation8 + $0x608] sm:$0xff]
    %v923 = vld [vmem:[#allocation8 + $0x610] sm:$0xff]
    %v924 = vld [vmem:[#allocation8 + $0x618] sm:$0xff]
    %v925 = vld [vmem:[#allocation8 + $0x620] sm:$0xff]
    %v926 = vld [vmem:[#allocation8 + $0x628] sm:$0xff]
    %v927 = vld [vmem:[#allocation8 + $0x630] sm:$0xff]
    %v928 = vld [vmem:[#allocation8 + $0x638] sm:$0xff]
    %v929 = vld [vmem:[#allocation8 + $0x640] sm:$0xff]
    %v930 = vld [vmem:[#allocation8 + $0x648] sm:$0xff]
    %v931 = vld [vmem:[#allocation8 + $0x650] sm:$0xff]
    %v932 = vld [vmem:[#allocation8 + $0x658] sm:$0xff]
    %v933 = vld [vmem:[#allocation8 + $0x660] sm:$0xff]
    %v934 = vld [vmem:[#allocation8 + $0x668] sm:$0xff]
    %v935 = vld [vmem:[#allocation8 + $0x670] sm:$0xff]
    %v936 = vld [vmem:[#allocation8 + $0x678] sm:$0xff]
    %v937 = vld [vmem:[#allocation8 + $0x680] sm:$0xff]
    %v938 = vld [vmem:[#allocation8 + $0x688] sm:$0xff]
    %v939 = vld [vmem:[#allocation8 + $0x690] sm:$0xff]
    %v940 = vld [vmem:[#allocation8 + $0x698] sm:$0xff]
    %v941 = vld [vmem:[#allocation8 + $0x6a0] sm:$0xff]
    %v942 = vld [vmem:[#allocation8 + $0x6a8] sm:$0xff]
    %v943 = vld [vmem:[#allocation8 + $0x6b0] sm:$0xff]
    %v944 = vld [vmem:[#allocation8 + $0x6b8] sm:$0xff]
    %v945 = vld [vmem:[#allocation8 + $0x6c0] sm:$0xff]
    %v946 = vld [vmem:[#allocation8 + $0x6c8] sm:$0xff]
    %v947 = vld [vmem:[#allocation8 + $0x6d0] sm:$0xff]
    %v948 = vld [vmem:[#allocation8 + $0x6d8] sm:$0xff]
    %v949 = vld [vmem:[#allocation8 + $0x6e0] sm:$0xff]
    %v950 = vld [vmem:[#allocation8 + $0x6e8] sm:$0xff]
    %v951 = vld [vmem:[#allocation8 + $0x6f0] sm:$0xff]
    %v952 = vld [vmem:[#allocation8 + $0x6f8] sm:$0xff]
    %v953 = vld [vmem:[#allocation8 + $0x700] sm:$0xff]
    %v954 = vld [vmem:[#allocation8 + $0x708] sm:$0xff]
    %v955 = vld [vmem:[#allocation8 + $0x710] sm:$0xff]
    %v956 = vld [vmem:[#allocation8 + $0x718] sm:$0xff]
    %v957 = vld [vmem:[#allocation8 + $0x720] sm:$0xff]
    %v958 = vld [vmem:[#allocation8 + $0x728] sm:$0xff]
    %v959 = vld [vmem:[#allocation8 + $0x730] sm:$0xff]
    %v960 = vld [vmem:[#allocation8 + $0x738] sm:$0xff]
    %v961 = vld [vmem:[#allocation8 + $0x740] sm:$0xff]
    %v962 = vld [vmem:[#allocation8 + $0x748] sm:$0xff]
    %v963 = vld [vmem:[#allocation8 + $0x750] sm:$0xff]
    %v964 = vld [vmem:[#allocation8 + $0x758] sm:$0xff]
    %v965 = vld [vmem:[#allocation8 + $0x760] sm:$0xff]
    %v966 = vld [vmem:[#allocation8 + $0x768] sm:$0xff]
    %v967 = vld [vmem:[#allocation8 + $0x770] sm:$0xff]
    %v968 = vld [vmem:[#allocation8 + $0x778] sm:$0xff]
    %v969 = vld [vmem:[#allocation8 + $0x780] sm:$0xff]
    %v970 = vld [vmem:[#allocation8 + $0x788] sm:$0xff]
    %v971 = vld [vmem:[#allocation8 + $0x790] sm:$0xff]
    %v972 = vld [vmem:[#allocation8 + $0x798] sm:$0xff]
    %v973 = vld [vmem:[#allocation8 + $0x7a0] sm:$0xff]
    %v974 = vld [vmem:[#allocation8 + $0x7a8] sm:$0xff]
    %v975 = vld [vmem:[#allocation8 + $0x7b0] sm:$0xff]
    %v976 = vld [vmem:[#allocation8 + $0x7b8] sm:$0xff]
    %v977 = vld [vmem:[#allocation8 + $0x7c0] sm:$0xff]
    %v978 = vld [vmem:[#allocation8 + $0x7c8] sm:$0xff]
    %v979 = vld [vmem:[#allocation8 + $0x7d0] sm:$0xff]
    %v980 = vld [vmem:[#allocation8 + $0x7d8] sm:$0xff]
    %v981 = vld [vmem:[#allocation8 + $0x7e0] sm:$0xff]
    %v982 = vld [vmem:[#allocation8 + $0x7e8] sm:$0xff]
    %v983 = vld [vmem:[#allocation8 + $0x7f0] sm:$0xff]
    %v984 = vld [vmem:[#allocation8 + $0x7f8] sm:$0xff]
    %v985 = vld [vmem:[#allocation8 + $0x800] sm:$0xff]
    %v986 = vld [vmem:[#allocation8 + $0x808] sm:$0xff]
    %v987 = vld [vmem:[#allocation8 + $0x810] sm:$0xff]
    %v988 = vld [vmem:[#allocation8 + $0x818] sm:$0xff]
    %v989 = vld [vmem:[#allocation8 + $0x820] sm:$0xff]
    %v990 = vld [vmem:[#allocation8 + $0x828] sm:$0xff]
    %v991 = vld [vmem:[#allocation8 + $0x830] sm:$0xff]
    %v992 = vld [vmem:[#allocation8 + $0x838] sm:$0xff]
    %v993 = vld [vmem:[#allocation8 + $0x840] sm:$0xff]
    %v994 = vld [vmem:[#allocation8 + $0x848] sm:$0xff]
    %v995 = vld [vmem:[#allocation8 + $0x850] sm:$0xff]
    %v996 = vld [vmem:[#allocation8 + $0x858] sm:$0xff]
    %v997 = vld [vmem:[#allocation8 + $0x860] sm:$0xff]
    %v998 = vld [vmem:[#allocation8 + $0x868] sm:$0xff]
    %v999 = vld [vmem:[#allocation8 + $0x870] sm:$0xff]
    %v1000 = vld [vmem:[#allocation8 + $0x878] sm:$0xff]
    %v1001 = vld [vmem:[#allocation8 + $0x880] sm:$0xff]
    %v1002 = vld [vmem:[#allocation8 + $0x888] sm:$0xff]
    %v1003 = vld [vmem:[#allocation8 + $0x890] sm:$0xff]
    %v1004 = vld [vmem:[#allocation8 + $0x898] sm:$0xff]
    %v1005 = vld [vmem:[#allocation8 + $0x8a0] sm:$0xff]
    %v1006 = vld [vmem:[#allocation8 + $0x8a8] sm:$0xff]
    %v1007 = vld [vmem:[#allocation8 + $0x8b0] sm:$0xff]
    %v1008 = vld [vmem:[#allocation8 + $0x8b8] sm:$0xff]
    %v1009 = vld [vmem:[#allocation8 + $0x8c0] sm:$0xff]
    %v1010 = vld [vmem:[#allocation8 + $0x8c8] sm:$0xff]
    %v1011 = vld [vmem:[#allocation8 + $0x8d0] sm:$0xff]
    %v1012 = vld [vmem:[#allocation8 + $0x8d8] sm:$0xff]
    %v1013 = vld [vmem:[#allocation8 + $0x8e0] sm:$0xff]
    %v1014 = vld [vmem:[#allocation8 + $0x8e8] sm:$0xff]
    %v1015 = vld [vmem:[#allocation8 + $0x8f0] sm:$0xff]
    %v1016 = vld [vmem:[#allocation8 + $0x8f8] sm:$0xff]
    %v1017 = vld [vmem:[#allocation8 + $0x900] sm:$0xff]
    %v1018 = vld [vmem:[#allocation8 + $0x908] sm:$0xff]
    %v1019 = vld [vmem:[#allocation8 + $0x910] sm:$0xff]
    %v1020 = vld [vmem:[#allocation8 + $0x918] sm:$0xff]
    %v1021 = vld [vmem:[#allocation8 + $0x920] sm:$0xff]
    %v1022 = vld [vmem:[#allocation8 + $0x928] sm:$0xff]
    %v1023 = vld [vmem:[#allocation8 + $0x930] sm:$0xff]
    %v1024 = vld [vmem:[#allocation8 + $0x938] sm:$0xff]
    %v1025 = vld [vmem:[#allocation8 + $0x940] sm:$0xff]
    %v1026 = vld [vmem:[#allocation8 + $0x948] sm:$0xff]
    %v1027 = vld [vmem:[#allocation8 + $0x950] sm:$0xff]
    %v1028 = vld [vmem:[#allocation8 + $0x958] sm:$0xff]
    %v1029 = vld [vmem:[#allocation8 + $0x960] sm:$0xff]
    %v1030 = vld [vmem:[#allocation8 + $0x968] sm:$0xff]
    %v1031 = vld [vmem:[#allocation8 + $0x970] sm:$0xff]
    %v1032 = vld [vmem:[#allocation8 + $0x978] sm:$0xff]
    %v1033 = vld [vmem:[#allocation8 + $0x980] sm:$0xff]
    %v1034 = vld [vmem:[#allocation8 + $0x988] sm:$0xff]
    %v1035 = vld [vmem:[#allocation8 + $0x990] sm:$0xff]
    %v1036 = vld [vmem:[#allocation8 + $0x998] sm:$0xff]
    %v1037 = vld [vmem:[#allocation8 + $0x9a0] sm:$0xff]
    %v1038 = vld [vmem:[#allocation8 + $0x9a8] sm:$0xff]
    %v1039 = vld [vmem:[#allocation8 + $0x9b0] sm:$0xff]
    %v1040 = vld [vmem:[#allocation8 + $0x9b8] sm:$0xff]
    %v1041 = vld [vmem:[#allocation8 + $0x9c0] sm:$0xff]
    %v1042 = vld [vmem:[#allocation8 + $0x9c8] sm:$0xff]
    %v1043 = vld [vmem:[#allocation8 + $0x9d0] sm:$0xff]
    %v1044 = vld [vmem:[#allocation8 + $0x9d8] sm:$0xff]
    %v1045 = vld [vmem:[#allocation8 + $0x9e0] sm:$0xff]
    %v1046 = vld [vmem:[#allocation8 + $0x9e8] sm:$0xff]
    %v1047 = vld [vmem:[#allocation8 + $0x9f0] sm:$0xff]
    %v1048 = vld [vmem:[#allocation8 + $0x9f8] sm:$0xff]
    %v1049 = vld [vmem:[#allocation8 + $0xa00] sm:$0xff]
    %v1050 = vld [vmem:[#allocation8 + $0xa08] sm:$0xff]
    %v1051 = vld [vmem:[#allocation8 + $0xa10] sm:$0xff]
    %v1052 = vld [vmem:[#allocation8 + $0xa18] sm:$0xff]
    %v1053 = vld [vmem:[#allocation8 + $0xa20] sm:$0xff]
    %v1054 = vld [vmem:[#allocation8 + $0xa28] sm:$0xff]
    %v1055 = vld [vmem:[#allocation8 + $0xa30] sm:$0xff]
    %v1056 = vld [vmem:[#allocation8 + $0xa38] sm:$0xff]
    %v1057 = vld [vmem:[#allocation8 + $0xa40] sm:$0xff]
    %v1058 = vld [vmem:[#allocation8 + $0xa48] sm:$0xff]
    %v1059 = vld [vmem:[#allocation8 + $0xa50] sm:$0xff]
    %v1060 = vld [vmem:[#allocation8 + $0xa58] sm:$0xff]
    %v1061 = vld [vmem:[#allocation8 + $0xa60] sm:$0xff]
    %v1062 = vld [vmem:[#allocation8 + $0xa68] sm:$0xff]
    %v1063 = vld [vmem:[#allocation8 + $0xa70] sm:$0xff]
    %v1064 = vld [vmem:[#allocation8 + $0xa78] sm:$0xff]
    %v1065 = vld [vmem:[#allocation8 + $0xa80] sm:$0xff]
    %v1066 = vld [vmem:[#allocation8 + $0xa88] sm:$0xff]
    %v1067 = vld [vmem:[#allocation8 + $0xa90] sm:$0xff]
    %v1068 = vld [vmem:[#allocation8 + $0xa98] sm:$0xff]
    %v1069 = vld [vmem:[#allocation8 + $0xaa0] sm:$0xff]
    %v1070 = vld [vmem:[#allocation8 + $0xaa8] sm:$0xff]
    %v1071 = vld [vmem:[#allocation8 + $0xab0] sm:$0xff]
    %v1072 = vld [vmem:[#allocation8 + $0xab8] sm:$0xff]
    %v1073 = vld [vmem:[#allocation8 + $0xac0] sm:$0xff]
    %v1074 = vld [vmem:[#allocation8 + $0xac8] sm:$0xff]
    %v1075 = vld [vmem:[#allocation8 + $0xad0] sm:$0xff]
    %v1076 = vld [vmem:[#allocation8 + $0xad8] sm:$0xff]
    %v1077 = vld [vmem:[#allocation8 + $0xae0] sm:$0xff]
    %v1078 = vld [vmem:[#allocation8 + $0xae8] sm:$0xff]
    %v1079 = vld [vmem:[#allocation8 + $0xaf0] sm:$0xff]
    %v1080 = vld [vmem:[#allocation8 + $0xaf8] sm:$0xff]
    %v1081 = vld [vmem:[#allocation8 + $0xb00] sm:$0xff]
    %v1082 = vld [vmem:[#allocation8 + $0xb08] sm:$0xff]
    %v1083 = vld [vmem:[#allocation8 + $0xb10] sm:$0xff]
    %v1084 = vld [vmem:[#allocation8 + $0xb18] sm:$0xff]
    %v1085 = vld [vmem:[#allocation8 + $0xb20] sm:$0xff]
    %v1086 = vld [vmem:[#allocation8 + $0xb28] sm:$0xff]
    %v1087 = vld [vmem:[#allocation8 + $0xb30] sm:$0xff]
    %v1088 = vld [vmem:[#allocation8 + $0xb38] sm:$0xff]
    %v1089 = vld [vmem:[#allocation8 + $0xb40] sm:$0xff]
    %v1090 = vld [vmem:[#allocation8 + $0xb48] sm:$0xff]
    %v1091 = vld [vmem:[#allocation8 + $0xb50] sm:$0xff]
    %v1092 = vld [vmem:[#allocation8 + $0xb58] sm:$0xff]
    %v1093 = vld [vmem:[#allocation8 + $0xb60] sm:$0xff]
    %v1094 = vld [vmem:[#allocation8 + $0xb68] sm:$0xff]
    %v1095 = vld [vmem:[#allocation8 + $0xb70] sm:$0xff]
    %v1096 = vld [vmem:[#allocation8 + $0xb78] sm:$0xff]
    %v1097 = vld [vmem:[#allocation8 + $0xb80] sm:$0xff]
    %v1098 = vld [vmem:[#allocation8 + $0xb88] sm:$0xff]
    %v1099 = vld [vmem:[#allocation8 + $0xb90] sm:$0xff]
    %v1100 = vld [vmem:[#allocation8 + $0xb98] sm:$0xff]
    %v1101 = vld [vmem:[#allocation8 + $0xba0] sm:$0xff]
    %v1102 = vld [vmem:[#allocation8 + $0xba8] sm:$0xff]
    %v1103 = vld [vmem:[#allocation8 + $0xbb0] sm:$0xff]
    %v1104 = vld [vmem:[#allocation8 + $0xbb8] sm:$0xff]
    %v1105 = vld [vmem:[#allocation8 + $0xbc0] sm:$0xff]
    %v1106 = vld [vmem:[#allocation8 + $0xbc8] sm:$0xff]
    %v1107 = vld [vmem:[#allocation8 + $0xbd0] sm:$0xff]
    %v1108 = vld [vmem:[#allocation8 + $0xbd8] sm:$0xff]
    %v1109 = vld [vmem:[#allocation8 + $0xbe0] sm:$0xff]
    %v1110 = vld [vmem:[#allocation8 + $0xbe8] sm:$0xff]
    %v1111 = vld [vmem:[#allocation8 + $0xbf0] sm:$0xff]
    %v1112 = vld [vmem:[#allocation8 + $0xbf8] sm:$0xff]
    %v1113 = vld [vmem:[#allocation8 + $0xc00] sm:$0xff]
    %v1114 = vld [vmem:[#allocation8 + $0xc08] sm:$0xff]
    %v1115 = vld [vmem:[#allocation8 + $0xc10] sm:$0xff]
    %v1116 = vld [vmem:[#allocation8 + $0xc18] sm:$0xff]
    %v1117 = vld [vmem:[#allocation8 + $0xc20] sm:$0xff]
    %v1118 = vld [vmem:[#allocation8 + $0xc28] sm:$0xff]
    %v1119 = vld [vmem:[#allocation8 + $0xc30] sm:$0xff]
    %v1120 = vld [vmem:[#allocation8 + $0xc38] sm:$0xff]
    %v1121 = vld [vmem:[#allocation8 + $0xc40] sm:$0xff]
    %v1122 = vld [vmem:[#allocation8 + $0xc48] sm:$0xff]
    %v1123 = vld [vmem:[#allocation8 + $0xc50] sm:$0xff]
    %v1124 = vld [vmem:[#allocation8 + $0xc58] sm:$0xff]
    %v1125 = vld [vmem:[#allocation8 + $0xc60] sm:$0xff]
    %v1126 = vld [vmem:[#allocation8 + $0xc68] sm:$0xff]
    %v1127 = vld [vmem:[#allocation8 + $0xc70] sm:$0xff]
    %v1128 = vld [vmem:[#allocation8 + $0xc78] sm:$0xff]
    %v1129 = vld [vmem:[#allocation8 + $0xc80] sm:$0xff]
    %v1130 = vld [vmem:[#allocation8 + $0xc88] sm:$0xff]
    %v1131 = vld [vmem:[#allocation8 + $0xc90] sm:$0xff]
    %v1132 = vld [vmem:[#allocation8 + $0xc98] sm:$0xff]
    %v1133 = vld [vmem:[#allocation8 + $0xca0] sm:$0xff]
    %v1134 = vld [vmem:[#allocation8 + $0xca8] sm:$0xff]
    %v1135 = vld [vmem:[#allocation8 + $0xcb0] sm:$0xff]
    %v1136 = vld [vmem:[#allocation8 + $0xcb8] sm:$0xff]
    %v1137 = vld [vmem:[#allocation8 + $0xcc0] sm:$0xff]
    %v1138 = vld [vmem:[#allocation8 + $0xcc8] sm:$0xff]
    %v1139 = vld [vmem:[#allocation8 + $0xcd0] sm:$0xff]
    %v1140 = vld [vmem:[#allocation8 + $0xcd8] sm:$0xff]
    %v1141 = vld [vmem:[#allocation8 + $0xce0] sm:$0xff]
    %v1142 = vld [vmem:[#allocation8 + $0xce8] sm:$0xff]
    %v1143 = vld [vmem:[#allocation8 + $0xcf0] sm:$0xff]
    %v1144 = vld [vmem:[#allocation8 + $0xcf8] sm:$0xff]
    %v1145 = vld [vmem:[#allocation8 + $0xd00] sm:$0xff]
    %v1146 = vld [vmem:[#allocation8 + $0xd08] sm:$0xff]
    %v1147 = vld [vmem:[#allocation8 + $0xd10] sm:$0xff]
    %v1148 = vld [vmem:[#allocation8 + $0xd18] sm:$0xff]
    %v1149 = vld [vmem:[#allocation8 + $0xd20] sm:$0xff]
    %v1150 = vld [vmem:[#allocation8 + $0xd28] sm:$0xff]
    %v1151 = vld [vmem:[#allocation8 + $0xd30] sm:$0xff]
    %v1152 = vld [vmem:[#allocation8 + $0xd38] sm:$0xff]
    %v1153 = vld [vmem:[#allocation8 + $0xd40] sm:$0xff]
    %v1154 = vld [vmem:[#allocation8 + $0xd48] sm:$0xff]
    %v1155 = vld [vmem:[#allocation8 + $0xd50] sm:$0xff]
    %v1156 = vld [vmem:[#allocation8 + $0xd58] sm:$0xff]
    %v1157 = vld [vmem:[#allocation8 + $0xd60] sm:$0xff]
    %v1158 = vld [vmem:[#allocation8 + $0xd68] sm:$0xff]
    %v1159 = vld [vmem:[#allocation8 + $0xd70] sm:$0xff]
    %v1160 = vld [vmem:[#allocation8 + $0xd78] sm:$0xff]
    %v1161 = vld [vmem:[#allocation8 + $0xd80] sm:$0xff]
    %v1162 = vld [vmem:[#allocation8 + $0xd88] sm:$0xff]
    %v1163 = vld [vmem:[#allocation8 + $0xd90] sm:$0xff]
    %v1164 = vld [vmem:[#allocation8 + $0xd98] sm:$0xff]
    %v1165 = vld [vmem:[#allocation8 + $0xda0] sm:$0xff]
    %v1166 = vld [vmem:[#allocation8 + $0xda8] sm:$0xff]
    %v1167 = vld [vmem:[#allocation8 + $0xdb0] sm:$0xff]
    %v1168 = vld [vmem:[#allocation8 + $0xdb8] sm:$0xff]
    %v1169 = vld [vmem:[#allocation8 + $0xdc0] sm:$0xff]
    %v1170 = vld [vmem:[#allocation8 + $0xdc8] sm:$0xff]
    %v1171 = vld [vmem:[#allocation8 + $0xdd0] sm:$0xff]
    %v1172 = vld [vmem:[#allocation8 + $0xdd8] sm:$0xff]
    %v1173 = vld [vmem:[#allocation8 + $0xde0] sm:$0xff]
    %v1174 = vld [vmem:[#allocation8 + $0xde8] sm:$0xff]
    %v1175 = vld [vmem:[#allocation8 + $0xdf0] sm:$0xff]
    %v1176 = vld [vmem:[#allocation8 + $0xdf8] sm:$0xff]
    %v1177 = vld [vmem:[#allocation8 + $0xe00] sm:$0xff]
    %v1178 = vld [vmem:[#allocation8 + $0xe08] sm:$0xff]
    %v1179 = vld [vmem:[#allocation8 + $0xe10] sm:$0xff]
    %v1180 = vld [vmem:[#allocation8 + $0xe18] sm:$0xff]
    %v1181 = vld [vmem:[#allocation8 + $0xe20] sm:$0xff]
    %v1182 = vld [vmem:[#allocation8 + $0xe28] sm:$0xff]
    %v1183 = vld [vmem:[#allocation8 + $0xe30] sm:$0xff]
    %v1184 = vld [vmem:[#allocation8 + $0xe38] sm:$0xff]
    %v1185 = vld [vmem:[#allocation8 + $0xe40] sm:$0xff]
    %v1186 = vld [vmem:[#allocation8 + $0xe48] sm:$0xff]
    %v1187 = vld [vmem:[#allocation8 + $0xe50] sm:$0xff]
    %v1188 = vld [vmem:[#allocation8 + $0xe58] sm:$0xff]
    %v1189 = vld [vmem:[#allocation8 + $0xe60] sm:$0xff]
    %v1190 = vld [vmem:[#allocation8 + $0xe68] sm:$0xff]
    %v1191 = vld [vmem:[#allocation8 + $0xe70] sm:$0xff]
    %v1192 = vld [vmem:[#allocation8 + $0xe78] sm:$0xff]
    %v1193 = vld [vmem:[#allocation8 + $0xe80] sm:$0xff]
    %v1194 = vld [vmem:[#allocation8 + $0xe88] sm:$0xff]
    %v1195 = vld [vmem:[#allocation8 + $0xe90] sm:$0xff]
    %v1196 = vld [vmem:[#allocation8 + $0xe98] sm:$0xff]
    %v1197 = vld [vmem:[#allocation8 + $0xea0] sm:$0xff]
    %v1198 = vld [vmem:[#allocation8 + $0xea8] sm:$0xff]
    %v1199 = vld [vmem:[#allocation8 + $0xeb0] sm:$0xff]
    %v1200 = vld [vmem:[#allocation8 + $0xeb8] sm:$0xff]
    %v1201 = vld [vmem:[#allocation8 + $0xec0] sm:$0xff]
    %v1202 = vld [vmem:[#allocation8 + $0xec8] sm:$0xff]
    %v1203 = vld [vmem:[#allocation8 + $0xed0] sm:$0xff]
    %v1204 = vld [vmem:[#allocation8 + $0xed8] sm:$0xff]
    %v1205 = vld [vmem:[#allocation8 + $0xee0] sm:$0xff]
    %v1206 = vld [vmem:[#allocation8 + $0xee8] sm:$0xff]
    %v1207 = vld [vmem:[#allocation8 + $0xef0] sm:$0xff]
    %v1208 = vld [vmem:[#allocation8 + $0xef8] sm:$0xff]
    %v1209 = vld [vmem:[#allocation8 + $0xf00] sm:$0xff]
    %v1210 = vld [vmem:[#allocation8 + $0xf08] sm:$0xff]
    %v1211 = vld [vmem:[#allocation8 + $0xf10] sm:$0xff]
    %v1212 = vld [vmem:[#allocation8 + $0xf18] sm:$0xff]
    %v1213 = vld [vmem:[#allocation8 + $0xf20] sm:$0xff]
    %v1214 = vld [vmem:[#allocation8 + $0xf28] sm:$0xff]
    %v1215 = vld [vmem:[#allocation8 + $0xf30] sm:$0xff]
    %v1216 = vld [vmem:[#allocation8 + $0xf38] sm:$0xff]
    %v1217 = vld [vmem:[#allocation8 + $0xf40] sm:$0xff]
    %v1218 = vld [vmem:[#allocation8 + $0xf48] sm:$0xff]
    %v1219 = vld [vmem:[#allocation8 + $0xf50] sm:$0xff]
    %v1220 = vld [vmem:[#allocation8 + $0xf58] sm:$0xff]
    %v1221 = vld [vmem:[#allocation8 + $0xf60] sm:$0xff]
    %v1222 = vld [vmem:[#allocation8 + $0xf68] sm:$0xff]
    %v1223 = vld [vmem:[#allocation8 + $0xf70] sm:$0xff]
    %v1224 = vld [vmem:[#allocation8 + $0xf78] sm:$0xff]
    %v1225 = vld [vmem:[#allocation8 + $0xf80] sm:$0xff]
    %v1226 = vld [vmem:[#allocation8 + $0xf88] sm:$0xff]
    %v1227 = vld [vmem:[#allocation8 + $0xf90] sm:$0xff]
    %v1228 = vld [vmem:[#allocation8 + $0xf98] sm:$0xff]
    %v1229 = vld [vmem:[#allocation8 + $0xfa0] sm:$0xff]
    %v1230 = vld [vmem:[#allocation8 + $0xfa8] sm:$0xff]
    %v1231 = vld [vmem:[#allocation8 + $0xfb0] sm:$0xff]
    %v1232 = vld [vmem:[#allocation8 + $0xfb8] sm:$0xff]
    %v1233 = vld [vmem:[#allocation8 + $0xfc0] sm:$0xff]
    %v1234 = vld [vmem:[#allocation8 + $0xfc8] sm:$0xff]
    %v1235 = vld [vmem:[#allocation8 + $0xfd0] sm:$0xff]
    %v1236 = vld [vmem:[#allocation8 + $0xfd8] sm:$0xff]
    %v1237 = vld [vmem:[#allocation8 + $0xfe0] sm:$0xff]
    %v1238 = vld [vmem:[#allocation8 + $0xfe8] sm:$0xff]
    %v1239 = vld [vmem:[#allocation8 + $0xff0] sm:$0xff]
    %v1240 = vld [vmem:[#allocation8 + $0xff8] sm:$0xff]
    %v1753 = vunpack.c.l.b16 %v729
    %v1754 = vunpack.c.h.b16 %v729
    %v1755 = vunpack.c.l.b16 %v730
    %v1756 = vunpack.c.h.b16 %v730
    %v1757 = vunpack.c.l.b16 %v731
    %v1758 = vunpack.c.h.b16 %v731
    %v1759 = vunpack.c.l.b16 %v732
    %v1760 = vunpack.c.h.b16 %v732
    %v1761 = vunpack.c.l.b16 %v733
    %v1762 = vunpack.c.h.b16 %v733
    %v1763 = vunpack.c.l.b16 %v734
    %v1764 = vunpack.c.h.b16 %v734
    %v1765 = vunpack.c.l.b16 %v735
    %v1766 = vunpack.c.h.b16 %v735
    %v1767 = vunpack.c.l.b16 %v736
    %v1768 = vunpack.c.h.b16 %v736
    %v1769 = vunpack.c.l.b16 %v737
    %v1770 = vunpack.c.h.b16 %v737
    %v1771 = vunpack.c.l.b16 %v738
    %v1772 = vunpack.c.h.b16 %v738
    %v1773 = vunpack.c.l.b16 %v739
    %v1774 = vunpack.c.h.b16 %v739
    %v1775 = vunpack.c.l.b16 %v740
    %v1776 = vunpack.c.h.b16 %v740
    %v1777 = vunpack.c.l.b16 %v741
    %v1778 = vunpack.c.h.b16 %v741
    %v1779 = vunpack.c.l.b16 %v742
    %v1780 = vunpack.c.h.b16 %v742
    %v1781 = vunpack.c.l.b16 %v743
    %v1782 = vunpack.c.h.b16 %v743
    %v1783 = vunpack.c.l.b16 %v744
    %v1784 = vunpack.c.h.b16 %v744
    %v1785 = vunpack.c.l.b16 %v745
    %v1786 = vunpack.c.h.b16 %v745
    %v1787 = vunpack.c.l.b16 %v746
    %v1788 = vunpack.c.h.b16 %v746
    %v1789 = vunpack.c.l.b16 %v747
    %v1790 = vunpack.c.h.b16 %v747
    %v1791 = vunpack.c.l.b16 %v748
    %v1792 = vunpack.c.h.b16 %v748
    %v1793 = vunpack.c.l.b16 %v749
    %v1794 = vunpack.c.h.b16 %v749
    %v1795 = vunpack.c.l.b16 %v750
    %v1796 = vunpack.c.h.b16 %v750
    %v1797 = vunpack.c.l.b16 %v751
    %v1798 = vunpack.c.h.b16 %v751
    %v1799 = vunpack.c.l.b16 %v752
    %v1800 = vunpack.c.h.b16 %v752
    %v1801 = vunpack.c.l.b16 %v753
    %v1802 = vunpack.c.h.b16 %v753
    %v1803 = vunpack.c.l.b16 %v754
    %v1804 = vunpack.c.h.b16 %v754
    %v1805 = vunpack.c.l.b16 %v755
    %v1806 = vunpack.c.h.b16 %v755
    %v1807 = vunpack.c.l.b16 %v756
    %v1808 = vunpack.c.h.b16 %v756
    %v1809 = vunpack.c.l.b16 %v757
    %v1810 = vunpack.c.h.b16 %v757
    %v1811 = vunpack.c.l.b16 %v758
    %v1812 = vunpack.c.h.b16 %v758
    %v1813 = vunpack.c.l.b16 %v759
    %v1814 = vunpack.c.h.b16 %v759
    %v1815 = vunpack.c.l.b16 %v760
    %v1816 = vunpack.c.h.b16 %v760
    %v1817 = vunpack.c.l.b16 %v761
    %v1818 = vunpack.c.h.b16 %v761
    %v1819 = vunpack.c.l.b16 %v762
    %v1820 = vunpack.c.h.b16 %v762
    %v1821 = vunpack.c.l.b16 %v763
    %v1822 = vunpack.c.h.b16 %v763
    %v1823 = vunpack.c.l.b16 %v764
    %v1824 = vunpack.c.h.b16 %v764
    %v1825 = vunpack.c.l.b16 %v765
    %v1826 = vunpack.c.h.b16 %v765
    %v1827 = vunpack.c.l.b16 %v766
    %v1828 = vunpack.c.h.b16 %v766
    %v1829 = vunpack.c.l.b16 %v767
    %v1830 = vunpack.c.h.b16 %v767
    %v1831 = vunpack.c.l.b16 %v768
    %v1832 = vunpack.c.h.b16 %v768
    %v1833 = vunpack.c.l.b16 %v769
    %v1834 = vunpack.c.h.b16 %v769
    %v1835 = vunpack.c.l.b16 %v770
    %v1836 = vunpack.c.h.b16 %v770
    %v1837 = vunpack.c.l.b16 %v771
    %v1838 = vunpack.c.h.b16 %v771
    %v1839 = vunpack.c.l.b16 %v772
    %v1840 = vunpack.c.h.b16 %v772
    %v1841 = vunpack.c.l.b16 %v773
    %v1842 = vunpack.c.h.b16 %v773
    %v1843 = vunpack.c.l.b16 %v774
    %v1844 = vunpack.c.h.b16 %v774
    %v1845 = vunpack.c.l.b16 %v775
    %v1846 = vunpack.c.h.b16 %v775
    %v1847 = vunpack.c.l.b16 %v776
    %v1848 = vunpack.c.h.b16 %v776
    %v1849 = vunpack.c.l.b16 %v777
    %v1850 = vunpack.c.h.b16 %v777
    %v1851 = vunpack.c.l.b16 %v778
    %v1852 = vunpack.c.h.b16 %v778
    %v1853 = vunpack.c.l.b16 %v779
    %v1854 = vunpack.c.h.b16 %v779
    %v1855 = vunpack.c.l.b16 %v780
    %v1856 = vunpack.c.h.b16 %v780
    %v1857 = vunpack.c.l.b16 %v781
    %v1858 = vunpack.c.h.b16 %v781
    %v1859 = vunpack.c.l.b16 %v782
    %v1860 = vunpack.c.h.b16 %v782
    %v1861 = vunpack.c.l.b16 %v783
    %v1862 = vunpack.c.h.b16 %v783
    %v1863 = vunpack.c.l.b16 %v784
    %v1864 = vunpack.c.h.b16 %v784
    %v1865 = vunpack.c.l.b16 %v785
    %v1866 = vunpack.c.h.b16 %v785
    %v1867 = vunpack.c.l.b16 %v786
    %v1868 = vunpack.c.h.b16 %v786
    %v1869 = vunpack.c.l.b16 %v787
    %v1870 = vunpack.c.h.b16 %v787
    %v1871 = vunpack.c.l.b16 %v788
    %v1872 = vunpack.c.h.b16 %v788
    %v1873 = vunpack.c.l.b16 %v789
    %v1874 = vunpack.c.h.b16 %v789
    %v1875 = vunpack.c.l.b16 %v790
    %v1876 = vunpack.c.h.b16 %v790
    %v1877 = vunpack.c.l.b16 %v791
    %v1878 = vunpack.c.h.b16 %v791
    %v1879 = vunpack.c.l.b16 %v792
    %v1880 = vunpack.c.h.b16 %v792
    %v1881 = vunpack.c.l.b16 %v793
    %v1882 = vunpack.c.h.b16 %v793
    %v1883 = vunpack.c.l.b16 %v794
    %v1884 = vunpack.c.h.b16 %v794
    %v1885 = vunpack.c.l.b16 %v795
    %v1886 = vunpack.c.h.b16 %v795
    %v1887 = vunpack.c.l.b16 %v796
    %v1888 = vunpack.c.h.b16 %v796
    %v1889 = vunpack.c.l.b16 %v797
    %v1890 = vunpack.c.h.b16 %v797
    %v1891 = vunpack.c.l.b16 %v798
    %v1892 = vunpack.c.h.b16 %v798
    %v1893 = vunpack.c.l.b16 %v799
    %v1894 = vunpack.c.h.b16 %v799
    %v1895 = vunpack.c.l.b16 %v800
    %v1896 = vunpack.c.h.b16 %v800
    %v1897 = vunpack.c.l.b16 %v801
    %v1898 = vunpack.c.h.b16 %v801
    %v1899 = vunpack.c.l.b16 %v802
    %v1900 = vunpack.c.h.b16 %v802
    %v1901 = vunpack.c.l.b16 %v803
    %v1902 = vunpack.c.h.b16 %v803
    %v1903 = vunpack.c.l.b16 %v804
    %v1904 = vunpack.c.h.b16 %v804
    %v1905 = vunpack.c.l.b16 %v805
    %v1906 = vunpack.c.h.b16 %v805
    %v1907 = vunpack.c.l.b16 %v806
    %v1908 = vunpack.c.h.b16 %v806
    %v1909 = vunpack.c.l.b16 %v807
    %v1910 = vunpack.c.h.b16 %v807
    %v1911 = vunpack.c.l.b16 %v808
    %v1912 = vunpack.c.h.b16 %v808
    %v1913 = vunpack.c.l.b16 %v809
    %v1914 = vunpack.c.h.b16 %v809
    %v1915 = vunpack.c.l.b16 %v810
    %v1916 = vunpack.c.h.b16 %v810
    %v1917 = vunpack.c.l.b16 %v811
    %v1918 = vunpack.c.h.b16 %v811
    %v1919 = vunpack.c.l.b16 %v812
    %v1920 = vunpack.c.h.b16 %v812
    %v1921 = vunpack.c.l.b16 %v813
    %v1922 = vunpack.c.h.b16 %v813
    %v1923 = vunpack.c.l.b16 %v814
    %v1924 = vunpack.c.h.b16 %v814
    %v1925 = vunpack.c.l.b16 %v815
    %v1926 = vunpack.c.h.b16 %v815
    %v1927 = vunpack.c.l.b16 %v816
    %v1928 = vunpack.c.h.b16 %v816
    %v1929 = vunpack.c.l.b16 %v817
    %v1930 = vunpack.c.h.b16 %v817
    %v1931 = vunpack.c.l.b16 %v818
    %v1932 = vunpack.c.h.b16 %v818
    %v1933 = vunpack.c.l.b16 %v819
    %v1934 = vunpack.c.h.b16 %v819
    %v1935 = vunpack.c.l.b16 %v820
    %v1936 = vunpack.c.h.b16 %v820
    %v1937 = vunpack.c.l.b16 %v821
    %v1938 = vunpack.c.h.b16 %v821
    %v1939 = vunpack.c.l.b16 %v822
    %v1940 = vunpack.c.h.b16 %v822
    %v1941 = vunpack.c.l.b16 %v823
    %v1942 = vunpack.c.h.b16 %v823
    %v1943 = vunpack.c.l.b16 %v824
    %v1944 = vunpack.c.h.b16 %v824
    %v1945 = vunpack.c.l.b16 %v825
    %v1946 = vunpack.c.h.b16 %v825
    %v1947 = vunpack.c.l.b16 %v826
    %v1948 = vunpack.c.h.b16 %v826
    %v1949 = vunpack.c.l.b16 %v827
    %v1950 = vunpack.c.h.b16 %v827
    %v1951 = vunpack.c.l.b16 %v828
    %v1952 = vunpack.c.h.b16 %v828
    %v1953 = vunpack.c.l.b16 %v829
    %v1954 = vunpack.c.h.b16 %v829
    %v1955 = vunpack.c.l.b16 %v830
    %v1956 = vunpack.c.h.b16 %v830
    %v1957 = vunpack.c.l.b16 %v831
    %v1958 = vunpack.c.h.b16 %v831
    %v1959 = vunpack.c.l.b16 %v832
    %v1960 = vunpack.c.h.b16 %v832
    %v1961 = vunpack.c.l.b16 %v833
    %v1962 = vunpack.c.h.b16 %v833
    %v1963 = vunpack.c.l.b16 %v834
    %v1964 = vunpack.c.h.b16 %v834
    %v1965 = vunpack.c.l.b16 %v835
    %v1966 = vunpack.c.h.b16 %v835
    %v1967 = vunpack.c.l.b16 %v836
    %v1968 = vunpack.c.h.b16 %v836
    %v1969 = vunpack.c.l.b16 %v837
    %v1970 = vunpack.c.h.b16 %v837
    %v1971 = vunpack.c.l.b16 %v838
    %v1972 = vunpack.c.h.b16 %v838
    %v1973 = vunpack.c.l.b16 %v839
    %v1974 = vunpack.c.h.b16 %v839
    %v1975 = vunpack.c.l.b16 %v840
    %v1976 = vunpack.c.h.b16 %v840
    %v1977 = vunpack.c.l.b16 %v841
    %v1978 = vunpack.c.h.b16 %v841
    %v1979 = vunpack.c.l.b16 %v842
    %v1980 = vunpack.c.h.b16 %v842
    %v1981 = vunpack.c.l.b16 %v843
    %v1982 = vunpack.c.h.b16 %v843
    %v1983 = vunpack.c.l.b16 %v844
    %v1984 = vunpack.c.h.b16 %v844
    %v1985 = vunpack.c.l.b16 %v845
    %v1986 = vunpack.c.h.b16 %v845
    %v1987 = vunpack.c.l.b16 %v846
    %v1988 = vunpack.c.h.b16 %v846
    %v1989 = vunpack.c.l.b16 %v847
    %v1990 = vunpack.c.h.b16 %v847
    %v1991 = vunpack.c.l.b16 %v848
    %v1992 = vunpack.c.h.b16 %v848
    %v1993 = vunpack.c.l.b16 %v849
    %v1994 = vunpack.c.h.b16 %v849
    %v1995 = vunpack.c.l.b16 %v850
    %v1996 = vunpack.c.h.b16 %v850
    %v1997 = vunpack.c.l.b16 %v851
    %v1998 = vunpack.c.h.b16 %v851
    %v1999 = vunpack.c.l.b16 %v852
    %v2000 = vunpack.c.h.b16 %v852
    %v2001 = vunpack.c.l.b16 %v853
    %v2002 = vunpack.c.h.b16 %v853
    %v2003 = vunpack.c.l.b16 %v854
    %v2004 = vunpack.c.h.b16 %v854
    %v2005 = vunpack.c.l.b16 %v855
    %v2006 = vunpack.c.h.b16 %v855
    %v2007 = vunpack.c.l.b16 %v856
    %v2008 = vunpack.c.h.b16 %v856
    %v2009 = vunpack.c.l.b16 %v857
    %v2010 = vunpack.c.h.b16 %v857
    %v2011 = vunpack.c.l.b16 %v858
    %v2012 = vunpack.c.h.b16 %v858
    %v2013 = vunpack.c.l.b16 %v859
    %v2014 = vunpack.c.h.b16 %v859
    %v2015 = vunpack.c.l.b16 %v860
    %v2016 = vunpack.c.h.b16 %v860
    %v2017 = vunpack.c.l.b16 %v861
    %v2018 = vunpack.c.h.b16 %v861
    %v2019 = vunpack.c.l.b16 %v862
    %v2020 = vunpack.c.h.b16 %v862
    %v2021 = vunpack.c.l.b16 %v863
    %v2022 = vunpack.c.h.b16 %v863
    %v2023 = vunpack.c.l.b16 %v864
    %v2024 = vunpack.c.h.b16 %v864
    %v2025 = vunpack.c.l.b16 %v865
    %v2026 = vunpack.c.h.b16 %v865
    %v2027 = vunpack.c.l.b16 %v866
    %v2028 = vunpack.c.h.b16 %v866
    %v2029 = vunpack.c.l.b16 %v867
    %v2030 = vunpack.c.h.b16 %v867
    %v2031 = vunpack.c.l.b16 %v868
    %v2032 = vunpack.c.h.b16 %v868
    %v2033 = vunpack.c.l.b16 %v869
    %v2034 = vunpack.c.h.b16 %v869
    %v2035 = vunpack.c.l.b16 %v870
    %v2036 = vunpack.c.h.b16 %v870
    %v2037 = vunpack.c.l.b16 %v871
    %v2038 = vunpack.c.h.b16 %v871
    %v2039 = vunpack.c.l.b16 %v872
    %v2040 = vunpack.c.h.b16 %v872
    %v2041 = vunpack.c.l.b16 %v873
    %v2042 = vunpack.c.h.b16 %v873
    %v2043 = vunpack.c.l.b16 %v874
    %v2044 = vunpack.c.h.b16 %v874
    %v2045 = vunpack.c.l.b16 %v875
    %v2046 = vunpack.c.h.b16 %v875
    %v2047 = vunpack.c.l.b16 %v876
    %v2048 = vunpack.c.h.b16 %v876
    %v2049 = vunpack.c.l.b16 %v877
    %v2050 = vunpack.c.h.b16 %v877
    %v2051 = vunpack.c.l.b16 %v878
    %v2052 = vunpack.c.h.b16 %v878
    %v2053 = vunpack.c.l.b16 %v879
    %v2054 = vunpack.c.h.b16 %v879
    %v2055 = vunpack.c.l.b16 %v880
    %v2056 = vunpack.c.h.b16 %v880
    %v2057 = vunpack.c.l.b16 %v881
    %v2058 = vunpack.c.h.b16 %v881
    %v2059 = vunpack.c.l.b16 %v882
    %v2060 = vunpack.c.h.b16 %v882
    %v2061 = vunpack.c.l.b16 %v883
    %v2062 = vunpack.c.h.b16 %v883
    %v2063 = vunpack.c.l.b16 %v884
    %v2064 = vunpack.c.h.b16 %v884
    %v2065 = vunpack.c.l.b16 %v885
    %v2066 = vunpack.c.h.b16 %v885
    %v2067 = vunpack.c.l.b16 %v886
    %v2068 = vunpack.c.h.b16 %v886
    %v2069 = vunpack.c.l.b16 %v887
    %v2070 = vunpack.c.h.b16 %v887
    %v2071 = vunpack.c.l.b16 %v888
    %v2072 = vunpack.c.h.b16 %v888
    %v2073 = vunpack.c.l.b16 %v889
    %v2074 = vunpack.c.h.b16 %v889
    %v2075 = vunpack.c.l.b16 %v890
    %v2076 = vunpack.c.h.b16 %v890
    %v2077 = vunpack.c.l.b16 %v891
    %v2078 = vunpack.c.h.b16 %v891
    %v2079 = vunpack.c.l.b16 %v892
    %v2080 = vunpack.c.h.b16 %v892
    %v2081 = vunpack.c.l.b16 %v893
    %v2082 = vunpack.c.h.b16 %v893
    %v2083 = vunpack.c.l.b16 %v894
    %v2084 = vunpack.c.h.b16 %v894
    %v2085 = vunpack.c.l.b16 %v895
    %v2086 = vunpack.c.h.b16 %v895
    %v2087 = vunpack.c.l.b16 %v896
    %v2088 = vunpack.c.h.b16 %v896
    %v2089 = vunpack.c.l.b16 %v897
    %v2090 = vunpack.c.h.b16 %v897
    %v2091 = vunpack.c.l.b16 %v898
    %v2092 = vunpack.c.h.b16 %v898
    %v2093 = vunpack.c.l.b16 %v899
    %v2094 = vunpack.c.h.b16 %v899
    %v2095 = vunpack.c.l.b16 %v900
    %v2096 = vunpack.c.h.b16 %v900
    %v2097 = vunpack.c.l.b16 %v901
    %v2098 = vunpack.c.h.b16 %v901
    %v2099 = vunpack.c.l.b16 %v902
    %v2100 = vunpack.c.h.b16 %v902
    %v2101 = vunpack.c.l.b16 %v903
    %v2102 = vunpack.c.h.b16 %v903
    %v2103 = vunpack.c.l.b16 %v904
    %v2104 = vunpack.c.h.b16 %v904
    %v2105 = vunpack.c.l.b16 %v905
    %v2106 = vunpack.c.h.b16 %v905
    %v2107 = vunpack.c.l.b16 %v906
    %v2108 = vunpack.c.h.b16 %v906
    %v2109 = vunpack.c.l.b16 %v907
    %v2110 = vunpack.c.h.b16 %v907
    %v2111 = vunpack.c.l.b16 %v908
    %v2112 = vunpack.c.h.b16 %v908
    %v2113 = vunpack.c.l.b16 %v909
    %v2114 = vunpack.c.h.b16 %v909
    %v2115 = vunpack.c.l.b16 %v910
    %v2116 = vunpack.c.h.b16 %v910
    %v2117 = vunpack.c.l.b16 %v911
    %v2118 = vunpack.c.h.b16 %v911
    %v2119 = vunpack.c.l.b16 %v912
    %v2120 = vunpack.c.h.b16 %v912
    %v2121 = vunpack.c.l.b16 %v913
    %v2122 = vunpack.c.h.b16 %v913
    %v2123 = vunpack.c.l.b16 %v914
    %v2124 = vunpack.c.h.b16 %v914
    %v2125 = vunpack.c.l.b16 %v915
    %v2126 = vunpack.c.h.b16 %v915
    %v2127 = vunpack.c.l.b16 %v916
    %v2128 = vunpack.c.h.b16 %v916
    %v2129 = vunpack.c.l.b16 %v917
    %v2130 = vunpack.c.h.b16 %v917
    %v2131 = vunpack.c.l.b16 %v918
    %v2132 = vunpack.c.h.b16 %v918
    %v2133 = vunpack.c.l.b16 %v919
    %v2134 = vunpack.c.h.b16 %v919
    %v2135 = vunpack.c.l.b16 %v920
    %v2136 = vunpack.c.h.b16 %v920
    %v2137 = vunpack.c.l.b16 %v921
    %v2138 = vunpack.c.h.b16 %v921
    %v2139 = vunpack.c.l.b16 %v922
    %v2140 = vunpack.c.h.b16 %v922
    %v2141 = vunpack.c.l.b16 %v923
    %v2142 = vunpack.c.h.b16 %v923
    %v2143 = vunpack.c.l.b16 %v924
    %v2144 = vunpack.c.h.b16 %v924
    %v2145 = vunpack.c.l.b16 %v925
    %v2146 = vunpack.c.h.b16 %v925
    %v2147 = vunpack.c.l.b16 %v926
    %v2148 = vunpack.c.h.b16 %v926
    %v2149 = vunpack.c.l.b16 %v927
    %v2150 = vunpack.c.h.b16 %v927
    %v2151 = vunpack.c.l.b16 %v928
    %v2152 = vunpack.c.h.b16 %v928
    %v2153 = vunpack.c.l.b16 %v929
    %v2154 = vunpack.c.h.b16 %v929
    %v2155 = vunpack.c.l.b16 %v930
    %v2156 = vunpack.c.h.b16 %v930
    %v2157 = vunpack.c.l.b16 %v931
    %v2158 = vunpack.c.h.b16 %v931
    %v2159 = vunpack.c.l.b16 %v932
    %v2160 = vunpack.c.h.b16 %v932
    %v2161 = vunpack.c.l.b16 %v933
    %v2162 = vunpack.c.h.b16 %v933
    %v2163 = vunpack.c.l.b16 %v934
    %v2164 = vunpack.c.h.b16 %v934
    %v2165 = vunpack.c.l.b16 %v935
    %v2166 = vunpack.c.h.b16 %v935
    %v2167 = vunpack.c.l.b16 %v936
    %v2168 = vunpack.c.h.b16 %v936
    %v2169 = vunpack.c.l.b16 %v937
    %v2170 = vunpack.c.h.b16 %v937
    %v2171 = vunpack.c.l.b16 %v938
    %v2172 = vunpack.c.h.b16 %v938
    %v2173 = vunpack.c.l.b16 %v939
    %v2174 = vunpack.c.h.b16 %v939
    %v2175 = vunpack.c.l.b16 %v940
    %v2176 = vunpack.c.h.b16 %v940
    %v2177 = vunpack.c.l.b16 %v941
    %v2178 = vunpack.c.h.b16 %v941
    %v2179 = vunpack.c.l.b16 %v942
    %v2180 = vunpack.c.h.b16 %v942
    %v2181 = vunpack.c.l.b16 %v943
    %v2182 = vunpack.c.h.b16 %v943
    %v2183 = vunpack.c.l.b16 %v944
    %v2184 = vunpack.c.h.b16 %v944
    %v2185 = vunpack.c.l.b16 %v945
    %v2186 = vunpack.c.h.b16 %v945
    %v2187 = vunpack.c.l.b16 %v946
    %v2188 = vunpack.c.h.b16 %v946
    %v2189 = vunpack.c.l.b16 %v947
    %v2190 = vunpack.c.h.b16 %v947
    %v2191 = vunpack.c.l.b16 %v948
    %v2192 = vunpack.c.h.b16 %v948
    %v2193 = vunpack.c.l.b16 %v949
    %v2194 = vunpack.c.h.b16 %v949
    %v2195 = vunpack.c.l.b16 %v950
    %v2196 = vunpack.c.h.b16 %v950
    %v2197 = vunpack.c.l.b16 %v951
    %v2198 = vunpack.c.h.b16 %v951
    %v2199 = vunpack.c.l.b16 %v952
    %v2200 = vunpack.c.h.b16 %v952
    %v2201 = vunpack.c.l.b16 %v953
    %v2202 = vunpack.c.h.b16 %v953
    %v2203 = vunpack.c.l.b16 %v954
    %v2204 = vunpack.c.h.b16 %v954
    %v2205 = vunpack.c.l.b16 %v955
    %v2206 = vunpack.c.h.b16 %v955
    %v2207 = vunpack.c.l.b16 %v956
    %v2208 = vunpack.c.h.b16 %v956
    %v2209 = vunpack.c.l.b16 %v957
    %v2210 = vunpack.c.h.b16 %v957
    %v2211 = vunpack.c.l.b16 %v958
    %v2212 = vunpack.c.h.b16 %v958
    %v2213 = vunpack.c.l.b16 %v959
    %v2214 = vunpack.c.h.b16 %v959
    %v2215 = vunpack.c.l.b16 %v960
    %v2216 = vunpack.c.h.b16 %v960
    %v2217 = vunpack.c.l.b16 %v961
    %v2218 = vunpack.c.h.b16 %v961
    %v2219 = vunpack.c.l.b16 %v962
    %v2220 = vunpack.c.h.b16 %v962
    %v2221 = vunpack.c.l.b16 %v963
    %v2222 = vunpack.c.h.b16 %v963
    %v2223 = vunpack.c.l.b16 %v964
    %v2224 = vunpack.c.h.b16 %v964
    %v2225 = vunpack.c.l.b16 %v965
    %v2226 = vunpack.c.h.b16 %v965
    %v2227 = vunpack.c.l.b16 %v966
    %v2228 = vunpack.c.h.b16 %v966
    %v2229 = vunpack.c.l.b16 %v967
    %v2230 = vunpack.c.h.b16 %v967
    %v2231 = vunpack.c.l.b16 %v968
    %v2232 = vunpack.c.h.b16 %v968
    %v2233 = vunpack.c.l.b16 %v969
    %v2234 = vunpack.c.h.b16 %v969
    %v2235 = vunpack.c.l.b16 %v970
    %v2236 = vunpack.c.h.b16 %v970
    %v2237 = vunpack.c.l.b16 %v971
    %v2238 = vunpack.c.h.b16 %v971
    %v2239 = vunpack.c.l.b16 %v972
    %v2240 = vunpack.c.h.b16 %v972
    %v2241 = vunpack.c.l.b16 %v973
    %v2242 = vunpack.c.h.b16 %v973
    %v2243 = vunpack.c.l.b16 %v974
    %v2244 = vunpack.c.h.b16 %v974
    %v2245 = vunpack.c.l.b16 %v975
    %v2246 = vunpack.c.h.b16 %v975
    %v2247 = vunpack.c.l.b16 %v976
    %v2248 = vunpack.c.h.b16 %v976
    %v2249 = vunpack.c.l.b16 %v977
    %v2250 = vunpack.c.h.b16 %v977
    %v2251 = vunpack.c.l.b16 %v978
    %v2252 = vunpack.c.h.b16 %v978
    %v2253 = vunpack.c.l.b16 %v979
    %v2254 = vunpack.c.h.b16 %v979
    %v2255 = vunpack.c.l.b16 %v980
    %v2256 = vunpack.c.h.b16 %v980
    %v2257 = vunpack.c.l.b16 %v981
    %v2258 = vunpack.c.h.b16 %v981
    %v2259 = vunpack.c.l.b16 %v982
    %v2260 = vunpack.c.h.b16 %v982
    %v2261 = vunpack.c.l.b16 %v983
    %v2262 = vunpack.c.h.b16 %v983
    %v2263 = vunpack.c.l.b16 %v984
    %v2264 = vunpack.c.h.b16 %v984
    %v2265 = vunpack.c.l.b16 %v985
    %v2266 = vunpack.c.h.b16 %v985
    %v2267 = vunpack.c.l.b16 %v986
    %v2268 = vunpack.c.h.b16 %v986
    %v2269 = vunpack.c.l.b16 %v987
    %v2270 = vunpack.c.h.b16 %v987
    %v2271 = vunpack.c.l.b16 %v988
    %v2272 = vunpack.c.h.b16 %v988
    %v2273 = vunpack.c.l.b16 %v989
    %v2274 = vunpack.c.h.b16 %v989
    %v2275 = vunpack.c.l.b16 %v990
    %v2276 = vunpack.c.h.b16 %v990
    %v2277 = vunpack.c.l.b16 %v991
    %v2278 = vunpack.c.h.b16 %v991
    %v2279 = vunpack.c.l.b16 %v992
    %v2280 = vunpack.c.h.b16 %v992
    %v2281 = vunpack.c.l.b16 %v993
    %v2282 = vunpack.c.h.b16 %v993
    %v2283 = vunpack.c.l.b16 %v994
    %v2284 = vunpack.c.h.b16 %v994
    %v2285 = vunpack.c.l.b16 %v995
    %v2286 = vunpack.c.h.b16 %v995
    %v2287 = vunpack.c.l.b16 %v996
    %v2288 = vunpack.c.h.b16 %v996
    %v2289 = vunpack.c.l.b16 %v997
    %v2290 = vunpack.c.h.b16 %v997
    %v2291 = vunpack.c.l.b16 %v998
    %v2292 = vunpack.c.h.b16 %v998
    %v2293 = vunpack.c.l.b16 %v999
    %v2294 = vunpack.c.h.b16 %v999
    %v2295 = vunpack.c.l.b16 %v1000
    %v2296 = vunpack.c.h.b16 %v1000
    %v2297 = vunpack.c.l.b16 %v1001
    %v2298 = vunpack.c.h.b16 %v1001
    %v2299 = vunpack.c.l.b16 %v1002
    %v2300 = vunpack.c.h.b16 %v1002
    %v2301 = vunpack.c.l.b16 %v1003
    %v2302 = vunpack.c.h.b16 %v1003
    %v2303 = vunpack.c.l.b16 %v1004
    %v2304 = vunpack.c.h.b16 %v1004
    %v2305 = vunpack.c.l.b16 %v1005
    %v2306 = vunpack.c.h.b16 %v1005
    %v2307 = vunpack.c.l.b16 %v1006
    %v2308 = vunpack.c.h.b16 %v1006
    %v2309 = vunpack.c.l.b16 %v1007
    %v2310 = vunpack.c.h.b16 %v1007
    %v2311 = vunpack.c.l.b16 %v1008
    %v2312 = vunpack.c.h.b16 %v1008
    %v2313 = vunpack.c.l.b16 %v1009
    %v2314 = vunpack.c.h.b16 %v1009
    %v2315 = vunpack.c.l.b16 %v1010
    %v2316 = vunpack.c.h.b16 %v1010
    %v2317 = vunpack.c.l.b16 %v1011
    %v2318 = vunpack.c.h.b16 %v1011
    %v2319 = vunpack.c.l.b16 %v1012
    %v2320 = vunpack.c.h.b16 %v1012
    %v2321 = vunpack.c.l.b16 %v1013
    %v2322 = vunpack.c.h.b16 %v1013
    %v2323 = vunpack.c.l.b16 %v1014
    %v2324 = vunpack.c.h.b16 %v1014
    %v2325 = vunpack.c.l.b16 %v1015
    %v2326 = vunpack.c.h.b16 %v1015
    %v2327 = vunpack.c.l.b16 %v1016
    %v2328 = vunpack.c.h.b16 %v1016
    %v2329 = vunpack.c.l.b16 %v1017
    %v2330 = vunpack.c.h.b16 %v1017
    %v2331 = vunpack.c.l.b16 %v1018
    %v2332 = vunpack.c.h.b16 %v1018
    %v2333 = vunpack.c.l.b16 %v1019
    %v2334 = vunpack.c.h.b16 %v1019
    %v2335 = vunpack.c.l.b16 %v1020
    %v2336 = vunpack.c.h.b16 %v1020
    %v2337 = vunpack.c.l.b16 %v1021
    %v2338 = vunpack.c.h.b16 %v1021
    %v2339 = vunpack.c.l.b16 %v1022
    %v2340 = vunpack.c.h.b16 %v1022
    %v2341 = vunpack.c.l.b16 %v1023
    %v2342 = vunpack.c.h.b16 %v1023
    %v2343 = vunpack.c.l.b16 %v1024
    %v2344 = vunpack.c.h.b16 %v1024
    %v2345 = vunpack.c.l.b16 %v1025
    %v2346 = vunpack.c.h.b16 %v1025
    %v2347 = vunpack.c.l.b16 %v1026
    %v2348 = vunpack.c.h.b16 %v1026
    %v2349 = vunpack.c.l.b16 %v1027
    %v2350 = vunpack.c.h.b16 %v1027
    %v2351 = vunpack.c.l.b16 %v1028
    %v2352 = vunpack.c.h.b16 %v1028
    %v2353 = vunpack.c.l.b16 %v1029
    %v2354 = vunpack.c.h.b16 %v1029
    %v2355 = vunpack.c.l.b16 %v1030
    %v2356 = vunpack.c.h.b16 %v1030
    %v2357 = vunpack.c.l.b16 %v1031
    %v2358 = vunpack.c.h.b16 %v1031
    %v2359 = vunpack.c.l.b16 %v1032
    %v2360 = vunpack.c.h.b16 %v1032
    %v2361 = vunpack.c.l.b16 %v1033
    %v2362 = vunpack.c.h.b16 %v1033
    %v2363 = vunpack.c.l.b16 %v1034
    %v2364 = vunpack.c.h.b16 %v1034
    %v2365 = vunpack.c.l.b16 %v1035
    %v2366 = vunpack.c.h.b16 %v1035
    %v2367 = vunpack.c.l.b16 %v1036
    %v2368 = vunpack.c.h.b16 %v1036
    %v2369 = vunpack.c.l.b16 %v1037
    %v2370 = vunpack.c.h.b16 %v1037
    %v2371 = vunpack.c.l.b16 %v1038
    %v2372 = vunpack.c.h.b16 %v1038
    %v2373 = vunpack.c.l.b16 %v1039
    %v2374 = vunpack.c.h.b16 %v1039
    %v2375 = vunpack.c.l.b16 %v1040
    %v2376 = vunpack.c.h.b16 %v1040
    %v2377 = vunpack.c.l.b16 %v1041
    %v2378 = vunpack.c.h.b16 %v1041
    %v2379 = vunpack.c.l.b16 %v1042
    %v2380 = vunpack.c.h.b16 %v1042
    %v2381 = vunpack.c.l.b16 %v1043
    %v2382 = vunpack.c.h.b16 %v1043
    %v2383 = vunpack.c.l.b16 %v1044
    %v2384 = vunpack.c.h.b16 %v1044
    %v2385 = vunpack.c.l.b16 %v1045
    %v2386 = vunpack.c.h.b16 %v1045
    %v2387 = vunpack.c.l.b16 %v1046
    %v2388 = vunpack.c.h.b16 %v1046
    %v2389 = vunpack.c.l.b16 %v1047
    %v2390 = vunpack.c.h.b16 %v1047
    %v2391 = vunpack.c.l.b16 %v1048
    %v2392 = vunpack.c.h.b16 %v1048
    %v2393 = vunpack.c.l.b16 %v1049
    %v2394 = vunpack.c.h.b16 %v1049
    %v2395 = vunpack.c.l.b16 %v1050
    %v2396 = vunpack.c.h.b16 %v1050
    %v2397 = vunpack.c.l.b16 %v1051
    %v2398 = vunpack.c.h.b16 %v1051
    %v2399 = vunpack.c.l.b16 %v1052
    %v2400 = vunpack.c.h.b16 %v1052
    %v2401 = vunpack.c.l.b16 %v1053
    %v2402 = vunpack.c.h.b16 %v1053
    %v2403 = vunpack.c.l.b16 %v1054
    %v2404 = vunpack.c.h.b16 %v1054
    %v2405 = vunpack.c.l.b16 %v1055
    %v2406 = vunpack.c.h.b16 %v1055
    %v2407 = vunpack.c.l.b16 %v1056
    %v2408 = vunpack.c.h.b16 %v1056
    %v2409 = vunpack.c.l.b16 %v1057
    %v2410 = vunpack.c.h.b16 %v1057
    %v2411 = vunpack.c.l.b16 %v1058
    %v2412 = vunpack.c.h.b16 %v1058
    %v2413 = vunpack.c.l.b16 %v1059
    %v2414 = vunpack.c.h.b16 %v1059
    %v2415 = vunpack.c.l.b16 %v1060
    %v2416 = vunpack.c.h.b16 %v1060
    %v2417 = vunpack.c.l.b16 %v1061
    %v2418 = vunpack.c.h.b16 %v1061
    %v2419 = vunpack.c.l.b16 %v1062
    %v2420 = vunpack.c.h.b16 %v1062
    %v2421 = vunpack.c.l.b16 %v1063
    %v2422 = vunpack.c.h.b16 %v1063
    %v2423 = vunpack.c.l.b16 %v1064
    %v2424 = vunpack.c.h.b16 %v1064
    %v2425 = vunpack.c.l.b16 %v1065
    %v2426 = vunpack.c.h.b16 %v1065
    %v2427 = vunpack.c.l.b16 %v1066
    %v2428 = vunpack.c.h.b16 %v1066
    %v2429 = vunpack.c.l.b16 %v1067
    %v2430 = vunpack.c.h.b16 %v1067
    %v2431 = vunpack.c.l.b16 %v1068
    %v2432 = vunpack.c.h.b16 %v1068
    %v2433 = vunpack.c.l.b16 %v1069
    %v2434 = vunpack.c.h.b16 %v1069
    %v2435 = vunpack.c.l.b16 %v1070
    %v2436 = vunpack.c.h.b16 %v1070
    %v2437 = vunpack.c.l.b16 %v1071
    %v2438 = vunpack.c.h.b16 %v1071
    %v2439 = vunpack.c.l.b16 %v1072
    %v2440 = vunpack.c.h.b16 %v1072
    %v2441 = vunpack.c.l.b16 %v1073
    %v2442 = vunpack.c.h.b16 %v1073
    %v2443 = vunpack.c.l.b16 %v1074
    %v2444 = vunpack.c.h.b16 %v1074
    %v2445 = vunpack.c.l.b16 %v1075
    %v2446 = vunpack.c.h.b16 %v1075
    %v2447 = vunpack.c.l.b16 %v1076
    %v2448 = vunpack.c.h.b16 %v1076
    %v2449 = vunpack.c.l.b16 %v1077
    %v2450 = vunpack.c.h.b16 %v1077
    %v2451 = vunpack.c.l.b16 %v1078
    %v2452 = vunpack.c.h.b16 %v1078
    %v2453 = vunpack.c.l.b16 %v1079
    %v2454 = vunpack.c.h.b16 %v1079
    %v2455 = vunpack.c.l.b16 %v1080
    %v2456 = vunpack.c.h.b16 %v1080
    %v2457 = vunpack.c.l.b16 %v1081
    %v2458 = vunpack.c.h.b16 %v1081
    %v2459 = vunpack.c.l.b16 %v1082
    %v2460 = vunpack.c.h.b16 %v1082
    %v2461 = vunpack.c.l.b16 %v1083
    %v2462 = vunpack.c.h.b16 %v1083
    %v2463 = vunpack.c.l.b16 %v1084
    %v2464 = vunpack.c.h.b16 %v1084
    %v2465 = vunpack.c.l.b16 %v1085
    %v2466 = vunpack.c.h.b16 %v1085
    %v2467 = vunpack.c.l.b16 %v1086
    %v2468 = vunpack.c.h.b16 %v1086
    %v2469 = vunpack.c.l.b16 %v1087
    %v2470 = vunpack.c.h.b16 %v1087
    %v2471 = vunpack.c.l.b16 %v1088
    %v2472 = vunpack.c.h.b16 %v1088
    %v2473 = vunpack.c.l.b16 %v1089
    %v2474 = vunpack.c.h.b16 %v1089
    %v2475 = vunpack.c.l.b16 %v1090
    %v2476 = vunpack.c.h.b16 %v1090
    %v2477 = vunpack.c.l.b16 %v1091
    %v2478 = vunpack.c.h.b16 %v1091
    %v2479 = vunpack.c.l.b16 %v1092
    %v2480 = vunpack.c.h.b16 %v1092
    %v2481 = vunpack.c.l.b16 %v1093
    %v2482 = vunpack.c.h.b16 %v1093
    %v2483 = vunpack.c.l.b16 %v1094
    %v2484 = vunpack.c.h.b16 %v1094
    %v2485 = vunpack.c.l.b16 %v1095
    %v2486 = vunpack.c.h.b16 %v1095
    %v2487 = vunpack.c.l.b16 %v1096
    %v2488 = vunpack.c.h.b16 %v1096
    %v2489 = vunpack.c.l.b16 %v1097
    %v2490 = vunpack.c.h.b16 %v1097
    %v2491 = vunpack.c.l.b16 %v1098
    %v2492 = vunpack.c.h.b16 %v1098
    %v2493 = vunpack.c.l.b16 %v1099
    %v2494 = vunpack.c.h.b16 %v1099
    %v2495 = vunpack.c.l.b16 %v1100
    %v2496 = vunpack.c.h.b16 %v1100
    %v2497 = vunpack.c.l.b16 %v1101
    %v2498 = vunpack.c.h.b16 %v1101
    %v2499 = vunpack.c.l.b16 %v1102
    %v2500 = vunpack.c.h.b16 %v1102
    %v2501 = vunpack.c.l.b16 %v1103
    %v2502 = vunpack.c.h.b16 %v1103
    %v2503 = vunpack.c.l.b16 %v1104
    %v2504 = vunpack.c.h.b16 %v1104
    %v2505 = vunpack.c.l.b16 %v1105
    %v2506 = vunpack.c.h.b16 %v1105
    %v2507 = vunpack.c.l.b16 %v1106
    %v2508 = vunpack.c.h.b16 %v1106
    %v2509 = vunpack.c.l.b16 %v1107
    %v2510 = vunpack.c.h.b16 %v1107
    %v2511 = vunpack.c.l.b16 %v1108
    %v2512 = vunpack.c.h.b16 %v1108
    %v2513 = vunpack.c.l.b16 %v1109
    %v2514 = vunpack.c.h.b16 %v1109
    %v2515 = vunpack.c.l.b16 %v1110
    %v2516 = vunpack.c.h.b16 %v1110
    %v2517 = vunpack.c.l.b16 %v1111
    %v2518 = vunpack.c.h.b16 %v1111
    %v2519 = vunpack.c.l.b16 %v1112
    %v2520 = vunpack.c.h.b16 %v1112
    %v2521 = vunpack.c.l.b16 %v1113
    %v2522 = vunpack.c.h.b16 %v1113
    %v2523 = vunpack.c.l.b16 %v1114
    %v2524 = vunpack.c.h.b16 %v1114
    %v2525 = vunpack.c.l.b16 %v1115
    %v2526 = vunpack.c.h.b16 %v1115
    %v2527 = vunpack.c.l.b16 %v1116
    %v2528 = vunpack.c.h.b16 %v1116
    %v2529 = vunpack.c.l.b16 %v1117
    %v2530 = vunpack.c.h.b16 %v1117
    %v2531 = vunpack.c.l.b16 %v1118
    %v2532 = vunpack.c.h.b16 %v1118
    %v2533 = vunpack.c.l.b16 %v1119
    %v2534 = vunpack.c.h.b16 %v1119
    %v2535 = vunpack.c.l.b16 %v1120
    %v2536 = vunpack.c.h.b16 %v1120
    %v2537 = vunpack.c.l.b16 %v1121
    %v2538 = vunpack.c.h.b16 %v1121
    %v2539 = vunpack.c.l.b16 %v1122
    %v2540 = vunpack.c.h.b16 %v1122
    %v2541 = vunpack.c.l.b16 %v1123
    %v2542 = vunpack.c.h.b16 %v1123
    %v2543 = vunpack.c.l.b16 %v1124
    %v2544 = vunpack.c.h.b16 %v1124
    %v2545 = vunpack.c.l.b16 %v1125
    %v2546 = vunpack.c.h.b16 %v1125
    %v2547 = vunpack.c.l.b16 %v1126
    %v2548 = vunpack.c.h.b16 %v1126
    %v2549 = vunpack.c.l.b16 %v1127
    %v2550 = vunpack.c.h.b16 %v1127
    %v2551 = vunpack.c.l.b16 %v1128
    %v2552 = vunpack.c.h.b16 %v1128
    %v2553 = vunpack.c.l.b16 %v1129
    %v2554 = vunpack.c.h.b16 %v1129
    %v2555 = vunpack.c.l.b16 %v1130
    %v2556 = vunpack.c.h.b16 %v1130
    %v2557 = vunpack.c.l.b16 %v1131
    %v2558 = vunpack.c.h.b16 %v1131
    %v2559 = vunpack.c.l.b16 %v1132
    %v2560 = vunpack.c.h.b16 %v1132
    %v2561 = vunpack.c.l.b16 %v1133
    %v2562 = vunpack.c.h.b16 %v1133
    %v2563 = vunpack.c.l.b16 %v1134
    %v2564 = vunpack.c.h.b16 %v1134
    %v2565 = vunpack.c.l.b16 %v1135
    %v2566 = vunpack.c.h.b16 %v1135
    %v2567 = vunpack.c.l.b16 %v1136
    %v2568 = vunpack.c.h.b16 %v1136
    %v2569 = vunpack.c.l.b16 %v1137
    %v2570 = vunpack.c.h.b16 %v1137
    %v2571 = vunpack.c.l.b16 %v1138
    %v2572 = vunpack.c.h.b16 %v1138
    %v2573 = vunpack.c.l.b16 %v1139
    %v2574 = vunpack.c.h.b16 %v1139
    %v2575 = vunpack.c.l.b16 %v1140
    %v2576 = vunpack.c.h.b16 %v1140
    %v2577 = vunpack.c.l.b16 %v1141
    %v2578 = vunpack.c.h.b16 %v1141
    %v2579 = vunpack.c.l.b16 %v1142
    %v2580 = vunpack.c.h.b16 %v1142
    %v2581 = vunpack.c.l.b16 %v1143
    %v2582 = vunpack.c.h.b16 %v1143
    %v2583 = vunpack.c.l.b16 %v1144
    %v2584 = vunpack.c.h.b16 %v1144
    %v2585 = vunpack.c.l.b16 %v1145
    %v2586 = vunpack.c.h.b16 %v1145
    %v2587 = vunpack.c.l.b16 %v1146
    %v2588 = vunpack.c.h.b16 %v1146
    %v2589 = vunpack.c.l.b16 %v1147
    %v2590 = vunpack.c.h.b16 %v1147
    %v2591 = vunpack.c.l.b16 %v1148
    %v2592 = vunpack.c.h.b16 %v1148
    %v2593 = vunpack.c.l.b16 %v1149
    %v2594 = vunpack.c.h.b16 %v1149
    %v2595 = vunpack.c.l.b16 %v1150
    %v2596 = vunpack.c.h.b16 %v1150
    %v2597 = vunpack.c.l.b16 %v1151
    %v2598 = vunpack.c.h.b16 %v1151
    %v2599 = vunpack.c.l.b16 %v1152
    %v2600 = vunpack.c.h.b16 %v1152
    %v2601 = vunpack.c.l.b16 %v1153
    %v2602 = vunpack.c.h.b16 %v1153
    %v2603 = vunpack.c.l.b16 %v1154
    %v2604 = vunpack.c.h.b16 %v1154
    %v2605 = vunpack.c.l.b16 %v1155
    %v2606 = vunpack.c.h.b16 %v1155
    %v2607 = vunpack.c.l.b16 %v1156
    %v2608 = vunpack.c.h.b16 %v1156
    %v2609 = vunpack.c.l.b16 %v1157
    %v2610 = vunpack.c.h.b16 %v1157
    %v2611 = vunpack.c.l.b16 %v1158
    %v2612 = vunpack.c.h.b16 %v1158
    %v2613 = vunpack.c.l.b16 %v1159
    %v2614 = vunpack.c.h.b16 %v1159
    %v2615 = vunpack.c.l.b16 %v1160
    %v2616 = vunpack.c.h.b16 %v1160
    %v2617 = vunpack.c.l.b16 %v1161
    %v2618 = vunpack.c.h.b16 %v1161
    %v2619 = vunpack.c.l.b16 %v1162
    %v2620 = vunpack.c.h.b16 %v1162
    %v2621 = vunpack.c.l.b16 %v1163
    %v2622 = vunpack.c.h.b16 %v1163
    %v2623 = vunpack.c.l.b16 %v1164
    %v2624 = vunpack.c.h.b16 %v1164
    %v2625 = vunpack.c.l.b16 %v1165
    %v2626 = vunpack.c.h.b16 %v1165
    %v2627 = vunpack.c.l.b16 %v1166
    %v2628 = vunpack.c.h.b16 %v1166
    %v2629 = vunpack.c.l.b16 %v1167
    %v2630 = vunpack.c.h.b16 %v1167
    %v2631 = vunpack.c.l.b16 %v1168
    %v2632 = vunpack.c.h.b16 %v1168
    %v2633 = vunpack.c.l.b16 %v1169
    %v2634 = vunpack.c.h.b16 %v1169
    %v2635 = vunpack.c.l.b16 %v1170
    %v2636 = vunpack.c.h.b16 %v1170
    %v2637 = vunpack.c.l.b16 %v1171
    %v2638 = vunpack.c.h.b16 %v1171
    %v2639 = vunpack.c.l.b16 %v1172
    %v2640 = vunpack.c.h.b16 %v1172
    %v2641 = vunpack.c.l.b16 %v1173
    %v2642 = vunpack.c.h.b16 %v1173
    %v2643 = vunpack.c.l.b16 %v1174
    %v2644 = vunpack.c.h.b16 %v1174
    %v2645 = vunpack.c.l.b16 %v1175
    %v2646 = vunpack.c.h.b16 %v1175
    %v2647 = vunpack.c.l.b16 %v1176
    %v2648 = vunpack.c.h.b16 %v1176
    %v2649 = vunpack.c.l.b16 %v1177
    %v2650 = vunpack.c.h.b16 %v1177
    %v2651 = vunpack.c.l.b16 %v1178
    %v2652 = vunpack.c.h.b16 %v1178
    %v2653 = vunpack.c.l.b16 %v1179
    %v2654 = vunpack.c.h.b16 %v1179
    %v2655 = vunpack.c.l.b16 %v1180
    %v2656 = vunpack.c.h.b16 %v1180
    %v2657 = vunpack.c.l.b16 %v1181
    %v2658 = vunpack.c.h.b16 %v1181
    %v2659 = vunpack.c.l.b16 %v1182
    %v2660 = vunpack.c.h.b16 %v1182
    %v2661 = vunpack.c.l.b16 %v1183
    %v2662 = vunpack.c.h.b16 %v1183
    %v2663 = vunpack.c.l.b16 %v1184
    %v2664 = vunpack.c.h.b16 %v1184
    %v2665 = vunpack.c.l.b16 %v1185
    %v2666 = vunpack.c.h.b16 %v1185
    %v2667 = vunpack.c.l.b16 %v1186
    %v2668 = vunpack.c.h.b16 %v1186
    %v2669 = vunpack.c.l.b16 %v1187
    %v2670 = vunpack.c.h.b16 %v1187
    %v2671 = vunpack.c.l.b16 %v1188
    %v2672 = vunpack.c.h.b16 %v1188
    %v2673 = vunpack.c.l.b16 %v1189
    %v2674 = vunpack.c.h.b16 %v1189
    %v2675 = vunpack.c.l.b16 %v1190
    %v2676 = vunpack.c.h.b16 %v1190
    %v2677 = vunpack.c.l.b16 %v1191
    %v2678 = vunpack.c.h.b16 %v1191
    %v2679 = vunpack.c.l.b16 %v1192
    %v2680 = vunpack.c.h.b16 %v1192
    %v2681 = vunpack.c.l.b16 %v1193
    %v2682 = vunpack.c.h.b16 %v1193
    %v2683 = vunpack.c.l.b16 %v1194
    %v2684 = vunpack.c.h.b16 %v1194
    %v2685 = vunpack.c.l.b16 %v1195
    %v2686 = vunpack.c.h.b16 %v1195
    %v2687 = vunpack.c.l.b16 %v1196
    %v2688 = vunpack.c.h.b16 %v1196
    %v2689 = vunpack.c.l.b16 %v1197
    %v2690 = vunpack.c.h.b16 %v1197
    %v2691 = vunpack.c.l.b16 %v1198
    %v2692 = vunpack.c.h.b16 %v1198
    %v2693 = vunpack.c.l.b16 %v1199
    %v2694 = vunpack.c.h.b16 %v1199
    %v2695 = vunpack.c.l.b16 %v1200
    %v2696 = vunpack.c.h.b16 %v1200
    %v2697 = vunpack.c.l.b16 %v1201
    %v2698 = vunpack.c.h.b16 %v1201
    %v2699 = vunpack.c.l.b16 %v1202
    %v2700 = vunpack.c.h.b16 %v1202
    %v2701 = vunpack.c.l.b16 %v1203
    %v2702 = vunpack.c.h.b16 %v1203
    %v2703 = vunpack.c.l.b16 %v1204
    %v2704 = vunpack.c.h.b16 %v1204
    %v2705 = vunpack.c.l.b16 %v1205
    %v2706 = vunpack.c.h.b16 %v1205
    %v2707 = vunpack.c.l.b16 %v1206
    %v2708 = vunpack.c.h.b16 %v1206
    %v2709 = vunpack.c.l.b16 %v1207
    %v2710 = vunpack.c.h.b16 %v1207
    %v2711 = vunpack.c.l.b16 %v1208
    %v2712 = vunpack.c.h.b16 %v1208
    %v2713 = vunpack.c.l.b16 %v1209
    %v2714 = vunpack.c.h.b16 %v1209
    %v2715 = vunpack.c.l.b16 %v1210
    %v2716 = vunpack.c.h.b16 %v1210
    %v2717 = vunpack.c.l.b16 %v1211
    %v2718 = vunpack.c.h.b16 %v1211
    %v2719 = vunpack.c.l.b16 %v1212
    %v2720 = vunpack.c.h.b16 %v1212
    %v2721 = vunpack.c.l.b16 %v1213
    %v2722 = vunpack.c.h.b16 %v1213
    %v2723 = vunpack.c.l.b16 %v1214
    %v2724 = vunpack.c.h.b16 %v1214
    %v2725 = vunpack.c.l.b16 %v1215
    %v2726 = vunpack.c.h.b16 %v1215
    %v2727 = vunpack.c.l.b16 %v1216
    %v2728 = vunpack.c.h.b16 %v1216
    %v2729 = vunpack.c.l.b16 %v1217
    %v2730 = vunpack.c.h.b16 %v1217
    %v2731 = vunpack.c.l.b16 %v1218
    %v2732 = vunpack.c.h.b16 %v1218
    %v2733 = vunpack.c.l.b16 %v1219
    %v2734 = vunpack.c.h.b16 %v1219
    %v2735 = vunpack.c.l.b16 %v1220
    %v2736 = vunpack.c.h.b16 %v1220
    %v2737 = vunpack.c.l.b16 %v1221
    %v2738 = vunpack.c.h.b16 %v1221
    %v2739 = vunpack.c.l.b16 %v1222
    %v2740 = vunpack.c.h.b16 %v1222
    %v2741 = vunpack.c.l.b16 %v1223
    %v2742 = vunpack.c.h.b16 %v1223
    %v2743 = vunpack.c.l.b16 %v1224
    %v2744 = vunpack.c.h.b16 %v1224
    %v2745 = vunpack.c.l.b16 %v1225
    %v2746 = vunpack.c.h.b16 %v1225
    %v2747 = vunpack.c.l.b16 %v1226
    %v2748 = vunpack.c.h.b16 %v1226
    %v2749 = vunpack.c.l.b16 %v1227
    %v2750 = vunpack.c.h.b16 %v1227
    %v2751 = vunpack.c.l.b16 %v1228
    %v2752 = vunpack.c.h.b16 %v1228
    %v2753 = vunpack.c.l.b16 %v1229
    %v2754 = vunpack.c.h.b16 %v1229
    %v2755 = vunpack.c.l.b16 %v1230
    %v2756 = vunpack.c.h.b16 %v1230
    %v2757 = vunpack.c.l.b16 %v1231
    %v2758 = vunpack.c.h.b16 %v1231
    %v2759 = vunpack.c.l.b16 %v1232
    %v2760 = vunpack.c.h.b16 %v1232
    %v2761 = vunpack.c.l.b16 %v1233
    %v2762 = vunpack.c.h.b16 %v1233
    %v2763 = vunpack.c.l.b16 %v1234
    %v2764 = vunpack.c.h.b16 %v1234
    %v2765 = vunpack.c.l.b16 %v1235
    %v2766 = vunpack.c.h.b16 %v1235
    %v2767 = vunpack.c.l.b16 %v1236
    %v2768 = vunpack.c.h.b16 %v1236
    %v2769 = vunpack.c.l.b16 %v1237
    %v2770 = vunpack.c.h.b16 %v1237
    %v2771 = vunpack.c.l.b16 %v1238
    %v2772 = vunpack.c.h.b16 %v1238
    %v2773 = vunpack.c.l.b16 %v1239
    %v2774 = vunpack.c.h.b16 %v1239
    %v2775 = vunpack.c.l.b16 %v1240
    %v2776 = vunpack.c.h.b16 %v1240
    %v2777 = vpack.c.b16 %v1761, %v1753
    %v2778 = vpack.c.b16 %v1762, %v1754
    %v2779 = vpack.c.b16 %v1763, %v1755
    %v2780 = vpack.c.b16 %v1764, %v1756
    %v2781 = vpack.c.b16 %v1765, %v1757
    %v2782 = vpack.c.b16 %v1766, %v1758
    %v2783 = vpack.c.b16 %v1767, %v1759
    %v2784 = vpack.c.b16 %v1768, %v1760
    %v2785 = vpack.c.b16 %v1777, %v1769
    %v2786 = vpack.c.b16 %v1778, %v1770
    %v2787 = vpack.c.b16 %v1779, %v1771
    %v2788 = vpack.c.b16 %v1780, %v1772
    %v2789 = vpack.c.b16 %v1781, %v1773
    %v2790 = vpack.c.b16 %v1782, %v1774
    %v2791 = vpack.c.b16 %v1783, %v1775
    %v2792 = vpack.c.b16 %v1784, %v1776
    %v2793 = vpack.c.b16 %v1793, %v1785
    %v2794 = vpack.c.b16 %v1794, %v1786
    %v2795 = vpack.c.b16 %v1795, %v1787
    %v2796 = vpack.c.b16 %v1796, %v1788
    %v2797 = vpack.c.b16 %v1797, %v1789
    %v2798 = vpack.c.b16 %v1798, %v1790
    %v2799 = vpack.c.b16 %v1799, %v1791
    %v2800 = vpack.c.b16 %v1800, %v1792
    %v2801 = vpack.c.b16 %v1809, %v1801
    %v2802 = vpack.c.b16 %v1810, %v1802
    %v2803 = vpack.c.b16 %v1811, %v1803
    %v2804 = vpack.c.b16 %v1812, %v1804
    %v2805 = vpack.c.b16 %v1813, %v1805
    %v2806 = vpack.c.b16 %v1814, %v1806
    %v2807 = vpack.c.b16 %v1815, %v1807
    %v2808 = vpack.c.b16 %v1816, %v1808
    %v2809 = vpack.c.b16 %v1825, %v1817
    %v2810 = vpack.c.b16 %v1826, %v1818
    %v2811 = vpack.c.b16 %v1827, %v1819
    %v2812 = vpack.c.b16 %v1828, %v1820
    %v2813 = vpack.c.b16 %v1829, %v1821
    %v2814 = vpack.c.b16 %v1830, %v1822
    %v2815 = vpack.c.b16 %v1831, %v1823
    %v2816 = vpack.c.b16 %v1832, %v1824
    %v2817 = vpack.c.b16 %v1841, %v1833
    %v2818 = vpack.c.b16 %v1842, %v1834
    %v2819 = vpack.c.b16 %v1843, %v1835
    %v2820 = vpack.c.b16 %v1844, %v1836
    %v2821 = vpack.c.b16 %v1845, %v1837
    %v2822 = vpack.c.b16 %v1846, %v1838
    %v2823 = vpack.c.b16 %v1847, %v1839
    %v2824 = vpack.c.b16 %v1848, %v1840
    %v2825 = vpack.c.b16 %v1857, %v1849
    %v2826 = vpack.c.b16 %v1858, %v1850
    %v2827 = vpack.c.b16 %v1859, %v1851
    %v2828 = vpack.c.b16 %v1860, %v1852
    %v2829 = vpack.c.b16 %v1861, %v1853
    %v2830 = vpack.c.b16 %v1862, %v1854
    %v2831 = vpack.c.b16 %v1863, %v1855
    %v2832 = vpack.c.b16 %v1864, %v1856
    %v2833 = vpack.c.b16 %v1873, %v1865
    %v2834 = vpack.c.b16 %v1874, %v1866
    %v2835 = vpack.c.b16 %v1875, %v1867
    %v2836 = vpack.c.b16 %v1876, %v1868
    %v2837 = vpack.c.b16 %v1877, %v1869
    %v2838 = vpack.c.b16 %v1878, %v1870
    %v2839 = vpack.c.b16 %v1879, %v1871
    %v2840 = vpack.c.b16 %v1880, %v1872
    %v2841 = vpack.c.b16 %v1889, %v1881
    %v2842 = vpack.c.b16 %v1890, %v1882
    %v2843 = vpack.c.b16 %v1891, %v1883
    %v2844 = vpack.c.b16 %v1892, %v1884
    %v2845 = vpack.c.b16 %v1893, %v1885
    %v2846 = vpack.c.b16 %v1894, %v1886
    %v2847 = vpack.c.b16 %v1895, %v1887
    %v2848 = vpack.c.b16 %v1896, %v1888
    %v2849 = vpack.c.b16 %v1905, %v1897
    %v2850 = vpack.c.b16 %v1906, %v1898
    %v2851 = vpack.c.b16 %v1907, %v1899
    %v2852 = vpack.c.b16 %v1908, %v1900
    %v2853 = vpack.c.b16 %v1909, %v1901
    %v2854 = vpack.c.b16 %v1910, %v1902
    %v2855 = vpack.c.b16 %v1911, %v1903
    %v2856 = vpack.c.b16 %v1912, %v1904
    %v2857 = vpack.c.b16 %v1921, %v1913
    %v2858 = vpack.c.b16 %v1922, %v1914
    %v2859 = vpack.c.b16 %v1923, %v1915
    %v2860 = vpack.c.b16 %v1924, %v1916
    %v2861 = vpack.c.b16 %v1925, %v1917
    %v2862 = vpack.c.b16 %v1926, %v1918
    %v2863 = vpack.c.b16 %v1927, %v1919
    %v2864 = vpack.c.b16 %v1928, %v1920
    %v2865 = vpack.c.b16 %v1937, %v1929
    %v2866 = vpack.c.b16 %v1938, %v1930
    %v2867 = vpack.c.b16 %v1939, %v1931
    %v2868 = vpack.c.b16 %v1940, %v1932
    %v2869 = vpack.c.b16 %v1941, %v1933
    %v2870 = vpack.c.b16 %v1942, %v1934
    %v2871 = vpack.c.b16 %v1943, %v1935
    %v2872 = vpack.c.b16 %v1944, %v1936
    %v2873 = vpack.c.b16 %v1953, %v1945
    %v2874 = vpack.c.b16 %v1954, %v1946
    %v2875 = vpack.c.b16 %v1955, %v1947
    %v2876 = vpack.c.b16 %v1956, %v1948
    %v2877 = vpack.c.b16 %v1957, %v1949
    %v2878 = vpack.c.b16 %v1958, %v1950
    %v2879 = vpack.c.b16 %v1959, %v1951
    %v2880 = vpack.c.b16 %v1960, %v1952
    %v2881 = vpack.c.b16 %v1969, %v1961
    %v2882 = vpack.c.b16 %v1970, %v1962
    %v2883 = vpack.c.b16 %v1971, %v1963
    %v2884 = vpack.c.b16 %v1972, %v1964
    %v2885 = vpack.c.b16 %v1973, %v1965
    %v2886 = vpack.c.b16 %v1974, %v1966
    %v2887 = vpack.c.b16 %v1975, %v1967
    %v2888 = vpack.c.b16 %v1976, %v1968
    %v2889 = vpack.c.b16 %v1985, %v1977
    %v2890 = vpack.c.b16 %v1986, %v1978
    %v2891 = vpack.c.b16 %v1987, %v1979
    %v2892 = vpack.c.b16 %v1988, %v1980
    %v2893 = vpack.c.b16 %v1989, %v1981
    %v2894 = vpack.c.b16 %v1990, %v1982
    %v2895 = vpack.c.b16 %v1991, %v1983
    %v2896 = vpack.c.b16 %v1992, %v1984
    %v2897 = vpack.c.b16 %v2001, %v1993
    %v2898 = vpack.c.b16 %v2002, %v1994
    %v2899 = vpack.c.b16 %v2003, %v1995
    %v2900 = vpack.c.b16 %v2004, %v1996
    %v2901 = vpack.c.b16 %v2005, %v1997
    %v2902 = vpack.c.b16 %v2006, %v1998
    %v2903 = vpack.c.b16 %v2007, %v1999
    %v2904 = vpack.c.b16 %v2008, %v2000
    %v2905 = vpack.c.b16 %v2017, %v2009
    %v2906 = vpack.c.b16 %v2018, %v2010
    %v2907 = vpack.c.b16 %v2019, %v2011
    %v2908 = vpack.c.b16 %v2020, %v2012
    %v2909 = vpack.c.b16 %v2021, %v2013
    %v2910 = vpack.c.b16 %v2022, %v2014
    %v2911 = vpack.c.b16 %v2023, %v2015
    %v2912 = vpack.c.b16 %v2024, %v2016
    %v2913 = vpack.c.b16 %v2033, %v2025
    %v2914 = vpack.c.b16 %v2034, %v2026
    %v2915 = vpack.c.b16 %v2035, %v2027
    %v2916 = vpack.c.b16 %v2036, %v2028
    %v2917 = vpack.c.b16 %v2037, %v2029
    %v2918 = vpack.c.b16 %v2038, %v2030
    %v2919 = vpack.c.b16 %v2039, %v2031
    %v2920 = vpack.c.b16 %v2040, %v2032
    %v2921 = vpack.c.b16 %v2049, %v2041
    %v2922 = vpack.c.b16 %v2050, %v2042
    %v2923 = vpack.c.b16 %v2051, %v2043
    %v2924 = vpack.c.b16 %v2052, %v2044
    %v2925 = vpack.c.b16 %v2053, %v2045
    %v2926 = vpack.c.b16 %v2054, %v2046
    %v2927 = vpack.c.b16 %v2055, %v2047
    %v2928 = vpack.c.b16 %v2056, %v2048
    %v2929 = vpack.c.b16 %v2065, %v2057
    %v2930 = vpack.c.b16 %v2066, %v2058
    %v2931 = vpack.c.b16 %v2067, %v2059
    %v2932 = vpack.c.b16 %v2068, %v2060
    %v2933 = vpack.c.b16 %v2069, %v2061
    %v2934 = vpack.c.b16 %v2070, %v2062
    %v2935 = vpack.c.b16 %v2071, %v2063
    %v2936 = vpack.c.b16 %v2072, %v2064
    %v2937 = vpack.c.b16 %v2081, %v2073
    %v2938 = vpack.c.b16 %v2082, %v2074
    %v2939 = vpack.c.b16 %v2083, %v2075
    %v2940 = vpack.c.b16 %v2084, %v2076
    %v2941 = vpack.c.b16 %v2085, %v2077
    %v2942 = vpack.c.b16 %v2086, %v2078
    %v2943 = vpack.c.b16 %v2087, %v2079
    %v2944 = vpack.c.b16 %v2088, %v2080
    %v2945 = vpack.c.b16 %v2097, %v2089
    %v2946 = vpack.c.b16 %v2098, %v2090
    %v2947 = vpack.c.b16 %v2099, %v2091
    %v2948 = vpack.c.b16 %v2100, %v2092
    %v2949 = vpack.c.b16 %v2101, %v2093
    %v2950 = vpack.c.b16 %v2102, %v2094
    %v2951 = vpack.c.b16 %v2103, %v2095
    %v2952 = vpack.c.b16 %v2104, %v2096
    %v2953 = vpack.c.b16 %v2113, %v2105
    %v2954 = vpack.c.b16 %v2114, %v2106
    %v2955 = vpack.c.b16 %v2115, %v2107
    %v2956 = vpack.c.b16 %v2116, %v2108
    %v2957 = vpack.c.b16 %v2117, %v2109
    %v2958 = vpack.c.b16 %v2118, %v2110
    %v2959 = vpack.c.b16 %v2119, %v2111
    %v2960 = vpack.c.b16 %v2120, %v2112
    %v2961 = vpack.c.b16 %v2129, %v2121
    %v2962 = vpack.c.b16 %v2130, %v2122
    %v2963 = vpack.c.b16 %v2131, %v2123
    %v2964 = vpack.c.b16 %v2132, %v2124
    %v2965 = vpack.c.b16 %v2133, %v2125
    %v2966 = vpack.c.b16 %v2134, %v2126
    %v2967 = vpack.c.b16 %v2135, %v2127
    %v2968 = vpack.c.b16 %v2136, %v2128
    %v2969 = vpack.c.b16 %v2145, %v2137
    %v2970 = vpack.c.b16 %v2146, %v2138
    %v2971 = vpack.c.b16 %v2147, %v2139
    %v2972 = vpack.c.b16 %v2148, %v2140
    %v2973 = vpack.c.b16 %v2149, %v2141
    %v2974 = vpack.c.b16 %v2150, %v2142
    %v2975 = vpack.c.b16 %v2151, %v2143
    %v2976 = vpack.c.b16 %v2152, %v2144
    %v2977 = vpack.c.b16 %v2161, %v2153
    %v2978 = vpack.c.b16 %v2162, %v2154
    %v2979 = vpack.c.b16 %v2163, %v2155
    %v2980 = vpack.c.b16 %v2164, %v2156
    %v2981 = vpack.c.b16 %v2165, %v2157
    %v2982 = vpack.c.b16 %v2166, %v2158
    %v2983 = vpack.c.b16 %v2167, %v2159
    %v2984 = vpack.c.b16 %v2168, %v2160
    %v2985 = vpack.c.b16 %v2177, %v2169
    %v2986 = vpack.c.b16 %v2178, %v2170
    %v2987 = vpack.c.b16 %v2179, %v2171
    %v2988 = vpack.c.b16 %v2180, %v2172
    %v2989 = vpack.c.b16 %v2181, %v2173
    %v2990 = vpack.c.b16 %v2182, %v2174
    %v2991 = vpack.c.b16 %v2183, %v2175
    %v2992 = vpack.c.b16 %v2184, %v2176
    %v2993 = vpack.c.b16 %v2193, %v2185
    %v2994 = vpack.c.b16 %v2194, %v2186
    %v2995 = vpack.c.b16 %v2195, %v2187
    %v2996 = vpack.c.b16 %v2196, %v2188
    %v2997 = vpack.c.b16 %v2197, %v2189
    %v2998 = vpack.c.b16 %v2198, %v2190
    %v2999 = vpack.c.b16 %v2199, %v2191
    %v3000 = vpack.c.b16 %v2200, %v2192
    %v3001 = vpack.c.b16 %v2209, %v2201
    %v3002 = vpack.c.b16 %v2210, %v2202
    %v3003 = vpack.c.b16 %v2211, %v2203
    %v3004 = vpack.c.b16 %v2212, %v2204
    %v3005 = vpack.c.b16 %v2213, %v2205
    %v3006 = vpack.c.b16 %v2214, %v2206
    %v3007 = vpack.c.b16 %v2215, %v2207
    %v3008 = vpack.c.b16 %v2216, %v2208
    %v3009 = vpack.c.b16 %v2225, %v2217
    %v3010 = vpack.c.b16 %v2226, %v2218
    %v3011 = vpack.c.b16 %v2227, %v2219
    %v3012 = vpack.c.b16 %v2228, %v2220
    %v3013 = vpack.c.b16 %v2229, %v2221
    %v3014 = vpack.c.b16 %v2230, %v2222
    %v3015 = vpack.c.b16 %v2231, %v2223
    %v3016 = vpack.c.b16 %v2232, %v2224
    %v3017 = vpack.c.b16 %v2241, %v2233
    %v3018 = vpack.c.b16 %v2242, %v2234
    %v3019 = vpack.c.b16 %v2243, %v2235
    %v3020 = vpack.c.b16 %v2244, %v2236
    %v3021 = vpack.c.b16 %v2245, %v2237
    %v3022 = vpack.c.b16 %v2246, %v2238
    %v3023 = vpack.c.b16 %v2247, %v2239
    %v3024 = vpack.c.b16 %v2248, %v2240
    %v3025 = vpack.c.b16 %v2257, %v2249
    %v3026 = vpack.c.b16 %v2258, %v2250
    %v3027 = vpack.c.b16 %v2259, %v2251
    %v3028 = vpack.c.b16 %v2260, %v2252
    %v3029 = vpack.c.b16 %v2261, %v2253
    %v3030 = vpack.c.b16 %v2262, %v2254
    %v3031 = vpack.c.b16 %v2263, %v2255
    %v3032 = vpack.c.b16 %v2264, %v2256
    %v3033 = vpack.c.b16 %v2273, %v2265
    %v3034 = vpack.c.b16 %v2274, %v2266
    %v3035 = vpack.c.b16 %v2275, %v2267
    %v3036 = vpack.c.b16 %v2276, %v2268
    %v3037 = vpack.c.b16 %v2277, %v2269
    %v3038 = vpack.c.b16 %v2278, %v2270
    %v3039 = vpack.c.b16 %v2279, %v2271
    %v3040 = vpack.c.b16 %v2280, %v2272
    %v3041 = vpack.c.b16 %v2289, %v2281
    %v3042 = vpack.c.b16 %v2290, %v2282
    %v3043 = vpack.c.b16 %v2291, %v2283
    %v3044 = vpack.c.b16 %v2292, %v2284
    %v3045 = vpack.c.b16 %v2293, %v2285
    %v3046 = vpack.c.b16 %v2294, %v2286
    %v3047 = vpack.c.b16 %v2295, %v2287
    %v3048 = vpack.c.b16 %v2296, %v2288
    %v3049 = vpack.c.b16 %v2305, %v2297
    %v3050 = vpack.c.b16 %v2306, %v2298
    %v3051 = vpack.c.b16 %v2307, %v2299
    %v3052 = vpack.c.b16 %v2308, %v2300
    %v3053 = vpack.c.b16 %v2309, %v2301
    %v3054 = vpack.c.b16 %v2310, %v2302
    %v3055 = vpack.c.b16 %v2311, %v2303
    %v3056 = vpack.c.b16 %v2312, %v2304
    %v3057 = vpack.c.b16 %v2321, %v2313
    %v3058 = vpack.c.b16 %v2322, %v2314
    %v3059 = vpack.c.b16 %v2323, %v2315
    %v3060 = vpack.c.b16 %v2324, %v2316
    %v3061 = vpack.c.b16 %v2325, %v2317
    %v3062 = vpack.c.b16 %v2326, %v2318
    %v3063 = vpack.c.b16 %v2327, %v2319
    %v3064 = vpack.c.b16 %v2328, %v2320
    %v3065 = vpack.c.b16 %v2337, %v2329
    %v3066 = vpack.c.b16 %v2338, %v2330
    %v3067 = vpack.c.b16 %v2339, %v2331
    %v3068 = vpack.c.b16 %v2340, %v2332
    %v3069 = vpack.c.b16 %v2341, %v2333
    %v3070 = vpack.c.b16 %v2342, %v2334
    %v3071 = vpack.c.b16 %v2343, %v2335
    %v3072 = vpack.c.b16 %v2344, %v2336
    %v3073 = vpack.c.b16 %v2353, %v2345
    %v3074 = vpack.c.b16 %v2354, %v2346
    %v3075 = vpack.c.b16 %v2355, %v2347
    %v3076 = vpack.c.b16 %v2356, %v2348
    %v3077 = vpack.c.b16 %v2357, %v2349
    %v3078 = vpack.c.b16 %v2358, %v2350
    %v3079 = vpack.c.b16 %v2359, %v2351
    %v3080 = vpack.c.b16 %v2360, %v2352
    %v3081 = vpack.c.b16 %v2369, %v2361
    %v3082 = vpack.c.b16 %v2370, %v2362
    %v3083 = vpack.c.b16 %v2371, %v2363
    %v3084 = vpack.c.b16 %v2372, %v2364
    %v3085 = vpack.c.b16 %v2373, %v2365
    %v3086 = vpack.c.b16 %v2374, %v2366
    %v3087 = vpack.c.b16 %v2375, %v2367
    %v3088 = vpack.c.b16 %v2376, %v2368
    %v3089 = vpack.c.b16 %v2385, %v2377
    %v3090 = vpack.c.b16 %v2386, %v2378
    %v3091 = vpack.c.b16 %v2387, %v2379
    %v3092 = vpack.c.b16 %v2388, %v2380
    %v3093 = vpack.c.b16 %v2389, %v2381
    %v3094 = vpack.c.b16 %v2390, %v2382
    %v3095 = vpack.c.b16 %v2391, %v2383
    %v3096 = vpack.c.b16 %v2392, %v2384
    %v3097 = vpack.c.b16 %v2401, %v2393
    %v3098 = vpack.c.b16 %v2402, %v2394
    %v3099 = vpack.c.b16 %v2403, %v2395
    %v3100 = vpack.c.b16 %v2404, %v2396
    %v3101 = vpack.c.b16 %v2405, %v2397
    %v3102 = vpack.c.b16 %v2406, %v2398
    %v3103 = vpack.c.b16 %v2407, %v2399
    %v3104 = vpack.c.b16 %v2408, %v2400
    %v3105 = vpack.c.b16 %v2417, %v2409
    %v3106 = vpack.c.b16 %v2418, %v2410
    %v3107 = vpack.c.b16 %v2419, %v2411
    %v3108 = vpack.c.b16 %v2420, %v2412
    %v3109 = vpack.c.b16 %v2421, %v2413
    %v3110 = vpack.c.b16 %v2422, %v2414
    %v3111 = vpack.c.b16 %v2423, %v2415
    %v3112 = vpack.c.b16 %v2424, %v2416
    %v3113 = vpack.c.b16 %v2433, %v2425
    %v3114 = vpack.c.b16 %v2434, %v2426
    %v3115 = vpack.c.b16 %v2435, %v2427
    %v3116 = vpack.c.b16 %v2436, %v2428
    %v3117 = vpack.c.b16 %v2437, %v2429
    %v3118 = vpack.c.b16 %v2438, %v2430
    %v3119 = vpack.c.b16 %v2439, %v2431
    %v3120 = vpack.c.b16 %v2440, %v2432
    %v3121 = vpack.c.b16 %v2449, %v2441
    %v3122 = vpack.c.b16 %v2450, %v2442
    %v3123 = vpack.c.b16 %v2451, %v2443
    %v3124 = vpack.c.b16 %v2452, %v2444
    %v3125 = vpack.c.b16 %v2453, %v2445
    %v3126 = vpack.c.b16 %v2454, %v2446
    %v3127 = vpack.c.b16 %v2455, %v2447
    %v3128 = vpack.c.b16 %v2456, %v2448
    %v3129 = vpack.c.b16 %v2465, %v2457
    %v3130 = vpack.c.b16 %v2466, %v2458
    %v3131 = vpack.c.b16 %v2467, %v2459
    %v3132 = vpack.c.b16 %v2468, %v2460
    %v3133 = vpack.c.b16 %v2469, %v2461
    %v3134 = vpack.c.b16 %v2470, %v2462
    %v3135 = vpack.c.b16 %v2471, %v2463
    %v3136 = vpack.c.b16 %v2472, %v2464
    %v3137 = vpack.c.b16 %v2481, %v2473
    %v3138 = vpack.c.b16 %v2482, %v2474
    %v3139 = vpack.c.b16 %v2483, %v2475
    %v3140 = vpack.c.b16 %v2484, %v2476
    %v3141 = vpack.c.b16 %v2485, %v2477
    %v3142 = vpack.c.b16 %v2486, %v2478
    %v3143 = vpack.c.b16 %v2487, %v2479
    %v3144 = vpack.c.b16 %v2488, %v2480
    %v3145 = vpack.c.b16 %v2497, %v2489
    %v3146 = vpack.c.b16 %v2498, %v2490
    %v3147 = vpack.c.b16 %v2499, %v2491
    %v3148 = vpack.c.b16 %v2500, %v2492
    %v3149 = vpack.c.b16 %v2501, %v2493
    %v3150 = vpack.c.b16 %v2502, %v2494
    %v3151 = vpack.c.b16 %v2503, %v2495
    %v3152 = vpack.c.b16 %v2504, %v2496
    %v3153 = vpack.c.b16 %v2513, %v2505
    %v3154 = vpack.c.b16 %v2514, %v2506
    %v3155 = vpack.c.b16 %v2515, %v2507
    %v3156 = vpack.c.b16 %v2516, %v2508
    %v3157 = vpack.c.b16 %v2517, %v2509
    %v3158 = vpack.c.b16 %v2518, %v2510
    %v3159 = vpack.c.b16 %v2519, %v2511
    %v3160 = vpack.c.b16 %v2520, %v2512
    %v3161 = vpack.c.b16 %v2529, %v2521
    %v3162 = vpack.c.b16 %v2530, %v2522
    %v3163 = vpack.c.b16 %v2531, %v2523
    %v3164 = vpack.c.b16 %v2532, %v2524
    %v3165 = vpack.c.b16 %v2533, %v2525
    %v3166 = vpack.c.b16 %v2534, %v2526
    %v3167 = vpack.c.b16 %v2535, %v2527
    %v3168 = vpack.c.b16 %v2536, %v2528
    %v3169 = vpack.c.b16 %v2545, %v2537
    %v3170 = vpack.c.b16 %v2546, %v2538
    %v3171 = vpack.c.b16 %v2547, %v2539
    %v3172 = vpack.c.b16 %v2548, %v2540
    %v3173 = vpack.c.b16 %v2549, %v2541
    %v3174 = vpack.c.b16 %v2550, %v2542
    %v3175 = vpack.c.b16 %v2551, %v2543
    %v3176 = vpack.c.b16 %v2552, %v2544
    %v3177 = vpack.c.b16 %v2561, %v2553
    %v3178 = vpack.c.b16 %v2562, %v2554
    %v3179 = vpack.c.b16 %v2563, %v2555
    %v3180 = vpack.c.b16 %v2564, %v2556
    %v3181 = vpack.c.b16 %v2565, %v2557
    %v3182 = vpack.c.b16 %v2566, %v2558
    %v3183 = vpack.c.b16 %v2567, %v2559
    %v3184 = vpack.c.b16 %v2568, %v2560
    %v3185 = vpack.c.b16 %v2577, %v2569
    %v3186 = vpack.c.b16 %v2578, %v2570
    %v3187 = vpack.c.b16 %v2579, %v2571
    %v3188 = vpack.c.b16 %v2580, %v2572
    %v3189 = vpack.c.b16 %v2581, %v2573
    %v3190 = vpack.c.b16 %v2582, %v2574
    %v3191 = vpack.c.b16 %v2583, %v2575
    %v3192 = vpack.c.b16 %v2584, %v2576
    %v3193 = vpack.c.b16 %v2593, %v2585
    %v3194 = vpack.c.b16 %v2594, %v2586
    %v3195 = vpack.c.b16 %v2595, %v2587
    %v3196 = vpack.c.b16 %v2596, %v2588
    %v3197 = vpack.c.b16 %v2597, %v2589
    %v3198 = vpack.c.b16 %v2598, %v2590
    %v3199 = vpack.c.b16 %v2599, %v2591
    %v3200 = vpack.c.b16 %v2600, %v2592
    %v3201 = vpack.c.b16 %v2609, %v2601
    %v3202 = vpack.c.b16 %v2610, %v2602
    %v3203 = vpack.c.b16 %v2611, %v2603
    %v3204 = vpack.c.b16 %v2612, %v2604
    %v3205 = vpack.c.b16 %v2613, %v2605
    %v3206 = vpack.c.b16 %v2614, %v2606
    %v3207 = vpack.c.b16 %v2615, %v2607
    %v3208 = vpack.c.b16 %v2616, %v2608
    %v3209 = vpack.c.b16 %v2625, %v2617
    %v3210 = vpack.c.b16 %v2626, %v2618
    %v3211 = vpack.c.b16 %v2627, %v2619
    %v3212 = vpack.c.b16 %v2628, %v2620
    %v3213 = vpack.c.b16 %v2629, %v2621
    %v3214 = vpack.c.b16 %v2630, %v2622
    %v3215 = vpack.c.b16 %v2631, %v2623
    %v3216 = vpack.c.b16 %v2632, %v2624
    %v3217 = vpack.c.b16 %v2641, %v2633
    %v3218 = vpack.c.b16 %v2642, %v2634
    %v3219 = vpack.c.b16 %v2643, %v2635
    %v3220 = vpack.c.b16 %v2644, %v2636
    %v3221 = vpack.c.b16 %v2645, %v2637
    %v3222 = vpack.c.b16 %v2646, %v2638
    %v3223 = vpack.c.b16 %v2647, %v2639
    %v3224 = vpack.c.b16 %v2648, %v2640
    %v3225 = vpack.c.b16 %v2657, %v2649
    %v3226 = vpack.c.b16 %v2658, %v2650
    %v3227 = vpack.c.b16 %v2659, %v2651
    %v3228 = vpack.c.b16 %v2660, %v2652
    %v3229 = vpack.c.b16 %v2661, %v2653
    %v3230 = vpack.c.b16 %v2662, %v2654
    %v3231 = vpack.c.b16 %v2663, %v2655
    %v3232 = vpack.c.b16 %v2664, %v2656
    %v3233 = vpack.c.b16 %v2673, %v2665
    %v3234 = vpack.c.b16 %v2674, %v2666
    %v3235 = vpack.c.b16 %v2675, %v2667
    %v3236 = vpack.c.b16 %v2676, %v2668
    %v3237 = vpack.c.b16 %v2677, %v2669
    %v3238 = vpack.c.b16 %v2678, %v2670
    %v3239 = vpack.c.b16 %v2679, %v2671
    %v3240 = vpack.c.b16 %v2680, %v2672
    %v3241 = vpack.c.b16 %v2689, %v2681
    %v3242 = vpack.c.b16 %v2690, %v2682
    %v3243 = vpack.c.b16 %v2691, %v2683
    %v3244 = vpack.c.b16 %v2692, %v2684
    %v3245 = vpack.c.b16 %v2693, %v2685
    %v3246 = vpack.c.b16 %v2694, %v2686
    %v3247 = vpack.c.b16 %v2695, %v2687
    %v3248 = vpack.c.b16 %v2696, %v2688
    %v3249 = vpack.c.b16 %v2705, %v2697
    %v3250 = vpack.c.b16 %v2706, %v2698
    %v3251 = vpack.c.b16 %v2707, %v2699
    %v3252 = vpack.c.b16 %v2708, %v2700
    %v3253 = vpack.c.b16 %v2709, %v2701
    %v3254 = vpack.c.b16 %v2710, %v2702
    %v3255 = vpack.c.b16 %v2711, %v2703
    %v3256 = vpack.c.b16 %v2712, %v2704
    %v3257 = vpack.c.b16 %v2721, %v2713
    %v3258 = vpack.c.b16 %v2722, %v2714
    %v3259 = vpack.c.b16 %v2723, %v2715
    %v3260 = vpack.c.b16 %v2724, %v2716
    %v3261 = vpack.c.b16 %v2725, %v2717
    %v3262 = vpack.c.b16 %v2726, %v2718
    %v3263 = vpack.c.b16 %v2727, %v2719
    %v3264 = vpack.c.b16 %v2728, %v2720
    %v3265 = vpack.c.b16 %v2737, %v2729
    %v3266 = vpack.c.b16 %v2738, %v2730
    %v3267 = vpack.c.b16 %v2739, %v2731
    %v3268 = vpack.c.b16 %v2740, %v2732
    %v3269 = vpack.c.b16 %v2741, %v2733
    %v3270 = vpack.c.b16 %v2742, %v2734
    %v3271 = vpack.c.b16 %v2743, %v2735
    %v3272 = vpack.c.b16 %v2744, %v2736
    %v3273 = vpack.c.b16 %v2753, %v2745
    %v3274 = vpack.c.b16 %v2754, %v2746
    %v3275 = vpack.c.b16 %v2755, %v2747
    %v3276 = vpack.c.b16 %v2756, %v2748
    %v3277 = vpack.c.b16 %v2757, %v2749
    %v3278 = vpack.c.b16 %v2758, %v2750
    %v3279 = vpack.c.b16 %v2759, %v2751
    %v3280 = vpack.c.b16 %v2760, %v2752
    %v3281 = vpack.c.b16 %v2769, %v2761
    %v3282 = vpack.c.b16 %v2770, %v2762
    %v3283 = vpack.c.b16 %v2771, %v2763
    %v3284 = vpack.c.b16 %v2772, %v2764
    %v3285 = vpack.c.b16 %v2773, %v2765
    %v3286 = vpack.c.b16 %v2774, %v2766
    %v3287 = vpack.c.b16 %v2775, %v2767
    %v3288 = vpack.c.b16 %v2776, %v2768
    %3801 = vmatprep.subr.bf16.mxu0 %v2778
    %3802 = vmatpush1.bf16.msra.mxu0 %v2777
    %3803 = vmatprep.subr.bf16.mxu0 %v2786
    %3804 = vmatpush1.bf16.msra.mxu0 %v2785
    %3805 = vmatprep.subr.bf16.mxu0 %v2794
    %3806 = vmatpush1.bf16.msra.mxu0 %v2793
    %3807 = vmatprep.subr.bf16.mxu0 %v2802
    %3808 = vmatpush1.bf16.msra.mxu0 %v2801
    %3809 = vmatprep.subr.bf16.mxu0 %v2810
    %3810 = vmatpush1.bf16.msra.mxu0 %v2809
    %3811 = vmatprep.subr.bf16.mxu0 %v2818
    %3812 = vmatpush1.bf16.msra.mxu0 %v2817
    %3813 = vmatprep.subr.bf16.mxu0 %v2826
    %3814 = vmatpush1.bf16.msra.mxu0 %v2825
    %3815 = vmatprep.subr.bf16.mxu0 %v2834
    %3816 = vmatpush1.bf16.msra.mxu0 %v2833
    %3817 = vmatprep.subr.bf16.mxu0 %v2842
    %3818 = vmatpush1.bf16.msra.mxu0 %v2841
    %3819 = vmatprep.subr.bf16.mxu0 %v2850
    %3820 = vmatpush1.bf16.msra.mxu0 %v2849
    %3821 = vmatprep.subr.bf16.mxu0 %v2858
    %3822 = vmatpush1.bf16.msra.mxu0 %v2857
    %3823 = vmatprep.subr.bf16.mxu0 %v2866
    %3824 = vmatpush1.bf16.msra.mxu0 %v2865
    %3825 = vmatprep.subr.bf16.mxu0 %v2874
    %3826 = vmatpush1.bf16.msra.mxu0 %v2873
    %3827 = vmatprep.subr.bf16.mxu0 %v2882
    %3828 = vmatpush1.bf16.msra.mxu0 %v2881
    %3829 = vmatprep.subr.bf16.mxu0 %v2890
    %3830 = vmatpush1.bf16.msra.mxu0 %v2889
    %3831 = vmatprep.subr.bf16.mxu0 %v2898
    %3832 = vmatpush1.bf16.msra.mxu0 %v2897
    %3833 = vmatprep.mubr.bf16.mxu0 %v202
    %3834 = vmatmul.mubr.bf16.gmra.mrb[0].mxu0 %v201
    %v3835 = vpop.f32.mrb[0].mxu0
    %v3836 = vadd.f32 0.0, %v3835
    %v3837 = vpop.f32.mrb[0].mxu0
    %v3838 = vadd.f32 0.0, %v3837
    %v3839 = vpop.f32.mrb[0].mxu0
    %v3840 = vadd.f32 0.0, %v3839
    %v3841 = vpop.f32.mrb[0].mxu0
    %v3842 = vadd.f32 0.0, %v3841
    %3843 = vmatprep.mubr.bf16.mxu0 %v210
    %3844 = vmatmul.mubr.bf16.gmra.mrb[0].mxu0 %v209
    %v3845 = vpop.f32.mrb[0].mxu0
    %v3846 = vadd.f32 0.0, %v3845
    %v3847 = vpop.f32.mrb[0].mxu0
    %v3848 = vadd.f32 0.0, %v3847
    %v3849 = vpop.f32.mrb[0].mxu0
    %v3850 = vpop.f32.mrb[0].mxu0
    %3851 = vdwg.mxu0
    %3852 = vmatprep.subr.bf16.mxu0 %v2906
    %3853 = vmatpush1.bf16.msra.mxu0 %v2905
    %3854 = vmatprep.subr.bf16.mxu0 %v2914
    %3855 = vmatpush1.bf16.msra.mxu0 %v2913
    %3856 = vmatprep.subr.bf16.mxu0 %v2922
    %3857 = vmatpush1.bf16.msra.mxu0 %v2921
    %3858 = vmatprep.subr.bf16.mxu0 %v2930
    %3859 = vmatpush1.bf16.msra.mxu0 %v2929
    %3860 = vmatprep.subr.bf16.mxu0 %v2938
    %3861 = vmatpush1.bf16.msra.mxu0 %v2937
    %3862 = vmatprep.subr.bf16.mxu0 %v2946
    %3863 = vmatpush1.bf16.msra.mxu0 %v2945
    %3864 = vmatprep.subr.bf16.mxu0 %v2954
    %3865 = vmatpush1.bf16.msra.mxu0 %v2953
    %3866 = vmatprep.subr.bf16.mxu0 %v2962
    %3867 = vmatpush1.bf16.msra.mxu0 %v2961
    %3868 = vmatprep.subr.bf16.mxu0 %v2970
    %3869 = vmatpush1.bf16.msra.mxu0 %v2969
    %3870 = vmatprep.subr.bf16.mxu0 %v2978
    %3871 = vmatpush1.bf16.msra.mxu0 %v2977
    %3872 = vmatprep.subr.bf16.mxu0 %v2986
    %3873 = vmatpush1.bf16.msra.mxu0 %v2985
    %3874 = vmatprep.subr.bf16.mxu0 %v2994
    %3875 = vmatpush1.bf16.msra.mxu0 %v2993
    %3876 = vmatprep.subr.bf16.mxu0 %v3002
    %3877 = vmatpush1.bf16.msra.mxu0 %v3001
    %3878 = vmatprep.subr.bf16.mxu0 %v3010
    %3879 = vmatpush1.bf16.msra.mxu0 %v3009
    %3880 = vmatprep.subr.bf16.mxu0 %v3018
    %3881 = vmatpush1.bf16.msra.mxu0 %v3017
    %3882 = vmatprep.subr.bf16.mxu0 %v3026
    %3883 = vmatpush1.bf16.msra.mxu0 %v3025
    %3884 = vmatprep.mubr.bf16.mxu0 %v204
    %3885 = vmatmul.mubr.bf16.gmra.mrb[0].mxu0 %v203
    %v3886 = vpop.f32.mrb[0].mxu0
    %v3887 = vadd.f32 %v3836, %v3886
    %v3888 = vpop.f32.mrb[0].mxu0
    %v3889 = vadd.f32 %v3838, %v3888
    %v3890 = vpop.f32.mrb[0].mxu0
    %v3891 = vadd.f32 %v3840, %v3890
    %v3892 = vpop.f32.mrb[0].mxu0
    %v3893 = vadd.f32 %v3842, %v3892
    %3894 = vmatprep.mubr.bf16.mxu0 %v212
    %3895 = vmatmul.mubr.bf16.gmra.mrb[0].mxu0 %v211
    %v3896 = vpop.f32.mrb[0].mxu0
    %v3897 = vadd.f32 %v3846, %v3896
    %v3898 = vpop.f32.mrb[0].mxu0
    %v3899 = vadd.f32 %v3848, %v3898
    %v3900 = vpop.f32.mrb[0].mxu0
    %v3901 = vpop.f32.mrb[0].mxu0
    %3902 = vdwg.mxu0
    %3903 = vmatprep.subr.bf16.mxu0 %v3034
    %3904 = vmatpush1.bf16.msra.mxu0 %v3033
    %3905 = vmatprep.subr.bf16.mxu0 %v3042
    %3906 = vmatpush1.bf16.msra.mxu0 %v3041
    %3907 = vmatprep.subr.bf16.mxu0 %v3050
    %3908 = vmatpush1.bf16.msra.mxu0 %v3049
    %3909 = vmatprep.subr.bf16.mxu0 %v3058
    %3910 = vmatpush1.bf16.msra.mxu0 %v3057
    %3911 = vmatprep.subr.bf16.mxu0 %v3066
    %3912 = vmatpush1.bf16.msra.mxu0 %v3065
    %3913 = vmatprep.subr.bf16.mxu0 %v3074
    %3914 = vmatpush1.bf16.msra.mxu0 %v3073
    %3915 = vmatprep.subr.bf16.mxu0 %v3082
    %3916 = vmatpush1.bf16.msra.mxu0 %v3081
    %3917 = vmatprep.subr.bf16.mxu0 %v3090
    %3918 = vmatpush1.bf16.msra.mxu0 %v3089
    %3919 = vmatprep.subr.bf16.mxu0 %v3098
    %3920 = vmatpush1.bf16.msra.mxu0 %v3097
    %3921 = vmatprep.subr.bf16.mxu0 %v3106
    %3922 = vmatpush1.bf16.msra.mxu0 %v3105
    %3923 = vmatprep.subr.bf16.mxu0 %v3114
    %3924 = vmatpush1.bf16.msra.mxu0 %v3113
    %3925 = vmatprep.subr.bf16.mxu0 %v3122
    %3926 = vmatpush1.bf16.msra.mxu0 %v3121
    %3927 = vmatprep.subr.bf16.mxu0 %v3130
    %3928 = vmatpush1.bf16.msra.mxu0 %v3129
    %3929 = vmatprep.subr.bf16.mxu0 %v3138
    %3930 = vmatpush1.bf16.msra.mxu0 %v3137
    %3931 = vmatprep.subr.bf16.mxu0 %v3146
    %3932 = vmatpush1.bf16.msra.mxu0 %v3145
    %3933 = vmatprep.subr.bf16.mxu0 %v3154
    %3934 = vmatpush1.bf16.msra.mxu0 %v3153
    %3935 = vmatprep.mubr.bf16.mxu0 %v206
    %3936 = vmatmul.mubr.bf16.gmra.mrb[0].mxu0 %v205
    %v3937 = vpop.f32.mrb[0].mxu0
    %v3938 = vadd.f32 %v3887, %v3937
    %v3939 = vpop.f32.mrb[0].mxu0
    %v3940 = vadd.f32 %v3889, %v3939
    %v3941 = vpop.f32.mrb[0].mxu0
    %v3942 = vadd.f32 %v3891, %v3941
    %v3943 = vpop.f32.mrb[0].mxu0
    %v3944 = vadd.f32 %v3893, %v3943
    %3945 = vmatprep.mubr.bf16.mxu0 %v214
    %3946 = vmatmul.mubr.bf16.gmra.mrb[0].mxu0 %v213
    %v3947 = vpop.f32.mrb[0].mxu0
    %v3948 = vadd.f32 %v3897, %v3947
    %v3949 = vpop.f32.mrb[0].mxu0
    %v3950 = vadd.f32 %v3899, %v3949
    %v3951 = vpop.f32.mrb[0].mxu0
    %v3952 = vpop.f32.mrb[0].mxu0
    %3953 = vdwg.mxu0
    %3954 = vmatprep.subr.bf16.mxu0 %v3162
    %3955 = vmatpush1.bf16.msra.mxu0 %v3161
    %3956 = vmatprep.subr.bf16.mxu0 %v3170
    %3957 = vmatpush1.bf16.msra.mxu0 %v3169
    %3958 = vmatprep.subr.bf16.mxu0 %v3178
    %3959 = vmatpush1.bf16.msra.mxu0 %v3177
    %3960 = vmatprep.subr.bf16.mxu0 %v3186
    %3961 = vmatpush1.bf16.msra.mxu0 %v3185
    %3962 = vmatprep.subr.bf16.mxu0 %v3194
    %3963 = vmatpush1.bf16.msra.mxu0 %v3193
    %3964 = vmatprep.subr.bf16.mxu0 %v3202
    %3965 = vmatpush1.bf16.msra.mxu0 %v3201
    %3966 = vmatprep.subr.bf16.mxu0 %v3210
    %3967 = vmatpush1.bf16.msra.mxu0 %v3209
    %3968 = vmatprep.subr.bf16.mxu0 %v3218
    %3969 = vmatpush1.bf16.msra.mxu0 %v3217
    %3970 = vmatprep.subr.bf16.mxu0 %v3226
    %3971 = vmatpush1.bf16.msra.mxu0 %v3225
    %3972 = vmatprep.subr.bf16.mxu0 %v3234
    %3973 = vmatpush1.bf16.msra.mxu0 %v3233
    %3974 = vmatprep.subr.bf16.mxu0 %v3242
    %3975 = vmatpush1.bf16.msra.mxu0 %v3241
    %3976 = vmatprep.subr.bf16.mxu0 %v3250
    %3977 = vmatpush1.bf16.msra.mxu0 %v3249
    %3978 = vmatprep.subr.bf16.mxu0 %v3258
    %3979 = vmatpush1.bf16.msra.mxu0 %v3257
    %3980 = vmatprep.subr.bf16.mxu0 %v3266
    %3981 = vmatpush1.bf16.msra.mxu0 %v3265
    %3982 = vmatprep.subr.bf16.mxu0 %v3274
    %3983 = vmatpush1.bf16.msra.mxu0 %v3273
    %3984 = vmatprep.subr.bf16.mxu0 %v3282
    %3985 = vmatpush1.bf16.msra.mxu0 %v3281
    %3986 = vmatprep.mubr.bf16.mxu0 %v208
    %3987 = vmatmul.mubr.bf16.gmra.mrb[0].mxu0 %v207
    %v3988 = vpop.f32.mrb[0].mxu0
    %v3989 = vadd.f32 %v3938, %v3988
    %v3990 = vpop.f32.mrb[0].mxu0
    %v3991 = vadd.f32 %v3940, %v3990
    %v3992 = vpop.f32.mrb[0].mxu0
    %v3993 = vadd.f32 %v3942, %v3992
    %v3994 = vpop.f32.mrb[0].mxu0
    %v3995 = vadd.f32 %v3944, %v3994
    %3996 = vmatprep.mubr.bf16.mxu0 %v216
    %3997 = vmatmul.mubr.bf16.gmra.mrb[0].mxu0 %v215
    %v3998 = vpop.f32.mrb[0].mxu0
    %v3999 = vadd.f32 %v3948, %v3998
    %v4000 = vpop.f32.mrb[0].mxu0
    %v4001 = vadd.f32 %v3950, %v4000
    %v4002 = vpop.f32.mrb[0].mxu0
    %v4003 = vpop.f32.mrb[0].mxu0
    %4004 = vdwg.mxu0
    %4005 = vmatprep.subr.bf16.mxu0 %v2780
    %4006 = vmatpush1.bf16.msra.mxu0 %v2779
    %4007 = vmatprep.subr.bf16.mxu0 %v2788
    %4008 = vmatpush1.bf16.msra.mxu0 %v2787
    %4009 = vmatprep.subr.bf16.mxu0 %v2796
    %4010 = vmatpush1.bf16.msra.mxu0 %v2795
    %4011 = vmatprep.subr.bf16.mxu0 %v2804
    %4012 = vmatpush1.bf16.msra.mxu0 %v2803
    %4013 = vmatprep.subr.bf16.mxu0 %v2812
    %4014 = vmatpush1.bf16.msra.mxu0 %v2811
    %4015 = vmatprep.subr.bf16.mxu0 %v2820
    %4016 = vmatpush1.bf16.msra.mxu0 %v2819
    %4017 = vmatprep.subr.bf16.mxu0 %v2828
    %4018 = vmatpush1.bf16.msra.mxu0 %v2827
    %4019 = vmatprep.subr.bf16.mxu0 %v2836
    %4020 = vmatpush1.bf16.msra.mxu0 %v2835
    %4021 = vmatprep.subr.bf16.mxu0 %v2844
    %4022 = vmatpush1.bf16.msra.mxu0 %v2843
    %4023 = vmatprep.subr.bf16.mxu0 %v2852
    %4024 = vmatpush1.bf16.msra.mxu0 %v2851
    %4025 = vmatprep.subr.bf16.mxu0 %v2860
    %4026 = vmatpush1.bf16.msra.mxu0 %v2859
    %4027 = vmatprep.subr.bf16.mxu0 %v2868
    %4028 = vmatpush1.bf16.msra.mxu0 %v2867
    %4029 = vmatprep.subr.bf16.mxu0 %v2876
    %4030 = vmatpush1.bf16.msra.mxu0 %v2875
    %4031 = vmatprep.subr.bf16.mxu0 %v2884
    %4032 = vmatpush1.bf16.msra.mxu0 %v2883
    %4033 = vmatprep.subr.bf16.mxu0 %v2892
    %4034 = vmatpush1.bf16.msra.mxu0 %v2891
    %4035 = vmatprep.subr.bf16.mxu0 %v2900
    %4036 = vmatpush1.bf16.msra.mxu0 %v2899
    %4037 = vmatprep.mubr.bf16.mxu0 %v202
    %4038 = vmatmul.mubr.bf16.gmra.mrb[0].mxu0 %v201
    %v4039 = vpop.f32.mrb[0].mxu0
    %v4040 = vadd.f32 0.0, %v4039
    %v4041 = vpop.f32.mrb[0].mxu0
    %v4042 = vadd.f32 0.0, %v4041
    %v4043 = vpop.f32.mrb[0].mxu0
    %v4044 = vadd.f32 0.0, %v4043
    %v4045 = vpop.f32.mrb[0].mxu0
    %v4046 = vadd.f32 0.0, %v4045
    %4047 = vmatprep.mubr.bf16.mxu0 %v210
    %4048 = vmatmul.mubr.bf16.gmra.mrb[0].mxu0 %v209
    %v4049 = vpop.f32.mrb[0].mxu0
    %v4050 = vadd.f32 0.0, %v4049
    %v4051 = vpop.f32.mrb[0].mxu0
    %v4052 = vadd.f32 0.0, %v4051
    %v4053 = vpop.f32.mrb[0].mxu0
    %v4054 = vpop.f32.mrb[0].mxu0
    %4055 = vdwg.mxu0
    %4056 = vmatprep.subr.bf16.mxu0 %v2908
    %4057 = vmatpush1.bf16.msra.mxu0 %v2907
    %4058 = vmatprep.subr.bf16.mxu0 %v2916
    %4059 = vmatpush1.bf16.msra.mxu0 %v2915
    %4060 = vmatprep.subr.bf16.mxu0 %v2924
    %4061 = vmatpush1.bf16.msra.mxu0 %v2923
    %4062 = vmatprep.subr.bf16.mxu0 %v2932
    %4063 = vmatpush1.bf16.msra.mxu0 %v2931
    %4064 = vmatprep.subr.bf16.mxu0 %v2940
    %4065 = vmatpush1.bf16.msra.mxu0 %v2939
    %4066 = vmatprep.subr.bf16.mxu0 %v2948
    %4067 = vmatpush1.bf16.msra.mxu0 %v2947
    %4068 = vmatprep.subr.bf16.mxu0 %v2956
    %4069 = vmatpush1.bf16.msra.mxu0 %v2955
    %4070 = vmatprep.subr.bf16.mxu0 %v2964
    %4071 = vmatpush1.bf16.msra.mxu0 %v2963
    %4072 = vmatprep.subr.bf16.mxu0 %v2972
    %4073 = vmatpush1.bf16.msra.mxu0 %v2971
    %4074 = vmatprep.subr.bf16.mxu0 %v2980
    %4075 = vmatpush1.bf16.msra.mxu0 %v2979
    %4076 = vmatprep.subr.bf16.mxu0 %v2988
    %4077 = vmatpush1.bf16.msra.mxu0 %v2987
    %4078 = vmatprep.subr.bf16.mxu0 %v2996
    %4079 = vmatpush1.bf16.msra.mxu0 %v2995
    %4080 = vmatprep.subr.bf16.mxu0 %v3004
    %4081 = vmatpush1.bf16.msra.mxu0 %v3003
    %4082 = vmatprep.subr.bf16.mxu0 %v3012
    %4083 = vmatpush1.bf16.msra.mxu0 %v3011
    %4084 = vmatprep.subr.bf16.mxu0 %v3020
    %4085 = vmatpush1.bf16.msra.mxu0 %v3019
    %4086 = vmatprep.subr.bf16.mxu0 %v3028
    %4087 = vmatpush1.bf16.msra.mxu0 %v3027
    %4088 = vmatprep.mubr.bf16.mxu0 %v204
    %4089 = vmatmul.mubr.bf16.gmra.mrb[0].mxu0 %v203
    %v4090 = vpop.f32.mrb[0].mxu0
    %v4091 = vadd.f32 %v4040, %v4090
    %v4092 = vpop.f32.mrb[0].mxu0
    %v4093 = vadd.f32 %v4042, %v4092
    %v4094 = vpop.f32.mrb[0].mxu0
    %v4095 = vadd.f32 %v4044, %v4094
    %v4096 = vpop.f32.mrb[0].mxu0
    %v4097 = vadd.f32 %v4046, %v4096
    %4098 = vmatprep.mubr.bf16.mxu0 %v212
    %4099 = vmatmul.mubr.bf16.gmra.mrb[0].mxu0 %v211
    %v4100 = vpop.f32.mrb[0].mxu0
    %v4101 = vadd.f32 %v4050, %v4100
    %v4102 = vpop.f32.mrb[0].mxu0
    %v4103 = vadd.f32 %v4052, %v4102
    %v4104 = vpop.f32.mrb[0].mxu0
    %v4105 = vpop.f32.mrb[0].mxu0
    %4106 = vdwg.mxu0
    %4107 = vmatprep.subr.bf16.mxu0 %v3036
    %4108 = vmatpush1.bf16.msra.mxu0 %v3035
    %4109 = vmatprep.subr.bf16.mxu0 %v3044
    %4110 = vmatpush1.bf16.msra.mxu0 %v3043
    %4111 = vmatprep.subr.bf16.mxu0 %v3052
    %4112 = vmatpush1.bf16.msra.mxu0 %v3051
    %4113 = vmatprep.subr.bf16.mxu0 %v3060
    %4114 = vmatpush1.bf16.msra.mxu0 %v3059
    %4115 = vmatprep.subr.bf16.mxu0 %v3068
    %4116 = vmatpush1.bf16.msra.mxu0 %v3067
    %4117 = vmatprep.subr.bf16.mxu0 %v3076
    %4118 = vmatpush1.bf16.msra.mxu0 %v3075
    %4119 = vmatprep.subr.bf16.mxu0 %v3084
    %4120 = vmatpush1.bf16.msra.mxu0 %v3083
    %4121 = vmatprep.subr.bf16.mxu0 %v3092
    %4122 = vmatpush1.bf16.msra.mxu0 %v3091
    %4123 = vmatprep.subr.bf16.mxu0 %v3100
    %4124 = vmatpush1.bf16.msra.mxu0 %v3099
    %4125 = vmatprep.subr.bf16.mxu0 %v3108
    %4126 = vmatpush1.bf16.msra.mxu0 %v3107
    %4127 = vmatprep.subr.bf16.mxu0 %v3116
    %4128 = vmatpush1.bf16.msra.mxu0 %v3115
    %4129 = vmatprep.subr.bf16.mxu0 %v3124
    %4130 = vmatpush1.bf16.msra.mxu0 %v3123
    %4131 = vmatprep.subr.bf16.mxu0 %v3132
    %4132 = vmatpush1.bf16.msra.mxu0 %v3131
    %4133 = vmatprep.subr.bf16.mxu0 %v3140
    %4134 = vmatpush1.bf16.msra.mxu0 %v3139
    %4135 = vmatprep.subr.bf16.mxu0 %v3148
    %4136 = vmatpush1.bf16.msra.mxu0 %v3147
    %4137 = vmatprep.subr.bf16.mxu0 %v3156
    %4138 = vmatpush1.bf16.msra.mxu0 %v3155
    %4139 = vmatprep.mubr.bf16.mxu0 %v206
    %4140 = vmatmul.mubr.bf16.gmra.mrb[0].mxu0 %v205
    %v4141 = vpop.f32.mrb[0].mxu0
    %v4142 = vadd.f32 %v4091, %v4141
    %v4143 = vpop.f32.mrb[0].mxu0
    %v4144 = vadd.f32 %v4093, %v4143
    %v4145 = vpop.f32.mrb[0].mxu0
    %v4146 = vadd.f32 %v4095, %v4145
    %v4147 = vpop.f32.mrb[0].mxu0
    %v4148 = vadd.f32 %v4097, %v4147
    %4149 = vmatprep.mubr.bf16.mxu0 %v214
    %4150 = vmatmul.mubr.bf16.gmra.mrb[0].mxu0 %v213
    %v4151 = vpop.f32.mrb[0].mxu0
    %v4152 = vadd.f32 %v4101, %v4151
    %v4153 = vpop.f32.mrb[0].mxu0
    %v4154 = vadd.f32 %v4103, %v4153
    %v4155 = vpop.f32.mrb[0].mxu0
    %v4156 = vpop.f32.mrb[0].mxu0
    %4157 = vdwg.mxu0
    %4158 = vmatprep.subr.bf16.mxu0 %v3164
    %4159 = vmatpush1.bf16.msra.mxu0 %v3163
    %4160 = vmatprep.subr.bf16.mxu0 %v3172
    %4161 = vmatpush1.bf16.msra.mxu0 %v3171
    %4162 = vmatprep.subr.bf16.mxu0 %v3180
    %4163 = vmatpush1.bf16.msra.mxu0 %v3179
    %4164 = vmatprep.subr.bf16.mxu0 %v3188
    %4165 = vmatpush1.bf16.msra.mxu0 %v3187
    %4166 = vmatprep.subr.bf16.mxu0 %v3196
    %4167 = vmatpush1.bf16.msra.mxu0 %v3195
    %4168 = vmatprep.subr.bf16.mxu0 %v3204
    %4169 = vmatpush1.bf16.msra.mxu0 %v3203
    %4170 = vmatprep.subr.bf16.mxu0 %v3212
    %4171 = vmatpush1.bf16.msra.mxu0 %v3211
    %4172 = vmatprep.subr.bf16.mxu0 %v3220
    %4173 = vmatpush1.bf16.msra.mxu0 %v3219
    %4174 = vmatprep.subr.bf16.mxu0 %v3228
    %4175 = vmatpush1.bf16.msra.mxu0 %v3227
    %4176 = vmatprep.subr.bf16.mxu0 %v3236
    %4177 = vmatpush1.bf16.msra.mxu0 %v3235
    %4178 = vmatprep.subr.bf16.mxu0 %v3244
    %4179 = vmatpush1.bf16.msra.mxu0 %v3243
    %4180 = vmatprep.subr.bf16.mxu0 %v3252
    %4181 = vmatpush1.bf16.msra.mxu0 %v3251
    %4182 = vmatprep.subr.bf16.mxu0 %v3260
    %4183 = vmatpush1.bf16.msra.mxu0 %v3259
    %4184 = vmatprep.subr.bf16.mxu0 %v3268
    %4185 = vmatpush1.bf16.msra.mxu0 %v3267
    %4186 = vmatprep.subr.bf16.mxu0 %v3276
    %4187 = vmatpush1.bf16.msra.mxu0 %v3275
    %4188 = vmatprep.subr.bf16.mxu0 %v3284
    %4189 = vmatpush1.bf16.msra.mxu0 %v3283
    %4190 = vmatprep.mubr.bf16.mxu0 %v208
    %4191 = vmatmul.mubr.bf16.gmra.mrb[0].mxu0 %v207
    %v4192 = vpop.f32.mrb[0].mxu0
    %v4193 = vadd.f32 %v4142, %v4192
    %v4194 = vpop.f32.mrb[0].mxu0
    %v4195 = vadd.f32 %v4144, %v4194
    %v4196 = vpop.f32.mrb[0].mxu0
    %v4197 = vadd.f32 %v4146, %v4196
    %v4198 = vpop.f32.mrb[0].mxu0
    %v4199 = vadd.f32 %v4148, %v4198
    %4200 = vmatprep.mubr.bf16.mxu0 %v216
    %4201 = vmatmul.mubr.bf16.gmra.mrb[0].mxu0 %v215
    %v4202 = vpop.f32.mrb[0].mxu0
    %v4203 = vadd.f32 %v4152, %v4202
    %v4204 = vpop.f32.mrb[0].mxu0
    %v4205 = vadd.f32 %v4154, %v4204
    %v4206 = vpop.f32.mrb[0].mxu0
    %v4207 = vpop.f32.mrb[0].mxu0
    %4208 = vdwg.mxu0
    %4209 = vmatprep.subr.bf16.mxu0 %v2782
    %4210 = vmatpush1.bf16.msra.mxu0 %v2781
    %4211 = vmatprep.subr.bf16.mxu0 %v2790
    %4212 = vmatpush1.bf16.msra.mxu0 %v2789
    %4213 = vmatprep.subr.bf16.mxu0 %v2798
    %4214 = vmatpush1.bf16.msra.mxu0 %v2797
    %4215 = vmatprep.subr.bf16.mxu0 %v2806
    %4216 = vmatpush1.bf16.msra.mxu0 %v2805
    %4217 = vmatprep.subr.bf16.mxu0 %v2814
    %4218 = vmatpush1.bf16.msra.mxu0 %v2813
    %4219 = vmatprep.subr.bf16.mxu0 %v2822
    %4220 = vmatpush1.bf16.msra.mxu0 %v2821
    %4221 = vmatprep.subr.bf16.mxu0 %v2830
    %4222 = vmatpush1.bf16.msra.mxu0 %v2829
    %4223 = vmatprep.subr.bf16.mxu0 %v2838
    %4224 = vmatpush1.bf16.msra.mxu0 %v2837
    %4225 = vmatprep.subr.bf16.mxu0 %v2846
    %4226 = vmatpush1.bf16.msra.mxu0 %v2845
    %4227 = vmatprep.subr.bf16.mxu0 %v2854
    %4228 = vmatpush1.bf16.msra.mxu0 %v2853
    %4229 = vmatprep.subr.bf16.mxu0 %v2862
    %4230 = vmatpush1.bf16.msra.mxu0 %v2861
    %4231 = vmatprep.subr.bf16.mxu0 %v2870
    %4232 = vmatpush1.bf16.msra.mxu0 %v2869
    %4233 = vmatprep.subr.bf16.mxu0 %v2878
    %4234 = vmatpush1.bf16.msra.mxu0 %v2877
    %4235 = vmatprep.subr.bf16.mxu0 %v2886
    %4236 = vmatpush1.bf16.msra.mxu0 %v2885
    %4237 = vmatprep.subr.bf16.mxu0 %v2894
    %4238 = vmatpush1.bf16.msra.mxu0 %v2893
    %4239 = vmatprep.subr.bf16.mxu0 %v2902
    %4240 = vmatpush1.bf16.msra.mxu0 %v2901
    %4241 = vmatprep.mubr.bf16.mxu0 %v202
    %4242 = vmatmul.mubr.bf16.gmra.mrb[0].mxu0 %v201
    %v4243 = vpop.f32.mrb[0].mxu0
    %v4244 = vadd.f32 0.0, %v4243
    %v4245 = vpop.f32.mrb[0].mxu0
    %v4246 = vadd.f32 0.0, %v4245
    %v4247 = vpop.f32.mrb[0].mxu0
    %v4248 = vadd.f32 0.0, %v4247
    %v4249 = vpop.f32.mrb[0].mxu0
    %v4250 = vadd.f32 0.0, %v4249
    %4251 = vmatprep.mubr.bf16.mxu0 %v210
    %4252 = vmatmul.mubr.bf16.gmra.mrb[0].mxu0 %v209
    %v4253 = vpop.f32.mrb[0].mxu0
    %v4254 = vadd.f32 0.0, %v4253
    %v4255 = vpop.f32.mrb[0].mxu0
    %v4256 = vadd.f32 0.0, %v4255
    %v4257 = vpop.f32.mrb[0].mxu0
    %v4258 = vpop.f32.mrb[0].mxu0
    %4259 = vdwg.mxu0
    %4260 = vmatprep.subr.bf16.mxu0 %v2910
    %4261 = vmatpush1.bf16.msra.mxu0 %v2909
    %4262 = vmatprep.subr.bf16.mxu0 %v2918
    %4263 = vmatpush1.bf16.msra.mxu0 %v2917
    %4264 = vmatprep.subr.bf16.mxu0 %v2926
    %4265 = vmatpush1.bf16.msra.mxu0 %v2925
    %4266 = vmatprep.subr.bf16.mxu0 %v2934
    %4267 = vmatpush1.bf16.msra.mxu0 %v2933
    %4268 = vmatprep.subr.bf16.mxu0 %v2942
    %4269 = vmatpush1.bf16.msra.mxu0 %v2941
    %4270 = vmatprep.subr.bf16.mxu0 %v2950
    %4271 = vmatpush1.bf16.msra.mxu0 %v2949
    %4272 = vmatprep.subr.bf16.mxu0 %v2958
    %4273 = vmatpush1.bf16.msra.mxu0 %v2957
    %4274 = vmatprep.subr.bf16.mxu0 %v2966
    %4275 = vmatpush1.bf16.msra.mxu0 %v2965
    %4276 = vmatprep.subr.bf16.mxu0 %v2974
    %4277 = vmatpush1.bf16.msra.mxu0 %v2973
    %4278 = vmatprep.subr.bf16.mxu0 %v2982
    %4279 = vmatpush1.bf16.msra.mxu0 %v2981
    %4280 = vmatprep.subr.bf16.mxu0 %v2990
    %4281 = vmatpush1.bf16.msra.mxu0 %v2989
    %4282 = vmatprep.subr.bf16.mxu0 %v2998
    %4283 = vmatpush1.bf16.msra.mxu0 %v2997
    %4284 = vmatprep.subr.bf16.mxu0 %v3006
    %4285 = vmatpush1.bf16.msra.mxu0 %v3005
    %4286 = vmatprep.subr.bf16.mxu0 %v3014
    %4287 = vmatpush1.bf16.msra.mxu0 %v3013
    %4288 = vmatprep.subr.bf16.mxu0 %v3022
    %4289 = vmatpush1.bf16.msra.mxu0 %v3021
    %4290 = vmatprep.subr.bf16.mxu0 %v3030
    %4291 = vmatpush1.bf16.msra.mxu0 %v3029
    %4292 = vmatprep.mubr.bf16.mxu0 %v204
    %4293 = vmatmul.mubr.bf16.gmra.mrb[0].mxu0 %v203
    %v4294 = vpop.f32.mrb[0].mxu0
    %v4295 = vadd.f32 %v4244, %v4294
    %v4296 = vpop.f32.mrb[0].mxu0
    %v4297 = vadd.f32 %v4246, %v4296
    %v4298 = vpop.f32.mrb[0].mxu0
    %v4299 = vadd.f32 %v4248, %v4298
    %v4300 = vpop.f32.mrb[0].mxu0
    %v4301 = vadd.f32 %v4250, %v4300
    %4302 = vmatprep.mubr.bf16.mxu0 %v212
    %4303 = vmatmul.mubr.bf16.gmra.mrb[0].mxu0 %v211
    %v4304 = vpop.f32.mrb[0].mxu0
    %v4305 = vadd.f32 %v4254, %v4304
    %v4306 = vpop.f32.mrb[0].mxu0
    %v4307 = vadd.f32 %v4256, %v4306
    %v4308 = vpop.f32.mrb[0].mxu0
    %v4309 = vpop.f32.mrb[0].mxu0
    %4310 = vdwg.mxu0
    %4311 = vmatprep.subr.bf16.mxu0 %v3038
    %4312 = vmatpush1.bf16.msra.mxu0 %v3037
    %4313 = vmatprep.subr.bf16.mxu0 %v3046
    %4314 = vmatpush1.bf16.msra.mxu0 %v3045
    %4315 = vmatprep.subr.bf16.mxu0 %v3054
    %4316 = vmatpush1.bf16.msra.mxu0 %v3053
    %4317 = vmatprep.subr.bf16.mxu0 %v3062
    %4318 = vmatpush1.bf16.msra.mxu0 %v3061
    %4319 = vmatprep.subr.bf16.mxu0 %v3070
    %4320 = vmatpush1.bf16.msra.mxu0 %v3069
    %4321 = vmatprep.subr.bf16.mxu0 %v3078
    %4322 = vmatpush1.bf16.msra.mxu0 %v3077
    %4323 = vmatprep.subr.bf16.mxu0 %v3086
    %4324 = vmatpush1.bf16.msra.mxu0 %v3085
    %4325 = vmatprep.subr.bf16.mxu0 %v3094
    %4326 = vmatpush1.bf16.msra.mxu0 %v3093
    %4327 = vmatprep.subr.bf16.mxu0 %v3102
    %4328 = vmatpush1.bf16.msra.mxu0 %v3101
    %4329 = vmatprep.subr.bf16.mxu0 %v3110
    %4330 = vmatpush1.bf16.msra.mxu0 %v3109
    %4331 = vmatprep.subr.bf16.mxu0 %v3118
    %4332 = vmatpush1.bf16.msra.mxu0 %v3117
    %4333 = vmatprep.subr.bf16.mxu0 %v3126
    %4334 = vmatpush1.bf16.msra.mxu0 %v3125
    %4335 = vmatprep.subr.bf16.mxu0 %v3134
    %4336 = vmatpush1.bf16.msra.mxu0 %v3133
    %4337 = vmatprep.subr.bf16.mxu0 %v3142
    %4338 = vmatpush1.bf16.msra.mxu0 %v3141
    %4339 = vmatprep.subr.bf16.mxu0 %v3150
    %4340 = vmatpush1.bf16.msra.mxu0 %v3149
    %4341 = vmatprep.subr.bf16.mxu0 %v3158
    %4342 = vmatpush1.bf16.msra.mxu0 %v3157
    %4343 = vmatprep.mubr.bf16.mxu0 %v206
    %4344 = vmatmul.mubr.bf16.gmra.mrb[0].mxu0 %v205
    %v4345 = vpop.f32.mrb[0].mxu0
    %v4346 = vadd.f32 %v4295, %v4345
    %v4347 = vpop.f32.mrb[0].mxu0
    %v4348 = vadd.f32 %v4297, %v4347
    %v4349 = vpop.f32.mrb[0].mxu0
    %v4350 = vadd.f32 %v4299, %v4349
    %v4351 = vpop.f32.mrb[0].mxu0
    %v4352 = vadd.f32 %v4301, %v4351
    %4353 = vmatprep.mubr.bf16.mxu0 %v214
    %4354 = vmatmul.mubr.bf16.gmra.mrb[0].mxu0 %v213
    %v4355 = vpop.f32.mrb[0].mxu0
    %v4356 = vadd.f32 %v4305, %v4355
    %v4357 = vpop.f32.mrb[0].mxu0
    %v4358 = vadd.f32 %v4307, %v4357
    %v4359 = vpop.f32.mrb[0].mxu0
    %v4360 = vpop.f32.mrb[0].mxu0
    %4361 = vdwg.mxu0
    %4362 = vmatprep.subr.bf16.mxu0 %v3166
    %4363 = vmatpush1.bf16.msra.mxu0 %v3165
    %4364 = vmatprep.subr.bf16.mxu0 %v3174
    %4365 = vmatpush1.bf16.msra.mxu0 %v3173
    %4366 = vmatprep.subr.bf16.mxu0 %v3182
    %4367 = vmatpush1.bf16.msra.mxu0 %v3181
    %4368 = vmatprep.subr.bf16.mxu0 %v3190
    %4369 = vmatpush1.bf16.msra.mxu0 %v3189
    %4370 = vmatprep.subr.bf16.mxu0 %v3198
    %4371 = vmatpush1.bf16.msra.mxu0 %v3197
    %4372 = vmatprep.subr.bf16.mxu0 %v3206
    %4373 = vmatpush1.bf16.msra.mxu0 %v3205
    %4374 = vmatprep.subr.bf16.mxu0 %v3214
    %4375 = vmatpush1.bf16.msra.mxu0 %v3213
    %4376 = vmatprep.subr.bf16.mxu0 %v3222
    %4377 = vmatpush1.bf16.msra.mxu0 %v3221
    %4378 = vmatprep.subr.bf16.mxu0 %v3230
    %4379 = vmatpush1.bf16.msra.mxu0 %v3229
    %4380 = vmatprep.subr.bf16.mxu0 %v3238
    %4381 = vmatpush1.bf16.msra.mxu0 %v3237
    %4382 = vmatprep.subr.bf16.mxu0 %v3246
    %4383 = vmatpush1.bf16.msra.mxu0 %v3245
    %4384 = vmatprep.subr.bf16.mxu0 %v3254
    %4385 = vmatpush1.bf16.msra.mxu0 %v3253
    %4386 = vmatprep.subr.bf16.mxu0 %v3262
    %4387 = vmatpush1.bf16.msra.mxu0 %v3261
    %4388 = vmatprep.subr.bf16.mxu0 %v3270
    %4389 = vmatpush1.bf16.msra.mxu0 %v3269
    %4390 = vmatprep.subr.bf16.mxu0 %v3278
    %4391 = vmatpush1.bf16.msra.mxu0 %v3277
    %4392 = vmatprep.subr.bf16.mxu0 %v3286
    %4393 = vmatpush1.bf16.msra.mxu0 %v3285
    %4394 = vmatprep.mubr.bf16.mxu0 %v208
    %4395 = vmatmul.mubr.bf16.gmra.mrb[0].mxu0 %v207
    %v4396 = vpop.f32.mrb[0].mxu0
    %v4397 = vadd.f32 %v4346, %v4396
    %v4398 = vpop.f32.mrb[0].mxu0
    %v4399 = vadd.f32 %v4348, %v4398
    %v4400 = vpop.f32.mrb[0].mxu0
    %v4401 = vadd.f32 %v4350, %v4400
    %v4402 = vpop.f32.mrb[0].mxu0
    %v4403 = vadd.f32 %v4352, %v4402
    %4404 = vmatprep.mubr.bf16.mxu0 %v216
    %4405 = vmatmul.mubr.bf16.gmra.mrb[0].mxu0 %v215
    %v4406 = vpop.f32.mrb[0].mxu0
    %v4407 = vadd.f32 %v4356, %v4406
    %v4408 = vpop.f32.mrb[0].mxu0
    %v4409 = vadd.f32 %v4358, %v4408
    %v4410 = vpop.f32.mrb[0].mxu0
    %v4411 = vpop.f32.mrb[0].mxu0
    %4412 = vdwg.mxu0
    %4413 = vmatprep.subr.bf16.mxu0 %v2784
    %4414 = vmatpush1.bf16.msra.mxu0 %v2783
    %4415 = vmatprep.subr.bf16.mxu0 %v2792
    %4416 = vmatpush1.bf16.msra.mxu0 %v2791
    %4417 = vmatprep.subr.bf16.mxu0 %v2800
    %4418 = vmatpush1.bf16.msra.mxu0 %v2799
    %4419 = vmatprep.subr.bf16.mxu0 %v2808
    %4420 = vmatpush1.bf16.msra.mxu0 %v2807
    %4421 = vmatprep.subr.bf16.mxu0 %v2816
    %4422 = vmatpush1.bf16.msra.mxu0 %v2815
    %4423 = vmatprep.subr.bf16.mxu0 %v2824
    %4424 = vmatpush1.bf16.msra.mxu0 %v2823
    %4425 = vmatprep.subr.bf16.mxu0 %v2832
    %4426 = vmatpush1.bf16.msra.mxu0 %v2831
    %4427 = vmatprep.subr.bf16.mxu0 %v2840
    %4428 = vmatpush1.bf16.msra.mxu0 %v2839
    %4429 = vmatprep.subr.bf16.mxu0 %v2848
    %4430 = vmatpush1.bf16.msra.mxu0 %v2847
    %4431 = vmatprep.subr.bf16.mxu0 %v2856
    %4432 = vmatpush1.bf16.msra.mxu0 %v2855
    %4433 = vmatprep.subr.bf16.mxu0 %v2864
    %4434 = vmatpush1.bf16.msra.mxu0 %v2863
    %4435 = vmatprep.subr.bf16.mxu0 %v2872
    %4436 = vmatpush1.bf16.msra.mxu0 %v2871
    %4437 = vmatprep.subr.bf16.mxu0 %v2880
    %4438 = vmatpush1.bf16.msra.mxu0 %v2879
    %4439 = vmatprep.subr.bf16.mxu0 %v2888
    %4440 = vmatpush1.bf16.msra.mxu0 %v2887
    %4441 = vmatprep.subr.bf16.mxu0 %v2896
    %4442 = vmatpush1.bf16.msra.mxu0 %v2895
    %4443 = vmatprep.subr.bf16.mxu0 %v2904
    %4444 = vmatpush1.bf16.msra.mxu0 %v2903
    %4445 = vmatprep.mubr.bf16.mxu0 %v202
    %4446 = vmatmul.mubr.bf16.gmra.mrb[0].mxu0 %v201
    %v4447 = vpop.f32.mrb[0].mxu0
    %v4448 = vadd.f32 0.0, %v4447
    %v4449 = vpop.f32.mrb[0].mxu0
    %v4450 = vadd.f32 0.0, %v4449
    %v4451 = vpop.f32.mrb[0].mxu0
    %v4452 = vadd.f32 0.0, %v4451
    %v4453 = vpop.f32.mrb[0].mxu0
    %v4454 = vadd.f32 0.0, %v4453
    %4455 = vmatprep.mubr.bf16.mxu0 %v210
    %4456 = vmatmul.mubr.bf16.gmra.mrb[0].mxu0 %v209
    %v4457 = vpop.f32.mrb[0].mxu0
    %v4458 = vadd.f32 0.0, %v4457
    %v4459 = vpop.f32.mrb[0].mxu0
    %v4460 = vadd.f32 0.0, %v4459
    %v4461 = vpop.f32.mrb[0].mxu0
    %v4462 = vpop.f32.mrb[0].mxu0
    %4463 = vdwg.mxu0
    %4464 = vmatprep.subr.bf16.mxu0 %v2912
    %4465 = vmatpush1.bf16.msra.mxu0 %v2911
    %4466 = vmatprep.subr.bf16.mxu0 %v2920
    %4467 = vmatpush1.bf16.msra.mxu0 %v2919
    %4468 = vmatprep.subr.bf16.mxu0 %v2928
    %4469 = vmatpush1.bf16.msra.mxu0 %v2927
    %4470 = vmatprep.subr.bf16.mxu0 %v2936
    %4471 = vmatpush1.bf16.msra.mxu0 %v2935
    %4472 = vmatprep.subr.bf16.mxu0 %v2944
    %4473 = vmatpush1.bf16.msra.mxu0 %v2943
    %4474 = vmatprep.subr.bf16.mxu0 %v2952
    %4475 = vmatpush1.bf16.msra.mxu0 %v2951
    %4476 = vmatprep.subr.bf16.mxu0 %v2960
    %4477 = vmatpush1.bf16.msra.mxu0 %v2959
    %4478 = vmatprep.subr.bf16.mxu0 %v2968
    %4479 = vmatpush1.bf16.msra.mxu0 %v2967
    %4480 = vmatprep.subr.bf16.mxu0 %v2976
    %4481 = vmatpush1.bf16.msra.mxu0 %v2975
    %4482 = vmatprep.subr.bf16.mxu0 %v2984
    %4483 = vmatpush1.bf16.msra.mxu0 %v2983
    %4484 = vmatprep.subr.bf16.mxu0 %v2992
    %4485 = vmatpush1.bf16.msra.mxu0 %v2991
    %4486 = vmatprep.subr.bf16.mxu0 %v3000
    %4487 = vmatpush1.bf16.msra.mxu0 %v2999
    %4488 = vmatprep.subr.bf16.mxu0 %v3008
    %4489 = vmatpush1.bf16.msra.mxu0 %v3007
    %4490 = vmatprep.subr.bf16.mxu0 %v3016
    %4491 = vmatpush1.bf16.msra.mxu0 %v3015
    %4492 = vmatprep.subr.bf16.mxu0 %v3024
    %4493 = vmatpush1.bf16.msra.mxu0 %v3023
    %4494 = vmatprep.subr.bf16.mxu0 %v3032
    %4495 = vmatpush1.bf16.msra.mxu0 %v3031
    %4496 = vmatprep.mubr.bf16.mxu0 %v204
    %4497 = vmatmul.mubr.bf16.gmra.mrb[0].mxu0 %v203
    %v4498 = vpop.f32.mrb[0].mxu0
    %v4499 = vadd.f32 %v4448, %v4498
    %v4500 = vpop.f32.mrb[0].mxu0
    %v4501 = vadd.f32 %v4450, %v4500
    %v4502 = vpop.f32.mrb[0].mxu0
    %v4503 = vadd.f32 %v4452, %v4502
    %v4504 = vpop.f32.mrb[0].mxu0
    %v4505 = vadd.f32 %v4454, %v4504
    %4506 = vmatprep.mubr.bf16.mxu0 %v212
    %4507 = vmatmul.mubr.bf16.gmra.mrb[0].mxu0 %v211
    %v4508 = vpop.f32.mrb[0].mxu0
    %v4509 = vadd.f32 %v4458, %v4508
    %v4510 = vpop.f32.mrb[0].mxu0
    %v4511 = vadd.f32 %v4460, %v4510
    %v4512 = vpop.f32.mrb[0].mxu0
    %v4513 = vpop.f32.mrb[0].mxu0
    %4514 = vdwg.mxu0
    %4515 = vmatprep.subr.bf16.mxu0 %v3040
    %4516 = vmatpush1.bf16.msra.mxu0 %v3039
    %4517 = vmatprep.subr.bf16.mxu0 %v3048
    %4518 = vmatpush1.bf16.msra.mxu0 %v3047
    %4519 = vmatprep.subr.bf16.mxu0 %v3056
    %4520 = vmatpush1.bf16.msra.mxu0 %v3055
    %4521 = vmatprep.subr.bf16.mxu0 %v3064
    %4522 = vmatpush1.bf16.msra.mxu0 %v3063
    %4523 = vmatprep.subr.bf16.mxu0 %v3072
    %4524 = vmatpush1.bf16.msra.mxu0 %v3071
    %4525 = vmatprep.subr.bf16.mxu0 %v3080
    %4526 = vmatpush1.bf16.msra.mxu0 %v3079
    %4527 = vmatprep.subr.bf16.mxu0 %v3088
    %4528 = vmatpush1.bf16.msra.mxu0 %v3087
    %4529 = vmatprep.subr.bf16.mxu0 %v3096
    %4530 = vmatpush1.bf16.msra.mxu0 %v3095
    %4531 = vmatprep.subr.bf16.mxu0 %v3104
    %4532 = vmatpush1.bf16.msra.mxu0 %v3103
    %4533 = vmatprep.subr.bf16.mxu0 %v3112
    %4534 = vmatpush1.bf16.msra.mxu0 %v3111
    %4535 = vmatprep.subr.bf16.mxu0 %v3120
    %4536 = vmatpush1.bf16.msra.mxu0 %v3119
    %4537 = vmatprep.subr.bf16.mxu0 %v3128
    %4538 = vmatpush1.bf16.msra.mxu0 %v3127
    %4539 = vmatprep.subr.bf16.mxu0 %v3136
    %4540 = vmatpush1.bf16.msra.mxu0 %v3135
    %4541 = vmatprep.subr.bf16.mxu0 %v3144
    %4542 = vmatpush1.bf16.msra.mxu0 %v3143
    %4543 = vmatprep.subr.bf16.mxu0 %v3152
    %4544 = vmatpush1.bf16.msra.mxu0 %v3151
    %4545 = vmatprep.subr.bf16.mxu0 %v3160
    %4546 = vmatpush1.bf16.msra.mxu0 %v3159
    %4547 = vmatprep.mubr.bf16.mxu0 %v206
    %4548 = vmatmul.mubr.bf16.gmra.mrb[0].mxu0 %v205
    %v4549 = vpop.f32.mrb[0].mxu0
    %v4550 = vadd.f32 %v4499, %v4549
    %v4551 = vpop.f32.mrb[0].mxu0
    %v4552 = vadd.f32 %v4501, %v4551
    %v4553 = vpop.f32.mrb[0].mxu0
    %v4554 = vadd.f32 %v4503, %v4553
    %v4555 = vpop.f32.mrb[0].mxu0
    %v4556 = vadd.f32 %v4505, %v4555
    %4557 = vmatprep.mubr.bf16.mxu0 %v214
    %4558 = vmatmul.mubr.bf16.gmra.mrb[0].mxu0 %v213
    %v4559 = vpop.f32.mrb[0].mxu0
    %v4560 = vadd.f32 %v4509, %v4559
    %v4561 = vpop.f32.mrb[0].mxu0
    %v4562 = vadd.f32 %v4511, %v4561
    %v4563 = vpop.f32.mrb[0].mxu0
    %v4564 = vpop.f32.mrb[0].mxu0
    %4565 = vdwg.mxu0
    %4566 = vmatprep.subr.bf16.mxu0 %v3168
    %4567 = vmatpush1.bf16.msra.mxu0 %v3167
    %4568 = vmatprep.subr.bf16.mxu0 %v3176
    %4569 = vmatpush1.bf16.msra.mxu0 %v3175
    %4570 = vmatprep.subr.bf16.mxu0 %v3184
    %4571 = vmatpush1.bf16.msra.mxu0 %v3183
    %4572 = vmatprep.subr.bf16.mxu0 %v3192
    %4573 = vmatpush1.bf16.msra.mxu0 %v3191
    %4574 = vmatprep.subr.bf16.mxu0 %v3200
    %4575 = vmatpush1.bf16.msra.mxu0 %v3199
    %4576 = vmatprep.subr.bf16.mxu0 %v3208
    %4577 = vmatpush1.bf16.msra.mxu0 %v3207
    %4578 = vmatprep.subr.bf16.mxu0 %v3216
    %4579 = vmatpush1.bf16.msra.mxu0 %v3215
    %4580 = vmatprep.subr.bf16.mxu0 %v3224
    %4581 = vmatpush1.bf16.msra.mxu0 %v3223
    %4582 = vmatprep.subr.bf16.mxu0 %v3232
    %4583 = vmatpush1.bf16.msra.mxu0 %v3231
    %4584 = vmatprep.subr.bf16.mxu0 %v3240
    %4585 = vmatpush1.bf16.msra.mxu0 %v3239
    %4586 = vmatprep.subr.bf16.mxu0 %v3248
    %4587 = vmatpush1.bf16.msra.mxu0 %v3247
    %4588 = vmatprep.subr.bf16.mxu0 %v3256
    %4589 = vmatpush1.bf16.msra.mxu0 %v3255
    %4590 = vmatprep.subr.bf16.mxu0 %v3264
    %4591 = vmatpush1.bf16.msra.mxu0 %v3263
    %4592 = vmatprep.subr.bf16.mxu0 %v3272
    %4593 = vmatpush1.bf16.msra.mxu0 %v3271
    %4594 = vmatprep.subr.bf16.mxu0 %v3280
    %4595 = vmatpush1.bf16.msra.mxu0 %v3279
    %4596 = vmatprep.subr.bf16.mxu0 %v3288
    %4597 = vmatpush1.bf16.msra.mxu0 %v3287
    %4598 = vmatprep.mubr.bf16.mxu0 %v208
    %4599 = vmatmul.mubr.bf16.gmra.mrb[0].mxu0 %v207
    %v4600 = vpop.f32.mrb[0].mxu0
    %v4601 = vadd.f32 %v4550, %v4600
    %v4602 = vpop.f32.mrb[0].mxu0
    %v4603 = vadd.f32 %v4552, %v4602
    %v4604 = vpop.f32.mrb[0].mxu0
    %v4605 = vadd.f32 %v4554, %v4604
    %v4606 = vpop.f32.mrb[0].mxu0
    %v4607 = vadd.f32 %v4556, %v4606
    %4608 = vmatprep.mubr.bf16.mxu0 %v216
    %4609 = vmatmul.mubr.bf16.gmra.mrb[0].mxu0 %v215
    %v4610 = vpop.f32.mrb[0].mxu0
    %v4611 = vadd.f32 %v4560, %v4610
    %v4612 = vpop.f32.mrb[0].mxu0
    %v4613 = vadd.f32 %v4562, %v4612
    %v4614 = vpop.f32.mrb[0].mxu0
    %v4615 = vpop.f32.mrb[0].mxu0
    %4616 = vdwg.mxu0
    %v5129 = vunpack.c.l.b16 %v217
    %v5130 = vunpack.c.h.b16 %v217
    %v5131 = vunpack.c.l.b16 %v218
    %v5132 = vunpack.c.h.b16 %v218
    %v5133 = vunpack.c.l.b16 %v219
    %v5134 = vunpack.c.h.b16 %v219
    %v5135 = vunpack.c.l.b16 %v220
    %v5136 = vunpack.c.h.b16 %v220
    %v5137 = vunpack.c.l.b16 %v221
    %v5138 = vunpack.c.h.b16 %v221
    %v5139 = vunpack.c.l.b16 %v222
    %v5140 = vunpack.c.h.b16 %v222
    %v5141 = vunpack.c.l.b16 %v223
    %v5142 = vunpack.c.h.b16 %v223
    %v5143 = vunpack.c.l.b16 %v224
    %v5144 = vunpack.c.h.b16 %v224
    %v5145 = vunpack.c.l.b16 %v225
    %v5146 = vunpack.c.h.b16 %v225
    %v5147 = vunpack.c.l.b16 %v226
    %v5148 = vunpack.c.h.b16 %v226
    %v5149 = vunpack.c.l.b16 %v227
    %v5150 = vunpack.c.h.b16 %v227
    %v5151 = vunpack.c.l.b16 %v228
    %v5152 = vunpack.c.h.b16 %v228
    %v5153 = vunpack.c.l.b16 %v229
    %v5154 = vunpack.c.h.b16 %v229
    %v5155 = vunpack.c.l.b16 %v230
    %v5156 = vunpack.c.h.b16 %v230
    %v5157 = vunpack.c.l.b16 %v231
    %v5158 = vunpack.c.h.b16 %v231
    %v5159 = vunpack.c.l.b16 %v232
    %v5160 = vunpack.c.h.b16 %v232
    %v5161 = vunpack.c.l.b16 %v233
    %v5162 = vunpack.c.h.b16 %v233
    %v5163 = vunpack.c.l.b16 %v234
    %v5164 = vunpack.c.h.b16 %v234
    %v5165 = vunpack.c.l.b16 %v235
    %v5166 = vunpack.c.h.b16 %v235
    %v5167 = vunpack.c.l.b16 %v236
    %v5168 = vunpack.c.h.b16 %v236
    %v5169 = vunpack.c.l.b16 %v237
    %v5170 = vunpack.c.h.b16 %v237
    %v5171 = vunpack.c.l.b16 %v238
    %v5172 = vunpack.c.h.b16 %v238
    %v5173 = vunpack.c.l.b16 %v239
    %v5174 = vunpack.c.h.b16 %v239
    %v5175 = vunpack.c.l.b16 %v240
    %v5176 = vunpack.c.h.b16 %v240
    %v5177 = vunpack.c.l.b16 %v241
    %v5178 = vunpack.c.h.b16 %v241
    %v5179 = vunpack.c.l.b16 %v242
    %v5180 = vunpack.c.h.b16 %v242
    %v5181 = vunpack.c.l.b16 %v243
    %v5182 = vunpack.c.h.b16 %v243
    %v5183 = vunpack.c.l.b16 %v244
    %v5184 = vunpack.c.h.b16 %v244
    %v5185 = vunpack.c.l.b16 %v245
    %v5186 = vunpack.c.h.b16 %v245
    %v5187 = vunpack.c.l.b16 %v246
    %v5188 = vunpack.c.h.b16 %v246
    %v5189 = vunpack.c.l.b16 %v247
    %v5190 = vunpack.c.h.b16 %v247
    %v5191 = vunpack.c.l.b16 %v248
    %v5192 = vunpack.c.h.b16 %v248
    %v5193 = vunpack.c.l.b16 %v249
    %v5194 = vunpack.c.h.b16 %v249
    %v5195 = vunpack.c.l.b16 %v250
    %v5196 = vunpack.c.h.b16 %v250
    %v5197 = vunpack.c.l.b16 %v251
    %v5198 = vunpack.c.h.b16 %v251
    %v5199 = vunpack.c.l.b16 %v252
    %v5200 = vunpack.c.h.b16 %v252
    %v5201 = vunpack.c.l.b16 %v253
    %v5202 = vunpack.c.h.b16 %v253
    %v5203 = vunpack.c.l.b16 %v254
    %v5204 = vunpack.c.h.b16 %v254
    %v5205 = vunpack.c.l.b16 %v255
    %v5206 = vunpack.c.h.b16 %v255
    %v5207 = vunpack.c.l.b16 %v256
    %v5208 = vunpack.c.h.b16 %v256
    %v5209 = vunpack.c.l.b16 %v257
    %v5210 = vunpack.c.h.b16 %v257
    %v5211 = vunpack.c.l.b16 %v258
    %v5212 = vunpack.c.h.b16 %v258
    %v5213 = vunpack.c.l.b16 %v259
    %v5214 = vunpack.c.h.b16 %v259
    %v5215 = vunpack.c.l.b16 %v260
    %v5216 = vunpack.c.h.b16 %v260
    %v5217 = vunpack.c.l.b16 %v261
    %v5218 = vunpack.c.h.b16 %v261
    %v5219 = vunpack.c.l.b16 %v262
    %v5220 = vunpack.c.h.b16 %v262
    %v5221 = vunpack.c.l.b16 %v263
    %v5222 = vunpack.c.h.b16 %v263
    %v5223 = vunpack.c.l.b16 %v264
    %v5224 = vunpack.c.h.b16 %v264
    %v5225 = vunpack.c.l.b16 %v265
    %v5226 = vunpack.c.h.b16 %v265
    %v5227 = vunpack.c.l.b16 %v266
    %v5228 = vunpack.c.h.b16 %v266
    %v5229 = vunpack.c.l.b16 %v267
    %v5230 = vunpack.c.h.b16 %v267
    %v5231 = vunpack.c.l.b16 %v268
    %v5232 = vunpack.c.h.b16 %v268
    %v5233 = vunpack.c.l.b16 %v269
    %v5234 = vunpack.c.h.b16 %v269
    %v5235 = vunpack.c.l.b16 %v270
    %v5236 = vunpack.c.h.b16 %v270
    %v5237 = vunpack.c.l.b16 %v271
    %v5238 = vunpack.c.h.b16 %v271
    %v5239 = vunpack.c.l.b16 %v272
    %v5240 = vunpack.c.h.b16 %v272
    %v5241 = vunpack.c.l.b16 %v273
    %v5242 = vunpack.c.h.b16 %v273
    %v5243 = vunpack.c.l.b16 %v274
    %v5244 = vunpack.c.h.b16 %v274
    %v5245 = vunpack.c.l.b16 %v275
    %v5246 = vunpack.c.h.b16 %v275
    %v5247 = vunpack.c.l.b16 %v276
    %v5248 = vunpack.c.h.b16 %v276
    %v5249 = vunpack.c.l.b16 %v277
    %v5250 = vunpack.c.h.b16 %v277
    %v5251 = vunpack.c.l.b16 %v278
    %v5252 = vunpack.c.h.b16 %v278
    %v5253 = vunpack.c.l.b16 %v279
    %v5254 = vunpack.c.h.b16 %v279
    %v5255 = vunpack.c.l.b16 %v280
    %v5256 = vunpack.c.h.b16 %v280
    %v5257 = vunpack.c.l.b16 %v281
    %v5258 = vunpack.c.h.b16 %v281
    %v5259 = vunpack.c.l.b16 %v282
    %v5260 = vunpack.c.h.b16 %v282
    %v5261 = vunpack.c.l.b16 %v283
    %v5262 = vunpack.c.h.b16 %v283
    %v5263 = vunpack.c.l.b16 %v284
    %v5264 = vunpack.c.h.b16 %v284
    %v5265 = vunpack.c.l.b16 %v285
    %v5266 = vunpack.c.h.b16 %v285
    %v5267 = vunpack.c.l.b16 %v286
    %v5268 = vunpack.c.h.b16 %v286
    %v5269 = vunpack.c.l.b16 %v287
    %v5270 = vunpack.c.h.b16 %v287
    %v5271 = vunpack.c.l.b16 %v288
    %v5272 = vunpack.c.h.b16 %v288
    %v5273 = vunpack.c.l.b16 %v289
    %v5274 = vunpack.c.h.b16 %v289
    %v5275 = vunpack.c.l.b16 %v290
    %v5276 = vunpack.c.h.b16 %v290
    %v5277 = vunpack.c.l.b16 %v291
    %v5278 = vunpack.c.h.b16 %v291
    %v5279 = vunpack.c.l.b16 %v292
    %v5280 = vunpack.c.h.b16 %v292
    %v5281 = vunpack.c.l.b16 %v293
    %v5282 = vunpack.c.h.b16 %v293
    %v5283 = vunpack.c.l.b16 %v294
    %v5284 = vunpack.c.h.b16 %v294
    %v5285 = vunpack.c.l.b16 %v295
    %v5286 = vunpack.c.h.b16 %v295
    %v5287 = vunpack.c.l.b16 %v296
    %v5288 = vunpack.c.h.b16 %v296
    %v5289 = vunpack.c.l.b16 %v297
    %v5290 = vunpack.c.h.b16 %v297
    %v5291 = vunpack.c.l.b16 %v298
    %v5292 = vunpack.c.h.b16 %v298
    %v5293 = vunpack.c.l.b16 %v299
    %v5294 = vunpack.c.h.b16 %v299
    %v5295 = vunpack.c.l.b16 %v300
    %v5296 = vunpack.c.h.b16 %v300
    %v5297 = vunpack.c.l.b16 %v301
    %v5298 = vunpack.c.h.b16 %v301
    %v5299 = vunpack.c.l.b16 %v302
    %v5300 = vunpack.c.h.b16 %v302
    %v5301 = vunpack.c.l.b16 %v303
    %v5302 = vunpack.c.h.b16 %v303
    %v5303 = vunpack.c.l.b16 %v304
    %v5304 = vunpack.c.h.b16 %v304
    %v5305 = vunpack.c.l.b16 %v305
    %v5306 = vunpack.c.h.b16 %v305
    %v5307 = vunpack.c.l.b16 %v306
    %v5308 = vunpack.c.h.b16 %v306
    %v5309 = vunpack.c.l.b16 %v307
    %v5310 = vunpack.c.h.b16 %v307
    %v5311 = vunpack.c.l.b16 %v308
    %v5312 = vunpack.c.h.b16 %v308
    %v5313 = vunpack.c.l.b16 %v309
    %v5314 = vunpack.c.h.b16 %v309
    %v5315 = vunpack.c.l.b16 %v310
    %v5316 = vunpack.c.h.b16 %v310
    %v5317 = vunpack.c.l.b16 %v311
    %v5318 = vunpack.c.h.b16 %v311
    %v5319 = vunpack.c.l.b16 %v312
    %v5320 = vunpack.c.h.b16 %v312
    %v5321 = vunpack.c.l.b16 %v313
    %v5322 = vunpack.c.h.b16 %v313
    %v5323 = vunpack.c.l.b16 %v314
    %v5324 = vunpack.c.h.b16 %v314
    %v5325 = vunpack.c.l.b16 %v315
    %v5326 = vunpack.c.h.b16 %v315
    %v5327 = vunpack.c.l.b16 %v316
    %v5328 = vunpack.c.h.b16 %v316
    %v5329 = vunpack.c.l.b16 %v317
    %v5330 = vunpack.c.h.b16 %v317
    %v5331 = vunpack.c.l.b16 %v318
    %v5332 = vunpack.c.h.b16 %v318
    %v5333 = vunpack.c.l.b16 %v319
    %v5334 = vunpack.c.h.b16 %v319
    %v5335 = vunpack.c.l.b16 %v320
    %v5336 = vunpack.c.h.b16 %v320
    %v5337 = vunpack.c.l.b16 %v321
    %v5338 = vunpack.c.h.b16 %v321
    %v5339 = vunpack.c.l.b16 %v322
    %v5340 = vunpack.c.h.b16 %v322
    %v5341 = vunpack.c.l.b16 %v323
    %v5342 = vunpack.c.h.b16 %v323
    %v5343 = vunpack.c.l.b16 %v324
    %v5344 = vunpack.c.h.b16 %v324
    %v5345 = vunpack.c.l.b16 %v325
    %v5346 = vunpack.c.h.b16 %v325
    %v5347 = vunpack.c.l.b16 %v326
    %v5348 = vunpack.c.h.b16 %v326
    %v5349 = vunpack.c.l.b16 %v327
    %v5350 = vunpack.c.h.b16 %v327
    %v5351 = vunpack.c.l.b16 %v328
    %v5352 = vunpack.c.h.b16 %v328
    %v5353 = vunpack.c.l.b16 %v329
    %v5354 = vunpack.c.h.b16 %v329
    %v5355 = vunpack.c.l.b16 %v330
    %v5356 = vunpack.c.h.b16 %v330
    %v5357 = vunpack.c.l.b16 %v331
    %v5358 = vunpack.c.h.b16 %v331
    %v5359 = vunpack.c.l.b16 %v332
    %v5360 = vunpack.c.h.b16 %v332
    %v5361 = vunpack.c.l.b16 %v333
    %v5362 = vunpack.c.h.b16 %v333
    %v5363 = vunpack.c.l.b16 %v334
    %v5364 = vunpack.c.h.b16 %v334
    %v5365 = vunpack.c.l.b16 %v335
    %v5366 = vunpack.c.h.b16 %v335
    %v5367 = vunpack.c.l.b16 %v336
    %v5368 = vunpack.c.h.b16 %v336
    %v5369 = vunpack.c.l.b16 %v337
    %v5370 = vunpack.c.h.b16 %v337
    %v5371 = vunpack.c.l.b16 %v338
    %v5372 = vunpack.c.h.b16 %v338
    %v5373 = vunpack.c.l.b16 %v339
    %v5374 = vunpack.c.h.b16 %v339
    %v5375 = vunpack.c.l.b16 %v340
    %v5376 = vunpack.c.h.b16 %v340
    %v5377 = vunpack.c.l.b16 %v341
    %v5378 = vunpack.c.h.b16 %v341
    %v5379 = vunpack.c.l.b16 %v342
    %v5380 = vunpack.c.h.b16 %v342
    %v5381 = vunpack.c.l.b16 %v343
    %v5382 = vunpack.c.h.b16 %v343
    %v5383 = vunpack.c.l.b16 %v344
    %v5384 = vunpack.c.h.b16 %v344
    %v5385 = vunpack.c.l.b16 %v345
    %v5386 = vunpack.c.h.b16 %v345
    %v5387 = vunpack.c.l.b16 %v346
    %v5388 = vunpack.c.h.b16 %v346
    %v5389 = vunpack.c.l.b16 %v347
    %v5390 = vunpack.c.h.b16 %v347
    %v5391 = vunpack.c.l.b16 %v348
    %v5392 = vunpack.c.h.b16 %v348
    %v5393 = vunpack.c.l.b16 %v349
    %v5394 = vunpack.c.h.b16 %v349
    %v5395 = vunpack.c.l.b16 %v350
    %v5396 = vunpack.c.h.b16 %v350
    %v5397 = vunpack.c.l.b16 %v351
    %v5398 = vunpack.c.h.b16 %v351
    %v5399 = vunpack.c.l.b16 %v352
    %v5400 = vunpack.c.h.b16 %v352
    %v5401 = vunpack.c.l.b16 %v353
    %v5402 = vunpack.c.h.b16 %v353
    %v5403 = vunpack.c.l.b16 %v354
    %v5404 = vunpack.c.h.b16 %v354
    %v5405 = vunpack.c.l.b16 %v355
    %v5406 = vunpack.c.h.b16 %v355
    %v5407 = vunpack.c.l.b16 %v356
    %v5408 = vunpack.c.h.b16 %v356
    %v5409 = vunpack.c.l.b16 %v357
    %v5410 = vunpack.c.h.b16 %v357
    %v5411 = vunpack.c.l.b16 %v358
    %v5412 = vunpack.c.h.b16 %v358
    %v5413 = vunpack.c.l.b16 %v359
    %v5414 = vunpack.c.h.b16 %v359
    %v5415 = vunpack.c.l.b16 %v360
    %v5416 = vunpack.c.h.b16 %v360
    %v5417 = vunpack.c.l.b16 %v361
    %v5418 = vunpack.c.h.b16 %v361
    %v5419 = vunpack.c.l.b16 %v362
    %v5420 = vunpack.c.h.b16 %v362
    %v5421 = vunpack.c.l.b16 %v363
    %v5422 = vunpack.c.h.b16 %v363
    %v5423 = vunpack.c.l.b16 %v364
    %v5424 = vunpack.c.h.b16 %v364
    %v5425 = vunpack.c.l.b16 %v365
    %v5426 = vunpack.c.h.b16 %v365
    %v5427 = vunpack.c.l.b16 %v366
    %v5428 = vunpack.c.h.b16 %v366
    %v5429 = vunpack.c.l.b16 %v367
    %v5430 = vunpack.c.h.b16 %v367
    %v5431 = vunpack.c.l.b16 %v368
    %v5432 = vunpack.c.h.b16 %v368
    %v5433 = vunpack.c.l.b16 %v369
    %v5434 = vunpack.c.h.b16 %v369
    %v5435 = vunpack.c.l.b16 %v370
    %v5436 = vunpack.c.h.b16 %v370
    %v5437 = vunpack.c.l.b16 %v371
    %v5438 = vunpack.c.h.b16 %v371
    %v5439 = vunpack.c.l.b16 %v372
    %v5440 = vunpack.c.h.b16 %v372
    %v5441 = vunpack.c.l.b16 %v373
    %v5442 = vunpack.c.h.b16 %v373
    %v5443 = vunpack.c.l.b16 %v374
    %v5444 = vunpack.c.h.b16 %v374
    %v5445 = vunpack.c.l.b16 %v375
    %v5446 = vunpack.c.h.b16 %v375
    %v5447 = vunpack.c.l.b16 %v376
    %v5448 = vunpack.c.h.b16 %v376
    %v5449 = vunpack.c.l.b16 %v377
    %v5450 = vunpack.c.h.b16 %v377
    %v5451 = vunpack.c.l.b16 %v378
    %v5452 = vunpack.c.h.b16 %v378
    %v5453 = vunpack.c.l.b16 %v379
    %v5454 = vunpack.c.h.b16 %v379
    %v5455 = vunpack.c.l.b16 %v380
    %v5456 = vunpack.c.h.b16 %v380
    %v5457 = vunpack.c.l.b16 %v381
    %v5458 = vunpack.c.h.b16 %v381
    %v5459 = vunpack.c.l.b16 %v382
    %v5460 = vunpack.c.h.b16 %v382
    %v5461 = vunpack.c.l.b16 %v383
    %v5462 = vunpack.c.h.b16 %v383
    %v5463 = vunpack.c.l.b16 %v384
    %v5464 = vunpack.c.h.b16 %v384
    %v5465 = vunpack.c.l.b16 %v385
    %v5466 = vunpack.c.h.b16 %v385
    %v5467 = vunpack.c.l.b16 %v386
    %v5468 = vunpack.c.h.b16 %v386
    %v5469 = vunpack.c.l.b16 %v387
    %v5470 = vunpack.c.h.b16 %v387
    %v5471 = vunpack.c.l.b16 %v388
    %v5472 = vunpack.c.h.b16 %v388
    %v5473 = vunpack.c.l.b16 %v389
    %v5474 = vunpack.c.h.b16 %v389
    %v5475 = vunpack.c.l.b16 %v390
    %v5476 = vunpack.c.h.b16 %v390
    %v5477 = vunpack.c.l.b16 %v391
    %v5478 = vunpack.c.h.b16 %v391
    %v5479 = vunpack.c.l.b16 %v392
    %v5480 = vunpack.c.h.b16 %v392
    %v5481 = vunpack.c.l.b16 %v393
    %v5482 = vunpack.c.h.b16 %v393
    %v5483 = vunpack.c.l.b16 %v394
    %v5484 = vunpack.c.h.b16 %v394
    %v5485 = vunpack.c.l.b16 %v395
    %v5486 = vunpack.c.h.b16 %v395
    %v5487 = vunpack.c.l.b16 %v396
    %v5488 = vunpack.c.h.b16 %v396
    %v5489 = vunpack.c.l.b16 %v397
    %v5490 = vunpack.c.h.b16 %v397
    %v5491 = vunpack.c.l.b16 %v398
    %v5492 = vunpack.c.h.b16 %v398
    %v5493 = vunpack.c.l.b16 %v399
    %v5494 = vunpack.c.h.b16 %v399
    %v5495 = vunpack.c.l.b16 %v400
    %v5496 = vunpack.c.h.b16 %v400
    %v5497 = vunpack.c.l.b16 %v401
    %v5498 = vunpack.c.h.b16 %v401
    %v5499 = vunpack.c.l.b16 %v402
    %v5500 = vunpack.c.h.b16 %v402
    %v5501 = vunpack.c.l.b16 %v403
    %v5502 = vunpack.c.h.b16 %v403
    %v5503 = vunpack.c.l.b16 %v404
    %v5504 = vunpack.c.h.b16 %v404
    %v5505 = vunpack.c.l.b16 %v405
    %v5506 = vunpack.c.h.b16 %v405
    %v5507 = vunpack.c.l.b16 %v406
    %v5508 = vunpack.c.h.b16 %v406
    %v5509 = vunpack.c.l.b16 %v407
    %v5510 = vunpack.c.h.b16 %v407
    %v5511 = vunpack.c.l.b16 %v408
    %v5512 = vunpack.c.h.b16 %v408
    %v5513 = vunpack.c.l.b16 %v409
    %v5514 = vunpack.c.h.b16 %v409
    %v5515 = vunpack.c.l.b16 %v410
    %v5516 = vunpack.c.h.b16 %v410
    %v5517 = vunpack.c.l.b16 %v411
    %v5518 = vunpack.c.h.b16 %v411
    %v5519 = vunpack.c.l.b16 %v412
    %v5520 = vunpack.c.h.b16 %v412
    %v5521 = vunpack.c.l.b16 %v413
    %v5522 = vunpack.c.h.b16 %v413
    %v5523 = vunpack.c.l.b16 %v414
    %v5524 = vunpack.c.h.b16 %v414
    %v5525 = vunpack.c.l.b16 %v415
    %v5526 = vunpack.c.h.b16 %v415
    %v5527 = vunpack.c.l.b16 %v416
    %v5528 = vunpack.c.h.b16 %v416
    %v5529 = vunpack.c.l.b16 %v417
    %v5530 = vunpack.c.h.b16 %v417
    %v5531 = vunpack.c.l.b16 %v418
    %v5532 = vunpack.c.h.b16 %v418
    %v5533 = vunpack.c.l.b16 %v419
    %v5534 = vunpack.c.h.b16 %v419
    %v5535 = vunpack.c.l.b16 %v420
    %v5536 = vunpack.c.h.b16 %v420
    %v5537 = vunpack.c.l.b16 %v421
    %v5538 = vunpack.c.h.b16 %v421
    %v5539 = vunpack.c.l.b16 %v422
    %v5540 = vunpack.c.h.b16 %v422
    %v5541 = vunpack.c.l.b16 %v423
    %v5542 = vunpack.c.h.b16 %v423
    %v5543 = vunpack.c.l.b16 %v424
    %v5544 = vunpack.c.h.b16 %v424
    %v5545 = vunpack.c.l.b16 %v425
    %v5546 = vunpack.c.h.b16 %v425
    %v5547 = vunpack.c.l.b16 %v426
    %v5548 = vunpack.c.h.b16 %v426
    %v5549 = vunpack.c.l.b16 %v427
    %v5550 = vunpack.c.h.b16 %v427
    %v5551 = vunpack.c.l.b16 %v428
    %v5552 = vunpack.c.h.b16 %v428
    %v5553 = vunpack.c.l.b16 %v429
    %v5554 = vunpack.c.h.b16 %v429
    %v5555 = vunpack.c.l.b16 %v430
    %v5556 = vunpack.c.h.b16 %v430
    %v5557 = vunpack.c.l.b16 %v431
    %v5558 = vunpack.c.h.b16 %v431
    %v5559 = vunpack.c.l.b16 %v432
    %v5560 = vunpack.c.h.b16 %v432
    %v5561 = vunpack.c.l.b16 %v433
    %v5562 = vunpack.c.h.b16 %v433
    %v5563 = vunpack.c.l.b16 %v434
    %v5564 = vunpack.c.h.b16 %v434
    %v5565 = vunpack.c.l.b16 %v435
    %v5566 = vunpack.c.h.b16 %v435
    %v5567 = vunpack.c.l.b16 %v436
    %v5568 = vunpack.c.h.b16 %v436
    %v5569 = vunpack.c.l.b16 %v437
    %v5570 = vunpack.c.h.b16 %v437
    %v5571 = vunpack.c.l.b16 %v438
    %v5572 = vunpack.c.h.b16 %v438
    %v5573 = vunpack.c.l.b16 %v439
    %v5574 = vunpack.c.h.b16 %v439
    %v5575 = vunpack.c.l.b16 %v440
    %v5576 = vunpack.c.h.b16 %v440
    %v5577 = vunpack.c.l.b16 %v441
    %v5578 = vunpack.c.h.b16 %v441
    %v5579 = vunpack.c.l.b16 %v442
    %v5580 = vunpack.c.h.b16 %v442
    %v5581 = vunpack.c.l.b16 %v443
    %v5582 = vunpack.c.h.b16 %v443
    %v5583 = vunpack.c.l.b16 %v444
    %v5584 = vunpack.c.h.b16 %v444
    %v5585 = vunpack.c.l.b16 %v445
    %v5586 = vunpack.c.h.b16 %v445
    %v5587 = vunpack.c.l.b16 %v446
    %v5588 = vunpack.c.h.b16 %v446
    %v5589 = vunpack.c.l.b16 %v447
    %v5590 = vunpack.c.h.b16 %v447
    %v5591 = vunpack.c.l.b16 %v448
    %v5592 = vunpack.c.h.b16 %v448
    %v5593 = vunpack.c.l.b16 %v449
    %v5594 = vunpack.c.h.b16 %v449
    %v5595 = vunpack.c.l.b16 %v450
    %v5596 = vunpack.c.h.b16 %v450
    %v5597 = vunpack.c.l.b16 %v451
    %v5598 = vunpack.c.h.b16 %v451
    %v5599 = vunpack.c.l.b16 %v452
    %v5600 = vunpack.c.h.b16 %v452
    %v5601 = vunpack.c.l.b16 %v453
    %v5602 = vunpack.c.h.b16 %v453
    %v5603 = vunpack.c.l.b16 %v454
    %v5604 = vunpack.c.h.b16 %v454
    %v5605 = vunpack.c.l.b16 %v455
    %v5606 = vunpack.c.h.b16 %v455
    %v5607 = vunpack.c.l.b16 %v456
    %v5608 = vunpack.c.h.b16 %v456
    %v5609 = vunpack.c.l.b16 %v457
    %v5610 = vunpack.c.h.b16 %v457
    %v5611 = vunpack.c.l.b16 %v458
    %v5612 = vunpack.c.h.b16 %v458
    %v5613 = vunpack.c.l.b16 %v459
    %v5614 = vunpack.c.h.b16 %v459
    %v5615 = vunpack.c.l.b16 %v460
    %v5616 = vunpack.c.h.b16 %v460
    %v5617 = vunpack.c.l.b16 %v461
    %v5618 = vunpack.c.h.b16 %v461
    %v5619 = vunpack.c.l.b16 %v462
    %v5620 = vunpack.c.h.b16 %v462
    %v5621 = vunpack.c.l.b16 %v463
    %v5622 = vunpack.c.h.b16 %v463
    %v5623 = vunpack.c.l.b16 %v464
    %v5624 = vunpack.c.h.b16 %v464
    %v5625 = vunpack.c.l.b16 %v465
    %v5626 = vunpack.c.h.b16 %v465
    %v5627 = vunpack.c.l.b16 %v466
    %v5628 = vunpack.c.h.b16 %v466
    %v5629 = vunpack.c.l.b16 %v467
    %v5630 = vunpack.c.h.b16 %v467
    %v5631 = vunpack.c.l.b16 %v468
    %v5632 = vunpack.c.h.b16 %v468
    %v5633 = vunpack.c.l.b16 %v469
    %v5634 = vunpack.c.h.b16 %v469
    %v5635 = vunpack.c.l.b16 %v470
    %v5636 = vunpack.c.h.b16 %v470
    %v5637 = vunpack.c.l.b16 %v471
    %v5638 = vunpack.c.h.b16 %v471
    %v5639 = vunpack.c.l.b16 %v472
    %v5640 = vunpack.c.h.b16 %v472
    %v5641 = vunpack.c.l.b16 %v473
    %v5642 = vunpack.c.h.b16 %v473
    %v5643 = vunpack.c.l.b16 %v474
    %v5644 = vunpack.c.h.b16 %v474
    %v5645 = vunpack.c.l.b16 %v475
    %v5646 = vunpack.c.h.b16 %v475
    %v5647 = vunpack.c.l.b16 %v476
    %v5648 = vunpack.c.h.b16 %v476
    %v5649 = vunpack.c.l.b16 %v477
    %v5650 = vunpack.c.h.b16 %v477
    %v5651 = vunpack.c.l.b16 %v478
    %v5652 = vunpack.c.h.b16 %v478
    %v5653 = vunpack.c.l.b16 %v479
    %v5654 = vunpack.c.h.b16 %v479
    %v5655 = vunpack.c.l.b16 %v480
    %v5656 = vunpack.c.h.b16 %v480
    %v5657 = vunpack.c.l.b16 %v481
    %v5658 = vunpack.c.h.b16 %v481
    %v5659 = vunpack.c.l.b16 %v482
    %v5660 = vunpack.c.h.b16 %v482
    %v5661 = vunpack.c.l.b16 %v483
    %v5662 = vunpack.c.h.b16 %v483
    %v5663 = vunpack.c.l.b16 %v484
    %v5664 = vunpack.c.h.b16 %v484
    %v5665 = vunpack.c.l.b16 %v485
    %v5666 = vunpack.c.h.b16 %v485
    %v5667 = vunpack.c.l.b16 %v486
    %v5668 = vunpack.c.h.b16 %v486
    %v5669 = vunpack.c.l.b16 %v487
    %v5670 = vunpack.c.h.b16 %v487
    %v5671 = vunpack.c.l.b16 %v488
    %v5672 = vunpack.c.h.b16 %v488
    %v5673 = vunpack.c.l.b16 %v489
    %v5674 = vunpack.c.h.b16 %v489
    %v5675 = vunpack.c.l.b16 %v490
    %v5676 = vunpack.c.h.b16 %v490
    %v5677 = vunpack.c.l.b16 %v491
    %v5678 = vunpack.c.h.b16 %v491
    %v5679 = vunpack.c.l.b16 %v492
    %v5680 = vunpack.c.h.b16 %v492
    %v5681 = vunpack.c.l.b16 %v493
    %v5682 = vunpack.c.h.b16 %v493
    %v5683 = vunpack.c.l.b16 %v494
    %v5684 = vunpack.c.h.b16 %v494
    %v5685 = vunpack.c.l.b16 %v495
    %v5686 = vunpack.c.h.b16 %v495
    %v5687 = vunpack.c.l.b16 %v496
    %v5688 = vunpack.c.h.b16 %v496
    %v5689 = vunpack.c.l.b16 %v497
    %v5690 = vunpack.c.h.b16 %v497
    %v5691 = vunpack.c.l.b16 %v498
    %v5692 = vunpack.c.h.b16 %v498
    %v5693 = vunpack.c.l.b16 %v499
    %v5694 = vunpack.c.h.b16 %v499
    %v5695 = vunpack.c.l.b16 %v500
    %v5696 = vunpack.c.h.b16 %v500
    %v5697 = vunpack.c.l.b16 %v501
    %v5698 = vunpack.c.h.b16 %v501
    %v5699 = vunpack.c.l.b16 %v502
    %v5700 = vunpack.c.h.b16 %v502
    %v5701 = vunpack.c.l.b16 %v503
    %v5702 = vunpack.c.h.b16 %v503
    %v5703 = vunpack.c.l.b16 %v504
    %v5704 = vunpack.c.h.b16 %v504
    %v5705 = vunpack.c.l.b16 %v505
    %v5706 = vunpack.c.h.b16 %v505
    %v5707 = vunpack.c.l.b16 %v506
    %v5708 = vunpack.c.h.b16 %v506
    %v5709 = vunpack.c.l.b16 %v507
    %v5710 = vunpack.c.h.b16 %v507
    %v5711 = vunpack.c.l.b16 %v508
    %v5712 = vunpack.c.h.b16 %v508
    %v5713 = vunpack.c.l.b16 %v509
    %v5714 = vunpack.c.h.b16 %v509
    %v5715 = vunpack.c.l.b16 %v510
    %v5716 = vunpack.c.h.b16 %v510
    %v5717 = vunpack.c.l.b16 %v511
    %v5718 = vunpack.c.h.b16 %v511
    %v5719 = vunpack.c.l.b16 %v512
    %v5720 = vunpack.c.h.b16 %v512
    %v5721 = vunpack.c.l.b16 %v513
    %v5722 = vunpack.c.h.b16 %v513
    %v5723 = vunpack.c.l.b16 %v514
    %v5724 = vunpack.c.h.b16 %v514
    %v5725 = vunpack.c.l.b16 %v515
    %v5726 = vunpack.c.h.b16 %v515
    %v5727 = vunpack.c.l.b16 %v516
    %v5728 = vunpack.c.h.b16 %v516
    %v5729 = vunpack.c.l.b16 %v517
    %v5730 = vunpack.c.h.b16 %v517
    %v5731 = vunpack.c.l.b16 %v518
    %v5732 = vunpack.c.h.b16 %v518
    %v5733 = vunpack.c.l.b16 %v519
    %v5734 = vunpack.c.h.b16 %v519
    %v5735 = vunpack.c.l.b16 %v520
    %v5736 = vunpack.c.h.b16 %v520
    %v5737 = vunpack.c.l.b16 %v521
    %v5738 = vunpack.c.h.b16 %v521
    %v5739 = vunpack.c.l.b16 %v522
    %v5740 = vunpack.c.h.b16 %v522
    %v5741 = vunpack.c.l.b16 %v523
    %v5742 = vunpack.c.h.b16 %v523
    %v5743 = vunpack.c.l.b16 %v524
    %v5744 = vunpack.c.h.b16 %v524
    %v5745 = vunpack.c.l.b16 %v525
    %v5746 = vunpack.c.h.b16 %v525
    %v5747 = vunpack.c.l.b16 %v526
    %v5748 = vunpack.c.h.b16 %v526
    %v5749 = vunpack.c.l.b16 %v527
    %v5750 = vunpack.c.h.b16 %v527
    %v5751 = vunpack.c.l.b16 %v528
    %v5752 = vunpack.c.h.b16 %v528
    %v5753 = vunpack.c.l.b16 %v529
    %v5754 = vunpack.c.h.b16 %v529
    %v5755 = vunpack.c.l.b16 %v530
    %v5756 = vunpack.c.h.b16 %v530
    %v5757 = vunpack.c.l.b16 %v531
    %v5758 = vunpack.c.h.b16 %v531
    %v5759 = vunpack.c.l.b16 %v532
    %v5760 = vunpack.c.h.b16 %v532
    %v5761 = vunpack.c.l.b16 %v533
    %v5762 = vunpack.c.h.b16 %v533
    %v5763 = vunpack.c.l.b16 %v534
    %v5764 = vunpack.c.h.b16 %v534
    %v5765 = vunpack.c.l.b16 %v535
    %v5766 = vunpack.c.h.b16 %v535
    %v5767 = vunpack.c.l.b16 %v536
    %v5768 = vunpack.c.h.b16 %v536
    %v5769 = vunpack.c.l.b16 %v537
    %v5770 = vunpack.c.h.b16 %v537
    %v5771 = vunpack.c.l.b16 %v538
    %v5772 = vunpack.c.h.b16 %v538
    %v5773 = vunpack.c.l.b16 %v539
    %v5774 = vunpack.c.h.b16 %v539
    %v5775 = vunpack.c.l.b16 %v540
    %v5776 = vunpack.c.h.b16 %v540
    %v5777 = vunpack.c.l.b16 %v541
    %v5778 = vunpack.c.h.b16 %v541
    %v5779 = vunpack.c.l.b16 %v542
    %v5780 = vunpack.c.h.b16 %v542
    %v5781 = vunpack.c.l.b16 %v543
    %v5782 = vunpack.c.h.b16 %v543
    %v5783 = vunpack.c.l.b16 %v544
    %v5784 = vunpack.c.h.b16 %v544
    %v5785 = vunpack.c.l.b16 %v545
    %v5786 = vunpack.c.h.b16 %v545
    %v5787 = vunpack.c.l.b16 %v546
    %v5788 = vunpack.c.h.b16 %v546
    %v5789 = vunpack.c.l.b16 %v547
    %v5790 = vunpack.c.h.b16 %v547
    %v5791 = vunpack.c.l.b16 %v548
    %v5792 = vunpack.c.h.b16 %v548
    %v5793 = vunpack.c.l.b16 %v549
    %v5794 = vunpack.c.h.b16 %v549
    %v5795 = vunpack.c.l.b16 %v550
    %v5796 = vunpack.c.h.b16 %v550
    %v5797 = vunpack.c.l.b16 %v551
    %v5798 = vunpack.c.h.b16 %v551
    %v5799 = vunpack.c.l.b16 %v552
    %v5800 = vunpack.c.h.b16 %v552
    %v5801 = vunpack.c.l.b16 %v553
    %v5802 = vunpack.c.h.b16 %v553
    %v5803 = vunpack.c.l.b16 %v554
    %v5804 = vunpack.c.h.b16 %v554
    %v5805 = vunpack.c.l.b16 %v555
    %v5806 = vunpack.c.h.b16 %v555
    %v5807 = vunpack.c.l.b16 %v556
    %v5808 = vunpack.c.h.b16 %v556
    %v5809 = vunpack.c.l.b16 %v557
    %v5810 = vunpack.c.h.b16 %v557
    %v5811 = vunpack.c.l.b16 %v558
    %v5812 = vunpack.c.h.b16 %v558
    %v5813 = vunpack.c.l.b16 %v559
    %v5814 = vunpack.c.h.b16 %v559
    %v5815 = vunpack.c.l.b16 %v560
    %v5816 = vunpack.c.h.b16 %v560
    %v5817 = vunpack.c.l.b16 %v561
    %v5818 = vunpack.c.h.b16 %v561
    %v5819 = vunpack.c.l.b16 %v562
    %v5820 = vunpack.c.h.b16 %v562
    %v5821 = vunpack.c.l.b16 %v563
    %v5822 = vunpack.c.h.b16 %v563
    %v5823 = vunpack.c.l.b16 %v564
    %v5824 = vunpack.c.h.b16 %v564
    %v5825 = vunpack.c.l.b16 %v565
    %v5826 = vunpack.c.h.b16 %v565
    %v5827 = vunpack.c.l.b16 %v566
    %v5828 = vunpack.c.h.b16 %v566
    %v5829 = vunpack.c.l.b16 %v567
    %v5830 = vunpack.c.h.b16 %v567
    %v5831 = vunpack.c.l.b16 %v568
    %v5832 = vunpack.c.h.b16 %v568
    %v5833 = vunpack.c.l.b16 %v569
    %v5834 = vunpack.c.h.b16 %v569
    %v5835 = vunpack.c.l.b16 %v570
    %v5836 = vunpack.c.h.b16 %v570
    %v5837 = vunpack.c.l.b16 %v571
    %v5838 = vunpack.c.h.b16 %v571
    %v5839 = vunpack.c.l.b16 %v572
    %v5840 = vunpack.c.h.b16 %v572
    %v5841 = vunpack.c.l.b16 %v573
    %v5842 = vunpack.c.h.b16 %v573
    %v5843 = vunpack.c.l.b16 %v574
    %v5844 = vunpack.c.h.b16 %v574
    %v5845 = vunpack.c.l.b16 %v575
    %v5846 = vunpack.c.h.b16 %v575
    %v5847 = vunpack.c.l.b16 %v576
    %v5848 = vunpack.c.h.b16 %v576
    %v5849 = vunpack.c.l.b16 %v577
    %v5850 = vunpack.c.h.b16 %v577
    %v5851 = vunpack.c.l.b16 %v578
    %v5852 = vunpack.c.h.b16 %v578
    %v5853 = vunpack.c.l.b16 %v579
    %v5854 = vunpack.c.h.b16 %v579
    %v5855 = vunpack.c.l.b16 %v580
    %v5856 = vunpack.c.h.b16 %v580
    %v5857 = vunpack.c.l.b16 %v581
    %v5858 = vunpack.c.h.b16 %v581
    %v5859 = vunpack.c.l.b16 %v582
    %v5860 = vunpack.c.h.b16 %v582
    %v5861 = vunpack.c.l.b16 %v583
    %v5862 = vunpack.c.h.b16 %v583
    %v5863 = vunpack.c.l.b16 %v584
    %v5864 = vunpack.c.h.b16 %v584
    %v5865 = vunpack.c.l.b16 %v585
    %v5866 = vunpack.c.h.b16 %v585
    %v5867 = vunpack.c.l.b16 %v586
    %v5868 = vunpack.c.h.b16 %v586
    %v5869 = vunpack.c.l.b16 %v587
    %v5870 = vunpack.c.h.b16 %v587
    %v5871 = vunpack.c.l.b16 %v588
    %v5872 = vunpack.c.h.b16 %v588
    %v5873 = vunpack.c.l.b16 %v589
    %v5874 = vunpack.c.h.b16 %v589
    %v5875 = vunpack.c.l.b16 %v590
    %v5876 = vunpack.c.h.b16 %v590
    %v5877 = vunpack.c.l.b16 %v591
    %v5878 = vunpack.c.h.b16 %v591
    %v5879 = vunpack.c.l.b16 %v592
    %v5880 = vunpack.c.h.b16 %v592
    %v5881 = vunpack.c.l.b16 %v593
    %v5882 = vunpack.c.h.b16 %v593
    %v5883 = vunpack.c.l.b16 %v594
    %v5884 = vunpack.c.h.b16 %v594
    %v5885 = vunpack.c.l.b16 %v595
    %v5886 = vunpack.c.h.b16 %v595
    %v5887 = vunpack.c.l.b16 %v596
    %v5888 = vunpack.c.h.b16 %v596
    %v5889 = vunpack.c.l.b16 %v597
    %v5890 = vunpack.c.h.b16 %v597
    %v5891 = vunpack.c.l.b16 %v598
    %v5892 = vunpack.c.h.b16 %v598
    %v5893 = vunpack.c.l.b16 %v599
    %v5894 = vunpack.c.h.b16 %v599
    %v5895 = vunpack.c.l.b16 %v600
    %v5896 = vunpack.c.h.b16 %v600
    %v5897 = vunpack.c.l.b16 %v601
    %v5898 = vunpack.c.h.b16 %v601
    %v5899 = vunpack.c.l.b16 %v602
    %v5900 = vunpack.c.h.b16 %v602
    %v5901 = vunpack.c.l.b16 %v603
    %v5902 = vunpack.c.h.b16 %v603
    %v5903 = vunpack.c.l.b16 %v604
    %v5904 = vunpack.c.h.b16 %v604
    %v5905 = vunpack.c.l.b16 %v605
    %v5906 = vunpack.c.h.b16 %v605
    %v5907 = vunpack.c.l.b16 %v606
    %v5908 = vunpack.c.h.b16 %v606
    %v5909 = vunpack.c.l.b16 %v607
    %v5910 = vunpack.c.h.b16 %v607
    %v5911 = vunpack.c.l.b16 %v608
    %v5912 = vunpack.c.h.b16 %v608
    %v5913 = vunpack.c.l.b16 %v609
    %v5914 = vunpack.c.h.b16 %v609
    %v5915 = vunpack.c.l.b16 %v610
    %v5916 = vunpack.c.h.b16 %v610
    %v5917 = vunpack.c.l.b16 %v611
    %v5918 = vunpack.c.h.b16 %v611
    %v5919 = vunpack.c.l.b16 %v612
    %v5920 = vunpack.c.h.b16 %v612
    %v5921 = vunpack.c.l.b16 %v613
    %v5922 = vunpack.c.h.b16 %v613
    %v5923 = vunpack.c.l.b16 %v614
    %v5924 = vunpack.c.h.b16 %v614
    %v5925 = vunpack.c.l.b16 %v615
    %v5926 = vunpack.c.h.b16 %v615
    %v5927 = vunpack.c.l.b16 %v616
    %v5928 = vunpack.c.h.b16 %v616
    %v5929 = vunpack.c.l.b16 %v617
    %v5930 = vunpack.c.h.b16 %v617
    %v5931 = vunpack.c.l.b16 %v618
    %v5932 = vunpack.c.h.b16 %v618
    %v5933 = vunpack.c.l.b16 %v619
    %v5934 = vunpack.c.h.b16 %v619
    %v5935 = vunpack.c.l.b16 %v620
    %v5936 = vunpack.c.h.b16 %v620
    %v5937 = vunpack.c.l.b16 %v621
    %v5938 = vunpack.c.h.b16 %v621
    %v5939 = vunpack.c.l.b16 %v622
    %v5940 = vunpack.c.h.b16 %v622
    %v5941 = vunpack.c.l.b16 %v623
    %v5942 = vunpack.c.h.b16 %v623
    %v5943 = vunpack.c.l.b16 %v624
    %v5944 = vunpack.c.h.b16 %v624
    %v5945 = vunpack.c.l.b16 %v625
    %v5946 = vunpack.c.h.b16 %v625
    %v5947 = vunpack.c.l.b16 %v626
    %v5948 = vunpack.c.h.b16 %v626
    %v5949 = vunpack.c.l.b16 %v627
    %v5950 = vunpack.c.h.b16 %v627
    %v5951 = vunpack.c.l.b16 %v628
    %v5952 = vunpack.c.h.b16 %v628
    %v5953 = vunpack.c.l.b16 %v629
    %v5954 = vunpack.c.h.b16 %v629
    %v5955 = vunpack.c.l.b16 %v630
    %v5956 = vunpack.c.h.b16 %v630
    %v5957 = vunpack.c.l.b16 %v631
    %v5958 = vunpack.c.h.b16 %v631
    %v5959 = vunpack.c.l.b16 %v632
    %v5960 = vunpack.c.h.b16 %v632
    %v5961 = vunpack.c.l.b16 %v633
    %v5962 = vunpack.c.h.b16 %v633
    %v5963 = vunpack.c.l.b16 %v634
    %v5964 = vunpack.c.h.b16 %v634
    %v5965 = vunpack.c.l.b16 %v635
    %v5966 = vunpack.c.h.b16 %v635
    %v5967 = vunpack.c.l.b16 %v636
    %v5968 = vunpack.c.h.b16 %v636
    %v5969 = vunpack.c.l.b16 %v637
    %v5970 = vunpack.c.h.b16 %v637
    %v5971 = vunpack.c.l.b16 %v638
    %v5972 = vunpack.c.h.b16 %v638
    %v5973 = vunpack.c.l.b16 %v639
    %v5974 = vunpack.c.h.b16 %v639
    %v5975 = vunpack.c.l.b16 %v640
    %v5976 = vunpack.c.h.b16 %v640
    %v5977 = vunpack.c.l.b16 %v641
    %v5978 = vunpack.c.h.b16 %v641
    %v5979 = vunpack.c.l.b16 %v642
    %v5980 = vunpack.c.h.b16 %v642
    %v5981 = vunpack.c.l.b16 %v643
    %v5982 = vunpack.c.h.b16 %v643
    %v5983 = vunpack.c.l.b16 %v644
    %v5984 = vunpack.c.h.b16 %v644
    %v5985 = vunpack.c.l.b16 %v645
    %v5986 = vunpack.c.h.b16 %v645
    %v5987 = vunpack.c.l.b16 %v646
    %v5988 = vunpack.c.h.b16 %v646
    %v5989 = vunpack.c.l.b16 %v647
    %v5990 = vunpack.c.h.b16 %v647
    %v5991 = vunpack.c.l.b16 %v648
    %v5992 = vunpack.c.h.b16 %v648
    %v5993 = vunpack.c.l.b16 %v649
    %v5994 = vunpack.c.h.b16 %v649
    %v5995 = vunpack.c.l.b16 %v650
    %v5996 = vunpack.c.h.b16 %v650
    %v5997 = vunpack.c.l.b16 %v651
    %v5998 = vunpack.c.h.b16 %v651
    %v5999 = vunpack.c.l.b16 %v652
    %v6000 = vunpack.c.h.b16 %v652
    %v6001 = vunpack.c.l.b16 %v653
    %v6002 = vunpack.c.h.b16 %v653
    %v6003 = vunpack.c.l.b16 %v654
    %v6004 = vunpack.c.h.b16 %v654
    %v6005 = vunpack.c.l.b16 %v655
    %v6006 = vunpack.c.h.b16 %v655
    %v6007 = vunpack.c.l.b16 %v656
    %v6008 = vunpack.c.h.b16 %v656
    %v6009 = vunpack.c.l.b16 %v657
    %v6010 = vunpack.c.h.b16 %v657
    %v6011 = vunpack.c.l.b16 %v658
    %v6012 = vunpack.c.h.b16 %v658
    %v6013 = vunpack.c.l.b16 %v659
    %v6014 = vunpack.c.h.b16 %v659
    %v6015 = vunpack.c.l.b16 %v660
    %v6016 = vunpack.c.h.b16 %v660
    %v6017 = vunpack.c.l.b16 %v661
    %v6018 = vunpack.c.h.b16 %v661
    %v6019 = vunpack.c.l.b16 %v662
    %v6020 = vunpack.c.h.b16 %v662
    %v6021 = vunpack.c.l.b16 %v663
    %v6022 = vunpack.c.h.b16 %v663
    %v6023 = vunpack.c.l.b16 %v664
    %v6024 = vunpack.c.h.b16 %v664
    %v6025 = vunpack.c.l.b16 %v665
    %v6026 = vunpack.c.h.b16 %v665
    %v6027 = vunpack.c.l.b16 %v666
    %v6028 = vunpack.c.h.b16 %v666
    %v6029 = vunpack.c.l.b16 %v667
    %v6030 = vunpack.c.h.b16 %v667
    %v6031 = vunpack.c.l.b16 %v668
    %v6032 = vunpack.c.h.b16 %v668
    %v6033 = vunpack.c.l.b16 %v669
    %v6034 = vunpack.c.h.b16 %v669
    %v6035 = vunpack.c.l.b16 %v670
    %v6036 = vunpack.c.h.b16 %v670
    %v6037 = vunpack.c.l.b16 %v671
    %v6038 = vunpack.c.h.b16 %v671
    %v6039 = vunpack.c.l.b16 %v672
    %v6040 = vunpack.c.h.b16 %v672
    %v6041 = vunpack.c.l.b16 %v673
    %v6042 = vunpack.c.h.b16 %v673
    %v6043 = vunpack.c.l.b16 %v674
    %v6044 = vunpack.c.h.b16 %v674
    %v6045 = vunpack.c.l.b16 %v675
    %v6046 = vunpack.c.h.b16 %v675
    %v6047 = vunpack.c.l.b16 %v676
    %v6048 = vunpack.c.h.b16 %v676
    %v6049 = vunpack.c.l.b16 %v677
    %v6050 = vunpack.c.h.b16 %v677
    %v6051 = vunpack.c.l.b16 %v678
    %v6052 = vunpack.c.h.b16 %v678
    %v6053 = vunpack.c.l.b16 %v679
    %v6054 = vunpack.c.h.b16 %v679
    %v6055 = vunpack.c.l.b16 %v680
    %v6056 = vunpack.c.h.b16 %v680
    %v6057 = vunpack.c.l.b16 %v681
    %v6058 = vunpack.c.h.b16 %v681
    %v6059 = vunpack.c.l.b16 %v682
    %v6060 = vunpack.c.h.b16 %v682
    %v6061 = vunpack.c.l.b16 %v683
    %v6062 = vunpack.c.h.b16 %v683
    %v6063 = vunpack.c.l.b16 %v684
    %v6064 = vunpack.c.h.b16 %v684
    %v6065 = vunpack.c.l.b16 %v685
    %v6066 = vunpack.c.h.b16 %v685
    %v6067 = vunpack.c.l.b16 %v686
    %v6068 = vunpack.c.h.b16 %v686
    %v6069 = vunpack.c.l.b16 %v687
    %v6070 = vunpack.c.h.b16 %v687
    %v6071 = vunpack.c.l.b16 %v688
    %v6072 = vunpack.c.h.b16 %v688
    %v6073 = vunpack.c.l.b16 %v689
    %v6074 = vunpack.c.h.b16 %v689
    %v6075 = vunpack.c.l.b16 %v690
    %v6076 = vunpack.c.h.b16 %v690
    %v6077 = vunpack.c.l.b16 %v691
    %v6078 = vunpack.c.h.b16 %v691
    %v6079 = vunpack.c.l.b16 %v692
    %v6080 = vunpack.c.h.b16 %v692
    %v6081 = vunpack.c.l.b16 %v693
    %v6082 = vunpack.c.h.b16 %v693
    %v6083 = vunpack.c.l.b16 %v694
    %v6084 = vunpack.c.h.b16 %v694
    %v6085 = vunpack.c.l.b16 %v695
    %v6086 = vunpack.c.h.b16 %v695
    %v6087 = vunpack.c.l.b16 %v696
    %v6088 = vunpack.c.h.b16 %v696
    %v6089 = vunpack.c.l.b16 %v697
    %v6090 = vunpack.c.h.b16 %v697
    %v6091 = vunpack.c.l.b16 %v698
    %v6092 = vunpack.c.h.b16 %v698
    %v6093 = vunpack.c.l.b16 %v699
    %v6094 = vunpack.c.h.b16 %v699
    %v6095 = vunpack.c.l.b16 %v700
    %v6096 = vunpack.c.h.b16 %v700
    %v6097 = vunpack.c.l.b16 %v701
    %v6098 = vunpack.c.h.b16 %v701
    %v6099 = vunpack.c.l.b16 %v702
    %v6100 = vunpack.c.h.b16 %v702
    %v6101 = vunpack.c.l.b16 %v703
    %v6102 = vunpack.c.h.b16 %v703
    %v6103 = vunpack.c.l.b16 %v704
    %v6104 = vunpack.c.h.b16 %v704
    %v6105 = vunpack.c.l.b16 %v705
    %v6106 = vunpack.c.h.b16 %v705
    %v6107 = vunpack.c.l.b16 %v706
    %v6108 = vunpack.c.h.b16 %v706
    %v6109 = vunpack.c.l.b16 %v707
    %v6110 = vunpack.c.h.b16 %v707
    %v6111 = vunpack.c.l.b16 %v708
    %v6112 = vunpack.c.h.b16 %v708
    %v6113 = vunpack.c.l.b16 %v709
    %v6114 = vunpack.c.h.b16 %v709
    %v6115 = vunpack.c.l.b16 %v710
    %v6116 = vunpack.c.h.b16 %v710
    %v6117 = vunpack.c.l.b16 %v711
    %v6118 = vunpack.c.h.b16 %v711
    %v6119 = vunpack.c.l.b16 %v712
    %v6120 = vunpack.c.h.b16 %v712
    %v6121 = vunpack.c.l.b16 %v713
    %v6122 = vunpack.c.h.b16 %v713
    %v6123 = vunpack.c.l.b16 %v714
    %v6124 = vunpack.c.h.b16 %v714
    %v6125 = vunpack.c.l.b16 %v715
    %v6126 = vunpack.c.h.b16 %v715
    %v6127 = vunpack.c.l.b16 %v716
    %v6128 = vunpack.c.h.b16 %v716
    %v6129 = vunpack.c.l.b16 %v717
    %v6130 = vunpack.c.h.b16 %v717
    %v6131 = vunpack.c.l.b16 %v718
    %v6132 = vunpack.c.h.b16 %v718
    %v6133 = vunpack.c.l.b16 %v719
    %v6134 = vunpack.c.h.b16 %v719
    %v6135 = vunpack.c.l.b16 %v720
    %v6136 = vunpack.c.h.b16 %v720
    %v6137 = vunpack.c.l.b16 %v721
    %v6138 = vunpack.c.h.b16 %v721
    %v6139 = vunpack.c.l.b16 %v722
    %v6140 = vunpack.c.h.b16 %v722
    %v6141 = vunpack.c.l.b16 %v723
    %v6142 = vunpack.c.h.b16 %v723
    %v6143 = vunpack.c.l.b16 %v724
    %v6144 = vunpack.c.h.b16 %v724
    %v6145 = vunpack.c.l.b16 %v725
    %v6146 = vunpack.c.h.b16 %v725
    %v6147 = vunpack.c.l.b16 %v726
    %v6148 = vunpack.c.h.b16 %v726
    %v6149 = vunpack.c.l.b16 %v727
    %v6150 = vunpack.c.h.b16 %v727
    %v6151 = vunpack.c.l.b16 %v728
    %v6152 = vunpack.c.h.b16 %v728
    %v6153 = vpack.c.b16 %v5137, %v5129
    %v6154 = vpack.c.b16 %v5138, %v5130
    %v6155 = vpack.c.b16 %v5139, %v5131
    %v6156 = vpack.c.b16 %v5140, %v5132
    %v6157 = vpack.c.b16 %v5141, %v5133
    %v6158 = vpack.c.b16 %v5142, %v5134
    %v6159 = vpack.c.b16 %v5143, %v5135
    %v6160 = vpack.c.b16 %v5144, %v5136
    %v6161 = vpack.c.b16 %v5153, %v5145
    %v6162 = vpack.c.b16 %v5154, %v5146
    %v6163 = vpack.c.b16 %v5155, %v5147
    %v6164 = vpack.c.b16 %v5156, %v5148
    %v6165 = vpack.c.b16 %v5157, %v5149
    %v6166 = vpack.c.b16 %v5158, %v5150
    %v6167 = vpack.c.b16 %v5159, %v5151
    %v6168 = vpack.c.b16 %v5160, %v5152
    %v6169 = vpack.c.b16 %v5169, %v5161
    %v6170 = vpack.c.b16 %v5170, %v5162
    %v6171 = vpack.c.b16 %v5171, %v5163
    %v6172 = vpack.c.b16 %v5172, %v5164
    %v6173 = vpack.c.b16 %v5173, %v5165
    %v6174 = vpack.c.b16 %v5174, %v5166
    %v6175 = vpack.c.b16 %v5175, %v5167
    %v6176 = vpack.c.b16 %v5176, %v5168
    %v6177 = vpack.c.b16 %v5185, %v5177
    %v6178 = vpack.c.b16 %v5186, %v5178
    %v6179 = vpack.c.b16 %v5187, %v5179
    %v6180 = vpack.c.b16 %v5188, %v5180
    %v6181 = vpack.c.b16 %v5189, %v5181
    %v6182 = vpack.c.b16 %v5190, %v5182
    %v6183 = vpack.c.b16 %v5191, %v5183
    %v6184 = vpack.c.b16 %v5192, %v5184
    %v6185 = vpack.c.b16 %v5201, %v5193
    %v6186 = vpack.c.b16 %v5202, %v5194
    %v6187 = vpack.c.b16 %v5203, %v5195
    %v6188 = vpack.c.b16 %v5204, %v5196
    %v6189 = vpack.c.b16 %v5205, %v5197
    %v6190 = vpack.c.b16 %v5206, %v5198
    %v6191 = vpack.c.b16 %v5207, %v5199
    %v6192 = vpack.c.b16 %v5208, %v5200
    %v6193 = vpack.c.b16 %v5217, %v5209
    %v6194 = vpack.c.b16 %v5218, %v5210
    %v6195 = vpack.c.b16 %v5219, %v5211
    %v6196 = vpack.c.b16 %v5220, %v5212
    %v6197 = vpack.c.b16 %v5221, %v5213
    %v6198 = vpack.c.b16 %v5222, %v5214
    %v6199 = vpack.c.b16 %v5223, %v5215
    %v6200 = vpack.c.b16 %v5224, %v5216
    %v6201 = vpack.c.b16 %v5233, %v5225
    %v6202 = vpack.c.b16 %v5234, %v5226
    %v6203 = vpack.c.b16 %v5235, %v5227
    %v6204 = vpack.c.b16 %v5236, %v5228
    %v6205 = vpack.c.b16 %v5237, %v5229
    %v6206 = vpack.c.b16 %v5238, %v5230
    %v6207 = vpack.c.b16 %v5239, %v5231
    %v6208 = vpack.c.b16 %v5240, %v5232
    %v6209 = vpack.c.b16 %v5249, %v5241
    %v6210 = vpack.c.b16 %v5250, %v5242
    %v6211 = vpack.c.b16 %v5251, %v5243
    %v6212 = vpack.c.b16 %v5252, %v5244
    %v6213 = vpack.c.b16 %v5253, %v5245
    %v6214 = vpack.c.b16 %v5254, %v5246
    %v6215 = vpack.c.b16 %v5255, %v5247
    %v6216 = vpack.c.b16 %v5256, %v5248
    %v6217 = vpack.c.b16 %v5265, %v5257
    %v6218 = vpack.c.b16 %v5266, %v5258
    %v6219 = vpack.c.b16 %v5267, %v5259
    %v6220 = vpack.c.b16 %v5268, %v5260
    %v6221 = vpack.c.b16 %v5269, %v5261
    %v6222 = vpack.c.b16 %v5270, %v5262
    %v6223 = vpack.c.b16 %v5271, %v5263
    %v6224 = vpack.c.b16 %v5272, %v5264
    %v6225 = vpack.c.b16 %v5281, %v5273
    %v6226 = vpack.c.b16 %v5282, %v5274
    %v6227 = vpack.c.b16 %v5283, %v5275
    %v6228 = vpack.c.b16 %v5284, %v5276
    %v6229 = vpack.c.b16 %v5285, %v5277
    %v6230 = vpack.c.b16 %v5286, %v5278
    %v6231 = vpack.c.b16 %v5287, %v5279
    %v6232 = vpack.c.b16 %v5288, %v5280
    %v6233 = vpack.c.b16 %v5297, %v5289
    %v6234 = vpack.c.b16 %v5298, %v5290
    %v6235 = vpack.c.b16 %v5299, %v5291
    %v6236 = vpack.c.b16 %v5300, %v5292
    %v6237 = vpack.c.b16 %v5301, %v5293
    %v6238 = vpack.c.b16 %v5302, %v5294
    %v6239 = vpack.c.b16 %v5303, %v5295
    %v6240 = vpack.c.b16 %v5304, %v5296
    %v6241 = vpack.c.b16 %v5313, %v5305
    %v6242 = vpack.c.b16 %v5314, %v5306
    %v6243 = vpack.c.b16 %v5315, %v5307
    %v6244 = vpack.c.b16 %v5316, %v5308
    %v6245 = vpack.c.b16 %v5317, %v5309
    %v6246 = vpack.c.b16 %v5318, %v5310
    %v6247 = vpack.c.b16 %v5319, %v5311
    %v6248 = vpack.c.b16 %v5320, %v5312
    %v6249 = vpack.c.b16 %v5329, %v5321
    %v6250 = vpack.c.b16 %v5330, %v5322
    %v6251 = vpack.c.b16 %v5331, %v5323
    %v6252 = vpack.c.b16 %v5332, %v5324
    %v6253 = vpack.c.b16 %v5333, %v5325
    %v6254 = vpack.c.b16 %v5334, %v5326
    %v6255 = vpack.c.b16 %v5335, %v5327
    %v6256 = vpack.c.b16 %v5336, %v5328
    %v6257 = vpack.c.b16 %v5345, %v5337
    %v6258 = vpack.c.b16 %v5346, %v5338
    %v6259 = vpack.c.b16 %v5347, %v5339
    %v6260 = vpack.c.b16 %v5348, %v5340
    %v6261 = vpack.c.b16 %v5349, %v5341
    %v6262 = vpack.c.b16 %v5350, %v5342
    %v6263 = vpack.c.b16 %v5351, %v5343
    %v6264 = vpack.c.b16 %v5352, %v5344
    %v6265 = vpack.c.b16 %v5361, %v5353
    %v6266 = vpack.c.b16 %v5362, %v5354
    %v6267 = vpack.c.b16 %v5363, %v5355
    %v6268 = vpack.c.b16 %v5364, %v5356
    %v6269 = vpack.c.b16 %v5365, %v5357
    %v6270 = vpack.c.b16 %v5366, %v5358
    %v6271 = vpack.c.b16 %v5367, %v5359
    %v6272 = vpack.c.b16 %v5368, %v5360
    %v6273 = vpack.c.b16 %v5377, %v5369
    %v6274 = vpack.c.b16 %v5378, %v5370
    %v6275 = vpack.c.b16 %v5379, %v5371
    %v6276 = vpack.c.b16 %v5380, %v5372
    %v6277 = vpack.c.b16 %v5381, %v5373
    %v6278 = vpack.c.b16 %v5382, %v5374
    %v6279 = vpack.c.b16 %v5383, %v5375
    %v6280 = vpack.c.b16 %v5384, %v5376
    %v6281 = vpack.c.b16 %v5393, %v5385
    %v6282 = vpack.c.b16 %v5394, %v5386
    %v6283 = vpack.c.b16 %v5395, %v5387
    %v6284 = vpack.c.b16 %v5396, %v5388
    %v6285 = vpack.c.b16 %v5397, %v5389
    %v6286 = vpack.c.b16 %v5398, %v5390
    %v6287 = vpack.c.b16 %v5399, %v5391
    %v6288 = vpack.c.b16 %v5400, %v5392
    %v6289 = vpack.c.b16 %v5409, %v5401
    %v6290 = vpack.c.b16 %v5410, %v5402
    %v6291 = vpack.c.b16 %v5411, %v5403
    %v6292 = vpack.c.b16 %v5412, %v5404
    %v6293 = vpack.c.b16 %v5413, %v5405
    %v6294 = vpack.c.b16 %v5414, %v5406
    %v6295 = vpack.c.b16 %v5415, %v5407
    %v6296 = vpack.c.b16 %v5416, %v5408
    %v6297 = vpack.c.b16 %v5425, %v5417
    %v6298 = vpack.c.b16 %v5426, %v5418
    %v6299 = vpack.c.b16 %v5427, %v5419
    %v6300 = vpack.c.b16 %v5428, %v5420
    %v6301 = vpack.c.b16 %v5429, %v5421
    %v6302 = vpack.c.b16 %v5430, %v5422
    %v6303 = vpack.c.b16 %v5431, %v5423
    %v6304 = vpack.c.b16 %v5432, %v5424
    %v6305 = vpack.c.b16 %v5441, %v5433
    %v6306 = vpack.c.b16 %v5442, %v5434
    %v6307 = vpack.c.b16 %v5443, %v5435
    %v6308 = vpack.c.b16 %v5444, %v5436
    %v6309 = vpack.c.b16 %v5445, %v5437
    %v6310 = vpack.c.b16 %v5446, %v5438
    %v6311 = vpack.c.b16 %v5447, %v5439
    %v6312 = vpack.c.b16 %v5448, %v5440
    %v6313 = vpack.c.b16 %v5457, %v5449
    %v6314 = vpack.c.b16 %v5458, %v5450
    %v6315 = vpack.c.b16 %v5459, %v5451
    %v6316 = vpack.c.b16 %v5460, %v5452
    %v6317 = vpack.c.b16 %v5461, %v5453
    %v6318 = vpack.c.b16 %v5462, %v5454
    %v6319 = vpack.c.b16 %v5463, %v5455
    %v6320 = vpack.c.b16 %v5464, %v5456
    %v6321 = vpack.c.b16 %v5473, %v5465
    %v6322 = vpack.c.b16 %v5474, %v5466
    %v6323 = vpack.c.b16 %v5475, %v5467
    %v6324 = vpack.c.b16 %v5476, %v5468
    %v6325 = vpack.c.b16 %v5477, %v5469
    %v6326 = vpack.c.b16 %v5478, %v5470
    %v6327 = vpack.c.b16 %v5479, %v5471
    %v6328 = vpack.c.b16 %v5480, %v5472
    %v6329 = vpack.c.b16 %v5489, %v5481
    %v6330 = vpack.c.b16 %v5490, %v5482
    %v6331 = vpack.c.b16 %v5491, %v5483
    %v6332 = vpack.c.b16 %v5492, %v5484
    %v6333 = vpack.c.b16 %v5493, %v5485
    %v6334 = vpack.c.b16 %v5494, %v5486
    %v6335 = vpack.c.b16 %v5495, %v5487
    %v6336 = vpack.c.b16 %v5496, %v5488
    %v6337 = vpack.c.b16 %v5505, %v5497
    %v6338 = vpack.c.b16 %v5506, %v5498
    %v6339 = vpack.c.b16 %v5507, %v5499
    %v6340 = vpack.c.b16 %v5508, %v5500
    %v6341 = vpack.c.b16 %v5509, %v5501
    %v6342 = vpack.c.b16 %v5510, %v5502
    %v6343 = vpack.c.b16 %v5511, %v5503
    %v6344 = vpack.c.b16 %v5512, %v5504
    %v6345 = vpack.c.b16 %v5521, %v5513
    %v6346 = vpack.c.b16 %v5522, %v5514
    %v6347 = vpack.c.b16 %v5523, %v5515
    %v6348 = vpack.c.b16 %v5524, %v5516
    %v6349 = vpack.c.b16 %v5525, %v5517
    %v6350 = vpack.c.b16 %v5526, %v5518
    %v6351 = vpack.c.b16 %v5527, %v5519
    %v6352 = vpack.c.b16 %v5528, %v5520
    %v6353 = vpack.c.b16 %v5537, %v5529
    %v6354 = vpack.c.b16 %v5538, %v5530
    %v6355 = vpack.c.b16 %v5539, %v5531
    %v6356 = vpack.c.b16 %v5540, %v5532
    %v6357 = vpack.c.b16 %v5541, %v5533
    %v6358 = vpack.c.b16 %v5542, %v5534
    %v6359 = vpack.c.b16 %v5543, %v5535
    %v6360 = vpack.c.b16 %v5544, %v5536
    %v6361 = vpack.c.b16 %v5553, %v5545
    %v6362 = vpack.c.b16 %v5554, %v5546
    %v6363 = vpack.c.b16 %v5555, %v5547
    %v6364 = vpack.c.b16 %v5556, %v5548
    %v6365 = vpack.c.b16 %v5557, %v5549
    %v6366 = vpack.c.b16 %v5558, %v5550
    %v6367 = vpack.c.b16 %v5559, %v5551
    %v6368 = vpack.c.b16 %v5560, %v5552
    %v6369 = vpack.c.b16 %v5569, %v5561
    %v6370 = vpack.c.b16 %v5570, %v5562
    %v6371 = vpack.c.b16 %v5571, %v5563
    %v6372 = vpack.c.b16 %v5572, %v5564
    %v6373 = vpack.c.b16 %v5573, %v5565
    %v6374 = vpack.c.b16 %v5574, %v5566
    %v6375 = vpack.c.b16 %v5575, %v5567
    %v6376 = vpack.c.b16 %v5576, %v5568
    %v6377 = vpack.c.b16 %v5585, %v5577
    %v6378 = vpack.c.b16 %v5586, %v5578
    %v6379 = vpack.c.b16 %v5587, %v5579
    %v6380 = vpack.c.b16 %v5588, %v5580
    %v6381 = vpack.c.b16 %v5589, %v5581
    %v6382 = vpack.c.b16 %v5590, %v5582
    %v6383 = vpack.c.b16 %v5591, %v5583
    %v6384 = vpack.c.b16 %v5592, %v5584
    %v6385 = vpack.c.b16 %v5601, %v5593
    %v6386 = vpack.c.b16 %v5602, %v5594
    %v6387 = vpack.c.b16 %v5603, %v5595
    %v6388 = vpack.c.b16 %v5604, %v5596
    %v6389 = vpack.c.b16 %v5605, %v5597
    %v6390 = vpack.c.b16 %v5606, %v5598
    %v6391 = vpack.c.b16 %v5607, %v5599
    %v6392 = vpack.c.b16 %v5608, %v5600
    %v6393 = vpack.c.b16 %v5617, %v5609
    %v6394 = vpack.c.b16 %v5618, %v5610
    %v6395 = vpack.c.b16 %v5619, %v5611
    %v6396 = vpack.c.b16 %v5620, %v5612
    %v6397 = vpack.c.b16 %v5621, %v5613
    %v6398 = vpack.c.b16 %v5622, %v5614
    %v6399 = vpack.c.b16 %v5623, %v5615
    %v6400 = vpack.c.b16 %v5624, %v5616
    %v6401 = vpack.c.b16 %v5633, %v5625
    %v6402 = vpack.c.b16 %v5634, %v5626
    %v6403 = vpack.c.b16 %v5635, %v5627
    %v6404 = vpack.c.b16 %v5636, %v5628
    %v6405 = vpack.c.b16 %v5637, %v5629
    %v6406 = vpack.c.b16 %v5638, %v5630
    %v6407 = vpack.c.b16 %v5639, %v5631
    %v6408 = vpack.c.b16 %v5640, %v5632
    %v6409 = vpack.c.b16 %v5649, %v5641
    %v6410 = vpack.c.b16 %v5650, %v5642
    %v6411 = vpack.c.b16 %v5651, %v5643
    %v6412 = vpack.c.b16 %v5652, %v5644
    %v6413 = vpack.c.b16 %v5653, %v5645
    %v6414 = vpack.c.b16 %v5654, %v5646
    %v6415 = vpack.c.b16 %v5655, %v5647
    %v6416 = vpack.c.b16 %v5656, %v5648
    %v6417 = vpack.c.b16 %v5665, %v5657
    %v6418 = vpack.c.b16 %v5666, %v5658
    %v6419 = vpack.c.b16 %v5667, %v5659
    %v6420 = vpack.c.b16 %v5668, %v5660
    %v6421 = vpack.c.b16 %v5669, %v5661
    %v6422 = vpack.c.b16 %v5670, %v5662
    %v6423 = vpack.c.b16 %v5671, %v5663
    %v6424 = vpack.c.b16 %v5672, %v5664
    %v6425 = vpack.c.b16 %v5681, %v5673
    %v6426 = vpack.c.b16 %v5682, %v5674
    %v6427 = vpack.c.b16 %v5683, %v5675
    %v6428 = vpack.c.b16 %v5684, %v5676
    %v6429 = vpack.c.b16 %v5685, %v5677
    %v6430 = vpack.c.b16 %v5686, %v5678
    %v6431 = vpack.c.b16 %v5687, %v5679
    %v6432 = vpack.c.b16 %v5688, %v5680
    %v6433 = vpack.c.b16 %v5697, %v5689
    %v6434 = vpack.c.b16 %v5698, %v5690
    %v6435 = vpack.c.b16 %v5699, %v5691
    %v6436 = vpack.c.b16 %v5700, %v5692
    %v6437 = vpack.c.b16 %v5701, %v5693
    %v6438 = vpack.c.b16 %v5702, %v5694
    %v6439 = vpack.c.b16 %v5703, %v5695
    %v6440 = vpack.c.b16 %v5704, %v5696
    %v6441 = vpack.c.b16 %v5713, %v5705
    %v6442 = vpack.c.b16 %v5714, %v5706
    %v6443 = vpack.c.b16 %v5715, %v5707
    %v6444 = vpack.c.b16 %v5716, %v5708
    %v6445 = vpack.c.b16 %v5717, %v5709
    %v6446 = vpack.c.b16 %v5718, %v5710
    %v6447 = vpack.c.b16 %v5719, %v5711
    %v6448 = vpack.c.b16 %v5720, %v5712
    %v6449 = vpack.c.b16 %v5729, %v5721
    %v6450 = vpack.c.b16 %v5730, %v5722
    %v6451 = vpack.c.b16 %v5731, %v5723
    %v6452 = vpack.c.b16 %v5732, %v5724
    %v6453 = vpack.c.b16 %v5733, %v5725
    %v6454 = vpack.c.b16 %v5734, %v5726
    %v6455 = vpack.c.b16 %v5735, %v5727
    %v6456 = vpack.c.b16 %v5736, %v5728
    %v6457 = vpack.c.b16 %v5745, %v5737
    %v6458 = vpack.c.b16 %v5746, %v5738
    %v6459 = vpack.c.b16 %v5747, %v5739
    %v6460 = vpack.c.b16 %v5748, %v5740
    %v6461 = vpack.c.b16 %v5749, %v5741
    %v6462 = vpack.c.b16 %v5750, %v5742
    %v6463 = vpack.c.b16 %v5751, %v5743
    %v6464 = vpack.c.b16 %v5752, %v5744
    %v6465 = vpack.c.b16 %v5761, %v5753
    %v6466 = vpack.c.b16 %v5762, %v5754
    %v6467 = vpack.c.b16 %v5763, %v5755
    %v6468 = vpack.c.b16 %v5764, %v5756
    %v6469 = vpack.c.b16 %v5765, %v5757
    %v6470 = vpack.c.b16 %v5766, %v5758
    %v6471 = vpack.c.b16 %v5767, %v5759
    %v6472 = vpack.c.b16 %v5768, %v5760
    %v6473 = vpack.c.b16 %v5777, %v5769
    %v6474 = vpack.c.b16 %v5778, %v5770
    %v6475 = vpack.c.b16 %v5779, %v5771
    %v6476 = vpack.c.b16 %v5780, %v5772
    %v6477 = vpack.c.b16 %v5781, %v5773
    %v6478 = vpack.c.b16 %v5782, %v5774
    %v6479 = vpack.c.b16 %v5783, %v5775
    %v6480 = vpack.c.b16 %v5784, %v5776
    %v6481 = vpack.c.b16 %v5793, %v5785
    %v6482 = vpack.c.b16 %v5794, %v5786
    %v6483 = vpack.c.b16 %v5795, %v5787
    %v6484 = vpack.c.b16 %v5796, %v5788
    %v6485 = vpack.c.b16 %v5797, %v5789
    %v6486 = vpack.c.b16 %v5798, %v5790
    %v6487 = vpack.c.b16 %v5799, %v5791
    %v6488 = vpack.c.b16 %v5800, %v5792
    %v6489 = vpack.c.b16 %v5809, %v5801
    %v6490 = vpack.c.b16 %v5810, %v5802
    %v6491 = vpack.c.b16 %v5811, %v5803
    %v6492 = vpack.c.b16 %v5812, %v5804
    %v6493 = vpack.c.b16 %v5813, %v5805
    %v6494 = vpack.c.b16 %v5814, %v5806
    %v6495 = vpack.c.b16 %v5815, %v5807
    %v6496 = vpack.c.b16 %v5816, %v5808
    %v6497 = vpack.c.b16 %v5825, %v5817
    %v6498 = vpack.c.b16 %v5826, %v5818
    %v6499 = vpack.c.b16 %v5827, %v5819
    %v6500 = vpack.c.b16 %v5828, %v5820
    %v6501 = vpack.c.b16 %v5829, %v5821
    %v6502 = vpack.c.b16 %v5830, %v5822
    %v6503 = vpack.c.b16 %v5831, %v5823
    %v6504 = vpack.c.b16 %v5832, %v5824
    %v6505 = vpack.c.b16 %v5841, %v5833
    %v6506 = vpack.c.b16 %v5842, %v5834
    %v6507 = vpack.c.b16 %v5843, %v5835
    %v6508 = vpack.c.b16 %v5844, %v5836
    %v6509 = vpack.c.b16 %v5845, %v5837
    %v6510 = vpack.c.b16 %v5846, %v5838
    %v6511 = vpack.c.b16 %v5847, %v5839
    %v6512 = vpack.c.b16 %v5848, %v5840
    %v6513 = vpack.c.b16 %v5857, %v5849
    %v6514 = vpack.c.b16 %v5858, %v5850
    %v6515 = vpack.c.b16 %v5859, %v5851
    %v6516 = vpack.c.b16 %v5860, %v5852
    %v6517 = vpack.c.b16 %v5861, %v5853
    %v6518 = vpack.c.b16 %v5862, %v5854
    %v6519 = vpack.c.b16 %v5863, %v5855
    %v6520 = vpack.c.b16 %v5864, %v5856
    %v6521 = vpack.c.b16 %v5873, %v5865
    %v6522 = vpack.c.b16 %v5874, %v5866
    %v6523 = vpack.c.b16 %v5875, %v5867
    %v6524 = vpack.c.b16 %v5876, %v5868
    %v6525 = vpack.c.b16 %v5877, %v5869
    %v6526 = vpack.c.b16 %v5878, %v5870
    %v6527 = vpack.c.b16 %v5879, %v5871
    %v6528 = vpack.c.b16 %v5880, %v5872
    %v6529 = vpack.c.b16 %v5889, %v5881
    %v6530 = vpack.c.b16 %v5890, %v5882
    %v6531 = vpack.c.b16 %v5891, %v5883
    %v6532 = vpack.c.b16 %v5892, %v5884
    %v6533 = vpack.c.b16 %v5893, %v5885
    %v6534 = vpack.c.b16 %v5894, %v5886
    %v6535 = vpack.c.b16 %v5895, %v5887
    %v6536 = vpack.c.b16 %v5896, %v5888
    %v6537 = vpack.c.b16 %v5905, %v5897
    %v6538 = vpack.c.b16 %v5906, %v5898
    %v6539 = vpack.c.b16 %v5907, %v5899
    %v6540 = vpack.c.b16 %v5908, %v5900
    %v6541 = vpack.c.b16 %v5909, %v5901
    %v6542 = vpack.c.b16 %v5910, %v5902
    %v6543 = vpack.c.b16 %v5911, %v5903
    %v6544 = vpack.c.b16 %v5912, %v5904
    %v6545 = vpack.c.b16 %v5921, %v5913
    %v6546 = vpack.c.b16 %v5922, %v5914
    %v6547 = vpack.c.b16 %v5923, %v5915
    %v6548 = vpack.c.b16 %v5924, %v5916
    %v6549 = vpack.c.b16 %v5925, %v5917
    %v6550 = vpack.c.b16 %v5926, %v5918
    %v6551 = vpack.c.b16 %v5927, %v5919
    %v6552 = vpack.c.b16 %v5928, %v5920
    %v6553 = vpack.c.b16 %v5937, %v5929
    %v6554 = vpack.c.b16 %v5938, %v5930
    %v6555 = vpack.c.b16 %v5939, %v5931
    %v6556 = vpack.c.b16 %v5940, %v5932
    %v6557 = vpack.c.b16 %v5941, %v5933
    %v6558 = vpack.c.b16 %v5942, %v5934
    %v6559 = vpack.c.b16 %v5943, %v5935
    %v6560 = vpack.c.b16 %v5944, %v5936
    %v6561 = vpack.c.b16 %v5953, %v5945
    %v6562 = vpack.c.b16 %v5954, %v5946
    %v6563 = vpack.c.b16 %v5955, %v5947
    %v6564 = vpack.c.b16 %v5956, %v5948
    %v6565 = vpack.c.b16 %v5957, %v5949
    %v6566 = vpack.c.b16 %v5958, %v5950
    %v6567 = vpack.c.b16 %v5959, %v5951
    %v6568 = vpack.c.b16 %v5960, %v5952
    %v6569 = vpack.c.b16 %v5969, %v5961
    %v6570 = vpack.c.b16 %v5970, %v5962
    %v6571 = vpack.c.b16 %v5971, %v5963
    %v6572 = vpack.c.b16 %v5972, %v5964
    %v6573 = vpack.c.b16 %v5973, %v5965
    %v6574 = vpack.c.b16 %v5974, %v5966
    %v6575 = vpack.c.b16 %v5975, %v5967
    %v6576 = vpack.c.b16 %v5976, %v5968
    %v6577 = vpack.c.b16 %v5985, %v5977
    %v6578 = vpack.c.b16 %v5986, %v5978
    %v6579 = vpack.c.b16 %v5987, %v5979
    %v6580 = vpack.c.b16 %v5988, %v5980
    %v6581 = vpack.c.b16 %v5989, %v5981
    %v6582 = vpack.c.b16 %v5990, %v5982
    %v6583 = vpack.c.b16 %v5991, %v5983
    %v6584 = vpack.c.b16 %v5992, %v5984
    %v6585 = vpack.c.b16 %v6001, %v5993
    %v6586 = vpack.c.b16 %v6002, %v5994
    %v6587 = vpack.c.b16 %v6003, %v5995
    %v6588 = vpack.c.b16 %v6004, %v5996
    %v6589 = vpack.c.b16 %v6005, %v5997
    %v6590 = vpack.c.b16 %v6006, %v5998
    %v6591 = vpack.c.b16 %v6007, %v5999
    %v6592 = vpack.c.b16 %v6008, %v6000
    %v6593 = vpack.c.b16 %v6017, %v6009
    %v6594 = vpack.c.b16 %v6018, %v6010
    %v6595 = vpack.c.b16 %v6019, %v6011
    %v6596 = vpack.c.b16 %v6020, %v6012
    %v6597 = vpack.c.b16 %v6021, %v6013
    %v6598 = vpack.c.b16 %v6022, %v6014
    %v6599 = vpack.c.b16 %v6023, %v6015
    %v6600 = vpack.c.b16 %v6024, %v6016
    %v6601 = vpack.c.b16 %v6033, %v6025
    %v6602 = vpack.c.b16 %v6034, %v6026
    %v6603 = vpack.c.b16 %v6035, %v6027
    %v6604 = vpack.c.b16 %v6036, %v6028
    %v6605 = vpack.c.b16 %v6037, %v6029
    %v6606 = vpack.c.b16 %v6038, %v6030
    %v6607 = vpack.c.b16 %v6039, %v6031
    %v6608 = vpack.c.b16 %v6040, %v6032
    %v6609 = vpack.c.b16 %v6049, %v6041
    %v6610 = vpack.c.b16 %v6050, %v6042
    %v6611 = vpack.c.b16 %v6051, %v6043
    %v6612 = vpack.c.b16 %v6052, %v6044
    %v6613 = vpack.c.b16 %v6053, %v6045
    %v6614 = vpack.c.b16 %v6054, %v6046
    %v6615 = vpack.c.b16 %v6055, %v6047
    %v6616 = vpack.c.b16 %v6056, %v6048
    %v6617 = vpack.c.b16 %v6065, %v6057
    %v6618 = vpack.c.b16 %v6066, %v6058
    %v6619 = vpack.c.b16 %v6067, %v6059
    %v6620 = vpack.c.b16 %v6068, %v6060
    %v6621 = vpack.c.b16 %v6069, %v6061
    %v6622 = vpack.c.b16 %v6070, %v6062
    %v6623 = vpack.c.b16 %v6071, %v6063
    %v6624 = vpack.c.b16 %v6072, %v6064
    %v6625 = vpack.c.b16 %v6081, %v6073
    %v6626 = vpack.c.b16 %v6082, %v6074
    %v6627 = vpack.c.b16 %v6083, %v6075
    %v6628 = vpack.c.b16 %v6084, %v6076
    %v6629 = vpack.c.b16 %v6085, %v6077
    %v6630 = vpack.c.b16 %v6086, %v6078
    %v6631 = vpack.c.b16 %v6087, %v6079
    %v6632 = vpack.c.b16 %v6088, %v6080
    %v6633 = vpack.c.b16 %v6097, %v6089
    %v6634 = vpack.c.b16 %v6098, %v6090
    %v6635 = vpack.c.b16 %v6099, %v6091
    %v6636 = vpack.c.b16 %v6100, %v6092
    %v6637 = vpack.c.b16 %v6101, %v6093
    %v6638 = vpack.c.b16 %v6102, %v6094
    %v6639 = vpack.c.b16 %v6103, %v6095
    %v6640 = vpack.c.b16 %v6104, %v6096
    %v6641 = vpack.c.b16 %v6113, %v6105
    %v6642 = vpack.c.b16 %v6114, %v6106
    %v6643 = vpack.c.b16 %v6115, %v6107
    %v6644 = vpack.c.b16 %v6116, %v6108
    %v6645 = vpack.c.b16 %v6117, %v6109
    %v6646 = vpack.c.b16 %v6118, %v6110
    %v6647 = vpack.c.b16 %v6119, %v6111
    %v6648 = vpack.c.b16 %v6120, %v6112
    %v6649 = vpack.c.b16 %v6129, %v6121
    %v6650 = vpack.c.b16 %v6130, %v6122
    %v6651 = vpack.c.b16 %v6131, %v6123
    %v6652 = vpack.c.b16 %v6132, %v6124
    %v6653 = vpack.c.b16 %v6133, %v6125
    %v6654 = vpack.c.b16 %v6134, %v6126
    %v6655 = vpack.c.b16 %v6135, %v6127
    %v6656 = vpack.c.b16 %v6136, %v6128
    %v6657 = vpack.c.b16 %v6145, %v6137
    %v6658 = vpack.c.b16 %v6146, %v6138
    %v6659 = vpack.c.b16 %v6147, %v6139
    %v6660 = vpack.c.b16 %v6148, %v6140
    %v6661 = vpack.c.b16 %v6149, %v6141
    %v6662 = vpack.c.b16 %v6150, %v6142
    %v6663 = vpack.c.b16 %v6151, %v6143
    %v6664 = vpack.c.b16 %v6152, %v6144
    %7177 = vmatprep.subr.bf16.mxu0 %v6154
    %7178 = vmatpush1.bf16.msra.mxu0 %v6153
    %7179 = vmatprep.subr.bf16.mxu0 %v6162
    %7180 = vmatpush1.bf16.msra.mxu0 %v6161
    %7181 = vmatprep.subr.bf16.mxu0 %v6170
    %7182 = vmatpush1.bf16.msra.mxu0 %v6169
    %7183 = vmatprep.subr.bf16.mxu0 %v6178
    %7184 = vmatpush1.bf16.msra.mxu0 %v6177
    %7185 = vmatprep.subr.bf16.mxu0 %v6186
    %7186 = vmatpush1.bf16.msra.mxu0 %v6185
    %7187 = vmatprep.subr.bf16.mxu0 %v6194
    %7188 = vmatpush1.bf16.msra.mxu0 %v6193
    %7189 = vmatprep.subr.bf16.mxu0 %v6202
    %7190 = vmatpush1.bf16.msra.mxu0 %v6201
    %7191 = vmatprep.subr.bf16.mxu0 %v6210
    %7192 = vmatpush1.bf16.msra.mxu0 %v6209
    %7193 = vmatprep.subr.bf16.mxu0 %v6218
    %7194 = vmatpush1.bf16.msra.mxu0 %v6217
    %7195 = vmatprep.subr.bf16.mxu0 %v6226
    %7196 = vmatpush1.bf16.msra.mxu0 %v6225
    %7197 = vmatprep.subr.bf16.mxu0 %v6234
    %7198 = vmatpush1.bf16.msra.mxu0 %v6233
    %7199 = vmatprep.subr.bf16.mxu0 %v6242
    %7200 = vmatpush1.bf16.msra.mxu0 %v6241
    %7201 = vmatprep.subr.bf16.mxu0 %v6250
    %7202 = vmatpush1.bf16.msra.mxu0 %v6249
    %7203 = vmatprep.subr.bf16.mxu0 %v6258
    %7204 = vmatpush1.bf16.msra.mxu0 %v6257
    %7205 = vmatprep.subr.bf16.mxu0 %v6266
    %7206 = vmatpush1.bf16.msra.mxu0 %v6265
    %7207 = vmatprep.subr.bf16.mxu0 %v6274
    %7208 = vmatpush1.bf16.msra.mxu0 %v6273
    %7209 = vmatprep.mubr.bf16.mxu0 %v162
    %7210 = vmatmul.mubr.bf16.gmra.mrb[0].mxu0 %v161
    %v7211 = vpop.f32.mrb[0].mxu0
    %v7212 = vadd.f32 %v3989, %v7211
    %v7213 = vpop.f32.mrb[0].mxu0
    %v7214 = vadd.f32 %v3991, %v7213
    %v7215 = vpop.f32.mrb[0].mxu0
    %v7216 = vadd.f32 %v3993, %v7215
    %v7217 = vpop.f32.mrb[0].mxu0
    %v7218 = vadd.f32 %v3995, %v7217
    %7219 = vmatprep.mubr.bf16.mxu0 %v170
    %7220 = vmatmul.mubr.bf16.gmra.mrb[0].mxu0 %v169
    %v7221 = vpop.f32.mrb[0].mxu0
    %v7222 = vadd.f32 %v3999, %v7221
    %v7223 = vpop.f32.mrb[0].mxu0
    %v7224 = vadd.f32 %v4001, %v7223
    %v7225 = vpop.f32.mrb[0].mxu0
    %v7226 = vpop.f32.mrb[0].mxu0
    %7227 = vdwg.mxu0
    %7228 = vmatprep.subr.bf16.mxu0 %v6282
    %7229 = vmatpush1.bf16.msra.mxu0 %v6281
    %7230 = vmatprep.subr.bf16.mxu0 %v6290
    %7231 = vmatpush1.bf16.msra.mxu0 %v6289
    %7232 = vmatprep.subr.bf16.mxu0 %v6298
    %7233 = vmatpush1.bf16.msra.mxu0 %v6297
    %7234 = vmatprep.subr.bf16.mxu0 %v6306
    %7235 = vmatpush1.bf16.msra.mxu0 %v6305
    %7236 = vmatprep.subr.bf16.mxu0 %v6314
    %7237 = vmatpush1.bf16.msra.mxu0 %v6313
    %7238 = vmatprep.subr.bf16.mxu0 %v6322
    %7239 = vmatpush1.bf16.msra.mxu0 %v6321
    %7240 = vmatprep.subr.bf16.mxu0 %v6330
    %7241 = vmatpush1.bf16.msra.mxu0 %v6329
    %7242 = vmatprep.subr.bf16.mxu0 %v6338
    %7243 = vmatpush1.bf16.msra.mxu0 %v6337
    %7244 = vmatprep.subr.bf16.mxu0 %v6346
    %7245 = vmatpush1.bf16.msra.mxu0 %v6345
    %7246 = vmatprep.subr.bf16.mxu0 %v6354
    %7247 = vmatpush1.bf16.msra.mxu0 %v6353
    %7248 = vmatprep.subr.bf16.mxu0 %v6362
    %7249 = vmatpush1.bf16.msra.mxu0 %v6361
    %7250 = vmatprep.subr.bf16.mxu0 %v6370
    %7251 = vmatpush1.bf16.msra.mxu0 %v6369
    %7252 = vmatprep.subr.bf16.mxu0 %v6378
    %7253 = vmatpush1.bf16.msra.mxu0 %v6377
    %7254 = vmatprep.subr.bf16.mxu0 %v6386
    %7255 = vmatpush1.bf16.msra.mxu0 %v6385
    %7256 = vmatprep.subr.bf16.mxu0 %v6394
    %7257 = vmatpush1.bf16.msra.mxu0 %v6393
    %7258 = vmatprep.subr.bf16.mxu0 %v6402
    %7259 = vmatpush1.bf16.msra.mxu0 %v6401
    %7260 = vmatprep.mubr.bf16.mxu0 %v164
    %7261 = vmatmul.mubr.bf16.gmra.mrb[0].mxu0 %v163
    %v7262 = vpop.f32.mrb[0].mxu0
    %v7263 = vadd.f32 %v7212, %v7262
    %v7264 = vpop.f32.mrb[0].mxu0
    %v7265 = vadd.f32 %v7214, %v7264
    %v7266 = vpop.f32.mrb[0].mxu0
    %v7267 = vadd.f32 %v7216, %v7266
    %v7268 = vpop.f32.mrb[0].mxu0
    %v7269 = vadd.f32 %v7218, %v7268
    %7270 = vmatprep.mubr.bf16.mxu0 %v172
    %7271 = vmatmul.mubr.bf16.gmra.mrb[0].mxu0 %v171
    %v7272 = vpop.f32.mrb[0].mxu0
    %v7273 = vadd.f32 %v7222, %v7272
    %v7274 = vpop.f32.mrb[0].mxu0
    %v7275 = vadd.f32 %v7224, %v7274
    %v7276 = vpop.f32.mrb[0].mxu0
    %v7277 = vpop.f32.mrb[0].mxu0
    %7278 = vdwg.mxu0
    %7279 = vmatprep.subr.bf16.mxu0 %v6410
    %7280 = vmatpush1.bf16.msra.mxu0 %v6409
    %7281 = vmatprep.subr.bf16.mxu0 %v6418
    %7282 = vmatpush1.bf16.msra.mxu0 %v6417
    %7283 = vmatprep.subr.bf16.mxu0 %v6426
    %7284 = vmatpush1.bf16.msra.mxu0 %v6425
    %7285 = vmatprep.subr.bf16.mxu0 %v6434
    %7286 = vmatpush1.bf16.msra.mxu0 %v6433
    %7287 = vmatprep.subr.bf16.mxu0 %v6442
    %7288 = vmatpush1.bf16.msra.mxu0 %v6441
    %7289 = vmatprep.subr.bf16.mxu0 %v6450
    %7290 = vmatpush1.bf16.msra.mxu0 %v6449
    %7291 = vmatprep.subr.bf16.mxu0 %v6458
    %7292 = vmatpush1.bf16.msra.mxu0 %v6457
    %7293 = vmatprep.subr.bf16.mxu0 %v6466
    %7294 = vmatpush1.bf16.msra.mxu0 %v6465
    %7295 = vmatprep.subr.bf16.mxu0 %v6474
    %7296 = vmatpush1.bf16.msra.mxu0 %v6473
    %7297 = vmatprep.subr.bf16.mxu0 %v6482
    %7298 = vmatpush1.bf16.msra.mxu0 %v6481
    %7299 = vmatprep.subr.bf16.mxu0 %v6490
    %7300 = vmatpush1.bf16.msra.mxu0 %v6489
    %7301 = vmatprep.subr.bf16.mxu0 %v6498
    %7302 = vmatpush1.bf16.msra.mxu0 %v6497
    %7303 = vmatprep.subr.bf16.mxu0 %v6506
    %7304 = vmatpush1.bf16.msra.mxu0 %v6505
    %7305 = vmatprep.subr.bf16.mxu0 %v6514
    %7306 = vmatpush1.bf16.msra.mxu0 %v6513
    %7307 = vmatprep.subr.bf16.mxu0 %v6522
    %7308 = vmatpush1.bf16.msra.mxu0 %v6521
    %7309 = vmatprep.subr.bf16.mxu0 %v6530
    %7310 = vmatpush1.bf16.msra.mxu0 %v6529
    %7311 = vmatprep.mubr.bf16.mxu0 %v166
    %7312 = vmatmul.mubr.bf16.gmra.mrb[0].mxu0 %v165
    %v7313 = vpop.f32.mrb[0].mxu0
    %v7314 = vadd.f32 %v7263, %v7313
    %v7315 = vpop.f32.mrb[0].mxu0
    %v7316 = vadd.f32 %v7265, %v7315
    %v7317 = vpop.f32.mrb[0].mxu0
    %v7318 = vadd.f32 %v7267, %v7317
    %v7319 = vpop.f32.mrb[0].mxu0
    %v7320 = vadd.f32 %v7269, %v7319
    %7321 = vmatprep.mubr.bf16.mxu0 %v174
    %7322 = vmatmul.mubr.bf16.gmra.mrb[0].mxu0 %v173
    %v7323 = vpop.f32.mrb[0].mxu0
    %v7324 = vadd.f32 %v7273, %v7323
    %v7325 = vpop.f32.mrb[0].mxu0
    %v7326 = vadd.f32 %v7275, %v7325
    %v7327 = vpop.f32.mrb[0].mxu0
    %v7328 = vpop.f32.mrb[0].mxu0
    %7329 = vdwg.mxu0
    %7330 = vmatprep.subr.bf16.mxu0 %v6538
    %7331 = vmatpush1.bf16.msra.mxu0 %v6537
    %7332 = vmatprep.subr.bf16.mxu0 %v6546
    %7333 = vmatpush1.bf16.msra.mxu0 %v6545
    %7334 = vmatprep.subr.bf16.mxu0 %v6554
    %7335 = vmatpush1.bf16.msra.mxu0 %v6553
    %7336 = vmatprep.subr.bf16.mxu0 %v6562
    %7337 = vmatpush1.bf16.msra.mxu0 %v6561
    %7338 = vmatprep.subr.bf16.mxu0 %v6570
    %7339 = vmatpush1.bf16.msra.mxu0 %v6569
    %7340 = vmatprep.subr.bf16.mxu0 %v6578
    %7341 = vmatpush1.bf16.msra.mxu0 %v6577
    %7342 = vmatprep.subr.bf16.mxu0 %v6586
    %7343 = vmatpush1.bf16.msra.mxu0 %v6585
    %7344 = vmatprep.subr.bf16.mxu0 %v6594
    %7345 = vmatpush1.bf16.msra.mxu0 %v6593
    %7346 = vmatprep.subr.bf16.mxu0 %v6602
    %7347 = vmatpush1.bf16.msra.mxu0 %v6601
    %7348 = vmatprep.subr.bf16.mxu0 %v6610
    %7349 = vmatpush1.bf16.msra.mxu0 %v6609
    %7350 = vmatprep.subr.bf16.mxu0 %v6618
    %7351 = vmatpush1.bf16.msra.mxu0 %v6617
    %7352 = vmatprep.subr.bf16.mxu0 %v6626
    %7353 = vmatpush1.bf16.msra.mxu0 %v6625
    %7354 = vmatprep.subr.bf16.mxu0 %v6634
    %7355 = vmatpush1.bf16.msra.mxu0 %v6633
    %7356 = vmatprep.subr.bf16.mxu0 %v6642
    %7357 = vmatpush1.bf16.msra.mxu0 %v6641
    %7358 = vmatprep.subr.bf16.mxu0 %v6650
    %7359 = vmatpush1.bf16.msra.mxu0 %v6649
    %7360 = vmatprep.subr.bf16.mxu0 %v6658
    %7361 = vmatpush1.bf16.msra.mxu0 %v6657
    %7362 = vmatprep.mubr.bf16.mxu0 %v168
    %7363 = vmatmul.mubr.bf16.gmra.mrb[0].mxu0 %v167
    %v7364 = vpop.f32.mrb[0].mxu0
    %v7365 = vadd.f32 %v7314, %v7364
    %v7366 = vpop.f32.mrb[0].mxu0
    %v7367 = vadd.f32 %v7316, %v7366
    %v7368 = vpop.f32.mrb[0].mxu0
    %v7369 = vadd.f32 %v7318, %v7368
    %v7370 = vpop.f32.mrb[0].mxu0
    %v7371 = vadd.f32 %v7320, %v7370
    %7372 = vmatprep.mubr.bf16.mxu0 %v176
    %7373 = vmatmul.mubr.bf16.gmra.mrb[0].mxu0 %v175
    %v7374 = vpop.f32.mrb[0].mxu0
    %v7375 = vadd.f32 %v7324, %v7374
    %v7376 = vpop.f32.mrb[0].mxu0
    %v7377 = vadd.f32 %v7326, %v7376
    %v7378 = vpop.f32.mrb[0].mxu0
    %v7379 = vpop.f32.mrb[0].mxu0
    %7380 = vdwg.mxu0
    %7381 = vmatprep.subr.bf16.mxu0 %v6156
    %7382 = vmatpush1.bf16.msra.mxu0 %v6155
    %7383 = vmatprep.subr.bf16.mxu0 %v6164
    %7384 = vmatpush1.bf16.msra.mxu0 %v6163
    %7385 = vmatprep.subr.bf16.mxu0 %v6172
    %7386 = vmatpush1.bf16.msra.mxu0 %v6171
    %7387 = vmatprep.subr.bf16.mxu0 %v6180
    %7388 = vmatpush1.bf16.msra.mxu0 %v6179
    %7389 = vmatprep.subr.bf16.mxu0 %v6188
    %7390 = vmatpush1.bf16.msra.mxu0 %v6187
    %7391 = vmatprep.subr.bf16.mxu0 %v6196
    %7392 = vmatpush1.bf16.msra.mxu0 %v6195
    %7393 = vmatprep.subr.bf16.mxu0 %v6204
    %7394 = vmatpush1.bf16.msra.mxu0 %v6203
    %7395 = vmatprep.subr.bf16.mxu0 %v6212
    %7396 = vmatpush1.bf16.msra.mxu0 %v6211
    %7397 = vmatprep.subr.bf16.mxu0 %v6220
    %7398 = vmatpush1.bf16.msra.mxu0 %v6219
    %7399 = vmatprep.subr.bf16.mxu0 %v6228
    %7400 = vmatpush1.bf16.msra.mxu0 %v6227
    %7401 = vmatprep.subr.bf16.mxu0 %v6236
    %7402 = vmatpush1.bf16.msra.mxu0 %v6235
    %7403 = vmatprep.subr.bf16.mxu0 %v6244
    %7404 = vmatpush1.bf16.msra.mxu0 %v6243
    %7405 = vmatprep.subr.bf16.mxu0 %v6252
    %7406 = vmatpush1.bf16.msra.mxu0 %v6251
    %7407 = vmatprep.subr.bf16.mxu0 %v6260
    %7408 = vmatpush1.bf16.msra.mxu0 %v6259
    %7409 = vmatprep.subr.bf16.mxu0 %v6268
    %7410 = vmatpush1.bf16.msra.mxu0 %v6267
    %7411 = vmatprep.subr.bf16.mxu0 %v6276
    %7412 = vmatpush1.bf16.msra.mxu0 %v6275
    %7413 = vmatprep.mubr.bf16.mxu0 %v162
    %7414 = vmatmul.mubr.bf16.gmra.mrb[0].mxu0 %v161
    %v7415 = vpop.f32.mrb[0].mxu0
    %v7416 = vadd.f32 %v4193, %v7415
    %v7417 = vpop.f32.mrb[0].mxu0
    %v7418 = vadd.f32 %v4195, %v7417
    %v7419 = vpop.f32.mrb[0].mxu0
    %v7420 = vadd.f32 %v4197, %v7419
    %v7421 = vpop.f32.mrb[0].mxu0
    %v7422 = vadd.f32 %v4199, %v7421
    %7423 = vmatprep.mubr.bf16.mxu0 %v170
    %7424 = vmatmul.mubr.bf16.gmra.mrb[0].mxu0 %v169
    %v7425 = vpop.f32.mrb[0].mxu0
    %v7426 = vadd.f32 %v4203, %v7425
    %v7427 = vpop.f32.mrb[0].mxu0
    %v7428 = vadd.f32 %v4205, %v7427
    %v7429 = vpop.f32.mrb[0].mxu0
    %v7430 = vpop.f32.mrb[0].mxu0
    %7431 = vdwg.mxu0
    %7432 = vmatprep.subr.bf16.mxu0 %v6284
    %7433 = vmatpush1.bf16.msra.mxu0 %v6283
    %7434 = vmatprep.subr.bf16.mxu0 %v6292
    %7435 = vmatpush1.bf16.msra.mxu0 %v6291
    %7436 = vmatprep.subr.bf16.mxu0 %v6300
    %7437 = vmatpush1.bf16.msra.mxu0 %v6299
    %7438 = vmatprep.subr.bf16.mxu0 %v6308
    %7439 = vmatpush1.bf16.msra.mxu0 %v6307
    %7440 = vmatprep.subr.bf16.mxu0 %v6316
    %7441 = vmatpush1.bf16.msra.mxu0 %v6315
    %7442 = vmatprep.subr.bf16.mxu0 %v6324
    %7443 = vmatpush1.bf16.msra.mxu0 %v6323
    %7444 = vmatprep.subr.bf16.mxu0 %v6332
    %7445 = vmatpush1.bf16.msra.mxu0 %v6331
    %7446 = vmatprep.subr.bf16.mxu0 %v6340
    %7447 = vmatpush1.bf16.msra.mxu0 %v6339
    %7448 = vmatprep.subr.bf16.mxu0 %v6348
    %7449 = vmatpush1.bf16.msra.mxu0 %v6347
    %7450 = vmatprep.subr.bf16.mxu0 %v6356
    %7451 = vmatpush1.bf16.msra.mxu0 %v6355
    %7452 = vmatprep.subr.bf16.mxu0 %v6364
    %7453 = vmatpush1.bf16.msra.mxu0 %v6363
    %7454 = vmatprep.subr.bf16.mxu0 %v6372
    %7455 = vmatpush1.bf16.msra.mxu0 %v6371
    %7456 = vmatprep.subr.bf16.mxu0 %v6380
    %7457 = vmatpush1.bf16.msra.mxu0 %v6379
    %7458 = vmatprep.subr.bf16.mxu0 %v6388
    %7459 = vmatpush1.bf16.msra.mxu0 %v6387
    %7460 = vmatprep.subr.bf16.mxu0 %v6396
    %7461 = vmatpush1.bf16.msra.mxu0 %v6395
    %7462 = vmatprep.subr.bf16.mxu0 %v6404
    %7463 = vmatpush1.bf16.msra.mxu0 %v6403
    %7464 = vmatprep.mubr.bf16.mxu0 %v164
    %7465 = vmatmul.mubr.bf16.gmra.mrb[0].mxu0 %v163
    %v7466 = vpop.f32.mrb[0].mxu0
    %v7467 = vadd.f32 %v7416, %v7466
    %v7468 = vpop.f32.mrb[0].mxu0
    %v7469 = vadd.f32 %v7418, %v7468
    %v7470 = vpop.f32.mrb[0].mxu0
    %v7471 = vadd.f32 %v7420, %v7470
    %v7472 = vpop.f32.mrb[0].mxu0
    %v7473 = vadd.f32 %v7422, %v7472
    %7474 = vmatprep.mubr.bf16.mxu0 %v172
    %7475 = vmatmul.mubr.bf16.gmra.mrb[0].mxu0 %v171
    %v7476 = vpop.f32.mrb[0].mxu0
    %v7477 = vadd.f32 %v7426, %v7476
    %v7478 = vpop.f32.mrb[0].mxu0
    %v7479 = vadd.f32 %v7428, %v7478
    %v7480 = vpop.f32.mrb[0].mxu0
    %v7481 = vpop.f32.mrb[0].mxu0
    %7482 = vdwg.mxu0
    %7483 = vmatprep.subr.bf16.mxu0 %v6412
    %7484 = vmatpush1.bf16.msra.mxu0 %v6411
    %7485 = vmatprep.subr.bf16.mxu0 %v6420
    %7486 = vmatpush1.bf16.msra.mxu0 %v6419
    %7487 = vmatprep.subr.bf16.mxu0 %v6428
    %7488 = vmatpush1.bf16.msra.mxu0 %v6427
    %7489 = vmatprep.subr.bf16.mxu0 %v6436
    %7490 = vmatpush1.bf16.msra.mxu0 %v6435
    %7491 = vmatprep.subr.bf16.mxu0 %v6444
    %7492 = vmatpush1.bf16.msra.mxu0 %v6443
    %7493 = vmatprep.subr.bf16.mxu0 %v6452
    %7494 = vmatpush1.bf16.msra.mxu0 %v6451
    %7495 = vmatprep.subr.bf16.mxu0 %v6460
    %7496 = vmatpush1.bf16.msra.mxu0 %v6459
    %7497 = vmatprep.subr.bf16.mxu0 %v6468
    %7498 = vmatpush1.bf16.msra.mxu0 %v6467
    %7499 = vmatprep.subr.bf16.mxu0 %v6476
    %7500 = vmatpush1.bf16.msra.mxu0 %v6475
    %7501 = vmatprep.subr.bf16.mxu0 %v6484
    %7502 = vmatpush1.bf16.msra.mxu0 %v6483
    %7503 = vmatprep.subr.bf16.mxu0 %v6492
    %7504 = vmatpush1.bf16.msra.mxu0 %v6491
    %7505 = vmatprep.subr.bf16.mxu0 %v6500
    %7506 = vmatpush1.bf16.msra.mxu0 %v6499
    %7507 = vmatprep.subr.bf16.mxu0 %v6508
    %7508 = vmatpush1.bf16.msra.mxu0 %v6507
    %7509 = vmatprep.subr.bf16.mxu0 %v6516
    %7510 = vmatpush1.bf16.msra.mxu0 %v6515
    %7511 = vmatprep.subr.bf16.mxu0 %v6524
    %7512 = vmatpush1.bf16.msra.mxu0 %v6523
    %7513 = vmatprep.subr.bf16.mxu0 %v6532
    %7514 = vmatpush1.bf16.msra.mxu0 %v6531
    %7515 = vmatprep.mubr.bf16.mxu0 %v166
    %7516 = vmatmul.mubr.bf16.gmra.mrb[0].mxu0 %v165
    %v7517 = vpop.f32.mrb[0].mxu0
    %v7518 = vadd.f32 %v7467, %v7517
    %v7519 = vpop.f32.mrb[0].mxu0
    %v7520 = vadd.f32 %v7469, %v7519
    %v7521 = vpop.f32.mrb[0].mxu0
    %v7522 = vadd.f32 %v7471, %v7521
    %v7523 = vpop.f32.mrb[0].mxu0
    %v7524 = vadd.f32 %v7473, %v7523
    %7525 = vmatprep.mubr.bf16.mxu0 %v174
    %7526 = vmatmul.mubr.bf16.gmra.mrb[0].mxu0 %v173
    %v7527 = vpop.f32.mrb[0].mxu0
    %v7528 = vadd.f32 %v7477, %v7527
    %v7529 = vpop.f32.mrb[0].mxu0
    %v7530 = vadd.f32 %v7479, %v7529
    %v7531 = vpop.f32.mrb[0].mxu0
    %v7532 = vpop.f32.mrb[0].mxu0
    %7533 = vdwg.mxu0
    %7534 = vmatprep.subr.bf16.mxu0 %v6540
    %7535 = vmatpush1.bf16.msra.mxu0 %v6539
    %7536 = vmatprep.subr.bf16.mxu0 %v6548
    %7537 = vmatpush1.bf16.msra.mxu0 %v6547
    %7538 = vmatprep.subr.bf16.mxu0 %v6556
    %7539 = vmatpush1.bf16.msra.mxu0 %v6555
    %7540 = vmatprep.subr.bf16.mxu0 %v6564
    %7541 = vmatpush1.bf16.msra.mxu0 %v6563
    %7542 = vmatprep.subr.bf16.mxu0 %v6572
    %7543 = vmatpush1.bf16.msra.mxu0 %v6571
    %7544 = vmatprep.subr.bf16.mxu0 %v6580
    %7545 = vmatpush1.bf16.msra.mxu0 %v6579
    %7546 = vmatprep.subr.bf16.mxu0 %v6588
    %7547 = vmatpush1.bf16.msra.mxu0 %v6587
    %7548 = vmatprep.subr.bf16.mxu0 %v6596
    %7549 = vmatpush1.bf16.msra.mxu0 %v6595
    %7550 = vmatprep.subr.bf16.mxu0 %v6604
    %7551 = vmatpush1.bf16.msra.mxu0 %v6603
    %7552 = vmatprep.subr.bf16.mxu0 %v6612
    %7553 = vmatpush1.bf16.msra.mxu0 %v6611
    %7554 = vmatprep.subr.bf16.mxu0 %v6620
    %7555 = vmatpush1.bf16.msra.mxu0 %v6619
    %7556 = vmatprep.subr.bf16.mxu0 %v6628
    %7557 = vmatpush1.bf16.msra.mxu0 %v6627
    %7558 = vmatprep.subr.bf16.mxu0 %v6636
    %7559 = vmatpush1.bf16.msra.mxu0 %v6635
    %7560 = vmatprep.subr.bf16.mxu0 %v6644
    %7561 = vmatpush1.bf16.msra.mxu0 %v6643
    %7562 = vmatprep.subr.bf16.mxu0 %v6652
    %7563 = vmatpush1.bf16.msra.mxu0 %v6651
    %7564 = vmatprep.subr.bf16.mxu0 %v6660
    %7565 = vmatpush1.bf16.msra.mxu0 %v6659
    %7566 = vmatprep.mubr.bf16.mxu0 %v168
    %7567 = vmatmul.mubr.bf16.gmra.mrb[0].mxu0 %v167
    %v7568 = vpop.f32.mrb[0].mxu0
    %v7569 = vadd.f32 %v7518, %v7568
    %v7570 = vpop.f32.mrb[0].mxu0
    %v7571 = vadd.f32 %v7520, %v7570
    %v7572 = vpop.f32.mrb[0].mxu0
    %v7573 = vadd.f32 %v7522, %v7572
    %v7574 = vpop.f32.mrb[0].mxu0
    %v7575 = vadd.f32 %v7524, %v7574
    %7576 = vmatprep.mubr.bf16.mxu0 %v176
    %7577 = vmatmul.mubr.bf16.gmra.mrb[0].mxu0 %v175
    %v7578 = vpop.f32.mrb[0].mxu0
    %v7579 = vadd.f32 %v7528, %v7578
    %v7580 = vpop.f32.mrb[0].mxu0
    %v7581 = vadd.f32 %v7530, %v7580
    %v7582 = vpop.f32.mrb[0].mxu0
    %v7583 = vpop.f32.mrb[0].mxu0
    %7584 = vdwg.mxu0
    %7585 = vmatprep.subr.bf16.mxu0 %v6158
    %7586 = vmatpush1.bf16.msra.mxu0 %v6157
    %7587 = vmatprep.subr.bf16.mxu0 %v6166
    %7588 = vmatpush1.bf16.msra.mxu0 %v6165
    %7589 = vmatprep.subr.bf16.mxu0 %v6174
    %7590 = vmatpush1.bf16.msra.mxu0 %v6173
    %7591 = vmatprep.subr.bf16.mxu0 %v6182
    %7592 = vmatpush1.bf16.msra.mxu0 %v6181
    %7593 = vmatprep.subr.bf16.mxu0 %v6190
    %7594 = vmatpush1.bf16.msra.mxu0 %v6189
    %7595 = vmatprep.subr.bf16.mxu0 %v6198
    %7596 = vmatpush1.bf16.msra.mxu0 %v6197
    %7597 = vmatprep.subr.bf16.mxu0 %v6206
    %7598 = vmatpush1.bf16.msra.mxu0 %v6205
    %7599 = vmatprep.subr.bf16.mxu0 %v6214
    %7600 = vmatpush1.bf16.msra.mxu0 %v6213
    %7601 = vmatprep.subr.bf16.mxu0 %v6222
    %7602 = vmatpush1.bf16.msra.mxu0 %v6221
    %7603 = vmatprep.subr.bf16.mxu0 %v6230
    %7604 = vmatpush1.bf16.msra.mxu0 %v6229
    %7605 = vmatprep.subr.bf16.mxu0 %v6238
    %7606 = vmatpush1.bf16.msra.mxu0 %v6237
    %7607 = vmatprep.subr.bf16.mxu0 %v6246
    %7608 = vmatpush1.bf16.msra.mxu0 %v6245
    %7609 = vmatprep.subr.bf16.mxu0 %v6254
    %7610 = vmatpush1.bf16.msra.mxu0 %v6253
    %7611 = vmatprep.subr.bf16.mxu0 %v6262
    %7612 = vmatpush1.bf16.msra.mxu0 %v6261
    %7613 = vmatprep.subr.bf16.mxu0 %v6270
    %7614 = vmatpush1.bf16.msra.mxu0 %v6269
    %7615 = vmatprep.subr.bf16.mxu0 %v6278
    %7616 = vmatpush1.bf16.msra.mxu0 %v6277
    %7617 = vmatprep.mubr.bf16.mxu0 %v162
    %7618 = vmatmul.mubr.bf16.gmra.mrb[0].mxu0 %v161
    %v7619 = vpop.f32.mrb[0].mxu0
    %v7620 = vadd.f32 %v4397, %v7619
    %v7621 = vpop.f32.mrb[0].mxu0
    %v7622 = vadd.f32 %v4399, %v7621
    %v7623 = vpop.f32.mrb[0].mxu0
    %v7624 = vadd.f32 %v4401, %v7623
    %v7625 = vpop.f32.mrb[0].mxu0
    %v7626 = vadd.f32 %v4403, %v7625
    %7627 = vmatprep.mubr.bf16.mxu0 %v170
    %7628 = vmatmul.mubr.bf16.gmra.mrb[0].mxu0 %v169
    %v7629 = vpop.f32.mrb[0].mxu0
    %v7630 = vadd.f32 %v4407, %v7629
    %v7631 = vpop.f32.mrb[0].mxu0
    %v7632 = vadd.f32 %v4409, %v7631
    %v7633 = vpop.f32.mrb[0].mxu0
    %v7634 = vpop.f32.mrb[0].mxu0
    %7635 = vdwg.mxu0
    %7636 = vmatprep.subr.bf16.mxu0 %v6286
    %7637 = vmatpush1.bf16.msra.mxu0 %v6285
    %7638 = vmatprep.subr.bf16.mxu0 %v6294
    %7639 = vmatpush1.bf16.msra.mxu0 %v6293
    %7640 = vmatprep.subr.bf16.mxu0 %v6302
    %7641 = vmatpush1.bf16.msra.mxu0 %v6301
    %7642 = vmatprep.subr.bf16.mxu0 %v6310
    %7643 = vmatpush1.bf16.msra.mxu0 %v6309
    %7644 = vmatprep.subr.bf16.mxu0 %v6318
    %7645 = vmatpush1.bf16.msra.mxu0 %v6317
    %7646 = vmatprep.subr.bf16.mxu0 %v6326
    %7647 = vmatpush1.bf16.msra.mxu0 %v6325
    %7648 = vmatprep.subr.bf16.mxu0 %v6334
    %7649 = vmatpush1.bf16.msra.mxu0 %v6333
    %7650 = vmatprep.subr.bf16.mxu0 %v6342
    %7651 = vmatpush1.bf16.msra.mxu0 %v6341
    %7652 = vmatprep.subr.bf16.mxu0 %v6350
    %7653 = vmatpush1.bf16.msra.mxu0 %v6349
    %7654 = vmatprep.subr.bf16.mxu0 %v6358
    %7655 = vmatpush1.bf16.msra.mxu0 %v6357
    %7656 = vmatprep.subr.bf16.mxu0 %v6366
    %7657 = vmatpush1.bf16.msra.mxu0 %v6365
    %7658 = vmatprep.subr.bf16.mxu0 %v6374
    %7659 = vmatpush1.bf16.msra.mxu0 %v6373
    %7660 = vmatprep.subr.bf16.mxu0 %v6382
    %7661 = vmatpush1.bf16.msra.mxu0 %v6381
    %7662 = vmatprep.subr.bf16.mxu0 %v6390
    %7663 = vmatpush1.bf16.msra.mxu0 %v6389
    %7664 = vmatprep.subr.bf16.mxu0 %v6398
    %7665 = vmatpush1.bf16.msra.mxu0 %v6397
    %7666 = vmatprep.subr.bf16.mxu0 %v6406
    %7667 = vmatpush1.bf16.msra.mxu0 %v6405
    %7668 = vmatprep.mubr.bf16.mxu0 %v164
    %7669 = vmatmul.mubr.bf16.gmra.mrb[0].mxu0 %v163
    %v7670 = vpop.f32.mrb[0].mxu0
    %v7671 = vadd.f32 %v7620, %v7670
    %v7672 = vpop.f32.mrb[0].mxu0
    %v7673 = vadd.f32 %v7622, %v7672
    %v7674 = vpop.f32.mrb[0].mxu0
    %v7675 = vadd.f32 %v7624, %v7674
    %v7676 = vpop.f32.mrb[0].mxu0
    %v7677 = vadd.f32 %v7626, %v7676
    %7678 = vmatprep.mubr.bf16.mxu0 %v172
    %7679 = vmatmul.mubr.bf16.gmra.mrb[0].mxu0 %v171
    %v7680 = vpop.f32.mrb[0].mxu0
    %v7681 = vadd.f32 %v7630, %v7680
    %v7682 = vpop.f32.mrb[0].mxu0
    %v7683 = vadd.f32 %v7632, %v7682
    %v7684 = vpop.f32.mrb[0].mxu0
    %v7685 = vpop.f32.mrb[0].mxu0
    %7686 = vdwg.mxu0
    %7687 = vmatprep.subr.bf16.mxu0 %v6414
    %7688 = vmatpush1.bf16.msra.mxu0 %v6413
    %7689 = vmatprep.subr.bf16.mxu0 %v6422
    %7690 = vmatpush1.bf16.msra.mxu0 %v6421
    %7691 = vmatprep.subr.bf16.mxu0 %v6430
    %7692 = vmatpush1.bf16.msra.mxu0 %v6429
    %7693 = vmatprep.subr.bf16.mxu0 %v6438
    %7694 = vmatpush1.bf16.msra.mxu0 %v6437
    %7695 = vmatprep.subr.bf16.mxu0 %v6446
    %7696 = vmatpush1.bf16.msra.mxu0 %v6445
    %7697 = vmatprep.subr.bf16.mxu0 %v6454
    %7698 = vmatpush1.bf16.msra.mxu0 %v6453
    %7699 = vmatprep.subr.bf16.mxu0 %v6462
    %7700 = vmatpush1.bf16.msra.mxu0 %v6461
    %7701 = vmatprep.subr.bf16.mxu0 %v6470
    %7702 = vmatpush1.bf16.msra.mxu0 %v6469
    %7703 = vmatprep.subr.bf16.mxu0 %v6478
    %7704 = vmatpush1.bf16.msra.mxu0 %v6477
    %7705 = vmatprep.subr.bf16.mxu0 %v6486
    %7706 = vmatpush1.bf16.msra.mxu0 %v6485
    %7707 = vmatprep.subr.bf16.mxu0 %v6494
    %7708 = vmatpush1.bf16.msra.mxu0 %v6493
    %7709 = vmatprep.subr.bf16.mxu0 %v6502
    %7710 = vmatpush1.bf16.msra.mxu0 %v6501
    %7711 = vmatprep.subr.bf16.mxu0 %v6510
    %7712 = vmatpush1.bf16.msra.mxu0 %v6509
    %7713 = vmatprep.subr.bf16.mxu0 %v6518
    %7714 = vmatpush1.bf16.msra.mxu0 %v6517
    %7715 = vmatprep.subr.bf16.mxu0 %v6526
    %7716 = vmatpush1.bf16.msra.mxu0 %v6525
    %7717 = vmatprep.subr.bf16.mxu0 %v6534
    %7718 = vmatpush1.bf16.msra.mxu0 %v6533
    %7719 = vmatprep.mubr.bf16.mxu0 %v166
    %7720 = vmatmul.mubr.bf16.gmra.mrb[0].mxu0 %v165
    %v7721 = vpop.f32.mrb[0].mxu0
    %v7722 = vadd.f32 %v7671, %v7721
    %v7723 = vpop.f32.mrb[0].mxu0
    %v7724 = vadd.f32 %v7673, %v7723
    %v7725 = vpop.f32.mrb[0].mxu0
    %v7726 = vadd.f32 %v7675, %v7725
    %v7727 = vpop.f32.mrb[0].mxu0
    %v7728 = vadd.f32 %v7677, %v7727
    %7729 = vmatprep.mubr.bf16.mxu0 %v174
    %7730 = vmatmul.mubr.bf16.gmra.mrb[0].mxu0 %v173
    %v7731 = vpop.f32.mrb[0].mxu0
    %v7732 = vadd.f32 %v7681, %v7731
    %v7733 = vpop.f32.mrb[0].mxu0
    %v7734 = vadd.f32 %v7683, %v7733
    %v7735 = vpop.f32.mrb[0].mxu0
    %v7736 = vpop.f32.mrb[0].mxu0
    %7737 = vdwg.mxu0
    %7738 = vmatprep.subr.bf16.mxu0 %v6542
    %7739 = vmatpush1.bf16.msra.mxu0 %v6541
    %7740 = vmatprep.subr.bf16.mxu0 %v6550
    %7741 = vmatpush1.bf16.msra.mxu0 %v6549
    %7742 = vmatprep.subr.bf16.mxu0 %v6558
    %7743 = vmatpush1.bf16.msra.mxu0 %v6557
    %7744 = vmatprep.subr.bf16.mxu0 %v6566
    %7745 = vmatpush1.bf16.msra.mxu0 %v6565
    %7746 = vmatprep.subr.bf16.mxu0 %v6574
    %7747 = vmatpush1.bf16.msra.mxu0 %v6573
    %7748 = vmatprep.subr.bf16.mxu0 %v6582
    %7749 = vmatpush1.bf16.msra.mxu0 %v6581
    %7750 = vmatprep.subr.bf16.mxu0 %v6590
    %7751 = vmatpush1.bf16.msra.mxu0 %v6589
    %7752 = vmatprep.subr.bf16.mxu0 %v6598
    %7753 = vmatpush1.bf16.msra.mxu0 %v6597
    %7754 = vmatprep.subr.bf16.mxu0 %v6606
    %7755 = vmatpush1.bf16.msra.mxu0 %v6605
    %7756 = vmatprep.subr.bf16.mxu0 %v6614
    %7757 = vmatpush1.bf16.msra.mxu0 %v6613
    %7758 = vmatprep.subr.bf16.mxu0 %v6622
    %7759 = vmatpush1.bf16.msra.mxu0 %v6621
    %7760 = vmatprep.subr.bf16.mxu0 %v6630
    %7761 = vmatpush1.bf16.msra.mxu0 %v6629
    %7762 = vmatprep.subr.bf16.mxu0 %v6638
    %7763 = vmatpush1.bf16.msra.mxu0 %v6637
    %7764 = vmatprep.subr.bf16.mxu0 %v6646
    %7765 = vmatpush1.bf16.msra.mxu0 %v6645
    %7766 = vmatprep.subr.bf16.mxu0 %v6654
    %7767 = vmatpush1.bf16.msra.mxu0 %v6653
    %7768 = vmatprep.subr.bf16.mxu0 %v6662
    %7769 = vmatpush1.bf16.msra.mxu0 %v6661
    %7770 = vmatprep.mubr.bf16.mxu0 %v168
    %7771 = vmatmul.mubr.bf16.gmra.mrb[0].mxu0 %v167
    %v7772 = vpop.f32.mrb[0].mxu0
    %v7773 = vadd.f32 %v7722, %v7772
    %v7774 = vpop.f32.mrb[0].mxu0
    %v7775 = vadd.f32 %v7724, %v7774
    %v7776 = vpop.f32.mrb[0].mxu0
    %v7777 = vadd.f32 %v7726, %v7776
    %v7778 = vpop.f32.mrb[0].mxu0
    %v7779 = vadd.f32 %v7728, %v7778
    %7780 = vmatprep.mubr.bf16.mxu0 %v176
    %7781 = vmatmul.mubr.bf16.gmra.mrb[0].mxu0 %v175
    %v7782 = vpop.f32.mrb[0].mxu0
    %v7783 = vadd.f32 %v7732, %v7782
    %v7784 = vpop.f32.mrb[0].mxu0
    %v7785 = vadd.f32 %v7734, %v7784
    %v7786 = vpop.f32.mrb[0].mxu0
    %v7787 = vpop.f32.mrb[0].mxu0
    %7788 = vdwg.mxu0
    %7789 = vmatprep.subr.bf16.mxu0 %v6160
    %7790 = vmatpush1.bf16.msra.mxu0 %v6159
    %7791 = vmatprep.subr.bf16.mxu0 %v6168
    %7792 = vmatpush1.bf16.msra.mxu0 %v6167
    %7793 = vmatprep.subr.bf16.mxu0 %v6176
    %7794 = vmatpush1.bf16.msra.mxu0 %v6175
    %7795 = vmatprep.subr.bf16.mxu0 %v6184
    %7796 = vmatpush1.bf16.msra.mxu0 %v6183
    %7797 = vmatprep.subr.bf16.mxu0 %v6192
    %7798 = vmatpush1.bf16.msra.mxu0 %v6191
    %7799 = vmatprep.subr.bf16.mxu0 %v6200
    %7800 = vmatpush1.bf16.msra.mxu0 %v6199
    %7801 = vmatprep.subr.bf16.mxu0 %v6208
    %7802 = vmatpush1.bf16.msra.mxu0 %v6207
    %7803 = vmatprep.subr.bf16.mxu0 %v6216
    %7804 = vmatpush1.bf16.msra.mxu0 %v6215
    %7805 = vmatprep.subr.bf16.mxu0 %v6224
    %7806 = vmatpush1.bf16.msra.mxu0 %v6223
    %7807 = vmatprep.subr.bf16.mxu0 %v6232
    %7808 = vmatpush1.bf16.msra.mxu0 %v6231
    %7809 = vmatprep.subr.bf16.mxu0 %v6240
    %7810 = vmatpush1.bf16.msra.mxu0 %v6239
    %7811 = vmatprep.subr.bf16.mxu0 %v6248
    %7812 = vmatpush1.bf16.msra.mxu0 %v6247
    %7813 = vmatprep.subr.bf16.mxu0 %v6256
    %7814 = vmatpush1.bf16.msra.mxu0 %v6255
    %7815 = vmatprep.subr.bf16.mxu0 %v6264
    %7816 = vmatpush1.bf16.msra.mxu0 %v6263
    %7817 = vmatprep.subr.bf16.mxu0 %v6272
    %7818 = vmatpush1.bf16.msra.mxu0 %v6271
    %7819 = vmatprep.subr.bf16.mxu0 %v6280
    %7820 = vmatpush1.bf16.msra.mxu0 %v6279
    %7821 = vmatprep.mubr.bf16.mxu0 %v162
    %7822 = vmatmul.mubr.bf16.gmra.mrb[0].mxu0 %v161
    %v7823 = vpop.f32.mrb[0].mxu0
    %v7824 = vadd.f32 %v4601, %v7823
    %v7825 = vpop.f32.mrb[0].mxu0
    %v7826 = vadd.f32 %v4603, %v7825
    %v7827 = vpop.f32.mrb[0].mxu0
    %v7828 = vadd.f32 %v4605, %v7827
    %v7829 = vpop.f32.mrb[0].mxu0
    %v7830 = vadd.f32 %v4607, %v7829
    %7831 = vmatprep.mubr.bf16.mxu0 %v170
    %7832 = vmatmul.mubr.bf16.gmra.mrb[0].mxu0 %v169
    %v7833 = vpop.f32.mrb[0].mxu0
    %v7834 = vadd.f32 %v4611, %v7833
    %v7835 = vpop.f32.mrb[0].mxu0
    %v7836 = vadd.f32 %v4613, %v7835
    %v7837 = vpop.f32.mrb[0].mxu0
    %v7838 = vpop.f32.mrb[0].mxu0
    %7839 = vdwg.mxu0
    %7840 = vmatprep.subr.bf16.mxu0 %v6288
    %7841 = vmatpush1.bf16.msra.mxu0 %v6287
    %7842 = vmatprep.subr.bf16.mxu0 %v6296
    %7843 = vmatpush1.bf16.msra.mxu0 %v6295
    %7844 = vmatprep.subr.bf16.mxu0 %v6304
    %7845 = vmatpush1.bf16.msra.mxu0 %v6303
    %7846 = vmatprep.subr.bf16.mxu0 %v6312
    %7847 = vmatpush1.bf16.msra.mxu0 %v6311
    %7848 = vmatprep.subr.bf16.mxu0 %v6320
    %7849 = vmatpush1.bf16.msra.mxu0 %v6319
    %7850 = vmatprep.subr.bf16.mxu0 %v6328
    %7851 = vmatpush1.bf16.msra.mxu0 %v6327
    %7852 = vmatprep.subr.bf16.mxu0 %v6336
    %7853 = vmatpush1.bf16.msra.mxu0 %v6335
    %7854 = vmatprep.subr.bf16.mxu0 %v6344
    %7855 = vmatpush1.bf16.msra.mxu0 %v6343
    %7856 = vmatprep.subr.bf16.mxu0 %v6352
    %7857 = vmatpush1.bf16.msra.mxu0 %v6351
    %7858 = vmatprep.subr.bf16.mxu0 %v6360
    %7859 = vmatpush1.bf16.msra.mxu0 %v6359
    %7860 = vmatprep.subr.bf16.mxu0 %v6368
    %7861 = vmatpush1.bf16.msra.mxu0 %v6367
    %7862 = vmatprep.subr.bf16.mxu0 %v6376
    %7863 = vmatpush1.bf16.msra.mxu0 %v6375
    %7864 = vmatprep.subr.bf16.mxu0 %v6384
    %7865 = vmatpush1.bf16.msra.mxu0 %v6383
    %7866 = vmatprep.subr.bf16.mxu0 %v6392
    %7867 = vmatpush1.bf16.msra.mxu0 %v6391
    %7868 = vmatprep.subr.bf16.mxu0 %v6400
    %7869 = vmatpush1.bf16.msra.mxu0 %v6399
    %7870 = vmatprep.subr.bf16.mxu0 %v6408
    %7871 = vmatpush1.bf16.msra.mxu0 %v6407
    %7872 = vmatprep.mubr.bf16.mxu0 %v164
    %7873 = vmatmul.mubr.bf16.gmra.mrb[0].mxu0 %v163
    %v7874 = vpop.f32.mrb[0].mxu0
    %v7875 = vadd.f32 %v7824, %v7874
    %v7876 = vpop.f32.mrb[0].mxu0
    %v7877 = vadd.f32 %v7826, %v7876
    %v7878 = vpop.f32.mrb[0].mxu0
    %v7879 = vadd.f32 %v7828, %v7878
    %v7880 = vpop.f32.mrb[0].mxu0
    %v7881 = vadd.f32 %v7830, %v7880
    %7882 = vmatprep.mubr.bf16.mxu0 %v172
    %7883 = vmatmul.mubr.bf16.gmra.mrb[0].mxu0 %v171
    %v7884 = vpop.f32.mrb[0].mxu0
    %v7885 = vadd.f32 %v7834, %v7884
    %v7886 = vpop.f32.mrb[0].mxu0
    %v7887 = vadd.f32 %v7836, %v7886
    %v7888 = vpop.f32.mrb[0].mxu0
    %v7889 = vpop.f32.mrb[0].mxu0
    %7890 = vdwg.mxu0
    %7891 = vmatprep.subr.bf16.mxu0 %v6416
    %7892 = vmatpush1.bf16.msra.mxu0 %v6415
    %7893 = vmatprep.subr.bf16.mxu0 %v6424
    %7894 = vmatpush1.bf16.msra.mxu0 %v6423
    %7895 = vmatprep.subr.bf16.mxu0 %v6432
    %7896 = vmatpush1.bf16.msra.mxu0 %v6431
    %7897 = vmatprep.subr.bf16.mxu0 %v6440
    %7898 = vmatpush1.bf16.msra.mxu0 %v6439
    %7899 = vmatprep.subr.bf16.mxu0 %v6448
    %7900 = vmatpush1.bf16.msra.mxu0 %v6447
    %7901 = vmatprep.subr.bf16.mxu0 %v6456
    %7902 = vmatpush1.bf16.msra.mxu0 %v6455
    %7903 = vmatprep.subr.bf16.mxu0 %v6464
    %7904 = vmatpush1.bf16.msra.mxu0 %v6463
    %7905 = vmatprep.subr.bf16.mxu0 %v6472
    %7906 = vmatpush1.bf16.msra.mxu0 %v6471
    %7907 = vmatprep.subr.bf16.mxu0 %v6480
    %7908 = vmatpush1.bf16.msra.mxu0 %v6479
    %7909 = vmatprep.subr.bf16.mxu0 %v6488
    %7910 = vmatpush1.bf16.msra.mxu0 %v6487
    %7911 = vmatprep.subr.bf16.mxu0 %v6496
    %7912 = vmatpush1.bf16.msra.mxu0 %v6495
    %7913 = vmatprep.subr.bf16.mxu0 %v6504
    %7914 = vmatpush1.bf16.msra.mxu0 %v6503
    %7915 = vmatprep.subr.bf16.mxu0 %v6512
    %7916 = vmatpush1.bf16.msra.mxu0 %v6511
    %7917 = vmatprep.subr.bf16.mxu0 %v6520
    %7918 = vmatpush1.bf16.msra.mxu0 %v6519
    %7919 = vmatprep.subr.bf16.mxu0 %v6528
    %7920 = vmatpush1.bf16.msra.mxu0 %v6527
    %7921 = vmatprep.subr.bf16.mxu0 %v6536
    %7922 = vmatpush1.bf16.msra.mxu0 %v6535
    %7923 = vmatprep.mubr.bf16.mxu0 %v166
    %7924 = vmatmul.mubr.bf16.gmra.mrb[0].mxu0 %v165
    %v7925 = vpop.f32.mrb[0].mxu0
    %v7926 = vadd.f32 %v7875, %v7925
    %v7927 = vpop.f32.mrb[0].mxu0
    %v7928 = vadd.f32 %v7877, %v7927
    %v7929 = vpop.f32.mrb[0].mxu0
    %v7930 = vadd.f32 %v7879, %v7929
    %v7931 = vpop.f32.mrb[0].mxu0
    %v7932 = vadd.f32 %v7881, %v7931
    %7933 = vmatprep.mubr.bf16.mxu0 %v174
    %7934 = vmatmul.mubr.bf16.gmra.mrb[0].mxu0 %v173
    %v7935 = vpop.f32.mrb[0].mxu0
    %v7936 = vadd.f32 %v7885, %v7935
    %v7937 = vpop.f32.mrb[0].mxu0
    %v7938 = vadd.f32 %v7887, %v7937
    %v7939 = vpop.f32.mrb[0].mxu0
    %v7940 = vpop.f32.mrb[0].mxu0
    %7941 = vdwg.mxu0
    %7942 = vmatprep.subr.bf16.mxu0 %v6544
    %7943 = vmatpush1.bf16.msra.mxu0 %v6543
    %7944 = vmatprep.subr.bf16.mxu0 %v6552
    %7945 = vmatpush1.bf16.msra.mxu0 %v6551
    %7946 = vmatprep.subr.bf16.mxu0 %v6560
    %7947 = vmatpush1.bf16.msra.mxu0 %v6559
    %7948 = vmatprep.subr.bf16.mxu0 %v6568
    %7949 = vmatpush1.bf16.msra.mxu0 %v6567
    %7950 = vmatprep.subr.bf16.mxu0 %v6576
    %7951 = vmatpush1.bf16.msra.mxu0 %v6575
    %7952 = vmatprep.subr.bf16.mxu0 %v6584
    %7953 = vmatpush1.bf16.msra.mxu0 %v6583
    %7954 = vmatprep.subr.bf16.mxu0 %v6592
    %7955 = vmatpush1.bf16.msra.mxu0 %v6591
    %7956 = vmatprep.subr.bf16.mxu0 %v6600
    %7957 = vmatpush1.bf16.msra.mxu0 %v6599
    %7958 = vmatprep.subr.bf16.mxu0 %v6608
    %7959 = vmatpush1.bf16.msra.mxu0 %v6607
    %7960 = vmatprep.subr.bf16.mxu0 %v6616
    %7961 = vmatpush1.bf16.msra.mxu0 %v6615
    %7962 = vmatprep.subr.bf16.mxu0 %v6624
    %7963 = vmatpush1.bf16.msra.mxu0 %v6623
    %7964 = vmatprep.subr.bf16.mxu0 %v6632
    %7965 = vmatpush1.bf16.msra.mxu0 %v6631
    %7966 = vmatprep.subr.bf16.mxu0 %v6640
    %7967 = vmatpush1.bf16.msra.mxu0 %v6639
    %7968 = vmatprep.subr.bf16.mxu0 %v6648
    %7969 = vmatpush1.bf16.msra.mxu0 %v6647
    %7970 = vmatprep.subr.bf16.mxu0 %v6656
    %7971 = vmatpush1.bf16.msra.mxu0 %v6655
    %7972 = vmatprep.subr.bf16.mxu0 %v6664
    %7973 = vmatpush1.bf16.msra.mxu0 %v6663
    %7974 = vmatprep.mubr.bf16.mxu0 %v168
    %7975 = vmatmul.mubr.bf16.gmra.mrb[0].mxu0 %v167
    %v7976 = vpop.f32.mrb[0].mxu0
    %v7977 = vadd.f32 %v7926, %v7976
    %v7978 = vpop.f32.mrb[0].mxu0
    %v7979 = vadd.f32 %v7928, %v7978
    %v7980 = vpop.f32.mrb[0].mxu0
    %v7981 = vadd.f32 %v7930, %v7980
    %v7982 = vpop.f32.mrb[0].mxu0
    %v7983 = vadd.f32 %v7932, %v7982
    %7984 = vmatprep.mubr.bf16.mxu0 %v176
    %7985 = vmatmul.mubr.bf16.gmra.mrb[0].mxu0 %v175
    %v7986 = vpop.f32.mrb[0].mxu0
    %v7987 = vadd.f32 %v7936, %v7986
    %v7988 = vpop.f32.mrb[0].mxu0
    %v7989 = vadd.f32 %v7938, %v7988
    %v7990 = vpop.f32.mrb[0].mxu0
    %v7991 = vpop.f32.mrb[0].mxu0
    %7992 = vdwg.mxu0
    %v7993 = vld [vmem:[#allocation10] sm:$0xff]
    %v7995 = vlaneseq
    %v7996 = vshrl.u32 %v7995, 7
    %v7997 = vsub.s32 0, %v7996
    %v7998 = vrot.slane %v7993, %v7997
    %v7999 = vlaneseq
    %v8000 = vshrl.u32 %v7999, 7
    %v8001 = vsub.s32 1, %v8000
    %v8002 = vrot.slane %v7993, %v8001
    %v8003 = vlaneseq
    %v8004 = vshrl.u32 %v8003, 7
    %v8005 = vsub.s32 2, %v8004
    %v8006 = vrot.slane %v7993, %v8005
    %v8007 = vlaneseq
    %v8008 = vshrl.u32 %v8007, 7
    %v8009 = vsub.s32 3, %v8008
    %v8010 = vrot.slane %v7993, %v8009
    %v8011 = vlaneseq
    %v8012 = vshrl.u32 %v8011, 7
    %v8013 = vsub.s32 4, %v8012
    %v8014 = vrot.slane %v7993, %v8013
    %v8015 = vlaneseq
    %v8016 = vshrl.u32 %v8015, 7
    %v8017 = vsub.s32 5, %v8016
    %v8018 = vrot.slane %v7993, %v8017
    %v8019 = vlaneseq
    %v8020 = vshrl.u32 %v8019, 7
    %v8021 = vsub.s32 6, %v8020
    %v8022 = vrot.slane %v7993, %v8021
    %v8023 = vlaneseq
    %v8024 = vshrl.u32 %v8023, 7
    %v8025 = vsub.s32 7, %v8024
    %v8026 = vrot.slane %v7993, %v8025
    %v8035 = vadd.f32 %v7365, %v7998
    %v8036 = vadd.f32 %v7367, %v8002
    %v8037 = vadd.f32 %v7569, %v8006
    %v8038 = vadd.f32 %v7571, %v8010
    %v8039 = vadd.f32 %v7773, %v8014
    %v8040 = vadd.f32 %v7775, %v8018
    %v8041 = vadd.f32 %v7977, %v8022
    %v8042 = vadd.f32 %v7979, %v8026
    %v8043 = vadd.f32 %v7369, %v7998
    %v8044 = vadd.f32 %v7371, %v8002
    %v8045 = vadd.f32 %v7573, %v8006
    %v8046 = vadd.f32 %v7575, %v8010
    %v8047 = vadd.f32 %v7777, %v8014
    %v8048 = vadd.f32 %v7779, %v8018
    %v8049 = vadd.f32 %v7981, %v8022
    %v8050 = vadd.f32 %v7983, %v8026
    %v8051 = vadd.f32 %v7375, %v7998
    %v8052 = vadd.f32 %v7377, %v8002
    %v8053 = vadd.f32 %v7579, %v8006
    %v8054 = vadd.f32 %v7581, %v8010
    %v8055 = vadd.f32 %v7783, %v8014
    %v8056 = vadd.f32 %v7785, %v8018
    %v8057 = vadd.f32 %v7987, %v8022
    %v8058 = vadd.f32 %v7989, %v8026
    %v8059 = vmin.f32 %v8035, 0.0
    %v8060 = vmin.f32 %v8036, 0.0
    %v8061 = vmin.f32 %v8037, 0.0
    %v8062 = vmin.f32 %v8038, 0.0
    %v8063 = vmin.f32 %v8039, 0.0
    %v8064 = vmin.f32 %v8040, 0.0
    %v8065 = vmin.f32 %v8041, 0.0
    %v8066 = vmin.f32 %v8042, 0.0
    %v8067 = vmin.f32 %v8043, 0.0
    %v8068 = vmin.f32 %v8044, 0.0
    %v8069 = vmin.f32 %v8045, 0.0
    %v8070 = vmin.f32 %v8046, 0.0
    %v8071 = vmin.f32 %v8047, 0.0
    %v8072 = vmin.f32 %v8048, 0.0
    %v8073 = vmin.f32 %v8049, 0.0
    %v8074 = vmin.f32 %v8050, 0.0
    %v8075 = vmin.f32 %v8051, 0.0
    %v8076 = vmin.f32 %v8052, 0.0
    %v8077 = vmin.f32 %v8053, 0.0
    %v8078 = vmin.f32 %v8054, 0.0
    %v8079 = vmin.f32 %v8055, 0.0
    %v8080 = vmin.f32 %v8056, 0.0
    %v8081 = vmin.f32 %v8057, 0.0
    %v8082 = vmin.f32 %v8058, 0.0
    %v8083 = vmul.f32 %v8059, 1.442695
    %v8084 = vpow.pop %v8083
    %v8085 = vmul.f32 %v8060, 1.442695
    %v8086 = vpow.pop %v8085
    %v8087 = vmul.f32 %v8061, 1.442695
    %v8088 = vpow.pop %v8087
    %v8089 = vmul.f32 %v8062, 1.442695
    %v8090 = vpow.pop %v8089
    %v8091 = vmul.f32 %v8063, 1.442695
    %v8092 = vpow.pop %v8091
    %v8093 = vmul.f32 %v8064, 1.442695
    %v8094 = vpow.pop %v8093
    %v8095 = vmul.f32 %v8065, 1.442695
    %v8096 = vpow.pop %v8095
    %v8097 = vmul.f32 %v8066, 1.442695
    %v8098 = vpow.pop %v8097
    %v8099 = vmul.f32 %v8067, 1.442695
    %v8100 = vpow.pop %v8099
    %v8101 = vmul.f32 %v8068, 1.442695
    %v8102 = vpow.pop %v8101
    %v8103 = vmul.f32 %v8069, 1.442695
    %v8104 = vpow.pop %v8103
    %v8105 = vmul.f32 %v8070, 1.442695
    %v8106 = vpow.pop %v8105
    %v8107 = vmul.f32 %v8071, 1.442695
    %v8108 = vpow.pop %v8107
    %v8109 = vmul.f32 %v8072, 1.442695
    %v8110 = vpow.pop %v8109
    %v8111 = vmul.f32 %v8073, 1.442695
    %v8112 = vpow.pop %v8111
    %v8113 = vmul.f32 %v8074, 1.442695
    %v8114 = vpow.pop %v8113
    %v8115 = vmul.f32 %v8075, 1.442695
    %v8116 = vpow.pop %v8115
    %v8117 = vmul.f32 %v8076, 1.442695
    %v8118 = vpow.pop %v8117
    %v8119 = vmul.f32 %v8077, 1.442695
    %v8120 = vpow.pop %v8119
    %v8121 = vmul.f32 %v8078, 1.442695
    %v8122 = vpow.pop %v8121
    %v8123 = vmul.f32 %v8079, 1.442695
    %v8124 = vpow.pop %v8123
    %v8125 = vmul.f32 %v8080, 1.442695
    %v8126 = vpow.pop %v8125
    %v8127 = vmul.f32 %v8081, 1.442695
    %v8128 = vpow.pop %v8127
    %v8129 = vmul.f32 %v8082, 1.442695
    %v8130 = vpow.pop %v8129
    %v8131 = vsub.f32 %v8084, 1.0
    %v8132 = vsub.f32 %v8086, 1.0
    %v8133 = vsub.f32 %v8088, 1.0
    %v8134 = vsub.f32 %v8090, 1.0
    %v8135 = vsub.f32 %v8092, 1.0
    %v8136 = vsub.f32 %v8094, 1.0
    %v8137 = vsub.f32 %v8096, 1.0
    %v8138 = vsub.f32 %v8098, 1.0
    %v8139 = vsub.f32 %v8100, 1.0
    %v8140 = vsub.f32 %v8102, 1.0
    %v8141 = vsub.f32 %v8104, 1.0
    %v8142 = vsub.f32 %v8106, 1.0
    %v8143 = vsub.f32 %v8108, 1.0
    %v8144 = vsub.f32 %v8110, 1.0
    %v8145 = vsub.f32 %v8112, 1.0
    %v8146 = vsub.f32 %v8114, 1.0
    %v8147 = vsub.f32 %v8116, 1.0
    %v8148 = vsub.f32 %v8118, 1.0
    %v8149 = vsub.f32 %v8120, 1.0
    %v8150 = vsub.f32 %v8122, 1.0
    %v8151 = vsub.f32 %v8124, 1.0
    %v8152 = vsub.f32 %v8126, 1.0
    %v8153 = vsub.f32 %v8128, 1.0
    %v8154 = vsub.f32 %v8130, 1.0
    %v8155 = vmul.f32 %v8059, 0.16666667
    %v8156 = vmul.f32 %v8060, 0.16666667
    %v8157 = vmul.f32 %v8061, 0.16666667
    %v8158 = vmul.f32 %v8062, 0.16666667
    %v8159 = vmul.f32 %v8063, 0.16666667
    %v8160 = vmul.f32 %v8064, 0.16666667
    %v8161 = vmul.f32 %v8065, 0.16666667
    %v8162 = vmul.f32 %v8066, 0.16666667
    %v8163 = vmul.f32 %v8067, 0.16666667
    %v8164 = vmul.f32 %v8068, 0.16666667
    %v8165 = vmul.f32 %v8069, 0.16666667
    %v8166 = vmul.f32 %v8070, 0.16666667
    %v8167 = vmul.f32 %v8071, 0.16666667
    %v8168 = vmul.f32 %v8072, 0.16666667
    %v8169 = vmul.f32 %v8073, 0.16666667
    %v8170 = vmul.f32 %v8074, 0.16666667
    %v8171 = vmul.f32 %v8075, 0.16666667
    %v8172 = vmul.f32 %v8076, 0.16666667
    %v8173 = vmul.f32 %v8077, 0.16666667
    %v8174 = vmul.f32 %v8078, 0.16666667
    %v8175 = vmul.f32 %v8079, 0.16666667
    %v8176 = vmul.f32 %v8080, 0.16666667
    %v8177 = vmul.f32 %v8081, 0.16666667
    %v8178 = vmul.f32 %v8082, 0.16666667
    %v8179 = vadd.f32 %v8155, 0.5
    %v8180 = vadd.f32 %v8156, 0.5
    %v8181 = vadd.f32 %v8157, 0.5
    %v8182 = vadd.f32 %v8158, 0.5
    %v8183 = vadd.f32 %v8159, 0.5
    %v8184 = vadd.f32 %v8160, 0.5
    %v8185 = vadd.f32 %v8161, 0.5
    %v8186 = vadd.f32 %v8162, 0.5
    %v8187 = vadd.f32 %v8163, 0.5
    %v8188 = vadd.f32 %v8164, 0.5
    %v8189 = vadd.f32 %v8165, 0.5
    %v8190 = vadd.f32 %v8166, 0.5
    %v8191 = vadd.f32 %v8167, 0.5
    %v8192 = vadd.f32 %v8168, 0.5
    %v8193 = vadd.f32 %v8169, 0.5
    %v8194 = vadd.f32 %v8170, 0.5
    %v8195 = vadd.f32 %v8171, 0.5
    %v8196 = vadd.f32 %v8172, 0.5
    %v8197 = vadd.f32 %v8173, 0.5
    %v8198 = vadd.f32 %v8174, 0.5
    %v8199 = vadd.f32 %v8175, 0.5
    %v8200 = vadd.f32 %v8176, 0.5
    %v8201 = vadd.f32 %v8177, 0.5
    %v8202 = vadd.f32 %v8178, 0.5
    %v8203 = vmul.f32 %v8059, %v8179
    %v8204 = vmul.f32 %v8060, %v8180
    %v8205 = vmul.f32 %v8061, %v8181
    %v8206 = vmul.f32 %v8062, %v8182
    %v8207 = vmul.f32 %v8063, %v8183
    %v8208 = vmul.f32 %v8064, %v8184
    %v8209 = vmul.f32 %v8065, %v8185
    %v8210 = vmul.f32 %v8066, %v8186
    %v8211 = vmul.f32 %v8067, %v8187
    %v8212 = vmul.f32 %v8068, %v8188
    %v8213 = vmul.f32 %v8069, %v8189
    %v8214 = vmul.f32 %v8070, %v8190
    %v8215 = vmul.f32 %v8071, %v8191
    %v8216 = vmul.f32 %v8072, %v8192
    %v8217 = vmul.f32 %v8073, %v8193
    %v8218 = vmul.f32 %v8074, %v8194
    %v8219 = vmul.f32 %v8075, %v8195
    %v8220 = vmul.f32 %v8076, %v8196
    %v8221 = vmul.f32 %v8077, %v8197
    %v8222 = vmul.f32 %v8078, %v8198
    %v8223 = vmul.f32 %v8079, %v8199
    %v8224 = vmul.f32 %v8080, %v8200
    %v8225 = vmul.f32 %v8081, %v8201
    %v8226 = vmul.f32 %v8082, %v8202
    %v8227 = vadd.f32 %v8203, 1.0
    %v8228 = vadd.f32 %v8204, 1.0
    %v8229 = vadd.f32 %v8205, 1.0
    %v8230 = vadd.f32 %v8206, 1.0
    %v8231 = vadd.f32 %v8207, 1.0
    %v8232 = vadd.f32 %v8208, 1.0
    %v8233 = vadd.f32 %v8209, 1.0
    %v8234 = vadd.f32 %v8210, 1.0
    %v8235 = vadd.f32 %v8211, 1.0
    %v8236 = vadd.f32 %v8212, 1.0
    %v8237 = vadd.f32 %v8213, 1.0
    %v8238 = vadd.f32 %v8214, 1.0
    %v8239 = vadd.f32 %v8215, 1.0
    %v8240 = vadd.f32 %v8216, 1.0
    %v8241 = vadd.f32 %v8217, 1.0
    %v8242 = vadd.f32 %v8218, 1.0
    %v8243 = vadd.f32 %v8219, 1.0
    %v8244 = vadd.f32 %v8220, 1.0
    %v8245 = vadd.f32 %v8221, 1.0
    %v8246 = vadd.f32 %v8222, 1.0
    %v8247 = vadd.f32 %v8223, 1.0
    %v8248 = vadd.f32 %v8224, 1.0
    %v8249 = vadd.f32 %v8225, 1.0
    %v8250 = vadd.f32 %v8226, 1.0
    %v8251 = vmul.f32 %v8059, %v8227
    %v8252 = vmul.f32 %v8060, %v8228
    %v8253 = vmul.f32 %v8061, %v8229
    %v8254 = vmul.f32 %v8062, %v8230
    %v8255 = vmul.f32 %v8063, %v8231
    %v8256 = vmul.f32 %v8064, %v8232
    %v8257 = vmul.f32 %v8065, %v8233
    %v8258 = vmul.f32 %v8066, %v8234
    %v8259 = vmul.f32 %v8067, %v8235
    %v8260 = vmul.f32 %v8068, %v8236
    %v8261 = vmul.f32 %v8069, %v8237
    %v8262 = vmul.f32 %v8070, %v8238
    %v8263 = vmul.f32 %v8071, %v8239
    %v8264 = vmul.f32 %v8072, %v8240
    %v8265 = vmul.f32 %v8073, %v8241
    %v8266 = vmul.f32 %v8074, %v8242
    %v8267 = vmul.f32 %v8075, %v8243
    %v8268 = vmul.f32 %v8076, %v8244
    %v8269 = vmul.f32 %v8077, %v8245
    %v8270 = vmul.f32 %v8078, %v8246
    %v8271 = vmul.f32 %v8079, %v8247
    %v8272 = vmul.f32 %v8080, %v8248
    %v8273 = vmul.f32 %v8081, %v8249
    %v8274 = vmul.f32 %v8082, %v8250
    %vm8275 = vcmp.gt.f32.partialorder %v8059, -0.02
    %vm8276 = vcmp.gt.f32.partialorder %v8060, -0.02
    %vm8277 = vcmp.gt.f32.partialorder %v8061, -0.02
    %vm8278 = vcmp.gt.f32.partialorder %v8062, -0.02
    %vm8279 = vcmp.gt.f32.partialorder %v8063, -0.02
    %vm8280 = vcmp.gt.f32.partialorder %v8064, -0.02
    %vm8281 = vcmp.gt.f32.partialorder %v8065, -0.02
    %vm8282 = vcmp.gt.f32.partialorder %v8066, -0.02
    %vm8283 = vcmp.gt.f32.partialorder %v8067, -0.02
    %vm8284 = vcmp.gt.f32.partialorder %v8068, -0.02
    %vm8285 = vcmp.gt.f32.partialorder %v8069, -0.02
    %vm8286 = vcmp.gt.f32.partialorder %v8070, -0.02
    %vm8287 = vcmp.gt.f32.partialorder %v8071, -0.02
    %vm8288 = vcmp.gt.f32.partialorder %v8072, -0.02
    %vm8289 = vcmp.gt.f32.partialorder %v8073, -0.02
    %vm8290 = vcmp.gt.f32.partialorder %v8074, -0.02
    %vm8291 = vcmp.gt.f32.partialorder %v8075, -0.02
    %vm8292 = vcmp.gt.f32.partialorder %v8076, -0.02
    %vm8293 = vcmp.gt.f32.partialorder %v8077, -0.02
    %vm8294 = vcmp.gt.f32.partialorder %v8078, -0.02
    %vm8295 = vcmp.gt.f32.partialorder %v8079, -0.02
    %vm8296 = vcmp.gt.f32.partialorder %v8080, -0.02
    %vm8297 = vcmp.gt.f32.partialorder %v8081, -0.02
    %vm8298 = vcmp.gt.f32.partialorder %v8082, -0.02
    %v8299 = vsel %vm8275, %v8251, %v8131
    %v8300 = vsel %vm8276, %v8252, %v8132
    %v8301 = vsel %vm8277, %v8253, %v8133
    %v8302 = vsel %vm8278, %v8254, %v8134
    %v8303 = vsel %vm8279, %v8255, %v8135
    %v8304 = vsel %vm8280, %v8256, %v8136
    %v8305 = vsel %vm8281, %v8257, %v8137
    %v8306 = vsel %vm8282, %v8258, %v8138
    %v8307 = vsel %vm8283, %v8259, %v8139
    %v8308 = vsel %vm8284, %v8260, %v8140
    %v8309 = vsel %vm8285, %v8261, %v8141
    %v8310 = vsel %vm8286, %v8262, %v8142
    %v8311 = vsel %vm8287, %v8263, %v8143
    %v8312 = vsel %vm8288, %v8264, %v8144
    %v8313 = vsel %vm8289, %v8265, %v8145
    %v8314 = vsel %vm8290, %v8266, %v8146
    %v8315 = vsel %vm8291, %v8267, %v8147
    %v8316 = vsel %vm8292, %v8268, %v8148
    %v8317 = vsel %vm8293, %v8269, %v8149
    %v8318 = vsel %vm8294, %v8270, %v8150
    %v8319 = vsel %vm8295, %v8271, %v8151
    %v8320 = vsel %vm8296, %v8272, %v8152
    %v8321 = vsel %vm8297, %v8273, %v8153
    %v8322 = vsel %vm8298, %v8274, %v8154
    %vm8323 = vcmp.gt.f32.partialorder %v8035, 0.0
    %vm8324 = vcmp.gt.f32.partialorder %v8036, 0.0
    %vm8325 = vcmp.gt.f32.partialorder %v8037, 0.0
    %vm8326 = vcmp.gt.f32.partialorder %v8038, 0.0
    %vm8327 = vcmp.gt.f32.partialorder %v8039, 0.0
    %vm8328 = vcmp.gt.f32.partialorder %v8040, 0.0
    %vm8329 = vcmp.gt.f32.partialorder %v8041, 0.0
    %vm8330 = vcmp.gt.f32.partialorder %v8042, 0.0
    %vm8331 = vcmp.gt.f32.partialorder %v8043, 0.0
    %vm8332 = vcmp.gt.f32.partialorder %v8044, 0.0
    %vm8333 = vcmp.gt.f32.partialorder %v8045, 0.0
    %vm8334 = vcmp.gt.f32.partialorder %v8046, 0.0
    %vm8335 = vcmp.gt.f32.partialorder %v8047, 0.0
    %vm8336 = vcmp.gt.f32.partialorder %v8048, 0.0
    %vm8337 = vcmp.gt.f32.partialorder %v8049, 0.0
    %vm8338 = vcmp.gt.f32.partialorder %v8050, 0.0
    %vm8339 = vcmp.gt.f32.partialorder %v8051, 0.0
    %vm8340 = vcmp.gt.f32.partialorder %v8052, 0.0
    %vm8341 = vcmp.gt.f32.partialorder %v8053, 0.0
    %vm8342 = vcmp.gt.f32.partialorder %v8054, 0.0
    %vm8343 = vcmp.gt.f32.partialorder %v8055, 0.0
    %vm8344 = vcmp.gt.f32.partialorder %v8056, 0.0
    %vm8345 = vcmp.gt.f32.partialorder %v8057, 0.0
    %vm8346 = vcmp.gt.f32.partialorder %v8058, 0.0
    %v8347 = vsel %vm8323, %v8035, %v8299
    %v8348 = vsel %vm8324, %v8036, %v8300
    %v8349 = vsel %vm8325, %v8037, %v8301
    %v8350 = vsel %vm8326, %v8038, %v8302
    %v8351 = vsel %vm8327, %v8039, %v8303
    %v8352 = vsel %vm8328, %v8040, %v8304
    %v8353 = vsel %vm8329, %v8041, %v8305
    %v8354 = vsel %vm8330, %v8042, %v8306
    %v8355 = vsel %vm8331, %v8043, %v8307
    %v8356 = vsel %vm8332, %v8044, %v8308
    %v8357 = vsel %vm8333, %v8045, %v8309
    %v8358 = vsel %vm8334, %v8046, %v8310
    %v8359 = vsel %vm8335, %v8047, %v8311
    %v8360 = vsel %vm8336, %v8048, %v8312
    %v8361 = vsel %vm8337, %v8049, %v8313
    %v8362 = vsel %vm8338, %v8050, %v8314
    %v8363 = vsel %vm8339, %v8051, %v8315
    %v8364 = vsel %vm8340, %v8052, %v8316
    %v8365 = vsel %vm8341, %v8053, %v8317
    %v8366 = vsel %vm8342, %v8054, %v8318
    %v8367 = vsel %vm8343, %v8055, %v8319
    %v8368 = vsel %vm8344, %v8056, %v8320
    %v8369 = vsel %vm8345, %v8057, %v8321
    %v8370 = vsel %vm8346, %v8058, %v8322
    %v8371 = vpack.c.bf16 %v8355, %v8347
    %v8372 = vpack.c.bf16 %v8356, %v8348
    %v8373 = vpack.c.bf16 %v8357, %v8349
    %v8374 = vpack.c.bf16 %v8358, %v8350
    %v8375 = vpack.c.bf16 %v8359, %v8351
    %v8376 = vpack.c.bf16 %v8360, %v8352
    %v8377 = vpack.c.bf16 %v8361, %v8353
    %v8378 = vpack.c.bf16 %v8362, %v8354
    %v8379 = vpack.c.bf16 %v8363, %v8363
    %v8380 = vpack.c.bf16 %v8364, %v8364
    %v8381 = vpack.c.bf16 %v8365, %v8365
    %v8382 = vpack.c.bf16 %v8366, %v8366
    %v8383 = vpack.c.bf16 %v8367, %v8367
    %v8384 = vpack.c.bf16 %v8368, %v8368
    %v8385 = vpack.c.bf16 %v8369, %v8369
    %v8386 = vpack.c.bf16 %v8370, %v8370
    %v8387 = vld [vmem:[#allocation11] sm:$0xff]
    %v8388 = vld [vmem:[#allocation11 + $0x8] sm:$0xff]
    %v8389 = vld [vmem:[#allocation11 + $0x10] sm:$0xff]
    %v8390 = vld [vmem:[#allocation11 + $0x18] sm:$0xff]
    %v8391 = vld [vmem:[#allocation11 + $0x20] sm:$0xff]
    %v8392 = vld [vmem:[#allocation11 + $0x28] sm:$0xff]
    %v8393 = vld [vmem:[#allocation11 + $0x30] sm:$0xff]
    %v8394 = vld [vmem:[#allocation11 + $0x38] sm:$0xff]
    %v8395 = vld [vmem:[#allocation11 + $0x40] sm:$0xff]
    %v8396 = vld [vmem:[#allocation11 + $0x48] sm:$0xff]
    %v8397 = vld [vmem:[#allocation11 + $0x50] sm:$0xff]
    %v8398 = vld [vmem:[#allocation11 + $0x58] sm:$0xff]
    %v8399 = vld [vmem:[#allocation11 + $0x60] sm:$0xff]
    %v8400 = vld [vmem:[#allocation11 + $0x68] sm:$0xff]
    %v8401 = vld [vmem:[#allocation11 + $0x70] sm:$0xff]
    %v8402 = vld [vmem:[#allocation11 + $0x78] sm:$0xff]
    %v8403 = vld [vmem:[#allocation11 + $0x80] sm:$0xff]
    %v8404 = vld [vmem:[#allocation11 + $0x88] sm:$0xff]
    %v8405 = vld [vmem:[#allocation11 + $0x90] sm:$0xff]
    %v8406 = vld [vmem:[#allocation11 + $0x98] sm:$0xff]
    %v8407 = vld [vmem:[#allocation11 + $0xa0] sm:$0xff]
    %v8408 = vld [vmem:[#allocation11 + $0xa8] sm:$0xff]
    %v8409 = vld [vmem:[#allocation11 + $0xb0] sm:$0xff]
    %v8410 = vld [vmem:[#allocation11 + $0xb8] sm:$0xff]
    %v8411 = vld [vmem:[#allocation11 + $0xc0] sm:$0xff]
    %v8412 = vld [vmem:[#allocation11 + $0xc8] sm:$0xff]
    %v8413 = vld [vmem:[#allocation11 + $0xd0] sm:$0xff]
    %v8414 = vld [vmem:[#allocation11 + $0xd8] sm:$0xff]
    %v8415 = vld [vmem:[#allocation11 + $0xe0] sm:$0xff]
    %v8416 = vld [vmem:[#allocation11 + $0xe8] sm:$0xff]
    %v8417 = vld [vmem:[#allocation11 + $0xf0] sm:$0xff]
    %v8418 = vld [vmem:[#allocation11 + $0xf8] sm:$0xff]
    %v8419 = vld [vmem:[#allocation11 + $0x100] sm:$0xff]
    %v8420 = vld [vmem:[#allocation11 + $0x108] sm:$0xff]
    %v8421 = vld [vmem:[#allocation11 + $0x110] sm:$0xff]
    %v8422 = vld [vmem:[#allocation11 + $0x118] sm:$0xff]
    %v8423 = vld [vmem:[#allocation11 + $0x120] sm:$0xff]
    %v8424 = vld [vmem:[#allocation11 + $0x128] sm:$0xff]
    %v8425 = vld [vmem:[#allocation11 + $0x130] sm:$0xff]
    %v8426 = vld [vmem:[#allocation11 + $0x138] sm:$0xff]
    %v8427 = vld [vmem:[#allocation11 + $0x140] sm:$0xff]
    %v8428 = vld [vmem:[#allocation11 + $0x148] sm:$0xff]
    %v8429 = vld [vmem:[#allocation11 + $0x150] sm:$0xff]
    %v8430 = vld [vmem:[#allocation11 + $0x158] sm:$0xff]
    %v8431 = vld [vmem:[#allocation11 + $0x160] sm:$0xff]
    %v8432 = vld [vmem:[#allocation11 + $0x168] sm:$0xff]
    %v8433 = vld [vmem:[#allocation11 + $0x170] sm:$0xff]
    %v8434 = vld [vmem:[#allocation11 + $0x178] sm:$0xff]
    %v8435 = vld [vmem:[#allocation11 + $0x180] sm:$0xff]
    %v8436 = vld [vmem:[#allocation11 + $0x188] sm:$0xff]
    %v8437 = vld [vmem:[#allocation11 + $0x190] sm:$0xff]
    %v8438 = vld [vmem:[#allocation11 + $0x198] sm:$0xff]
    %v8439 = vld [vmem:[#allocation11 + $0x1a0] sm:$0xff]
    %v8440 = vld [vmem:[#allocation11 + $0x1a8] sm:$0xff]
    %v8441 = vld [vmem:[#allocation11 + $0x1b0] sm:$0xff]
    %v8442 = vld [vmem:[#allocation11 + $0x1b8] sm:$0xff]
    %v8443 = vld [vmem:[#allocation11 + $0x1c0] sm:$0xff]
    %v8444 = vld [vmem:[#allocation11 + $0x1c8] sm:$0xff]
    %v8445 = vld [vmem:[#allocation11 + $0x1d0] sm:$0xff]
    %v8446 = vld [vmem:[#allocation11 + $0x1d8] sm:$0xff]
    %v8447 = vld [vmem:[#allocation11 + $0x1e0] sm:$0xff]
    %v8448 = vld [vmem:[#allocation11 + $0x1e8] sm:$0xff]
    %v8449 = vld [vmem:[#allocation11 + $0x1f0] sm:$0xff]
    %v8450 = vld [vmem:[#allocation11 + $0x1f8] sm:$0xff]
    %v8451 = vld [vmem:[#allocation11 + $0x200] sm:$0xff]
    %v8452 = vld [vmem:[#allocation11 + $0x208] sm:$0xff]
    %v8453 = vld [vmem:[#allocation11 + $0x210] sm:$0xff]
    %v8454 = vld [vmem:[#allocation11 + $0x218] sm:$0xff]
    %v8455 = vld [vmem:[#allocation11 + $0x220] sm:$0xff]
    %v8456 = vld [vmem:[#allocation11 + $0x228] sm:$0xff]
    %v8457 = vld [vmem:[#allocation11 + $0x230] sm:$0xff]
    %v8458 = vld [vmem:[#allocation11 + $0x238] sm:$0xff]
    %v8459 = vld [vmem:[#allocation11 + $0x240] sm:$0xff]
    %v8460 = vld [vmem:[#allocation11 + $0x248] sm:$0xff]
    %v8461 = vld [vmem:[#allocation11 + $0x250] sm:$0xff]
    %v8462 = vld [vmem:[#allocation11 + $0x258] sm:$0xff]
    %v8463 = vld [vmem:[#allocation11 + $0x260] sm:$0xff]
    %v8464 = vld [vmem:[#allocation11 + $0x268] sm:$0xff]
    %v8465 = vld [vmem:[#allocation11 + $0x270] sm:$0xff]
    %v8466 = vld [vmem:[#allocation11 + $0x278] sm:$0xff]
    %v8467 = vld [vmem:[#allocation11 + $0x280] sm:$0xff]
    %v8468 = vld [vmem:[#allocation11 + $0x288] sm:$0xff]
    %v8469 = vld [vmem:[#allocation11 + $0x290] sm:$0xff]
    %v8470 = vld [vmem:[#allocation11 + $0x298] sm:$0xff]
    %v8471 = vld [vmem:[#allocation11 + $0x2a0] sm:$0xff]
    %v8472 = vld [vmem:[#allocation11 + $0x2a8] sm:$0xff]
    %v8473 = vld [vmem:[#allocation11 + $0x2b0] sm:$0xff]
    %v8474 = vld [vmem:[#allocation11 + $0x2b8] sm:$0xff]
    %v8475 = vld [vmem:[#allocation11 + $0x2c0] sm:$0xff]
    %v8476 = vld [vmem:[#allocation11 + $0x2c8] sm:$0xff]
    %v8477 = vld [vmem:[#allocation11 + $0x2d0] sm:$0xff]
    %v8478 = vld [vmem:[#allocation11 + $0x2d8] sm:$0xff]
    %v8479 = vld [vmem:[#allocation11 + $0x2e0] sm:$0xff]
    %v8480 = vld [vmem:[#allocation11 + $0x2e8] sm:$0xff]
    %v8481 = vld [vmem:[#allocation11 + $0x2f0] sm:$0xff]
    %v8482 = vld [vmem:[#allocation11 + $0x2f8] sm:$0xff]
    %v8483 = vld [vmem:[#allocation11 + $0x300] sm:$0xff]
    %v8484 = vld [vmem:[#allocation11 + $0x308] sm:$0xff]
    %v8485 = vld [vmem:[#allocation11 + $0x310] sm:$0xff]
    %v8486 = vld [vmem:[#allocation11 + $0x318] sm:$0xff]
    %v8487 = vld [vmem:[#allocation11 + $0x320] sm:$0xff]
    %v8488 = vld [vmem:[#allocation11 + $0x328] sm:$0xff]
    %v8489 = vld [vmem:[#allocation11 + $0x330] sm:$0xff]
    %v8490 = vld [vmem:[#allocation11 + $0x338] sm:$0xff]
    %v8491 = vld [vmem:[#allocation11 + $0x340] sm:$0xff]
    %v8492 = vld [vmem:[#allocation11 + $0x348] sm:$0xff]
    %v8493 = vld [vmem:[#allocation11 + $0x350] sm:$0xff]
    %v8494 = vld [vmem:[#allocation11 + $0x358] sm:$0xff]
    %v8495 = vld [vmem:[#allocation11 + $0x360] sm:$0xff]
    %v8496 = vld [vmem:[#allocation11 + $0x368] sm:$0xff]
    %v8497 = vld [vmem:[#allocation11 + $0x370] sm:$0xff]
    %v8498 = vld [vmem:[#allocation11 + $0x378] sm:$0xff]
    %v8499 = vld [vmem:[#allocation11 + $0x380] sm:$0xff]
    %v8500 = vld [vmem:[#allocation11 + $0x388] sm:$0xff]
    %v8501 = vld [vmem:[#allocation11 + $0x390] sm:$0xff]
    %v8502 = vld [vmem:[#allocation11 + $0x398] sm:$0xff]
    %v8503 = vld [vmem:[#allocation11 + $0x3a0] sm:$0xff]
    %v8504 = vld [vmem:[#allocation11 + $0x3a8] sm:$0xff]
    %v8505 = vld [vmem:[#allocation11 + $0x3b0] sm:$0xff]
    %v8506 = vld [vmem:[#allocation11 + $0x3b8] sm:$0xff]
    %v8507 = vld [vmem:[#allocation11 + $0x3c0] sm:$0xff]
    %v8508 = vld [vmem:[#allocation11 + $0x3c8] sm:$0xff]
    %v8509 = vld [vmem:[#allocation11 + $0x3d0] sm:$0xff]
    %v8510 = vld [vmem:[#allocation11 + $0x3d8] sm:$0xff]
    %v8511 = vld [vmem:[#allocation11 + $0x3e0] sm:$0xff]
    %v8512 = vld [vmem:[#allocation11 + $0x3e8] sm:$0xff]
    %v8513 = vld [vmem:[#allocation11 + $0x3f0] sm:$0xff]
    %v8514 = vld [vmem:[#allocation11 + $0x3f8] sm:$0xff]
    %v8515 = vld [vmem:[#allocation11 + $0x400] sm:$0xff]
    %v8516 = vld [vmem:[#allocation11 + $0x408] sm:$0xff]
    %v8517 = vld [vmem:[#allocation11 + $0x410] sm:$0xff]
    %v8518 = vld [vmem:[#allocation11 + $0x418] sm:$0xff]
    %v8519 = vld [vmem:[#allocation11 + $0x420] sm:$0xff]
    %v8520 = vld [vmem:[#allocation11 + $0x428] sm:$0xff]
    %v8521 = vld [vmem:[#allocation11 + $0x430] sm:$0xff]
    %v8522 = vld [vmem:[#allocation11 + $0x438] sm:$0xff]
    %v8523 = vld [vmem:[#allocation11 + $0x440] sm:$0xff]
    %v8524 = vld [vmem:[#allocation11 + $0x448] sm:$0xff]
    %v8525 = vld [vmem:[#allocation11 + $0x450] sm:$0xff]
    %v8526 = vld [vmem:[#allocation11 + $0x458] sm:$0xff]
    %v8527 = vld [vmem:[#allocation11 + $0x460] sm:$0xff]
    %v8528 = vld [vmem:[#allocation11 + $0x468] sm:$0xff]
    %v8529 = vld [vmem:[#allocation11 + $0x470] sm:$0xff]
    %v8530 = vld [vmem:[#allocation11 + $0x478] sm:$0xff]
    %v8531 = vld [vmem:[#allocation11 + $0x480] sm:$0xff]
    %v8532 = vld [vmem:[#allocation11 + $0x488] sm:$0xff]
    %v8533 = vld [vmem:[#allocation11 + $0x490] sm:$0xff]
    %v8534 = vld [vmem:[#allocation11 + $0x498] sm:$0xff]
    %v8535 = vld [vmem:[#allocation11 + $0x4a0] sm:$0xff]
    %v8536 = vld [vmem:[#allocation11 + $0x4a8] sm:$0xff]
    %v8537 = vld [vmem:[#allocation11 + $0x4b0] sm:$0xff]
    %v8538 = vld [vmem:[#allocation11 + $0x4b8] sm:$0xff]
    %v8539 = vld [vmem:[#allocation11 + $0x4c0] sm:$0xff]
    %v8540 = vld [vmem:[#allocation11 + $0x4c8] sm:$0xff]
    %v8541 = vld [vmem:[#allocation11 + $0x4d0] sm:$0xff]
    %v8542 = vld [vmem:[#allocation11 + $0x4d8] sm:$0xff]
    %v8543 = vld [vmem:[#allocation11 + $0x4e0] sm:$0xff]
    %v8544 = vld [vmem:[#allocation11 + $0x4e8] sm:$0xff]
    %v8545 = vld [vmem:[#allocation11 + $0x4f0] sm:$0xff]
    %v8546 = vld [vmem:[#allocation11 + $0x4f8] sm:$0xff]
    %v8547 = vld [vmem:[#allocation11 + $0x500] sm:$0xff]
    %v8548 = vld [vmem:[#allocation11 + $0x508] sm:$0xff]
    %v8549 = vld [vmem:[#allocation11 + $0x510] sm:$0xff]
    %v8550 = vld [vmem:[#allocation11 + $0x518] sm:$0xff]
    %v8551 = vld [vmem:[#allocation11 + $0x520] sm:$0xff]
    %v8552 = vld [vmem:[#allocation11 + $0x528] sm:$0xff]
    %v8553 = vld [vmem:[#allocation11 + $0x530] sm:$0xff]
    %v8554 = vld [vmem:[#allocation11 + $0x538] sm:$0xff]
    %v8555 = vld [vmem:[#allocation11 + $0x540] sm:$0xff]
    %v8556 = vld [vmem:[#allocation11 + $0x548] sm:$0xff]
    %v8557 = vld [vmem:[#allocation11 + $0x550] sm:$0xff]
    %v8558 = vld [vmem:[#allocation11 + $0x558] sm:$0xff]
    %v8559 = vld [vmem:[#allocation11 + $0x560] sm:$0xff]
    %v8560 = vld [vmem:[#allocation11 + $0x568] sm:$0xff]
    %v8561 = vld [vmem:[#allocation11 + $0x570] sm:$0xff]
    %v8562 = vld [vmem:[#allocation11 + $0x578] sm:$0xff]
    %v8563 = vld [vmem:[#allocation11 + $0x580] sm:$0xff]
    %v8564 = vld [vmem:[#allocation11 + $0x588] sm:$0xff]
    %v8565 = vld [vmem:[#allocation11 + $0x590] sm:$0xff]
    %v8566 = vld [vmem:[#allocation11 + $0x598] sm:$0xff]
    %v8567 = vld [vmem:[#allocation11 + $0x5a0] sm:$0xff]
    %v8568 = vld [vmem:[#allocation11 + $0x5a8] sm:$0xff]
    %v8569 = vld [vmem:[#allocation11 + $0x5b0] sm:$0xff]
    %v8570 = vld [vmem:[#allocation11 + $0x5b8] sm:$0xff]
    %v8571 = vld [vmem:[#allocation11 + $0x5c0] sm:$0xff]
    %v8572 = vld [vmem:[#allocation11 + $0x5c8] sm:$0xff]
    %v8573 = vld [vmem:[#allocation11 + $0x5d0] sm:$0xff]
    %v8574 = vld [vmem:[#allocation11 + $0x5d8] sm:$0xff]
    %v8575 = vld [vmem:[#allocation11 + $0x5e0] sm:$0xff]
    %v8576 = vld [vmem:[#allocation11 + $0x5e8] sm:$0xff]
    %v8577 = vld [vmem:[#allocation11 + $0x5f0] sm:$0xff]
    %v8578 = vld [vmem:[#allocation11 + $0x5f8] sm:$0xff]
    %v8579 = vld [vmem:[#allocation11 + $0x600] sm:$0xff]
    %v8580 = vld [vmem:[#allocation11 + $0x608] sm:$0xff]
    %v8581 = vld [vmem:[#allocation11 + $0x610] sm:$0xff]
    %v8582 = vld [vmem:[#allocation11 + $0x618] sm:$0xff]
    %v8583 = vld [vmem:[#allocation11 + $0x620] sm:$0xff]
    %v8584 = vld [vmem:[#allocation11 + $0x628] sm:$0xff]
    %v8585 = vld [vmem:[#allocation11 + $0x630] sm:$0xff]
    %v8586 = vld [vmem:[#allocation11 + $0x638] sm:$0xff]
    %v8587 = vld [vmem:[#allocation11 + $0x640] sm:$0xff]
    %v8588 = vld [vmem:[#allocation11 + $0x648] sm:$0xff]
    %v8589 = vld [vmem:[#allocation11 + $0x650] sm:$0xff]
    %v8590 = vld [vmem:[#allocation11 + $0x658] sm:$0xff]
    %v8591 = vld [vmem:[#allocation11 + $0x660] sm:$0xff]
    %v8592 = vld [vmem:[#allocation11 + $0x668] sm:$0xff]
    %v8593 = vld [vmem:[#allocation11 + $0x670] sm:$0xff]
    %v8594 = vld [vmem:[#allocation11 + $0x678] sm:$0xff]
    %v8595 = vld [vmem:[#allocation11 + $0x680] sm:$0xff]
    %v8596 = vld [vmem:[#allocation11 + $0x688] sm:$0xff]
    %v8597 = vld [vmem:[#allocation11 + $0x690] sm:$0xff]
    %v8598 = vld [vmem:[#allocation11 + $0x698] sm:$0xff]
    %v8599 = vld [vmem:[#allocation11 + $0x6a0] sm:$0xff]
    %v8600 = vld [vmem:[#allocation11 + $0x6a8] sm:$0xff]
    %v8601 = vld [vmem:[#allocation11 + $0x6b0] sm:$0xff]
    %v8602 = vld [vmem:[#allocation11 + $0x6b8] sm:$0xff]
    %v8603 = vld [vmem:[#allocation11 + $0x6c0] sm:$0xff]
    %v8604 = vld [vmem:[#allocation11 + $0x6c8] sm:$0xff]
    %v8605 = vld [vmem:[#allocation11 + $0x6d0] sm:$0xff]
    %v8606 = vld [vmem:[#allocation11 + $0x6d8] sm:$0xff]
    %v8607 = vld [vmem:[#allocation11 + $0x6e0] sm:$0xff]
    %v8608 = vld [vmem:[#allocation11 + $0x6e8] sm:$0xff]
    %v8609 = vld [vmem:[#allocation11 + $0x6f0] sm:$0xff]
    %v8610 = vld [vmem:[#allocation11 + $0x6f8] sm:$0xff]
    %v8611 = vld [vmem:[#allocation11 + $0x700] sm:$0xff]
    %v8612 = vld [vmem:[#allocation11 + $0x708] sm:$0xff]
    %v8613 = vld [vmem:[#allocation11 + $0x710] sm:$0xff]
    %v8614 = vld [vmem:[#allocation11 + $0x718] sm:$0xff]
    %v8615 = vld [vmem:[#allocation11 + $0x720] sm:$0xff]
    %v8616 = vld [vmem:[#allocation11 + $0x728] sm:$0xff]
    %v8617 = vld [vmem:[#allocation11 + $0x730] sm:$0xff]
    %v8618 = vld [vmem:[#allocation11 + $0x738] sm:$0xff]
    %v8619 = vld [vmem:[#allocation11 + $0x740] sm:$0xff]
    %v8620 = vld [vmem:[#allocation11 + $0x748] sm:$0xff]
    %v8621 = vld [vmem:[#allocation11 + $0x750] sm:$0xff]
    %v8622 = vld [vmem:[#allocation11 + $0x758] sm:$0xff]
    %v8623 = vld [vmem:[#allocation11 + $0x760] sm:$0xff]
    %v8624 = vld [vmem:[#allocation11 + $0x768] sm:$0xff]
    %v8625 = vld [vmem:[#allocation11 + $0x770] sm:$0xff]
    %v8626 = vld [vmem:[#allocation11 + $0x778] sm:$0xff]
    %v8627 = vld [vmem:[#allocation11 + $0x780] sm:$0xff]
    %v8628 = vld [vmem:[#allocation11 + $0x788] sm:$0xff]
    %v8629 = vld [vmem:[#allocation11 + $0x790] sm:$0xff]
    %v8630 = vld [vmem:[#allocation11 + $0x798] sm:$0xff]
    %v8631 = vld [vmem:[#allocation11 + $0x7a0] sm:$0xff]
    %v8632 = vld [vmem:[#allocation11 + $0x7a8] sm:$0xff]
    %v8633 = vld [vmem:[#allocation11 + $0x7b0] sm:$0xff]
    %v8634 = vld [vmem:[#allocation11 + $0x7b8] sm:$0xff]
    %v8635 = vld [vmem:[#allocation11 + $0x7c0] sm:$0xff]
    %v8636 = vld [vmem:[#allocation11 + $0x7c8] sm:$0xff]
    %v8637 = vld [vmem:[#allocation11 + $0x7d0] sm:$0xff]
    %v8638 = vld [vmem:[#allocation11 + $0x7d8] sm:$0xff]
    %v8639 = vld [vmem:[#allocation11 + $0x7e0] sm:$0xff]
    %v8640 = vld [vmem:[#allocation11 + $0x7e8] sm:$0xff]
    %v8641 = vld [vmem:[#allocation11 + $0x7f0] sm:$0xff]
    %v8642 = vld [vmem:[#allocation11 + $0x7f8] sm:$0xff]
    %v8643 = vld [vmem:[#allocation11 + $0x800] sm:$0xff]
    %v8644 = vld [vmem:[#allocation11 + $0x808] sm:$0xff]
    %v8645 = vld [vmem:[#allocation11 + $0x810] sm:$0xff]
    %v8646 = vld [vmem:[#allocation11 + $0x818] sm:$0xff]
    %v8647 = vld [vmem:[#allocation11 + $0x820] sm:$0xff]
    %v8648 = vld [vmem:[#allocation11 + $0x828] sm:$0xff]
    %v8649 = vld [vmem:[#allocation11 + $0x830] sm:$0xff]
    %v8650 = vld [vmem:[#allocation11 + $0x838] sm:$0xff]
    %v8651 = vld [vmem:[#allocation11 + $0x840] sm:$0xff]
    %v8652 = vld [vmem:[#allocation11 + $0x848] sm:$0xff]
    %v8653 = vld [vmem:[#allocation11 + $0x850] sm:$0xff]
    %v8654 = vld [vmem:[#allocation11 + $0x858] sm:$0xff]
    %v8655 = vld [vmem:[#allocation11 + $0x860] sm:$0xff]
    %v8656 = vld [vmem:[#allocation11 + $0x868] sm:$0xff]
    %v8657 = vld [vmem:[#allocation11 + $0x870] sm:$0xff]
    %v8658 = vld [vmem:[#allocation11 + $0x878] sm:$0xff]
    %v8659 = vld [vmem:[#allocation11 + $0x880] sm:$0xff]
    %v8660 = vld [vmem:[#allocation11 + $0x888] sm:$0xff]
    %v8661 = vld [vmem:[#allocation11 + $0x890] sm:$0xff]
    %v8662 = vld [vmem:[#allocation11 + $0x898] sm:$0xff]
    %v8663 = vld [vmem:[#allocation11 + $0x8a0] sm:$0xff]
    %v8664 = vld [vmem:[#allocation11 + $0x8a8] sm:$0xff]
    %v8665 = vld [vmem:[#allocation11 + $0x8b0] sm:$0xff]
    %v8666 = vld [vmem:[#allocation11 + $0x8b8] sm:$0xff]
    %v8667 = vld [vmem:[#allocation11 + $0x8c0] sm:$0xff]
    %v8668 = vld [vmem:[#allocation11 + $0x8c8] sm:$0xff]
    %v8669 = vld [vmem:[#allocation11 + $0x8d0] sm:$0xff]
    %v8670 = vld [vmem:[#allocation11 + $0x8d8] sm:$0xff]
    %v8671 = vld [vmem:[#allocation11 + $0x8e0] sm:$0xff]
    %v8672 = vld [vmem:[#allocation11 + $0x8e8] sm:$0xff]
    %v8673 = vld [vmem:[#allocation11 + $0x8f0] sm:$0xff]
    %v8674 = vld [vmem:[#allocation11 + $0x8f8] sm:$0xff]
    %v8675 = vld [vmem:[#allocation11 + $0x900] sm:$0xff]
    %v8676 = vld [vmem:[#allocation11 + $0x908] sm:$0xff]
    %v8677 = vld [vmem:[#allocation11 + $0x910] sm:$0xff]
    %v8678 = vld [vmem:[#allocation11 + $0x918] sm:$0xff]
    %v8679 = vld [vmem:[#allocation11 + $0x920] sm:$0xff]
    %v8680 = vld [vmem:[#allocation11 + $0x928] sm:$0xff]
    %v8681 = vld [vmem:[#allocation11 + $0x930] sm:$0xff]
    %v8682 = vld [vmem:[#allocation11 + $0x938] sm:$0xff]
    %v8683 = vld [vmem:[#allocation11 + $0x940] sm:$0xff]
    %v8684 = vld [vmem:[#allocation11 + $0x948] sm:$0xff]
    %v8685 = vld [vmem:[#allocation11 + $0x950] sm:$0xff]
    %v8686 = vld [vmem:[#allocation11 + $0x958] sm:$0xff]
    %v8687 = vld [vmem:[#allocation11 + $0x960] sm:$0xff]
    %v8688 = vld [vmem:[#allocation11 + $0x968] sm:$0xff]
    %v8689 = vld [vmem:[#allocation11 + $0x970] sm:$0xff]
    %v8690 = vld [vmem:[#allocation11 + $0x978] sm:$0xff]
    %v8691 = vld [vmem:[#allocation11 + $0x980] sm:$0xff]
    %v8692 = vld [vmem:[#allocation11 + $0x988] sm:$0xff]
    %v8693 = vld [vmem:[#allocation11 + $0x990] sm:$0xff]
    %v8694 = vld [vmem:[#allocation11 + $0x998] sm:$0xff]
    %v8695 = vld [vmem:[#allocation11 + $0x9a0] sm:$0xff]
    %v8696 = vld [vmem:[#allocation11 + $0x9a8] sm:$0xff]
    %v8697 = vld [vmem:[#allocation11 + $0x9b0] sm:$0xff]
    %v8698 = vld [vmem:[#allocation11 + $0x9b8] sm:$0xff]
    %v8699 = vld [vmem:[#allocation11 + $0x9c0] sm:$0xff]
    %v8700 = vld [vmem:[#allocation11 + $0x9c8] sm:$0xff]
    %v8701 = vld [vmem:[#allocation11 + $0x9d0] sm:$0xff]
    %v8702 = vld [vmem:[#allocation11 + $0x9d8] sm:$0xff]
    %v8703 = vld [vmem:[#allocation11 + $0x9e0] sm:$0xff]
    %v8704 = vld [vmem:[#allocation11 + $0x9e8] sm:$0xff]
    %v8705 = vld [vmem:[#allocation11 + $0x9f0] sm:$0xff]
    %v8706 = vld [vmem:[#allocation11 + $0x9f8] sm:$0xff]
    %v8707 = vld [vmem:[#allocation11 + $0xa00] sm:$0xff]
    %v8708 = vld [vmem:[#allocation11 + $0xa08] sm:$0xff]
    %v8709 = vld [vmem:[#allocation11 + $0xa10] sm:$0xff]
    %v8710 = vld [vmem:[#allocation11 + $0xa18] sm:$0xff]
    %v8711 = vld [vmem:[#allocation11 + $0xa20] sm:$0xff]
    %v8712 = vld [vmem:[#allocation11 + $0xa28] sm:$0xff]
    %v8713 = vld [vmem:[#allocation11 + $0xa30] sm:$0xff]
    %v8714 = vld [vmem:[#allocation11 + $0xa38] sm:$0xff]
    %v8715 = vld [vmem:[#allocation11 + $0xa40] sm:$0xff]
    %v8716 = vld [vmem:[#allocation11 + $0xa48] sm:$0xff]
    %v8717 = vld [vmem:[#allocation11 + $0xa50] sm:$0xff]
    %v8718 = vld [vmem:[#allocation11 + $0xa58] sm:$0xff]
    %v8719 = vld [vmem:[#allocation11 + $0xa60] sm:$0xff]
    %v8720 = vld [vmem:[#allocation11 + $0xa68] sm:$0xff]
    %v8721 = vld [vmem:[#allocation11 + $0xa70] sm:$0xff]
    %v8722 = vld [vmem:[#allocation11 + $0xa78] sm:$0xff]
    %v8723 = vld [vmem:[#allocation11 + $0xa80] sm:$0xff]
    %v8724 = vld [vmem:[#allocation11 + $0xa88] sm:$0xff]
    %v8725 = vld [vmem:[#allocation11 + $0xa90] sm:$0xff]
    %v8726 = vld [vmem:[#allocation11 + $0xa98] sm:$0xff]
    %v8727 = vld [vmem:[#allocation11 + $0xaa0] sm:$0xff]
    %v8728 = vld [vmem:[#allocation11 + $0xaa8] sm:$0xff]
    %v8729 = vld [vmem:[#allocation11 + $0xab0] sm:$0xff]
    %v8730 = vld [vmem:[#allocation11 + $0xab8] sm:$0xff]
    %v8731 = vld [vmem:[#allocation11 + $0xac0] sm:$0xff]
    %v8732 = vld [vmem:[#allocation11 + $0xac8] sm:$0xff]
    %v8733 = vld [vmem:[#allocation11 + $0xad0] sm:$0xff]
    %v8734 = vld [vmem:[#allocation11 + $0xad8] sm:$0xff]
    %v8735 = vld [vmem:[#allocation11 + $0xae0] sm:$0xff]
    %v8736 = vld [vmem:[#allocation11 + $0xae8] sm:$0xff]
    %v8737 = vld [vmem:[#allocation11 + $0xaf0] sm:$0xff]
    %v8738 = vld [vmem:[#allocation11 + $0xaf8] sm:$0xff]
    %v8739 = vld [vmem:[#allocation11 + $0xb00] sm:$0xff]
    %v8740 = vld [vmem:[#allocation11 + $0xb08] sm:$0xff]
    %v8741 = vld [vmem:[#allocation11 + $0xb10] sm:$0xff]
    %v8742 = vld [vmem:[#allocation11 + $0xb18] sm:$0xff]
    %v8743 = vld [vmem:[#allocation11 + $0xb20] sm:$0xff]
    %v8744 = vld [vmem:[#allocation11 + $0xb28] sm:$0xff]
    %v8745 = vld [vmem:[#allocation11 + $0xb30] sm:$0xff]
    %v8746 = vld [vmem:[#allocation11 + $0xb38] sm:$0xff]
    %v8747 = vld [vmem:[#allocation11 + $0xb40] sm:$0xff]
    %v8748 = vld [vmem:[#allocation11 + $0xb48] sm:$0xff]
    %v8749 = vld [vmem:[#allocation11 + $0xb50] sm:$0xff]
    %v8750 = vld [vmem:[#allocation11 + $0xb58] sm:$0xff]
    %v8751 = vld [vmem:[#allocation11 + $0xb60] sm:$0xff]
    %v8752 = vld [vmem:[#allocation11 + $0xb68] sm:$0xff]
    %v8753 = vld [vmem:[#allocation11 + $0xb70] sm:$0xff]
    %v8754 = vld [vmem:[#allocation11 + $0xb78] sm:$0xff]
    %v8755 = vld [vmem:[#allocation11 + $0xb80] sm:$0xff]
    %v8756 = vld [vmem:[#allocation11 + $0xb88] sm:$0xff]
    %v8757 = vld [vmem:[#allocation11 + $0xb90] sm:$0xff]
    %v8758 = vld [vmem:[#allocation11 + $0xb98] sm:$0xff]
    %v8759 = vld [vmem:[#allocation11 + $0xba0] sm:$0xff]
    %v8760 = vld [vmem:[#allocation11 + $0xba8] sm:$0xff]
    %v8761 = vld [vmem:[#allocation11 + $0xbb0] sm:$0xff]
    %v8762 = vld [vmem:[#allocation11 + $0xbb8] sm:$0xff]
    %v8763 = vld [vmem:[#allocation11 + $0xbc0] sm:$0xff]
    %v8764 = vld [vmem:[#allocation11 + $0xbc8] sm:$0xff]
    %v8765 = vld [vmem:[#allocation11 + $0xbd0] sm:$0xff]
    %v8766 = vld [vmem:[#allocation11 + $0xbd8] sm:$0xff]
    %v8767 = vld [vmem:[#allocation11 + $0xbe0] sm:$0xff]
    %v8768 = vld [vmem:[#allocation11 + $0xbe8] sm:$0xff]
    %v8769 = vld [vmem:[#allocation11 + $0xbf0] sm:$0xff]
    %v8770 = vld [vmem:[#allocation11 + $0xbf8] sm:$0xff]
    %v8771 = vld [vmem:[#allocation11 + $0xc00] sm:$0xff]
    %v8772 = vld [vmem:[#allocation11 + $0xc08] sm:$0xff]
    %v8773 = vld [vmem:[#allocation11 + $0xc10] sm:$0xff]
    %v8774 = vld [vmem:[#allocation11 + $0xc18] sm:$0xff]
    %v8775 = vld [vmem:[#allocation11 + $0xc20] sm:$0xff]
    %v8776 = vld [vmem:[#allocation11 + $0xc28] sm:$0xff]
    %v8777 = vld [vmem:[#allocation11 + $0xc30] sm:$0xff]
    %v8778 = vld [vmem:[#allocation11 + $0xc38] sm:$0xff]
    %v8779 = vld [vmem:[#allocation11 + $0xc40] sm:$0xff]
    %v8780 = vld [vmem:[#allocation11 + $0xc48] sm:$0xff]
    %v8781 = vld [vmem:[#allocation11 + $0xc50] sm:$0xff]
    %v8782 = vld [vmem:[#allocation11 + $0xc58] sm:$0xff]
    %v8783 = vld [vmem:[#allocation11 + $0xc60] sm:$0xff]
    %v8784 = vld [vmem:[#allocation11 + $0xc68] sm:$0xff]
    %v8785 = vld [vmem:[#allocation11 + $0xc70] sm:$0xff]
    %v8786 = vld [vmem:[#allocation11 + $0xc78] sm:$0xff]
    %v8787 = vld [vmem:[#allocation11 + $0xc80] sm:$0xff]
    %v8788 = vld [vmem:[#allocation11 + $0xc88] sm:$0xff]
    %v8789 = vld [vmem:[#allocation11 + $0xc90] sm:$0xff]
    %v8790 = vld [vmem:[#allocation11 + $0xc98] sm:$0xff]
    %v8791 = vld [vmem:[#allocation11 + $0xca0] sm:$0xff]
    %v8792 = vld [vmem:[#allocation11 + $0xca8] sm:$0xff]
    %v8793 = vld [vmem:[#allocation11 + $0xcb0] sm:$0xff]
    %v8794 = vld [vmem:[#allocation11 + $0xcb8] sm:$0xff]
    %v8795 = vld [vmem:[#allocation11 + $0xcc0] sm:$0xff]
    %v8796 = vld [vmem:[#allocation11 + $0xcc8] sm:$0xff]
    %v8797 = vld [vmem:[#allocation11 + $0xcd0] sm:$0xff]
    %v8798 = vld [vmem:[#allocation11 + $0xcd8] sm:$0xff]
    %v8799 = vld [vmem:[#allocation11 + $0xce0] sm:$0xff]
    %v8800 = vld [vmem:[#allocation11 + $0xce8] sm:$0xff]
    %v8801 = vld [vmem:[#allocation11 + $0xcf0] sm:$0xff]
    %v8802 = vld [vmem:[#allocation11 + $0xcf8] sm:$0xff]
    %v8803 = vld [vmem:[#allocation11 + $0xd00] sm:$0xff]
    %v8804 = vld [vmem:[#allocation11 + $0xd08] sm:$0xff]
    %v8805 = vld [vmem:[#allocation11 + $0xd10] sm:$0xff]
    %v8806 = vld [vmem:[#allocation11 + $0xd18] sm:$0xff]
    %v8807 = vld [vmem:[#allocation11 + $0xd20] sm:$0xff]
    %v8808 = vld [vmem:[#allocation11 + $0xd28] sm:$0xff]
    %v8809 = vld [vmem:[#allocation11 + $0xd30] sm:$0xff]
    %v8810 = vld [vmem:[#allocation11 + $0xd38] sm:$0xff]
    %v8811 = vld [vmem:[#allocation11 + $0xd40] sm:$0xff]
    %v8812 = vld [vmem:[#allocation11 + $0xd48] sm:$0xff]
    %v8813 = vld [vmem:[#allocation11 + $0xd50] sm:$0xff]
    %v8814 = vld [vmem:[#allocation11 + $0xd58] sm:$0xff]
    %v8815 = vld [vmem:[#allocation11 + $0xd60] sm:$0xff]
    %v8816 = vld [vmem:[#allocation11 + $0xd68] sm:$0xff]
    %v8817 = vld [vmem:[#allocation11 + $0xd70] sm:$0xff]
    %v8818 = vld [vmem:[#allocation11 + $0xd78] sm:$0xff]
    %v8819 = vld [vmem:[#allocation11 + $0xd80] sm:$0xff]
    %v8820 = vld [vmem:[#allocation11 + $0xd88] sm:$0xff]
    %v8821 = vld [vmem:[#allocation11 + $0xd90] sm:$0xff]
    %v8822 = vld [vmem:[#allocation11 + $0xd98] sm:$0xff]
    %v8823 = vld [vmem:[#allocation11 + $0xda0] sm:$0xff]
    %v8824 = vld [vmem:[#allocation11 + $0xda8] sm:$0xff]
    %v8825 = vld [vmem:[#allocation11 + $0xdb0] sm:$0xff]
    %v8826 = vld [vmem:[#allocation11 + $0xdb8] sm:$0xff]
    %v8827 = vld [vmem:[#allocation11 + $0xdc0] sm:$0xff]
    %v8828 = vld [vmem:[#allocation11 + $0xdc8] sm:$0xff]
    %v8829 = vld [vmem:[#allocation11 + $0xdd0] sm:$0xff]
    %v8830 = vld [vmem:[#allocation11 + $0xdd8] sm:$0xff]
    %v8831 = vld [vmem:[#allocation11 + $0xde0] sm:$0xff]
    %v8832 = vld [vmem:[#allocation11 + $0xde8] sm:$0xff]
    %v8833 = vld [vmem:[#allocation11 + $0xdf0] sm:$0xff]
    %v8834 = vld [vmem:[#allocation11 + $0xdf8] sm:$0xff]
    %v8835 = vld [vmem:[#allocation11 + $0xe00] sm:$0xff]
    %v8836 = vld [vmem:[#allocation11 + $0xe08] sm:$0xff]
    %v8837 = vld [vmem:[#allocation11 + $0xe10] sm:$0xff]
    %v8838 = vld [vmem:[#allocation11 + $0xe18] sm:$0xff]
    %v8839 = vld [vmem:[#allocation11 + $0xe20] sm:$0xff]
    %v8840 = vld [vmem:[#allocation11 + $0xe28] sm:$0xff]
    %v8841 = vld [vmem:[#allocation11 + $0xe30] sm:$0xff]
    %v8842 = vld [vmem:[#allocation11 + $0xe38] sm:$0xff]
    %v8843 = vld [vmem:[#allocation11 + $0xe40] sm:$0xff]
    %v8844 = vld [vmem:[#allocation11 + $0xe48] sm:$0xff]
    %v8845 = vld [vmem:[#allocation11 + $0xe50] sm:$0xff]
    %v8846 = vld [vmem:[#allocation11 + $0xe58] sm:$0xff]
    %v8847 = vld [vmem:[#allocation11 + $0xe60] sm:$0xff]
    %v8848 = vld [vmem:[#allocation11 + $0xe68] sm:$0xff]
    %v8849 = vld [vmem:[#allocation11 + $0xe70] sm:$0xff]
    %v8850 = vld [vmem:[#allocation11 + $0xe78] sm:$0xff]
    %v8851 = vld [vmem:[#allocation11 + $0xe80] sm:$0xff]
    %v8852 = vld [vmem:[#allocation11 + $0xe88] sm:$0xff]
    %v8853 = vld [vmem:[#allocation11 + $0xe90] sm:$0xff]
    %v8854 = vld [vmem:[#allocation11 + $0xe98] sm:$0xff]
    %v8855 = vld [vmem:[#allocation11 + $0xea0] sm:$0xff]
    %v8856 = vld [vmem:[#allocation11 + $0xea8] sm:$0xff]
    %v8857 = vld [vmem:[#allocation11 + $0xeb0] sm:$0xff]
    %v8858 = vld [vmem:[#allocation11 + $0xeb8] sm:$0xff]
    %v8859 = vld [vmem:[#allocation11 + $0xec0] sm:$0xff]
    %v8860 = vld [vmem:[#allocation11 + $0xec8] sm:$0xff]
    %v8861 = vld [vmem:[#allocation11 + $0xed0] sm:$0xff]
    %v8862 = vld [vmem:[#allocation11 + $0xed8] sm:$0xff]
    %v8863 = vld [vmem:[#allocation11 + $0xee0] sm:$0xff]
    %v8864 = vld [vmem:[#allocation11 + $0xee8] sm:$0xff]
    %v8865 = vld [vmem:[#allocation11 + $0xef0] sm:$0xff]
    %v8866 = vld [vmem:[#allocation11 + $0xef8] sm:$0xff]
    %v8867 = vld [vmem:[#allocation11 + $0xf00] sm:$0xff]
    %v8868 = vld [vmem:[#allocation11 + $0xf08] sm:$0xff]
    %v8869 = vld [vmem:[#allocation11 + $0xf10] sm:$0xff]
    %v8870 = vld [vmem:[#allocation11 + $0xf18] sm:$0xff]
    %v8871 = vld [vmem:[#allocation11 + $0xf20] sm:$0xff]
    %v8872 = vld [vmem:[#allocation11 + $0xf28] sm:$0xff]
    %v8873 = vld [vmem:[#allocation11 + $0xf30] sm:$0xff]
    %v8874 = vld [vmem:[#allocation11 + $0xf38] sm:$0xff]
    %v8875 = vld [vmem:[#allocation11 + $0xf40] sm:$0xff]
    %v8876 = vld [vmem:[#allocation11 + $0xf48] sm:$0xff]
    %v8877 = vld [vmem:[#allocation11 + $0xf50] sm:$0xff]
    %v8878 = vld [vmem:[#allocation11 + $0xf58] sm:$0xff]
    %v8879 = vld [vmem:[#allocation11 + $0xf60] sm:$0xff]
    %v8880 = vld [vmem:[#allocation11 + $0xf68] sm:$0xff]
    %v8881 = vld [vmem:[#allocation11 + $0xf70] sm:$0xff]
    %v8882 = vld [vmem:[#allocation11 + $0xf78] sm:$0xff]
    %v8883 = vld [vmem:[#allocation11 + $0xf80] sm:$0xff]
    %v8884 = vld [vmem:[#allocation11 + $0xf88] sm:$0xff]
    %v8885 = vld [vmem:[#allocation11 + $0xf90] sm:$0xff]
    %v8886 = vld [vmem:[#allocation11 + $0xf98] sm:$0xff]
    %v8887 = vld [vmem:[#allocation11 + $0xfa0] sm:$0xff]
    %v8888 = vld [vmem:[#allocation11 + $0xfa8] sm:$0xff]
    %v8889 = vld [vmem:[#allocation11 + $0xfb0] sm:$0xff]
    %v8890 = vld [vmem:[#allocation11 + $0xfb8] sm:$0xff]
    %v8891 = vld [vmem:[#allocation11 + $0xfc0] sm:$0xff]
    %v8892 = vld [vmem:[#allocation11 + $0xfc8] sm:$0xff]
    %v8893 = vld [vmem:[#allocation11 + $0xfd0] sm:$0xff]
    %v8894 = vld [vmem:[#allocation11 + $0xfd8] sm:$0xff]
    %v8895 = vld [vmem:[#allocation11 + $0xfe0] sm:$0xff]
    %v8896 = vld [vmem:[#allocation11 + $0xfe8] sm:$0xff]
    %v8897 = vld [vmem:[#allocation11 + $0xff0] sm:$0xff]
    %v8898 = vld [vmem:[#allocation11 + $0xff8] sm:$0xff]
    %v8899 = vld [vmem:[#allocation13] sm:$0xff]
    %v8901 = vlaneseq
    %v8902 = vshrl.u32 %v8901, 7
    %v8903 = vsub.s32 0, %v8902
    %v8904 = vrot.slane %v8899, %v8903
    %v8905 = vlaneseq
    %v8906 = vshrl.u32 %v8905, 7
    %v8907 = vsub.s32 1, %v8906
    %v8908 = vrot.slane %v8899, %v8907
    %v8909 = vlaneseq
    %v8910 = vshrl.u32 %v8909, 7
    %v8911 = vsub.s32 2, %v8910
    %v8912 = vrot.slane %v8899, %v8911
    %v8913 = vlaneseq
    %v8914 = vshrl.u32 %v8913, 7
    %v8915 = vsub.s32 3, %v8914
    %v8916 = vrot.slane %v8899, %v8915
    %v8917 = vlaneseq
    %v8918 = vshrl.u32 %v8917, 7
    %v8919 = vsub.s32 4, %v8918
    %v8920 = vrot.slane %v8899, %v8919
    %v8921 = vlaneseq
    %v8922 = vshrl.u32 %v8921, 7
    %v8923 = vsub.s32 5, %v8922
    %v8924 = vrot.slane %v8899, %v8923
    %v8925 = vlaneseq
    %v8926 = vshrl.u32 %v8925, 7
    %v8927 = vsub.s32 6, %v8926
    %v8928 = vrot.slane %v8899, %v8927
    %v8929 = vlaneseq
    %v8930 = vshrl.u32 %v8929, 7
    %v8931 = vsub.s32 7, %v8930
    %v8932 = vrot.slane %v8899, %v8931
    %v9453 = vunpack.c.l.b16 %v8387
    %v9454 = vunpack.c.h.b16 %v8387
    %v9455 = vunpack.c.l.b16 %v8388
    %v9456 = vunpack.c.h.b16 %v8388
    %v9457 = vunpack.c.l.b16 %v8389
    %v9458 = vunpack.c.h.b16 %v8389
    %v9459 = vunpack.c.l.b16 %v8390
    %v9460 = vunpack.c.h.b16 %v8390
    %v9461 = vunpack.c.l.b16 %v8391
    %v9462 = vunpack.c.h.b16 %v8391
    %v9463 = vunpack.c.l.b16 %v8392
    %v9464 = vunpack.c.h.b16 %v8392
    %v9465 = vunpack.c.l.b16 %v8393
    %v9466 = vunpack.c.h.b16 %v8393
    %v9467 = vunpack.c.l.b16 %v8394
    %v9468 = vunpack.c.h.b16 %v8394
    %v9469 = vunpack.c.l.b16 %v8395
    %v9470 = vunpack.c.h.b16 %v8395
    %v9471 = vunpack.c.l.b16 %v8396
    %v9472 = vunpack.c.h.b16 %v8396
    %v9473 = vunpack.c.l.b16 %v8397
    %v9474 = vunpack.c.h.b16 %v8397
    %v9475 = vunpack.c.l.b16 %v8398
    %v9476 = vunpack.c.h.b16 %v8398
    %v9477 = vunpack.c.l.b16 %v8399
    %v9478 = vunpack.c.h.b16 %v8399
    %v9479 = vunpack.c.l.b16 %v8400
    %v9480 = vunpack.c.h.b16 %v8400
    %v9481 = vunpack.c.l.b16 %v8401
    %v9482 = vunpack.c.h.b16 %v8401
    %v9483 = vunpack.c.l.b16 %v8402
    %v9484 = vunpack.c.h.b16 %v8402
    %v9485 = vunpack.c.l.b16 %v8403
    %v9486 = vunpack.c.h.b16 %v8403
    %v9487 = vunpack.c.l.b16 %v8404
    %v9488 = vunpack.c.h.b16 %v8404
    %v9489 = vunpack.c.l.b16 %v8405
    %v9490 = vunpack.c.h.b16 %v8405
    %v9491 = vunpack.c.l.b16 %v8406
    %v9492 = vunpack.c.h.b16 %v8406
    %v9493 = vunpack.c.l.b16 %v8407
    %v9494 = vunpack.c.h.b16 %v8407
    %v9495 = vunpack.c.l.b16 %v8408
    %v9496 = vunpack.c.h.b16 %v8408
    %v9497 = vunpack.c.l.b16 %v8409
    %v9498 = vunpack.c.h.b16 %v8409
    %v9499 = vunpack.c.l.b16 %v8410
    %v9500 = vunpack.c.h.b16 %v8410
    %v9501 = vunpack.c.l.b16 %v8411
    %v9502 = vunpack.c.h.b16 %v8411
    %v9503 = vunpack.c.l.b16 %v8412
    %v9504 = vunpack.c.h.b16 %v8412
    %v9505 = vunpack.c.l.b16 %v8413
    %v9506 = vunpack.c.h.b16 %v8413
    %v9507 = vunpack.c.l.b16 %v8414
    %v9508 = vunpack.c.h.b16 %v8414
    %v9509 = vunpack.c.l.b16 %v8415
    %v9510 = vunpack.c.h.b16 %v8415
    %v9511 = vunpack.c.l.b16 %v8416
    %v9512 = vunpack.c.h.b16 %v8416
    %v9513 = vunpack.c.l.b16 %v8417
    %v9514 = vunpack.c.h.b16 %v8417
    %v9515 = vunpack.c.l.b16 %v8418
    %v9516 = vunpack.c.h.b16 %v8418
    %v9517 = vunpack.c.l.b16 %v8419
    %v9518 = vunpack.c.h.b16 %v8419
    %v9519 = vunpack.c.l.b16 %v8420
    %v9520 = vunpack.c.h.b16 %v8420
    %v9521 = vunpack.c.l.b16 %v8421
    %v9522 = vunpack.c.h.b16 %v8421
    %v9523 = vunpack.c.l.b16 %v8422
    %v9524 = vunpack.c.h.b16 %v8422
    %v9525 = vunpack.c.l.b16 %v8423
    %v9526 = vunpack.c.h.b16 %v8423
    %v9527 = vunpack.c.l.b16 %v8424
    %v9528 = vunpack.c.h.b16 %v8424
    %v9529 = vunpack.c.l.b16 %v8425
    %v9530 = vunpack.c.h.b16 %v8425
    %v9531 = vunpack.c.l.b16 %v8426
    %v9532 = vunpack.c.h.b16 %v8426
    %v9533 = vunpack.c.l.b16 %v8427
    %v9534 = vunpack.c.h.b16 %v8427
    %v9535 = vunpack.c.l.b16 %v8428
    %v9536 = vunpack.c.h.b16 %v8428
    %v9537 = vunpack.c.l.b16 %v8429
    %v9538 = vunpack.c.h.b16 %v8429
    %v9539 = vunpack.c.l.b16 %v8430
    %v9540 = vunpack.c.h.b16 %v8430
    %v9541 = vunpack.c.l.b16 %v8431
    %v9542 = vunpack.c.h.b16 %v8431
    %v9543 = vunpack.c.l.b16 %v8432
    %v9544 = vunpack.c.h.b16 %v8432
    %v9545 = vunpack.c.l.b16 %v8433
    %v9546 = vunpack.c.h.b16 %v8433
    %v9547 = vunpack.c.l.b16 %v8434
    %v9548 = vunpack.c.h.b16 %v8434
    %v9549 = vunpack.c.l.b16 %v8435
    %v9550 = vunpack.c.h.b16 %v8435
    %v9551 = vunpack.c.l.b16 %v8436
    %v9552 = vunpack.c.h.b16 %v8436
    %v9553 = vunpack.c.l.b16 %v8437
    %v9554 = vunpack.c.h.b16 %v8437
    %v9555 = vunpack.c.l.b16 %v8438
    %v9556 = vunpack.c.h.b16 %v8438
    %v9557 = vunpack.c.l.b16 %v8439
    %v9558 = vunpack.c.h.b16 %v8439
    %v9559 = vunpack.c.l.b16 %v8440
    %v9560 = vunpack.c.h.b16 %v8440
    %v9561 = vunpack.c.l.b16 %v8441
    %v9562 = vunpack.c.h.b16 %v8441
    %v9563 = vunpack.c.l.b16 %v8442
    %v9564 = vunpack.c.h.b16 %v8442
    %v9565 = vunpack.c.l.b16 %v8443
    %v9566 = vunpack.c.h.b16 %v8443
    %v9567 = vunpack.c.l.b16 %v8444
    %v9568 = vunpack.c.h.b16 %v8444
    %v9569 = vunpack.c.l.b16 %v8445
    %v9570 = vunpack.c.h.b16 %v8445
    %v9571 = vunpack.c.l.b16 %v8446
    %v9572 = vunpack.c.h.b16 %v8446
    %v9573 = vunpack.c.l.b16 %v8447
    %v9574 = vunpack.c.h.b16 %v8447
    %v9575 = vunpack.c.l.b16 %v8448
    %v9576 = vunpack.c.h.b16 %v8448
    %v9577 = vunpack.c.l.b16 %v8449
    %v9578 = vunpack.c.h.b16 %v8449
    %v9579 = vunpack.c.l.b16 %v8450
    %v9580 = vunpack.c.h.b16 %v8450
    %v9581 = vunpack.c.l.b16 %v8451
    %v9582 = vunpack.c.h.b16 %v8451
    %v9583 = vunpack.c.l.b16 %v8452
    %v9584 = vunpack.c.h.b16 %v8452
    %v9585 = vunpack.c.l.b16 %v8453
    %v9586 = vunpack.c.h.b16 %v8453
    %v9587 = vunpack.c.l.b16 %v8454
    %v9588 = vunpack.c.h.b16 %v8454
    %v9589 = vunpack.c.l.b16 %v8455
    %v9590 = vunpack.c.h.b16 %v8455
    %v9591 = vunpack.c.l.b16 %v8456
    %v9592 = vunpack.c.h.b16 %v8456
    %v9593 = vunpack.c.l.b16 %v8457
    %v9594 = vunpack.c.h.b16 %v8457
    %v9595 = vunpack.c.l.b16 %v8458
    %v9596 = vunpack.c.h.b16 %v8458
    %v9597 = vunpack.c.l.b16 %v8459
    %v9598 = vunpack.c.h.b16 %v8459
    %v9599 = vunpack.c.l.b16 %v8460
    %v9600 = vunpack.c.h.b16 %v8460
    %v9601 = vunpack.c.l.b16 %v8461
    %v9602 = vunpack.c.h.b16 %v8461
    %v9603 = vunpack.c.l.b16 %v8462
    %v9604 = vunpack.c.h.b16 %v8462
    %v9605 = vunpack.c.l.b16 %v8463
    %v9606 = vunpack.c.h.b16 %v8463
    %v9607 = vunpack.c.l.b16 %v8464
    %v9608 = vunpack.c.h.b16 %v8464
    %v9609 = vunpack.c.l.b16 %v8465
    %v9610 = vunpack.c.h.b16 %v8465
    %v9611 = vunpack.c.l.b16 %v8466
    %v9612 = vunpack.c.h.b16 %v8466
    %v9613 = vunpack.c.l.b16 %v8467
    %v9614 = vunpack.c.h.b16 %v8467
    %v9615 = vunpack.c.l.b16 %v8468
    %v9616 = vunpack.c.h.b16 %v8468
    %v9617 = vunpack.c.l.b16 %v8469
    %v9618 = vunpack.c.h.b16 %v8469
    %v9619 = vunpack.c.l.b16 %v8470
    %v9620 = vunpack.c.h.b16 %v8470
    %v9621 = vunpack.c.l.b16 %v8471
    %v9622 = vunpack.c.h.b16 %v8471
    %v9623 = vunpack.c.l.b16 %v8472
    %v9624 = vunpack.c.h.b16 %v8472
    %v9625 = vunpack.c.l.b16 %v8473
    %v9626 = vunpack.c.h.b16 %v8473
    %v9627 = vunpack.c.l.b16 %v8474
    %v9628 = vunpack.c.h.b16 %v8474
    %v9629 = vunpack.c.l.b16 %v8475
    %v9630 = vunpack.c.h.b16 %v8475
    %v9631 = vunpack.c.l.b16 %v8476
    %v9632 = vunpack.c.h.b16 %v8476
    %v9633 = vunpack.c.l.b16 %v8477
    %v9634 = vunpack.c.h.b16 %v8477
    %v9635 = vunpack.c.l.b16 %v8478
    %v9636 = vunpack.c.h.b16 %v8478
    %v9637 = vunpack.c.l.b16 %v8479
    %v9638 = vunpack.c.h.b16 %v8479
    %v9639 = vunpack.c.l.b16 %v8480
    %v9640 = vunpack.c.h.b16 %v8480
    %v9641 = vunpack.c.l.b16 %v8481
    %v9642 = vunpack.c.h.b16 %v8481
    %v9643 = vunpack.c.l.b16 %v8482
    %v9644 = vunpack.c.h.b16 %v8482
    %v9645 = vunpack.c.l.b16 %v8483
    %v9646 = vunpack.c.h.b16 %v8483
    %v9647 = vunpack.c.l.b16 %v8484
    %v9648 = vunpack.c.h.b16 %v8484
    %v9649 = vunpack.c.l.b16 %v8485
    %v9650 = vunpack.c.h.b16 %v8485
    %v9651 = vunpack.c.l.b16 %v8486
    %v9652 = vunpack.c.h.b16 %v8486
    %v9653 = vunpack.c.l.b16 %v8487
    %v9654 = vunpack.c.h.b16 %v8487
    %v9655 = vunpack.c.l.b16 %v8488
    %v9656 = vunpack.c.h.b16 %v8488
    %v9657 = vunpack.c.l.b16 %v8489
    %v9658 = vunpack.c.h.b16 %v8489
    %v9659 = vunpack.c.l.b16 %v8490
    %v9660 = vunpack.c.h.b16 %v8490
    %v9661 = vunpack.c.l.b16 %v8491
    %v9662 = vunpack.c.h.b16 %v8491
    %v9663 = vunpack.c.l.b16 %v8492
    %v9664 = vunpack.c.h.b16 %v8492
    %v9665 = vunpack.c.l.b16 %v8493
    %v9666 = vunpack.c.h.b16 %v8493
    %v9667 = vunpack.c.l.b16 %v8494
    %v9668 = vunpack.c.h.b16 %v8494
    %v9669 = vunpack.c.l.b16 %v8495
    %v9670 = vunpack.c.h.b16 %v8495
    %v9671 = vunpack.c.l.b16 %v8496
    %v9672 = vunpack.c.h.b16 %v8496
    %v9673 = vunpack.c.l.b16 %v8497
    %v9674 = vunpack.c.h.b16 %v8497
    %v9675 = vunpack.c.l.b16 %v8498
    %v9676 = vunpack.c.h.b16 %v8498
    %v9677 = vunpack.c.l.b16 %v8499
    %v9678 = vunpack.c.h.b16 %v8499
    %v9679 = vunpack.c.l.b16 %v8500
    %v9680 = vunpack.c.h.b16 %v8500
    %v9681 = vunpack.c.l.b16 %v8501
    %v9682 = vunpack.c.h.b16 %v8501
    %v9683 = vunpack.c.l.b16 %v8502
    %v9684 = vunpack.c.h.b16 %v8502
    %v9685 = vunpack.c.l.b16 %v8503
    %v9686 = vunpack.c.h.b16 %v8503
    %v9687 = vunpack.c.l.b16 %v8504
    %v9688 = vunpack.c.h.b16 %v8504
    %v9689 = vunpack.c.l.b16 %v8505
    %v9690 = vunpack.c.h.b16 %v8505
    %v9691 = vunpack.c.l.b16 %v8506
    %v9692 = vunpack.c.h.b16 %v8506
    %v9693 = vunpack.c.l.b16 %v8507
    %v9694 = vunpack.c.h.b16 %v8507
    %v9695 = vunpack.c.l.b16 %v8508
    %v9696 = vunpack.c.h.b16 %v8508
    %v9697 = vunpack.c.l.b16 %v8509
    %v9698 = vunpack.c.h.b16 %v8509
    %v9699 = vunpack.c.l.b16 %v8510
    %v9700 = vunpack.c.h.b16 %v8510
    %v9701 = vunpack.c.l.b16 %v8511
    %v9702 = vunpack.c.h.b16 %v8511
    %v9703 = vunpack.c.l.b16 %v8512
    %v9704 = vunpack.c.h.b16 %v8512
    %v9705 = vunpack.c.l.b16 %v8513
    %v9706 = vunpack.c.h.b16 %v8513
    %v9707 = vunpack.c.l.b16 %v8514
    %v9708 = vunpack.c.h.b16 %v8514
    %v9709 = vunpack.c.l.b16 %v8515
    %v9710 = vunpack.c.h.b16 %v8515
    %v9711 = vunpack.c.l.b16 %v8516
    %v9712 = vunpack.c.h.b16 %v8516
    %v9713 = vunpack.c.l.b16 %v8517
    %v9714 = vunpack.c.h.b16 %v8517
    %v9715 = vunpack.c.l.b16 %v8518
    %v9716 = vunpack.c.h.b16 %v8518
    %v9717 = vunpack.c.l.b16 %v8519
    %v9718 = vunpack.c.h.b16 %v8519
    %v9719 = vunpack.c.l.b16 %v8520
    %v9720 = vunpack.c.h.b16 %v8520
    %v9721 = vunpack.c.l.b16 %v8521
    %v9722 = vunpack.c.h.b16 %v8521
    %v9723 = vunpack.c.l.b16 %v8522
    %v9724 = vunpack.c.h.b16 %v8522
    %v9725 = vunpack.c.l.b16 %v8523
    %v9726 = vunpack.c.h.b16 %v8523
    %v9727 = vunpack.c.l.b16 %v8524
    %v9728 = vunpack.c.h.b16 %v8524
    %v9729 = vunpack.c.l.b16 %v8525
    %v9730 = vunpack.c.h.b16 %v8525
    %v9731 = vunpack.c.l.b16 %v8526
    %v9732 = vunpack.c.h.b16 %v8526
    %v9733 = vunpack.c.l.b16 %v8527
    %v9734 = vunpack.c.h.b16 %v8527
    %v9735 = vunpack.c.l.b16 %v8528
    %v9736 = vunpack.c.h.b16 %v8528
    %v9737 = vunpack.c.l.b16 %v8529
    %v9738 = vunpack.c.h.b16 %v8529
    %v9739 = vunpack.c.l.b16 %v8530
    %v9740 = vunpack.c.h.b16 %v8530
    %v9741 = vunpack.c.l.b16 %v8531
    %v9742 = vunpack.c.h.b16 %v8531
    %v9743 = vunpack.c.l.b16 %v8532
    %v9744 = vunpack.c.h.b16 %v8532
    %v9745 = vunpack.c.l.b16 %v8533
    %v9746 = vunpack.c.h.b16 %v8533
    %v9747 = vunpack.c.l.b16 %v8534
    %v9748 = vunpack.c.h.b16 %v8534
    %v9749 = vunpack.c.l.b16 %v8535
    %v9750 = vunpack.c.h.b16 %v8535
    %v9751 = vunpack.c.l.b16 %v8536
    %v9752 = vunpack.c.h.b16 %v8536
    %v9753 = vunpack.c.l.b16 %v8537
    %v9754 = vunpack.c.h.b16 %v8537
    %v9755 = vunpack.c.l.b16 %v8538
    %v9756 = vunpack.c.h.b16 %v8538
    %v9757 = vunpack.c.l.b16 %v8539
    %v9758 = vunpack.c.h.b16 %v8539
    %v9759 = vunpack.c.l.b16 %v8540
    %v9760 = vunpack.c.h.b16 %v8540
    %v9761 = vunpack.c.l.b16 %v8541
    %v9762 = vunpack.c.h.b16 %v8541
    %v9763 = vunpack.c.l.b16 %v8542
    %v9764 = vunpack.c.h.b16 %v8542
    %v9765 = vunpack.c.l.b16 %v8543
    %v9766 = vunpack.c.h.b16 %v8543
    %v9767 = vunpack.c.l.b16 %v8544
    %v9768 = vunpack.c.h.b16 %v8544
    %v9769 = vunpack.c.l.b16 %v8545
    %v9770 = vunpack.c.h.b16 %v8545
    %v9771 = vunpack.c.l.b16 %v8546
    %v9772 = vunpack.c.h.b16 %v8546
    %v9773 = vunpack.c.l.b16 %v8547
    %v9774 = vunpack.c.h.b16 %v8547
    %v9775 = vunpack.c.l.b16 %v8548
    %v9776 = vunpack.c.h.b16 %v8548
    %v9777 = vunpack.c.l.b16 %v8549
    %v9778 = vunpack.c.h.b16 %v8549
    %v9779 = vunpack.c.l.b16 %v8550
    %v9780 = vunpack.c.h.b16 %v8550
    %v9781 = vunpack.c.l.b16 %v8551
    %v9782 = vunpack.c.h.b16 %v8551
    %v9783 = vunpack.c.l.b16 %v8552
    %v9784 = vunpack.c.h.b16 %v8552
    %v9785 = vunpack.c.l.b16 %v8553
    %v9786 = vunpack.c.h.b16 %v8553
    %v9787 = vunpack.c.l.b16 %v8554
    %v9788 = vunpack.c.h.b16 %v8554
    %v9789 = vunpack.c.l.b16 %v8555
    %v9790 = vunpack.c.h.b16 %v8555
    %v9791 = vunpack.c.l.b16 %v8556
    %v9792 = vunpack.c.h.b16 %v8556
    %v9793 = vunpack.c.l.b16 %v8557
    %v9794 = vunpack.c.h.b16 %v8557
    %v9795 = vunpack.c.l.b16 %v8558
    %v9796 = vunpack.c.h.b16 %v8558
    %v9797 = vunpack.c.l.b16 %v8559
    %v9798 = vunpack.c.h.b16 %v8559
    %v9799 = vunpack.c.l.b16 %v8560
    %v9800 = vunpack.c.h.b16 %v8560
    %v9801 = vunpack.c.l.b16 %v8561
    %v9802 = vunpack.c.h.b16 %v8561
    %v9803 = vunpack.c.l.b16 %v8562
    %v9804 = vunpack.c.h.b16 %v8562
    %v9805 = vunpack.c.l.b16 %v8563
    %v9806 = vunpack.c.h.b16 %v8563
    %v9807 = vunpack.c.l.b16 %v8564
    %v9808 = vunpack.c.h.b16 %v8564
    %v9809 = vunpack.c.l.b16 %v8565
    %v9810 = vunpack.c.h.b16 %v8565
    %v9811 = vunpack.c.l.b16 %v8566
    %v9812 = vunpack.c.h.b16 %v8566
    %v9813 = vunpack.c.l.b16 %v8567
    %v9814 = vunpack.c.h.b16 %v8567
    %v9815 = vunpack.c.l.b16 %v8568
    %v9816 = vunpack.c.h.b16 %v8568
    %v9817 = vunpack.c.l.b16 %v8569
    %v9818 = vunpack.c.h.b16 %v8569
    %v9819 = vunpack.c.l.b16 %v8570
    %v9820 = vunpack.c.h.b16 %v8570
    %v9821 = vunpack.c.l.b16 %v8571
    %v9822 = vunpack.c.h.b16 %v8571
    %v9823 = vunpack.c.l.b16 %v8572
    %v9824 = vunpack.c.h.b16 %v8572
    %v9825 = vunpack.c.l.b16 %v8573
    %v9826 = vunpack.c.h.b16 %v8573
    %v9827 = vunpack.c.l.b16 %v8574
    %v9828 = vunpack.c.h.b16 %v8574
    %v9829 = vunpack.c.l.b16 %v8575
    %v9830 = vunpack.c.h.b16 %v8575
    %v9831 = vunpack.c.l.b16 %v8576
    %v9832 = vunpack.c.h.b16 %v8576
    %v9833 = vunpack.c.l.b16 %v8577
    %v9834 = vunpack.c.h.b16 %v8577
    %v9835 = vunpack.c.l.b16 %v8578
    %v9836 = vunpack.c.h.b16 %v8578
    %v9837 = vunpack.c.l.b16 %v8579
    %v9838 = vunpack.c.h.b16 %v8579
    %v9839 = vunpack.c.l.b16 %v8580
    %v9840 = vunpack.c.h.b16 %v8580
    %v9841 = vunpack.c.l.b16 %v8581
    %v9842 = vunpack.c.h.b16 %v8581
    %v9843 = vunpack.c.l.b16 %v8582
    %v9844 = vunpack.c.h.b16 %v8582
    %v9845 = vunpack.c.l.b16 %v8583
    %v9846 = vunpack.c.h.b16 %v8583
    %v9847 = vunpack.c.l.b16 %v8584
    %v9848 = vunpack.c.h.b16 %v8584
    %v9849 = vunpack.c.l.b16 %v8585
    %v9850 = vunpack.c.h.b16 %v8585
    %v9851 = vunpack.c.l.b16 %v8586
    %v9852 = vunpack.c.h.b16 %v8586
    %v9853 = vunpack.c.l.b16 %v8587
    %v9854 = vunpack.c.h.b16 %v8587
    %v9855 = vunpack.c.l.b16 %v8588
    %v9856 = vunpack.c.h.b16 %v8588
    %v9857 = vunpack.c.l.b16 %v8589
    %v9858 = vunpack.c.h.b16 %v8589
    %v9859 = vunpack.c.l.b16 %v8590
    %v9860 = vunpack.c.h.b16 %v8590
    %v9861 = vunpack.c.l.b16 %v8591
    %v9862 = vunpack.c.h.b16 %v8591
    %v9863 = vunpack.c.l.b16 %v8592
    %v9864 = vunpack.c.h.b16 %v8592
    %v9865 = vunpack.c.l.b16 %v8593
    %v9866 = vunpack.c.h.b16 %v8593
    %v9867 = vunpack.c.l.b16 %v8594
    %v9868 = vunpack.c.h.b16 %v8594
    %v9869 = vunpack.c.l.b16 %v8595
    %v9870 = vunpack.c.h.b16 %v8595
    %v9871 = vunpack.c.l.b16 %v8596
    %v9872 = vunpack.c.h.b16 %v8596
    %v9873 = vunpack.c.l.b16 %v8597
    %v9874 = vunpack.c.h.b16 %v8597
    %v9875 = vunpack.c.l.b16 %v8598
    %v9876 = vunpack.c.h.b16 %v8598
    %v9877 = vunpack.c.l.b16 %v8599
    %v9878 = vunpack.c.h.b16 %v8599
    %v9879 = vunpack.c.l.b16 %v8600
    %v9880 = vunpack.c.h.b16 %v8600
    %v9881 = vunpack.c.l.b16 %v8601
    %v9882 = vunpack.c.h.b16 %v8601
    %v9883 = vunpack.c.l.b16 %v8602
    %v9884 = vunpack.c.h.b16 %v8602
    %v9885 = vunpack.c.l.b16 %v8603
    %v9886 = vunpack.c.h.b16 %v8603
    %v9887 = vunpack.c.l.b16 %v8604
    %v9888 = vunpack.c.h.b16 %v8604
    %v9889 = vunpack.c.l.b16 %v8605
    %v9890 = vunpack.c.h.b16 %v8605
    %v9891 = vunpack.c.l.b16 %v8606
    %v9892 = vunpack.c.h.b16 %v8606
    %v9893 = vunpack.c.l.b16 %v8607
    %v9894 = vunpack.c.h.b16 %v8607
    %v9895 = vunpack.c.l.b16 %v8608
    %v9896 = vunpack.c.h.b16 %v8608
    %v9897 = vunpack.c.l.b16 %v8609
    %v9898 = vunpack.c.h.b16 %v8609
    %v9899 = vunpack.c.l.b16 %v8610
    %v9900 = vunpack.c.h.b16 %v8610
    %v9901 = vunpack.c.l.b16 %v8611
    %v9902 = vunpack.c.h.b16 %v8611
    %v9903 = vunpack.c.l.b16 %v8612
    %v9904 = vunpack.c.h.b16 %v8612
    %v9905 = vunpack.c.l.b16 %v8613
    %v9906 = vunpack.c.h.b16 %v8613
    %v9907 = vunpack.c.l.b16 %v8614
    %v9908 = vunpack.c.h.b16 %v8614
    %v9909 = vunpack.c.l.b16 %v8615
    %v9910 = vunpack.c.h.b16 %v8615
    %v9911 = vunpack.c.l.b16 %v8616
    %v9912 = vunpack.c.h.b16 %v8616
    %v9913 = vunpack.c.l.b16 %v8617
    %v9914 = vunpack.c.h.b16 %v8617
    %v9915 = vunpack.c.l.b16 %v8618
    %v9916 = vunpack.c.h.b16 %v8618
    %v9917 = vunpack.c.l.b16 %v8619
    %v9918 = vunpack.c.h.b16 %v8619
    %v9919 = vunpack.c.l.b16 %v8620
    %v9920 = vunpack.c.h.b16 %v8620
    %v9921 = vunpack.c.l.b16 %v8621
    %v9922 = vunpack.c.h.b16 %v8621
    %v9923 = vunpack.c.l.b16 %v8622
    %v9924 = vunpack.c.h.b16 %v8622
    %v9925 = vunpack.c.l.b16 %v8623
    %v9926 = vunpack.c.h.b16 %v8623
    %v9927 = vunpack.c.l.b16 %v8624
    %v9928 = vunpack.c.h.b16 %v8624
    %v9929 = vunpack.c.l.b16 %v8625
    %v9930 = vunpack.c.h.b16 %v8625
    %v9931 = vunpack.c.l.b16 %v8626
    %v9932 = vunpack.c.h.b16 %v8626
    %v9933 = vunpack.c.l.b16 %v8627
    %v9934 = vunpack.c.h.b16 %v8627
    %v9935 = vunpack.c.l.b16 %v8628
    %v9936 = vunpack.c.h.b16 %v8628
    %v9937 = vunpack.c.l.b16 %v8629
    %v9938 = vunpack.c.h.b16 %v8629
    %v9939 = vunpack.c.l.b16 %v8630
    %v9940 = vunpack.c.h.b16 %v8630
    %v9941 = vunpack.c.l.b16 %v8631
    %v9942 = vunpack.c.h.b16 %v8631
    %v9943 = vunpack.c.l.b16 %v8632
    %v9944 = vunpack.c.h.b16 %v8632
    %v9945 = vunpack.c.l.b16 %v8633
    %v9946 = vunpack.c.h.b16 %v8633
    %v9947 = vunpack.c.l.b16 %v8634
    %v9948 = vunpack.c.h.b16 %v8634
    %v9949 = vunpack.c.l.b16 %v8635
    %v9950 = vunpack.c.h.b16 %v8635
    %v9951 = vunpack.c.l.b16 %v8636
    %v9952 = vunpack.c.h.b16 %v8636
    %v9953 = vunpack.c.l.b16 %v8637
    %v9954 = vunpack.c.h.b16 %v8637
    %v9955 = vunpack.c.l.b16 %v8638
    %v9956 = vunpack.c.h.b16 %v8638
    %v9957 = vunpack.c.l.b16 %v8639
    %v9958 = vunpack.c.h.b16 %v8639
    %v9959 = vunpack.c.l.b16 %v8640
    %v9960 = vunpack.c.h.b16 %v8640
    %v9961 = vunpack.c.l.b16 %v8641
    %v9962 = vunpack.c.h.b16 %v8641
    %v9963 = vunpack.c.l.b16 %v8642
    %v9964 = vunpack.c.h.b16 %v8642
    %v9965 = vunpack.c.l.b16 %v8643
    %v9966 = vunpack.c.h.b16 %v8643
    %v9967 = vunpack.c.l.b16 %v8644
    %v9968 = vunpack.c.h.b16 %v8644
    %v9969 = vunpack.c.l.b16 %v8645
    %v9970 = vunpack.c.h.b16 %v8645
    %v9971 = vunpack.c.l.b16 %v8646
    %v9972 = vunpack.c.h.b16 %v8646
    %v9973 = vunpack.c.l.b16 %v8647
    %v9974 = vunpack.c.h.b16 %v8647
    %v9975 = vunpack.c.l.b16 %v8648
    %v9976 = vunpack.c.h.b16 %v8648
    %v9977 = vunpack.c.l.b16 %v8649
    %v9978 = vunpack.c.h.b16 %v8649
    %v9979 = vunpack.c.l.b16 %v8650
    %v9980 = vunpack.c.h.b16 %v8650
    %v9981 = vunpack.c.l.b16 %v8651
    %v9982 = vunpack.c.h.b16 %v8651
    %v9983 = vunpack.c.l.b16 %v8652
    %v9984 = vunpack.c.h.b16 %v8652
    %v9985 = vunpack.c.l.b16 %v8653
    %v9986 = vunpack.c.h.b16 %v8653
    %v9987 = vunpack.c.l.b16 %v8654
    %v9988 = vunpack.c.h.b16 %v8654
    %v9989 = vunpack.c.l.b16 %v8655
    %v9990 = vunpack.c.h.b16 %v8655
    %v9991 = vunpack.c.l.b16 %v8656
    %v9992 = vunpack.c.h.b16 %v8656
    %v9993 = vunpack.c.l.b16 %v8657
    %v9994 = vunpack.c.h.b16 %v8657
    %v9995 = vunpack.c.l.b16 %v8658
    %v9996 = vunpack.c.h.b16 %v8658
    %v9997 = vunpack.c.l.b16 %v8659
    %v9998 = vunpack.c.h.b16 %v8659
    %v9999 = vunpack.c.l.b16 %v8660
    %v10000 = vunpack.c.h.b16 %v8660
    %v10001 = vunpack.c.l.b16 %v8661
    %v10002 = vunpack.c.h.b16 %v8661
    %v10003 = vunpack.c.l.b16 %v8662
    %v10004 = vunpack.c.h.b16 %v8662
    %v10005 = vunpack.c.l.b16 %v8663
    %v10006 = vunpack.c.h.b16 %v8663
    %v10007 = vunpack.c.l.b16 %v8664
    %v10008 = vunpack.c.h.b16 %v8664
    %v10009 = vunpack.c.l.b16 %v8665
    %v10010 = vunpack.c.h.b16 %v8665
    %v10011 = vunpack.c.l.b16 %v8666
    %v10012 = vunpack.c.h.b16 %v8666
    %v10013 = vunpack.c.l.b16 %v8667
    %v10014 = vunpack.c.h.b16 %v8667
    %v10015 = vunpack.c.l.b16 %v8668
    %v10016 = vunpack.c.h.b16 %v8668
    %v10017 = vunpack.c.l.b16 %v8669
    %v10018 = vunpack.c.h.b16 %v8669
    %v10019 = vunpack.c.l.b16 %v8670
    %v10020 = vunpack.c.h.b16 %v8670
    %v10021 = vunpack.c.l.b16 %v8671
    %v10022 = vunpack.c.h.b16 %v8671
    %v10023 = vunpack.c.l.b16 %v8672
    %v10024 = vunpack.c.h.b16 %v8672
    %v10025 = vunpack.c.l.b16 %v8673
    %v10026 = vunpack.c.h.b16 %v8673
    %v10027 = vunpack.c.l.b16 %v8674
    %v10028 = vunpack.c.h.b16 %v8674
    %v10029 = vunpack.c.l.b16 %v8675
    %v10030 = vunpack.c.h.b16 %v8675
    %v10031 = vunpack.c.l.b16 %v8676
    %v10032 = vunpack.c.h.b16 %v8676
    %v10033 = vunpack.c.l.b16 %v8677
    %v10034 = vunpack.c.h.b16 %v8677
    %v10035 = vunpack.c.l.b16 %v8678
    %v10036 = vunpack.c.h.b16 %v8678
    %v10037 = vunpack.c.l.b16 %v8679
    %v10038 = vunpack.c.h.b16 %v8679
    %v10039 = vunpack.c.l.b16 %v8680
    %v10040 = vunpack.c.h.b16 %v8680
    %v10041 = vunpack.c.l.b16 %v8681
    %v10042 = vunpack.c.h.b16 %v8681
    %v10043 = vunpack.c.l.b16 %v8682
    %v10044 = vunpack.c.h.b16 %v8682
    %v10045 = vunpack.c.l.b16 %v8683
    %v10046 = vunpack.c.h.b16 %v8683
    %v10047 = vunpack.c.l.b16 %v8684
    %v10048 = vunpack.c.h.b16 %v8684
    %v10049 = vunpack.c.l.b16 %v8685
    %v10050 = vunpack.c.h.b16 %v8685
    %v10051 = vunpack.c.l.b16 %v8686
    %v10052 = vunpack.c.h.b16 %v8686
    %v10053 = vunpack.c.l.b16 %v8687
    %v10054 = vunpack.c.h.b16 %v8687
    %v10055 = vunpack.c.l.b16 %v8688
    %v10056 = vunpack.c.h.b16 %v8688
    %v10057 = vunpack.c.l.b16 %v8689
    %v10058 = vunpack.c.h.b16 %v8689
    %v10059 = vunpack.c.l.b16 %v8690
    %v10060 = vunpack.c.h.b16 %v8690
    %v10061 = vunpack.c.l.b16 %v8691
    %v10062 = vunpack.c.h.b16 %v8691
    %v10063 = vunpack.c.l.b16 %v8692
    %v10064 = vunpack.c.h.b16 %v8692
    %v10065 = vunpack.c.l.b16 %v8693
    %v10066 = vunpack.c.h.b16 %v8693
    %v10067 = vunpack.c.l.b16 %v8694
    %v10068 = vunpack.c.h.b16 %v8694
    %v10069 = vunpack.c.l.b16 %v8695
    %v10070 = vunpack.c.h.b16 %v8695
    %v10071 = vunpack.c.l.b16 %v8696
    %v10072 = vunpack.c.h.b16 %v8696
    %v10073 = vunpack.c.l.b16 %v8697
    %v10074 = vunpack.c.h.b16 %v8697
    %v10075 = vunpack.c.l.b16 %v8698
    %v10076 = vunpack.c.h.b16 %v8698
    %v10077 = vunpack.c.l.b16 %v8699
    %v10078 = vunpack.c.h.b16 %v8699
    %v10079 = vunpack.c.l.b16 %v8700
    %v10080 = vunpack.c.h.b16 %v8700
    %v10081 = vunpack.c.l.b16 %v8701
    %v10082 = vunpack.c.h.b16 %v8701
    %v10083 = vunpack.c.l.b16 %v8702
    %v10084 = vunpack.c.h.b16 %v8702
    %v10085 = vunpack.c.l.b16 %v8703
    %v10086 = vunpack.c.h.b16 %v8703
    %v10087 = vunpack.c.l.b16 %v8704
    %v10088 = vunpack.c.h.b16 %v8704
    %v10089 = vunpack.c.l.b16 %v8705
    %v10090 = vunpack.c.h.b16 %v8705
    %v10091 = vunpack.c.l.b16 %v8706
    %v10092 = vunpack.c.h.b16 %v8706
    %v10093 = vunpack.c.l.b16 %v8707
    %v10094 = vunpack.c.h.b16 %v8707
    %v10095 = vunpack.c.l.b16 %v8708
    %v10096 = vunpack.c.h.b16 %v8708
    %v10097 = vunpack.c.l.b16 %v8709
    %v10098 = vunpack.c.h.b16 %v8709
    %v10099 = vunpack.c.l.b16 %v8710
    %v10100 = vunpack.c.h.b16 %v8710
    %v10101 = vunpack.c.l.b16 %v8711
    %v10102 = vunpack.c.h.b16 %v8711
    %v10103 = vunpack.c.l.b16 %v8712
    %v10104 = vunpack.c.h.b16 %v8712
    %v10105 = vunpack.c.l.b16 %v8713
    %v10106 = vunpack.c.h.b16 %v8713
    %v10107 = vunpack.c.l.b16 %v8714
    %v10108 = vunpack.c.h.b16 %v8714
    %v10109 = vunpack.c.l.b16 %v8715
    %v10110 = vunpack.c.h.b16 %v8715
    %v10111 = vunpack.c.l.b16 %v8716
    %v10112 = vunpack.c.h.b16 %v8716
    %v10113 = vunpack.c.l.b16 %v8717
    %v10114 = vunpack.c.h.b16 %v8717
    %v10115 = vunpack.c.l.b16 %v8718
    %v10116 = vunpack.c.h.b16 %v8718
    %v10117 = vunpack.c.l.b16 %v8719
    %v10118 = vunpack.c.h.b16 %v8719
    %v10119 = vunpack.c.l.b16 %v8720
    %v10120 = vunpack.c.h.b16 %v8720
    %v10121 = vunpack.c.l.b16 %v8721
    %v10122 = vunpack.c.h.b16 %v8721
    %v10123 = vunpack.c.l.b16 %v8722
    %v10124 = vunpack.c.h.b16 %v8722
    %v10125 = vunpack.c.l.b16 %v8723
    %v10126 = vunpack.c.h.b16 %v8723
    %v10127 = vunpack.c.l.b16 %v8724
    %v10128 = vunpack.c.h.b16 %v8724
    %v10129 = vunpack.c.l.b16 %v8725
    %v10130 = vunpack.c.h.b16 %v8725
    %v10131 = vunpack.c.l.b16 %v8726
    %v10132 = vunpack.c.h.b16 %v8726
    %v10133 = vunpack.c.l.b16 %v8727
    %v10134 = vunpack.c.h.b16 %v8727
    %v10135 = vunpack.c.l.b16 %v8728
    %v10136 = vunpack.c.h.b16 %v8728
    %v10137 = vunpack.c.l.b16 %v8729
    %v10138 = vunpack.c.h.b16 %v8729
    %v10139 = vunpack.c.l.b16 %v8730
    %v10140 = vunpack.c.h.b16 %v8730
    %v10141 = vunpack.c.l.b16 %v8731
    %v10142 = vunpack.c.h.b16 %v8731
    %v10143 = vunpack.c.l.b16 %v8732
    %v10144 = vunpack.c.h.b16 %v8732
    %v10145 = vunpack.c.l.b16 %v8733
    %v10146 = vunpack.c.h.b16 %v8733
    %v10147 = vunpack.c.l.b16 %v8734
    %v10148 = vunpack.c.h.b16 %v8734
    %v10149 = vunpack.c.l.b16 %v8735
    %v10150 = vunpack.c.h.b16 %v8735
    %v10151 = vunpack.c.l.b16 %v8736
    %v10152 = vunpack.c.h.b16 %v8736
    %v10153 = vunpack.c.l.b16 %v8737
    %v10154 = vunpack.c.h.b16 %v8737
    %v10155 = vunpack.c.l.b16 %v8738
    %v10156 = vunpack.c.h.b16 %v8738
    %v10157 = vunpack.c.l.b16 %v8739
    %v10158 = vunpack.c.h.b16 %v8739
    %v10159 = vunpack.c.l.b16 %v8740
    %v10160 = vunpack.c.h.b16 %v8740
    %v10161 = vunpack.c.l.b16 %v8741
    %v10162 = vunpack.c.h.b16 %v8741
    %v10163 = vunpack.c.l.b16 %v8742
    %v10164 = vunpack.c.h.b16 %v8742
    %v10165 = vunpack.c.l.b16 %v8743
    %v10166 = vunpack.c.h.b16 %v8743
    %v10167 = vunpack.c.l.b16 %v8744
    %v10168 = vunpack.c.h.b16 %v8744
    %v10169 = vunpack.c.l.b16 %v8745
    %v10170 = vunpack.c.h.b16 %v8745
    %v10171 = vunpack.c.l.b16 %v8746
    %v10172 = vunpack.c.h.b16 %v8746
    %v10173 = vunpack.c.l.b16 %v8747
    %v10174 = vunpack.c.h.b16 %v8747
    %v10175 = vunpack.c.l.b16 %v8748
    %v10176 = vunpack.c.h.b16 %v8748
    %v10177 = vunpack.c.l.b16 %v8749
    %v10178 = vunpack.c.h.b16 %v8749
    %v10179 = vunpack.c.l.b16 %v8750
    %v10180 = vunpack.c.h.b16 %v8750
    %v10181 = vunpack.c.l.b16 %v8751
    %v10182 = vunpack.c.h.b16 %v8751
    %v10183 = vunpack.c.l.b16 %v8752
    %v10184 = vunpack.c.h.b16 %v8752
    %v10185 = vunpack.c.l.b16 %v8753
    %v10186 = vunpack.c.h.b16 %v8753
    %v10187 = vunpack.c.l.b16 %v8754
    %v10188 = vunpack.c.h.b16 %v8754
    %v10189 = vunpack.c.l.b16 %v8755
    %v10190 = vunpack.c.h.b16 %v8755
    %v10191 = vunpack.c.l.b16 %v8756
    %v10192 = vunpack.c.h.b16 %v8756
    %v10193 = vunpack.c.l.b16 %v8757
    %v10194 = vunpack.c.h.b16 %v8757
    %v10195 = vunpack.c.l.b16 %v8758
    %v10196 = vunpack.c.h.b16 %v8758
    %v10197 = vunpack.c.l.b16 %v8759
    %v10198 = vunpack.c.h.b16 %v8759
    %v10199 = vunpack.c.l.b16 %v8760
    %v10200 = vunpack.c.h.b16 %v8760
    %v10201 = vunpack.c.l.b16 %v8761
    %v10202 = vunpack.c.h.b16 %v8761
    %v10203 = vunpack.c.l.b16 %v8762
    %v10204 = vunpack.c.h.b16 %v8762
    %v10205 = vunpack.c.l.b16 %v8763
    %v10206 = vunpack.c.h.b16 %v8763
    %v10207 = vunpack.c.l.b16 %v8764
    %v10208 = vunpack.c.h.b16 %v8764
    %v10209 = vunpack.c.l.b16 %v8765
    %v10210 = vunpack.c.h.b16 %v8765
    %v10211 = vunpack.c.l.b16 %v8766
    %v10212 = vunpack.c.h.b16 %v8766
    %v10213 = vunpack.c.l.b16 %v8767
    %v10214 = vunpack.c.h.b16 %v8767
    %v10215 = vunpack.c.l.b16 %v8768
    %v10216 = vunpack.c.h.b16 %v8768
    %v10217 = vunpack.c.l.b16 %v8769
    %v10218 = vunpack.c.h.b16 %v8769
    %v10219 = vunpack.c.l.b16 %v8770
    %v10220 = vunpack.c.h.b16 %v8770
    %v10221 = vunpack.c.l.b16 %v8771
    %v10222 = vunpack.c.h.b16 %v8771
    %v10223 = vunpack.c.l.b16 %v8772
    %v10224 = vunpack.c.h.b16 %v8772
    %v10225 = vunpack.c.l.b16 %v8773
    %v10226 = vunpack.c.h.b16 %v8773
    %v10227 = vunpack.c.l.b16 %v8774
    %v10228 = vunpack.c.h.b16 %v8774
    %v10229 = vunpack.c.l.b16 %v8775
    %v10230 = vunpack.c.h.b16 %v8775
    %v10231 = vunpack.c.l.b16 %v8776
    %v10232 = vunpack.c.h.b16 %v8776
    %v10233 = vunpack.c.l.b16 %v8777
    %v10234 = vunpack.c.h.b16 %v8777
    %v10235 = vunpack.c.l.b16 %v8778
    %v10236 = vunpack.c.h.b16 %v8778
    %v10237 = vunpack.c.l.b16 %v8779
    %v10238 = vunpack.c.h.b16 %v8779
    %v10239 = vunpack.c.l.b16 %v8780
    %v10240 = vunpack.c.h.b16 %v8780
    %v10241 = vunpack.c.l.b16 %v8781
    %v10242 = vunpack.c.h.b16 %v8781
    %v10243 = vunpack.c.l.b16 %v8782
    %v10244 = vunpack.c.h.b16 %v8782
    %v10245 = vunpack.c.l.b16 %v8783
    %v10246 = vunpack.c.h.b16 %v8783
    %v10247 = vunpack.c.l.b16 %v8784
    %v10248 = vunpack.c.h.b16 %v8784
    %v10249 = vunpack.c.l.b16 %v8785
    %v10250 = vunpack.c.h.b16 %v8785
    %v10251 = vunpack.c.l.b16 %v8786
    %v10252 = vunpack.c.h.b16 %v8786
    %v10253 = vunpack.c.l.b16 %v8787
    %v10254 = vunpack.c.h.b16 %v8787
    %v10255 = vunpack.c.l.b16 %v8788
    %v10256 = vunpack.c.h.b16 %v8788
    %v10257 = vunpack.c.l.b16 %v8789
    %v10258 = vunpack.c.h.b16 %v8789
    %v10259 = vunpack.c.l.b16 %v8790
    %v10260 = vunpack.c.h.b16 %v8790
    %v10261 = vunpack.c.l.b16 %v8791
    %v10262 = vunpack.c.h.b16 %v8791
    %v10263 = vunpack.c.l.b16 %v8792
    %v10264 = vunpack.c.h.b16 %v8792
    %v10265 = vunpack.c.l.b16 %v8793
    %v10266 = vunpack.c.h.b16 %v8793
    %v10267 = vunpack.c.l.b16 %v8794
    %v10268 = vunpack.c.h.b16 %v8794
    %v10269 = vunpack.c.l.b16 %v8795
    %v10270 = vunpack.c.h.b16 %v8795
    %v10271 = vunpack.c.l.b16 %v8796
    %v10272 = vunpack.c.h.b16 %v8796
    %v10273 = vunpack.c.l.b16 %v8797
    %v10274 = vunpack.c.h.b16 %v8797
    %v10275 = vunpack.c.l.b16 %v8798
    %v10276 = vunpack.c.h.b16 %v8798
    %v10277 = vunpack.c.l.b16 %v8799
    %v10278 = vunpack.c.h.b16 %v8799
    %v10279 = vunpack.c.l.b16 %v8800
    %v10280 = vunpack.c.h.b16 %v8800
    %v10281 = vunpack.c.l.b16 %v8801
    %v10282 = vunpack.c.h.b16 %v8801
    %v10283 = vunpack.c.l.b16 %v8802
    %v10284 = vunpack.c.h.b16 %v8802
    %v10285 = vunpack.c.l.b16 %v8803
    %v10286 = vunpack.c.h.b16 %v8803
    %v10287 = vunpack.c.l.b16 %v8804
    %v10288 = vunpack.c.h.b16 %v8804
    %v10289 = vunpack.c.l.b16 %v8805
    %v10290 = vunpack.c.h.b16 %v8805
    %v10291 = vunpack.c.l.b16 %v8806
    %v10292 = vunpack.c.h.b16 %v8806
    %v10293 = vunpack.c.l.b16 %v8807
    %v10294 = vunpack.c.h.b16 %v8807
    %v10295 = vunpack.c.l.b16 %v8808
    %v10296 = vunpack.c.h.b16 %v8808
    %v10297 = vunpack.c.l.b16 %v8809
    %v10298 = vunpack.c.h.b16 %v8809
    %v10299 = vunpack.c.l.b16 %v8810
    %v10300 = vunpack.c.h.b16 %v8810
    %v10301 = vunpack.c.l.b16 %v8811
    %v10302 = vunpack.c.h.b16 %v8811
    %v10303 = vunpack.c.l.b16 %v8812
    %v10304 = vunpack.c.h.b16 %v8812
    %v10305 = vunpack.c.l.b16 %v8813
    %v10306 = vunpack.c.h.b16 %v8813
    %v10307 = vunpack.c.l.b16 %v8814
    %v10308 = vunpack.c.h.b16 %v8814
    %v10309 = vunpack.c.l.b16 %v8815
    %v10310 = vunpack.c.h.b16 %v8815
    %v10311 = vunpack.c.l.b16 %v8816
    %v10312 = vunpack.c.h.b16 %v8816
    %v10313 = vunpack.c.l.b16 %v8817
    %v10314 = vunpack.c.h.b16 %v8817
    %v10315 = vunpack.c.l.b16 %v8818
    %v10316 = vunpack.c.h.b16 %v8818
    %v10317 = vunpack.c.l.b16 %v8819
    %v10318 = vunpack.c.h.b16 %v8819
    %v10319 = vunpack.c.l.b16 %v8820
    %v10320 = vunpack.c.h.b16 %v8820
    %v10321 = vunpack.c.l.b16 %v8821
    %v10322 = vunpack.c.h.b16 %v8821
    %v10323 = vunpack.c.l.b16 %v8822
    %v10324 = vunpack.c.h.b16 %v8822
    %v10325 = vunpack.c.l.b16 %v8823
    %v10326 = vunpack.c.h.b16 %v8823
    %v10327 = vunpack.c.l.b16 %v8824
    %v10328 = vunpack.c.h.b16 %v8824
    %v10329 = vunpack.c.l.b16 %v8825
    %v10330 = vunpack.c.h.b16 %v8825
    %v10331 = vunpack.c.l.b16 %v8826
    %v10332 = vunpack.c.h.b16 %v8826
    %v10333 = vunpack.c.l.b16 %v8827
    %v10334 = vunpack.c.h.b16 %v8827
    %v10335 = vunpack.c.l.b16 %v8828
    %v10336 = vunpack.c.h.b16 %v8828
    %v10337 = vunpack.c.l.b16 %v8829
    %v10338 = vunpack.c.h.b16 %v8829
    %v10339 = vunpack.c.l.b16 %v8830
    %v10340 = vunpack.c.h.b16 %v8830
    %v10341 = vunpack.c.l.b16 %v8831
    %v10342 = vunpack.c.h.b16 %v8831
    %v10343 = vunpack.c.l.b16 %v8832
    %v10344 = vunpack.c.h.b16 %v8832
    %v10345 = vunpack.c.l.b16 %v8833
    %v10346 = vunpack.c.h.b16 %v8833
    %v10347 = vunpack.c.l.b16 %v8834
    %v10348 = vunpack.c.h.b16 %v8834
    %v10349 = vunpack.c.l.b16 %v8835
    %v10350 = vunpack.c.h.b16 %v8835
    %v10351 = vunpack.c.l.b16 %v8836
    %v10352 = vunpack.c.h.b16 %v8836
    %v10353 = vunpack.c.l.b16 %v8837
    %v10354 = vunpack.c.h.b16 %v8837
    %v10355 = vunpack.c.l.b16 %v8838
    %v10356 = vunpack.c.h.b16 %v8838
    %v10357 = vunpack.c.l.b16 %v8839
    %v10358 = vunpack.c.h.b16 %v8839
    %v10359 = vunpack.c.l.b16 %v8840
    %v10360 = vunpack.c.h.b16 %v8840
    %v10361 = vunpack.c.l.b16 %v8841
    %v10362 = vunpack.c.h.b16 %v8841
    %v10363 = vunpack.c.l.b16 %v8842
    %v10364 = vunpack.c.h.b16 %v8842
    %v10365 = vunpack.c.l.b16 %v8843
    %v10366 = vunpack.c.h.b16 %v8843
    %v10367 = vunpack.c.l.b16 %v8844
    %v10368 = vunpack.c.h.b16 %v8844
    %v10369 = vunpack.c.l.b16 %v8845
    %v10370 = vunpack.c.h.b16 %v8845
    %v10371 = vunpack.c.l.b16 %v8846
    %v10372 = vunpack.c.h.b16 %v8846
    %v10373 = vunpack.c.l.b16 %v8847
    %v10374 = vunpack.c.h.b16 %v8847
    %v10375 = vunpack.c.l.b16 %v8848
    %v10376 = vunpack.c.h.b16 %v8848
    %v10377 = vunpack.c.l.b16 %v8849
    %v10378 = vunpack.c.h.b16 %v8849
    %v10379 = vunpack.c.l.b16 %v8850
    %v10380 = vunpack.c.h.b16 %v8850
    %v10381 = vunpack.c.l.b16 %v8851
    %v10382 = vunpack.c.h.b16 %v8851
    %v10383 = vunpack.c.l.b16 %v8852
    %v10384 = vunpack.c.h.b16 %v8852
    %v10385 = vunpack.c.l.b16 %v8853
    %v10386 = vunpack.c.h.b16 %v8853
    %v10387 = vunpack.c.l.b16 %v8854
    %v10388 = vunpack.c.h.b16 %v8854
    %v10389 = vunpack.c.l.b16 %v8855
    %v10390 = vunpack.c.h.b16 %v8855
    %v10391 = vunpack.c.l.b16 %v8856
    %v10392 = vunpack.c.h.b16 %v8856
    %v10393 = vunpack.c.l.b16 %v8857
    %v10394 = vunpack.c.h.b16 %v8857
    %v10395 = vunpack.c.l.b16 %v8858
    %v10396 = vunpack.c.h.b16 %v8858
    %v10397 = vunpack.c.l.b16 %v8859
    %v10398 = vunpack.c.h.b16 %v8859
    %v10399 = vunpack.c.l.b16 %v8860
    %v10400 = vunpack.c.h.b16 %v8860
    %v10401 = vunpack.c.l.b16 %v8861
    %v10402 = vunpack.c.h.b16 %v8861
    %v10403 = vunpack.c.l.b16 %v8862
    %v10404 = vunpack.c.h.b16 %v8862
    %v10405 = vunpack.c.l.b16 %v8863
    %v10406 = vunpack.c.h.b16 %v8863
    %v10407 = vunpack.c.l.b16 %v8864
    %v10408 = vunpack.c.h.b16 %v8864
    %v10409 = vunpack.c.l.b16 %v8865
    %v10410 = vunpack.c.h.b16 %v8865
    %v10411 = vunpack.c.l.b16 %v8866
    %v10412 = vunpack.c.h.b16 %v8866
    %v10413 = vunpack.c.l.b16 %v8867
    %v10414 = vunpack.c.h.b16 %v8867
    %v10415 = vunpack.c.l.b16 %v8868
    %v10416 = vunpack.c.h.b16 %v8868
    %v10417 = vunpack.c.l.b16 %v8869
    %v10418 = vunpack.c.h.b16 %v8869
    %v10419 = vunpack.c.l.b16 %v8870
    %v10420 = vunpack.c.h.b16 %v8870
    %v10421 = vunpack.c.l.b16 %v8871
    %v10422 = vunpack.c.h.b16 %v8871
    %v10423 = vunpack.c.l.b16 %v8872
    %v10424 = vunpack.c.h.b16 %v8872
    %v10425 = vunpack.c.l.b16 %v8873
    %v10426 = vunpack.c.h.b16 %v8873
    %v10427 = vunpack.c.l.b16 %v8874
    %v10428 = vunpack.c.h.b16 %v8874
    %v10429 = vunpack.c.l.b16 %v8875
    %v10430 = vunpack.c.h.b16 %v8875
    %v10431 = vunpack.c.l.b16 %v8876
    %v10432 = vunpack.c.h.b16 %v8876
    %v10433 = vunpack.c.l.b16 %v8877
    %v10434 = vunpack.c.h.b16 %v8877
    %v10435 = vunpack.c.l.b16 %v8878
    %v10436 = vunpack.c.h.b16 %v8878
    %v10437 = vunpack.c.l.b16 %v8879
    %v10438 = vunpack.c.h.b16 %v8879
    %v10439 = vunpack.c.l.b16 %v8880
    %v10440 = vunpack.c.h.b16 %v8880
    %v10441 = vunpack.c.l.b16 %v8881
    %v10442 = vunpack.c.h.b16 %v8881
    %v10443 = vunpack.c.l.b16 %v8882
    %v10444 = vunpack.c.h.b16 %v8882
    %v10445 = vunpack.c.l.b16 %v8883
    %v10446 = vunpack.c.h.b16 %v8883
    %v10447 = vunpack.c.l.b16 %v8884
    %v10448 = vunpack.c.h.b16 %v8884
    %v10449 = vunpack.c.l.b16 %v8885
    %v10450 = vunpack.c.h.b16 %v8885
    %v10451 = vunpack.c.l.b16 %v8886
    %v10452 = vunpack.c.h.b16 %v8886
    %v10453 = vunpack.c.l.b16 %v8887
    %v10454 = vunpack.c.h.b16 %v8887
    %v10455 = vunpack.c.l.b16 %v8888
    %v10456 = vunpack.c.h.b16 %v8888
    %v10457 = vunpack.c.l.b16 %v8889
    %v10458 = vunpack.c.h.b16 %v8889
    %v10459 = vunpack.c.l.b16 %v8890
    %v10460 = vunpack.c.h.b16 %v8890
    %v10461 = vunpack.c.l.b16 %v8891
    %v10462 = vunpack.c.h.b16 %v8891
    %v10463 = vunpack.c.l.b16 %v8892
    %v10464 = vunpack.c.h.b16 %v8892
    %v10465 = vunpack.c.l.b16 %v8893
    %v10466 = vunpack.c.h.b16 %v8893
    %v10467 = vunpack.c.l.b16 %v8894
    %v10468 = vunpack.c.h.b16 %v8894
    %v10469 = vunpack.c.l.b16 %v8895
    %v10470 = vunpack.c.h.b16 %v8895
    %v10471 = vunpack.c.l.b16 %v8896
    %v10472 = vunpack.c.h.b16 %v8896
    %v10473 = vunpack.c.l.b16 %v8897
    %v10474 = vunpack.c.h.b16 %v8897
    %v10475 = vunpack.c.l.b16 %v8898
    %v10476 = vunpack.c.h.b16 %v8898
    %v10477 = vpack.c.b16 %v9461, %v9453
    %v10478 = vpack.c.b16 %v9462, %v9454
    %v10479 = vpack.c.b16 %v9463, %v9455
    %v10480 = vpack.c.b16 %v9464, %v9456
    %v10481 = vpack.c.b16 %v9465, %v9457
    %v10482 = vpack.c.b16 %v9466, %v9458
    %v10483 = vpack.c.b16 %v9467, %v9459
    %v10484 = vpack.c.b16 %v9468, %v9460
    %v10485 = vpack.c.b16 %v9477, %v9469
    %v10486 = vpack.c.b16 %v9478, %v9470
    %v10487 = vpack.c.b16 %v9479, %v9471
    %v10488 = vpack.c.b16 %v9480, %v9472
    %v10489 = vpack.c.b16 %v9481, %v9473
    %v10490 = vpack.c.b16 %v9482, %v9474
    %v10491 = vpack.c.b16 %v9483, %v9475
    %v10492 = vpack.c.b16 %v9484, %v9476
    %v10493 = vpack.c.b16 %v9493, %v9485
    %v10494 = vpack.c.b16 %v9494, %v9486
    %v10495 = vpack.c.b16 %v9495, %v9487
    %v10496 = vpack.c.b16 %v9496, %v9488
    %v10497 = vpack.c.b16 %v9497, %v9489
    %v10498 = vpack.c.b16 %v9498, %v9490
    %v10499 = vpack.c.b16 %v9499, %v9491
    %v10500 = vpack.c.b16 %v9500, %v9492
    %v10501 = vpack.c.b16 %v9509, %v9501
    %v10502 = vpack.c.b16 %v9510, %v9502
    %v10503 = vpack.c.b16 %v9511, %v9503
    %v10504 = vpack.c.b16 %v9512, %v9504
    %v10505 = vpack.c.b16 %v9513, %v9505
    %v10506 = vpack.c.b16 %v9514, %v9506
    %v10507 = vpack.c.b16 %v9515, %v9507
    %v10508 = vpack.c.b16 %v9516, %v9508
    %v10509 = vpack.c.b16 %v9525, %v9517
    %v10510 = vpack.c.b16 %v9526, %v9518
    %v10511 = vpack.c.b16 %v9527, %v9519
    %v10512 = vpack.c.b16 %v9528, %v9520
    %v10513 = vpack.c.b16 %v9529, %v9521
    %v10514 = vpack.c.b16 %v9530, %v9522
    %v10515 = vpack.c.b16 %v9531, %v9523
    %v10516 = vpack.c.b16 %v9532, %v9524
    %v10517 = vpack.c.b16 %v9541, %v9533
    %v10518 = vpack.c.b16 %v9542, %v9534
    %v10519 = vpack.c.b16 %v9543, %v9535
    %v10520 = vpack.c.b16 %v9544, %v9536
    %v10521 = vpack.c.b16 %v9545, %v9537
    %v10522 = vpack.c.b16 %v9546, %v9538
    %v10523 = vpack.c.b16 %v9547, %v9539
    %v10524 = vpack.c.b16 %v9548, %v9540
    %v10525 = vpack.c.b16 %v9557, %v9549
    %v10526 = vpack.c.b16 %v9558, %v9550
    %v10527 = vpack.c.b16 %v9559, %v9551
    %v10528 = vpack.c.b16 %v9560, %v9552
    %v10529 = vpack.c.b16 %v9561, %v9553
    %v10530 = vpack.c.b16 %v9562, %v9554
    %v10531 = vpack.c.b16 %v9563, %v9555
    %v10532 = vpack.c.b16 %v9564, %v9556
    %v10533 = vpack.c.b16 %v9573, %v9565
    %v10534 = vpack.c.b16 %v9574, %v9566
    %v10535 = vpack.c.b16 %v9575, %v9567
    %v10536 = vpack.c.b16 %v9576, %v9568
    %v10537 = vpack.c.b16 %v9577, %v9569
    %v10538 = vpack.c.b16 %v9578, %v9570
    %v10539 = vpack.c.b16 %v9579, %v9571
    %v10540 = vpack.c.b16 %v9580, %v9572
    %v10541 = vpack.c.b16 %v9589, %v9581
    %v10542 = vpack.c.b16 %v9590, %v9582
    %v10543 = vpack.c.b16 %v9591, %v9583
    %v10544 = vpack.c.b16 %v9592, %v9584
    %v10545 = vpack.c.b16 %v9593, %v9585
    %v10546 = vpack.c.b16 %v9594, %v9586
    %v10547 = vpack.c.b16 %v9595, %v9587
    %v10548 = vpack.c.b16 %v9596, %v9588
    %v10549 = vpack.c.b16 %v9605, %v9597
    %v10550 = vpack.c.b16 %v9606, %v9598
    %v10551 = vpack.c.b16 %v9607, %v9599
    %v10552 = vpack.c.b16 %v9608, %v9600
    %v10553 = vpack.c.b16 %v9609, %v9601
    %v10554 = vpack.c.b16 %v9610, %v9602
    %v10555 = vpack.c.b16 %v9611, %v9603
    %v10556 = vpack.c.b16 %v9612, %v9604
    %v10557 = vpack.c.b16 %v9621, %v9613
    %v10558 = vpack.c.b16 %v9622, %v9614
    %v10559 = vpack.c.b16 %v9623, %v9615
    %v10560 = vpack.c.b16 %v9624, %v9616
    %v10561 = vpack.c.b16 %v9625, %v9617
    %v10562 = vpack.c.b16 %v9626, %v9618
    %v10563 = vpack.c.b16 %v9627, %v9619
    %v10564 = vpack.c.b16 %v9628, %v9620
    %v10565 = vpack.c.b16 %v9637, %v9629
    %v10566 = vpack.c.b16 %v9638, %v9630
    %v10567 = vpack.c.b16 %v9639, %v9631
    %v10568 = vpack.c.b16 %v9640, %v9632
    %v10569 = vpack.c.b16 %v9641, %v9633
    %v10570 = vpack.c.b16 %v9642, %v9634
    %v10571 = vpack.c.b16 %v9643, %v9635
    %v10572 = vpack.c.b16 %v9644, %v9636
    %v10573 = vpack.c.b16 %v9653, %v9645
    %v10574 = vpack.c.b16 %v9654, %v9646
    %v10575 = vpack.c.b16 %v9655, %v9647
    %v10576 = vpack.c.b16 %v9656, %v9648
    %v10577 = vpack.c.b16 %v9657, %v9649
    %v10578 = vpack.c.b16 %v9658, %v9650
    %v10579 = vpack.c.b16 %v9659, %v9651
    %v10580 = vpack.c.b16 %v9660, %v9652
    %v10581 = vpack.c.b16 %v9669, %v9661
    %v10582 = vpack.c.b16 %v9670, %v9662
    %v10583 = vpack.c.b16 %v9671, %v9663
    %v10584 = vpack.c.b16 %v9672, %v9664
    %v10585 = vpack.c.b16 %v9673, %v9665
    %v10586 = vpack.c.b16 %v9674, %v9666
    %v10587 = vpack.c.b16 %v9675, %v9667
    %v10588 = vpack.c.b16 %v9676, %v9668
    %v10589 = vpack.c.b16 %v9685, %v9677
    %v10590 = vpack.c.b16 %v9686, %v9678
    %v10591 = vpack.c.b16 %v9687, %v9679
    %v10592 = vpack.c.b16 %v9688, %v9680
    %v10593 = vpack.c.b16 %v9689, %v9681
    %v10594 = vpack.c.b16 %v9690, %v9682
    %v10595 = vpack.c.b16 %v9691, %v9683
    %v10596 = vpack.c.b16 %v9692, %v9684
    %v10597 = vpack.c.b16 %v9701, %v9693
    %v10598 = vpack.c.b16 %v9702, %v9694
    %v10599 = vpack.c.b16 %v9703, %v9695
    %v10600 = vpack.c.b16 %v9704, %v9696
    %v10601 = vpack.c.b16 %v9705, %v9697
    %v10602 = vpack.c.b16 %v9706, %v9698
    %v10603 = vpack.c.b16 %v9707, %v9699
    %v10604 = vpack.c.b16 %v9708, %v9700
    %v10605 = vpack.c.b16 %v9717, %v9709
    %v10606 = vpack.c.b16 %v9718, %v9710
    %v10607 = vpack.c.b16 %v9719, %v9711
    %v10608 = vpack.c.b16 %v9720, %v9712
    %v10609 = vpack.c.b16 %v9721, %v9713
    %v10610 = vpack.c.b16 %v9722, %v9714
    %v10611 = vpack.c.b16 %v9723, %v9715
    %v10612 = vpack.c.b16 %v9724, %v9716
    %v10613 = vpack.c.b16 %v9733, %v9725
    %v10614 = vpack.c.b16 %v9734, %v9726
    %v10615 = vpack.c.b16 %v9735, %v9727
    %v10616 = vpack.c.b16 %v9736, %v9728
    %v10617 = vpack.c.b16 %v9737, %v9729
    %v10618 = vpack.c.b16 %v9738, %v9730
    %v10619 = vpack.c.b16 %v9739, %v9731
    %v10620 = vpack.c.b16 %v9740, %v9732
    %v10621 = vpack.c.b16 %v9749, %v9741
    %v10622 = vpack.c.b16 %v9750, %v9742
    %v10623 = vpack.c.b16 %v9751, %v9743
    %v10624 = vpack.c.b16 %v9752, %v9744
    %v10625 = vpack.c.b16 %v9753, %v9745
    %v10626 = vpack.c.b16 %v9754, %v9746
    %v10627 = vpack.c.b16 %v9755, %v9747
    %v10628 = vpack.c.b16 %v9756, %v9748
    %v10629 = vpack.c.b16 %v9765, %v9757
    %v10630 = vpack.c.b16 %v9766, %v9758
    %v10631 = vpack.c.b16 %v9767, %v9759
    %v10632 = vpack.c.b16 %v9768, %v9760
    %v10633 = vpack.c.b16 %v9769, %v9761
    %v10634 = vpack.c.b16 %v9770, %v9762
    %v10635 = vpack.c.b16 %v9771, %v9763
    %v10636 = vpack.c.b16 %v9772, %v9764
    %v10637 = vpack.c.b16 %v9781, %v9773
    %v10638 = vpack.c.b16 %v9782, %v9774
    %v10639 = vpack.c.b16 %v9783, %v9775
    %v10640 = vpack.c.b16 %v9784, %v9776
    %v10641 = vpack.c.b16 %v9785, %v9777
    %v10642 = vpack.c.b16 %v9786, %v9778
    %v10643 = vpack.c.b16 %v9787, %v9779
    %v10644 = vpack.c.b16 %v9788, %v9780
    %v10645 = vpack.c.b16 %v9797, %v9789
    %v10646 = vpack.c.b16 %v9798, %v9790
    %v10647 = vpack.c.b16 %v9799, %v9791
    %v10648 = vpack.c.b16 %v9800, %v9792
    %v10649 = vpack.c.b16 %v9801, %v9793
    %v10650 = vpack.c.b16 %v9802, %v9794
    %v10651 = vpack.c.b16 %v9803, %v9795
    %v10652 = vpack.c.b16 %v9804, %v9796
    %v10653 = vpack.c.b16 %v9813, %v9805
    %v10654 = vpack.c.b16 %v9814, %v9806
    %v10655 = vpack.c.b16 %v9815, %v9807
    %v10656 = vpack.c.b16 %v9816, %v9808
    %v10657 = vpack.c.b16 %v9817, %v9809
    %v10658 = vpack.c.b16 %v9818, %v9810
    %v10659 = vpack.c.b16 %v9819, %v9811
    %v10660 = vpack.c.b16 %v9820, %v9812
    %v10661 = vpack.c.b16 %v9829, %v9821
    %v10662 = vpack.c.b16 %v9830, %v9822
    %v10663 = vpack.c.b16 %v9831, %v9823
    %v10664 = vpack.c.b16 %v9832, %v9824
    %v10665 = vpack.c.b16 %v9833, %v9825
    %v10666 = vpack.c.b16 %v9834, %v9826
    %v10667 = vpack.c.b16 %v9835, %v9827
    %v10668 = vpack.c.b16 %v9836, %v9828
    %v10669 = vpack.c.b16 %v9845, %v9837
    %v10670 = vpack.c.b16 %v9846, %v9838
    %v10671 = vpack.c.b16 %v9847, %v9839
    %v10672 = vpack.c.b16 %v9848, %v9840
    %v10673 = vpack.c.b16 %v9849, %v9841
    %v10674 = vpack.c.b16 %v9850, %v9842
    %v10675 = vpack.c.b16 %v9851, %v9843
    %v10676 = vpack.c.b16 %v9852, %v9844
    %v10677 = vpack.c.b16 %v9861, %v9853
    %v10678 = vpack.c.b16 %v9862, %v9854
    %v10679 = vpack.c.b16 %v9863, %v9855
    %v10680 = vpack.c.b16 %v9864, %v9856
    %v10681 = vpack.c.b16 %v9865, %v9857
    %v10682 = vpack.c.b16 %v9866, %v9858
    %v10683 = vpack.c.b16 %v9867, %v9859
    %v10684 = vpack.c.b16 %v9868, %v9860
    %v10685 = vpack.c.b16 %v9877, %v9869
    %v10686 = vpack.c.b16 %v9878, %v9870
    %v10687 = vpack.c.b16 %v9879, %v9871
    %v10688 = vpack.c.b16 %v9880, %v9872
    %v10689 = vpack.c.b16 %v9881, %v9873
    %v10690 = vpack.c.b16 %v9882, %v9874
    %v10691 = vpack.c.b16 %v9883, %v9875
    %v10692 = vpack.c.b16 %v9884, %v9876
    %v10693 = vpack.c.b16 %v9893, %v9885
    %v10694 = vpack.c.b16 %v9894, %v9886
    %v10695 = vpack.c.b16 %v9895, %v9887
    %v10696 = vpack.c.b16 %v9896, %v9888
    %v10697 = vpack.c.b16 %v9897, %v9889
    %v10698 = vpack.c.b16 %v9898, %v9890
    %v10699 = vpack.c.b16 %v9899, %v9891
    %v10700 = vpack.c.b16 %v9900, %v9892
    %v10701 = vpack.c.b16 %v9909, %v9901
    %v10702 = vpack.c.b16 %v9910, %v9902
    %v10703 = vpack.c.b16 %v9911, %v9903
    %v10704 = vpack.c.b16 %v9912, %v9904
    %v10705 = vpack.c.b16 %v9913, %v9905
    %v10706 = vpack.c.b16 %v9914, %v9906
    %v10707 = vpack.c.b16 %v9915, %v9907
    %v10708 = vpack.c.b16 %v9916, %v9908
    %v10709 = vpack.c.b16 %v9925, %v9917
    %v10710 = vpack.c.b16 %v9926, %v9918
    %v10711 = vpack.c.b16 %v9927, %v9919
    %v10712 = vpack.c.b16 %v9928, %v9920
    %v10713 = vpack.c.b16 %v9929, %v9921
    %v10714 = vpack.c.b16 %v9930, %v9922
    %v10715 = vpack.c.b16 %v9931, %v9923
    %v10716 = vpack.c.b16 %v9932, %v9924
    %v10717 = vpack.c.b16 %v9941, %v9933
    %v10718 = vpack.c.b16 %v9942, %v9934
    %v10719 = vpack.c.b16 %v9943, %v9935
    %v10720 = vpack.c.b16 %v9944, %v9936
    %v10721 = vpack.c.b16 %v9945, %v9937
    %v10722 = vpack.c.b16 %v9946, %v9938
    %v10723 = vpack.c.b16 %v9947, %v9939
    %v10724 = vpack.c.b16 %v9948, %v9940
    %v10725 = vpack.c.b16 %v9957, %v9949
    %v10726 = vpack.c.b16 %v9958, %v9950
    %v10727 = vpack.c.b16 %v9959, %v9951
    %v10728 = vpack.c.b16 %v9960, %v9952
    %v10729 = vpack.c.b16 %v9961, %v9953
    %v10730 = vpack.c.b16 %v9962, %v9954
    %v10731 = vpack.c.b16 %v9963, %v9955
    %v10732 = vpack.c.b16 %v9964, %v9956
    %v10733 = vpack.c.b16 %v9973, %v9965
    %v10734 = vpack.c.b16 %v9974, %v9966
    %v10735 = vpack.c.b16 %v9975, %v9967
    %v10736 = vpack.c.b16 %v9976, %v9968
    %v10737 = vpack.c.b16 %v9977, %v9969
    %v10738 = vpack.c.b16 %v9978, %v9970
    %v10739 = vpack.c.b16 %v9979, %v9971
    %v10740 = vpack.c.b16 %v9980, %v9972
    %v10741 = vpack.c.b16 %v9989, %v9981
    %v10742 = vpack.c.b16 %v9990, %v9982
    %v10743 = vpack.c.b16 %v9991, %v9983
    %v10744 = vpack.c.b16 %v9992, %v9984
    %v10745 = vpack.c.b16 %v9993, %v9985
    %v10746 = vpack.c.b16 %v9994, %v9986
    %v10747 = vpack.c.b16 %v9995, %v9987
    %v10748 = vpack.c.b16 %v9996, %v9988
    %v10749 = vpack.c.b16 %v10005, %v9997
    %v10750 = vpack.c.b16 %v10006, %v9998
    %v10751 = vpack.c.b16 %v10007, %v9999
    %v10752 = vpack.c.b16 %v10008, %v10000
    %v10753 = vpack.c.b16 %v10009, %v10001
    %v10754 = vpack.c.b16 %v10010, %v10002
    %v10755 = vpack.c.b16 %v10011, %v10003
    %v10756 = vpack.c.b16 %v10012, %v10004
    %v10757 = vpack.c.b16 %v10021, %v10013
    %v10758 = vpack.c.b16 %v10022, %v10014
    %v10759 = vpack.c.b16 %v10023, %v10015
    %v10760 = vpack.c.b16 %v10024, %v10016
    %v10761 = vpack.c.b16 %v10025, %v10017
    %v10762 = vpack.c.b16 %v10026, %v10018
    %v10763 = vpack.c.b16 %v10027, %v10019
    %v10764 = vpack.c.b16 %v10028, %v10020
    %v10765 = vpack.c.b16 %v10037, %v10029
    %v10766 = vpack.c.b16 %v10038, %v10030
    %v10767 = vpack.c.b16 %v10039, %v10031
    %v10768 = vpack.c.b16 %v10040, %v10032
    %v10769 = vpack.c.b16 %v10041, %v10033
    %v10770 = vpack.c.b16 %v10042, %v10034
    %v10771 = vpack.c.b16 %v10043, %v10035
    %v10772 = vpack.c.b16 %v10044, %v10036
    %v10773 = vpack.c.b16 %v10053, %v10045
    %v10774 = vpack.c.b16 %v10054, %v10046
    %v10775 = vpack.c.b16 %v10055, %v10047
    %v10776 = vpack.c.b16 %v10056, %v10048
    %v10777 = vpack.c.b16 %v10057, %v10049
    %v10778 = vpack.c.b16 %v10058, %v10050
    %v10779 = vpack.c.b16 %v10059, %v10051
    %v10780 = vpack.c.b16 %v10060, %v10052
    %v10781 = vpack.c.b16 %v10069, %v10061
    %v10782 = vpack.c.b16 %v10070, %v10062
    %v10783 = vpack.c.b16 %v10071, %v10063
    %v10784 = vpack.c.b16 %v10072, %v10064
    %v10785 = vpack.c.b16 %v10073, %v10065
    %v10786 = vpack.c.b16 %v10074, %v10066
    %v10787 = vpack.c.b16 %v10075, %v10067
    %v10788 = vpack.c.b16 %v10076, %v10068
    %v10789 = vpack.c.b16 %v10085, %v10077
    %v10790 = vpack.c.b16 %v10086, %v10078
    %v10791 = vpack.c.b16 %v10087, %v10079
    %v10792 = vpack.c.b16 %v10088, %v10080
    %v10793 = vpack.c.b16 %v10089, %v10081
    %v10794 = vpack.c.b16 %v10090, %v10082
    %v10795 = vpack.c.b16 %v10091, %v10083
    %v10796 = vpack.c.b16 %v10092, %v10084
    %v10797 = vpack.c.b16 %v10101, %v10093
    %v10798 = vpack.c.b16 %v10102, %v10094
    %v10799 = vpack.c.b16 %v10103, %v10095
    %v10800 = vpack.c.b16 %v10104, %v10096
    %v10801 = vpack.c.b16 %v10105, %v10097
    %v10802 = vpack.c.b16 %v10106, %v10098
    %v10803 = vpack.c.b16 %v10107, %v10099
    %v10804 = vpack.c.b16 %v10108, %v10100
    %v10805 = vpack.c.b16 %v10117, %v10109
    %v10806 = vpack.c.b16 %v10118, %v10110
    %v10807 = vpack.c.b16 %v10119, %v10111
    %v10808 = vpack.c.b16 %v10120, %v10112
    %v10809 = vpack.c.b16 %v10121, %v10113
    %v10810 = vpack.c.b16 %v10122, %v10114
    %v10811 = vpack.c.b16 %v10123, %v10115
    %v10812 = vpack.c.b16 %v10124, %v10116
    %v10813 = vpack.c.b16 %v10133, %v10125
    %v10814 = vpack.c.b16 %v10134, %v10126
    %v10815 = vpack.c.b16 %v10135, %v10127
    %v10816 = vpack.c.b16 %v10136, %v10128
    %v10817 = vpack.c.b16 %v10137, %v10129
    %v10818 = vpack.c.b16 %v10138, %v10130
    %v10819 = vpack.c.b16 %v10139, %v10131
    %v10820 = vpack.c.b16 %v10140, %v10132
    %v10821 = vpack.c.b16 %v10149, %v10141
    %v10822 = vpack.c.b16 %v10150, %v10142
    %v10823 = vpack.c.b16 %v10151, %v10143
    %v10824 = vpack.c.b16 %v10152, %v10144
    %v10825 = vpack.c.b16 %v10153, %v10145
    %v10826 = vpack.c.b16 %v10154, %v10146
    %v10827 = vpack.c.b16 %v10155, %v10147
    %v10828 = vpack.c.b16 %v10156, %v10148
    %v10829 = vpack.c.b16 %v10165, %v10157
    %v10830 = vpack.c.b16 %v10166, %v10158
    %v10831 = vpack.c.b16 %v10167, %v10159
    %v10832 = vpack.c.b16 %v10168, %v10160
    %v10833 = vpack.c.b16 %v10169, %v10161
    %v10834 = vpack.c.b16 %v10170, %v10162
    %v10835 = vpack.c.b16 %v10171, %v10163
    %v10836 = vpack.c.b16 %v10172, %v10164
    %v10837 = vpack.c.b16 %v10181, %v10173
    %v10838 = vpack.c.b16 %v10182, %v10174
    %v10839 = vpack.c.b16 %v10183, %v10175
    %v10840 = vpack.c.b16 %v10184, %v10176
    %v10841 = vpack.c.b16 %v10185, %v10177
    %v10842 = vpack.c.b16 %v10186, %v10178
    %v10843 = vpack.c.b16 %v10187, %v10179
    %v10844 = vpack.c.b16 %v10188, %v10180
    %v10845 = vpack.c.b16 %v10197, %v10189
    %v10846 = vpack.c.b16 %v10198, %v10190
    %v10847 = vpack.c.b16 %v10199, %v10191
    %v10848 = vpack.c.b16 %v10200, %v10192
    %v10849 = vpack.c.b16 %v10201, %v10193
    %v10850 = vpack.c.b16 %v10202, %v10194
    %v10851 = vpack.c.b16 %v10203, %v10195
    %v10852 = vpack.c.b16 %v10204, %v10196
    %v10853 = vpack.c.b16 %v10213, %v10205
    %v10854 = vpack.c.b16 %v10214, %v10206
    %v10855 = vpack.c.b16 %v10215, %v10207
    %v10856 = vpack.c.b16 %v10216, %v10208
    %v10857 = vpack.c.b16 %v10217, %v10209
    %v10858 = vpack.c.b16 %v10218, %v10210
    %v10859 = vpack.c.b16 %v10219, %v10211
    %v10860 = vpack.c.b16 %v10220, %v10212
    %v10861 = vpack.c.b16 %v10229, %v10221
    %v10862 = vpack.c.b16 %v10230, %v10222
    %v10863 = vpack.c.b16 %v10231, %v10223
    %v10864 = vpack.c.b16 %v10232, %v10224
    %v10865 = vpack.c.b16 %v10233, %v10225
    %v10866 = vpack.c.b16 %v10234, %v10226
    %v10867 = vpack.c.b16 %v10235, %v10227
    %v10868 = vpack.c.b16 %v10236, %v10228
    %v10869 = vpack.c.b16 %v10245, %v10237
    %v10870 = vpack.c.b16 %v10246, %v10238
    %v10871 = vpack.c.b16 %v10247, %v10239
    %v10872 = vpack.c.b16 %v10248, %v10240
    %v10873 = vpack.c.b16 %v10249, %v10241
    %v10874 = vpack.c.b16 %v10250, %v10242
    %v10875 = vpack.c.b16 %v10251, %v10243
    %v10876 = vpack.c.b16 %v10252, %v10244
    %v10877 = vpack.c.b16 %v10261, %v10253
    %v10878 = vpack.c.b16 %v10262, %v10254
    %v10879 = vpack.c.b16 %v10263, %v10255
    %v10880 = vpack.c.b16 %v10264, %v10256
    %v10881 = vpack.c.b16 %v10265, %v10257
    %v10882 = vpack.c.b16 %v10266, %v10258
    %v10883 = vpack.c.b16 %v10267, %v10259
    %v10884 = vpack.c.b16 %v10268, %v10260
    %v10885 = vpack.c.b16 %v10277, %v10269
    %v10886 = vpack.c.b16 %v10278, %v10270
    %v10887 = vpack.c.b16 %v10279, %v10271
    %v10888 = vpack.c.b16 %v10280, %v10272
    %v10889 = vpack.c.b16 %v10281, %v10273
    %v10890 = vpack.c.b16 %v10282, %v10274
    %v10891 = vpack.c.b16 %v10283, %v10275
    %v10892 = vpack.c.b16 %v10284, %v10276
    %v10893 = vpack.c.b16 %v10293, %v10285
    %v10894 = vpack.c.b16 %v10294, %v10286
    %v10895 = vpack.c.b16 %v10295, %v10287
    %v10896 = vpack.c.b16 %v10296, %v10288
    %v10897 = vpack.c.b16 %v10297, %v10289
    %v10898 = vpack.c.b16 %v10298, %v10290
    %v10899 = vpack.c.b16 %v10299, %v10291
    %v10900 = vpack.c.b16 %v10300, %v10292
    %v10901 = vpack.c.b16 %v10309, %v10301
    %v10902 = vpack.c.b16 %v10310, %v10302
    %v10903 = vpack.c.b16 %v10311, %v10303
    %v10904 = vpack.c.b16 %v10312, %v10304
    %v10905 = vpack.c.b16 %v10313, %v10305
    %v10906 = vpack.c.b16 %v10314, %v10306
    %v10907 = vpack.c.b16 %v10315, %v10307
    %v10908 = vpack.c.b16 %v10316, %v10308
    %v10909 = vpack.c.b16 %v10325, %v10317
    %v10910 = vpack.c.b16 %v10326, %v10318
    %v10911 = vpack.c.b16 %v10327, %v10319
    %v10912 = vpack.c.b16 %v10328, %v10320
    %v10913 = vpack.c.b16 %v10329, %v10321
    %v10914 = vpack.c.b16 %v10330, %v10322
    %v10915 = vpack.c.b16 %v10331, %v10323
    %v10916 = vpack.c.b16 %v10332, %v10324
    %v10917 = vpack.c.b16 %v10341, %v10333
    %v10918 = vpack.c.b16 %v10342, %v10334
    %v10919 = vpack.c.b16 %v10343, %v10335
    %v10920 = vpack.c.b16 %v10344, %v10336
    %v10921 = vpack.c.b16 %v10345, %v10337
    %v10922 = vpack.c.b16 %v10346, %v10338
    %v10923 = vpack.c.b16 %v10347, %v10339
    %v10924 = vpack.c.b16 %v10348, %v10340
    %v10925 = vpack.c.b16 %v10357, %v10349
    %v10926 = vpack.c.b16 %v10358, %v10350
    %v10927 = vpack.c.b16 %v10359, %v10351
    %v10928 = vpack.c.b16 %v10360, %v10352
    %v10929 = vpack.c.b16 %v10361, %v10353
    %v10930 = vpack.c.b16 %v10362, %v10354
    %v10931 = vpack.c.b16 %v10363, %v10355
    %v10932 = vpack.c.b16 %v10364, %v10356
    %v10933 = vpack.c.b16 %v10373, %v10365
    %v10934 = vpack.c.b16 %v10374, %v10366
    %v10935 = vpack.c.b16 %v10375, %v10367
    %v10936 = vpack.c.b16 %v10376, %v10368
    %v10937 = vpack.c.b16 %v10377, %v10369
    %v10938 = vpack.c.b16 %v10378, %v10370
    %v10939 = vpack.c.b16 %v10379, %v10371
    %v10940 = vpack.c.b16 %v10380, %v10372
    %v10941 = vpack.c.b16 %v10389, %v10381
    %v10942 = vpack.c.b16 %v10390, %v10382
    %v10943 = vpack.c.b16 %v10391, %v10383
    %v10944 = vpack.c.b16 %v10392, %v10384
    %v10945 = vpack.c.b16 %v10393, %v10385
    %v10946 = vpack.c.b16 %v10394, %v10386
    %v10947 = vpack.c.b16 %v10395, %v10387
    %v10948 = vpack.c.b16 %v10396, %v10388
    %v10949 = vpack.c.b16 %v10405, %v10397
    %v10950 = vpack.c.b16 %v10406, %v10398
    %v10951 = vpack.c.b16 %v10407, %v10399
    %v10952 = vpack.c.b16 %v10408, %v10400
    %v10953 = vpack.c.b16 %v10409, %v10401
    %v10954 = vpack.c.b16 %v10410, %v10402
    %v10955 = vpack.c.b16 %v10411, %v10403
    %v10956 = vpack.c.b16 %v10412, %v10404
    %v10957 = vpack.c.b16 %v10421, %v10413
    %v10958 = vpack.c.b16 %v10422, %v10414
    %v10959 = vpack.c.b16 %v10423, %v10415
    %v10960 = vpack.c.b16 %v10424, %v10416
    %v10961 = vpack.c.b16 %v10425, %v10417
    %v10962 = vpack.c.b16 %v10426, %v10418
    %v10963 = vpack.c.b16 %v10427, %v10419
    %v10964 = vpack.c.b16 %v10428, %v10420
    %v10965 = vpack.c.b16 %v10437, %v10429
    %v10966 = vpack.c.b16 %v10438, %v10430
    %v10967 = vpack.c.b16 %v10439, %v10431
    %v10968 = vpack.c.b16 %v10440, %v10432
    %v10969 = vpack.c.b16 %v10441, %v10433
    %v10970 = vpack.c.b16 %v10442, %v10434
    %v10971 = vpack.c.b16 %v10443, %v10435
    %v10972 = vpack.c.b16 %v10444, %v10436
    %v10973 = vpack.c.b16 %v10453, %v10445
    %v10974 = vpack.c.b16 %v10454, %v10446
    %v10975 = vpack.c.b16 %v10455, %v10447
    %v10976 = vpack.c.b16 %v10456, %v10448
    %v10977 = vpack.c.b16 %v10457, %v10449
    %v10978 = vpack.c.b16 %v10458, %v10450
    %v10979 = vpack.c.b16 %v10459, %v10451
    %v10980 = vpack.c.b16 %v10460, %v10452
    %v10981 = vpack.c.b16 %v10469, %v10461
    %v10982 = vpack.c.b16 %v10470, %v10462
    %v10983 = vpack.c.b16 %v10471, %v10463
    %v10984 = vpack.c.b16 %v10472, %v10464
    %v10985 = vpack.c.b16 %v10473, %v10465
    %v10986 = vpack.c.b16 %v10474, %v10466
    %v10987 = vpack.c.b16 %v10475, %v10467
    %v10988 = vpack.c.b16 %v10476, %v10468
    %11501 = vmatprep.subr.bf16.mxu0 %v10478
    %11502 = vmatpush1.bf16.msra.mxu0 %v10477
    %11503 = vmatprep.subr.bf16.mxu0 %v10486
    %11504 = vmatpush1.bf16.msra.mxu0 %v10485
    %11505 = vmatprep.subr.bf16.mxu0 %v10494
    %11506 = vmatpush1.bf16.msra.mxu0 %v10493
    %11507 = vmatprep.subr.bf16.mxu0 %v10502
    %11508 = vmatpush1.bf16.msra.mxu0 %v10501
    %11509 = vmatprep.subr.bf16.mxu0 %v10510
    %11510 = vmatpush1.bf16.msra.mxu0 %v10509
    %11511 = vmatprep.subr.bf16.mxu0 %v10518
    %11512 = vmatpush1.bf16.msra.mxu0 %v10517
    %11513 = vmatprep.subr.bf16.mxu0 %v10526
    %11514 = vmatpush1.bf16.msra.mxu0 %v10525
    %11515 = vmatprep.subr.bf16.mxu0 %v10534
    %11516 = vmatpush1.bf16.msra.mxu0 %v10533
    %11517 = vmatprep.subr.bf16.mxu0 %v10542
    %11518 = vmatpush1.bf16.msra.mxu0 %v10541
    %11519 = vmatprep.subr.bf16.mxu0 %v10550
    %11520 = vmatpush1.bf16.msra.mxu0 %v10549
    %11521 = vmatprep.subr.bf16.mxu0 %v10558
    %11522 = vmatpush1.bf16.msra.mxu0 %v10557
    %11523 = vmatprep.subr.bf16.mxu0 %v10566
    %11524 = vmatpush1.bf16.msra.mxu0 %v10565
    %11525 = vmatprep.subr.bf16.mxu0 %v10574
    %11526 = vmatpush1.bf16.msra.mxu0 %v10573
    %11527 = vmatprep.subr.bf16.mxu0 %v10582
    %11528 = vmatpush1.bf16.msra.mxu0 %v10581
    %11529 = vmatprep.subr.bf16.mxu0 %v10590
    %11530 = vmatpush1.bf16.msra.mxu0 %v10589
    %11531 = vmatprep.subr.bf16.mxu0 %v10598
    %11532 = vmatpush1.bf16.msra.mxu0 %v10597
    %11533 = vmatprep.mubr.bf16.mxu0 %v8372
    %11534 = vmatmul.mubr.bf16.gmra.mrb[0].mxu0 %v8371
    %v11535 = vpop.f32.mrb[0].mxu0
    %v11536 = vadd.f32 %v8904, %v11535
    %v11537 = vpop.f32.mrb[0].mxu0
    %v11538 = vadd.f32 %v8908, %v11537
    %v11539 = vpop.f32.mrb[0].mxu0
    %v11540 = vadd.f32 %v8904, %v11539
    %v11541 = vpop.f32.mrb[0].mxu0
    %v11542 = vadd.f32 %v8908, %v11541
    %11543 = vmatprep.mubr.bf16.mxu0 %v8380
    %11544 = vmatmul.mubr.bf16.gmra.mrb[0].mxu0 %v8379
    %v11545 = vpop.f32.mrb[0].mxu0
    %v11546 = vadd.f32 %v8904, %v11545
    %v11547 = vpop.f32.mrb[0].mxu0
    %v11548 = vadd.f32 %v8908, %v11547
    %v11549 = vpop.f32.mrb[0].mxu0
    %v11550 = vpop.f32.mrb[0].mxu0
    %11551 = vdwg.mxu0
    %11552 = vmatprep.subr.bf16.mxu0 %v10606
    %11553 = vmatpush1.bf16.msra.mxu0 %v10605
    %11554 = vmatprep.subr.bf16.mxu0 %v10614
    %11555 = vmatpush1.bf16.msra.mxu0 %v10613
    %11556 = vmatprep.subr.bf16.mxu0 %v10622
    %11557 = vmatpush1.bf16.msra.mxu0 %v10621
    %11558 = vmatprep.subr.bf16.mxu0 %v10630
    %11559 = vmatpush1.bf16.msra.mxu0 %v10629
    %11560 = vmatprep.subr.bf16.mxu0 %v10638
    %11561 = vmatpush1.bf16.msra.mxu0 %v10637
    %11562 = vmatprep.subr.bf16.mxu0 %v10646
    %11563 = vmatpush1.bf16.msra.mxu0 %v10645
    %11564 = vmatprep.subr.bf16.mxu0 %v10654
    %11565 = vmatpush1.bf16.msra.mxu0 %v10653
    %11566 = vmatprep.subr.bf16.mxu0 %v10662
    %11567 = vmatpush1.bf16.msra.mxu0 %v10661
    %11568 = vmatprep.subr.bf16.mxu0 %v10670
    %11569 = vmatpush1.bf16.msra.mxu0 %v10669
    %11570 = vmatprep.subr.bf16.mxu0 %v10678
    %11571 = vmatpush1.bf16.msra.mxu0 %v10677
    %11572 = vmatprep.subr.bf16.mxu0 %v10686
    %11573 = vmatpush1.bf16.msra.mxu0 %v10685
    %11574 = vmatprep.subr.bf16.mxu0 %v10694
    %11575 = vmatpush1.bf16.msra.mxu0 %v10693
    %11576 = vmatprep.subr.bf16.mxu0 %v10702
    %11577 = vmatpush1.bf16.msra.mxu0 %v10701
    %11578 = vmatprep.subr.bf16.mxu0 %v10710
    %11579 = vmatpush1.bf16.msra.mxu0 %v10709
    %11580 = vmatprep.subr.bf16.mxu0 %v10718
    %11581 = vmatpush1.bf16.msra.mxu0 %v10717
    %11582 = vmatprep.subr.bf16.mxu0 %v10726
    %11583 = vmatpush1.bf16.msra.mxu0 %v10725
    %11584 = vmatprep.mubr.bf16.mxu0 %v8374
    %11585 = vmatmul.mubr.bf16.gmra.mrb[0].mxu0 %v8373
    %v11586 = vpop.f32.mrb[0].mxu0
    %v11587 = vadd.f32 %v11536, %v11586
    %v11588 = vpop.f32.mrb[0].mxu0
    %v11589 = vadd.f32 %v11538, %v11588
    %v11590 = vpop.f32.mrb[0].mxu0
    %v11591 = vadd.f32 %v11540, %v11590
    %v11592 = vpop.f32.mrb[0].mxu0
    %v11593 = vadd.f32 %v11542, %v11592
    %11594 = vmatprep.mubr.bf16.mxu0 %v8382
    %11595 = vmatmul.mubr.bf16.gmra.mrb[0].mxu0 %v8381
    %v11596 = vpop.f32.mrb[0].mxu0
    %v11597 = vadd.f32 %v11546, %v11596
    %v11598 = vpop.f32.mrb[0].mxu0
    %v11599 = vadd.f32 %v11548, %v11598
    %v11600 = vpop.f32.mrb[0].mxu0
    %v11601 = vpop.f32.mrb[0].mxu0
    %11602 = vdwg.mxu0
    %11603 = vmatprep.subr.bf16.mxu0 %v10734
    %11604 = vmatpush1.bf16.msra.mxu0 %v10733
    %11605 = vmatprep.subr.bf16.mxu0 %v10742
    %11606 = vmatpush1.bf16.msra.mxu0 %v10741
    %11607 = vmatprep.subr.bf16.mxu0 %v10750
    %11608 = vmatpush1.bf16.msra.mxu0 %v10749
    %11609 = vmatprep.subr.bf16.mxu0 %v10758
    %11610 = vmatpush1.bf16.msra.mxu0 %v10757
    %11611 = vmatprep.subr.bf16.mxu0 %v10766
    %11612 = vmatpush1.bf16.msra.mxu0 %v10765
    %11613 = vmatprep.subr.bf16.mxu0 %v10774
    %11614 = vmatpush1.bf16.msra.mxu0 %v10773
    %11615 = vmatprep.subr.bf16.mxu0 %v10782
    %11616 = vmatpush1.bf16.msra.mxu0 %v10781
    %11617 = vmatprep.subr.bf16.mxu0 %v10790
    %11618 = vmatpush1.bf16.msra.mxu0 %v10789
    %11619 = vmatprep.subr.bf16.mxu0 %v10798
    %11620 = vmatpush1.bf16.msra.mxu0 %v10797
    %11621 = vmatprep.subr.bf16.mxu0 %v10806
    %11622 = vmatpush1.bf16.msra.mxu0 %v10805
    %11623 = vmatprep.subr.bf16.mxu0 %v10814
    %11624 = vmatpush1.bf16.msra.mxu0 %v10813
    %11625 = vmatprep.subr.bf16.mxu0 %v10822
    %11626 = vmatpush1.bf16.msra.mxu0 %v10821
    %11627 = vmatprep.subr.bf16.mxu0 %v10830
    %11628 = vmatpush1.bf16.msra.mxu0 %v10829
    %11629 = vmatprep.subr.bf16.mxu0 %v10838
    %11630 = vmatpush1.bf16.msra.mxu0 %v10837
    %11631 = vmatprep.subr.bf16.mxu0 %v10846
    %11632 = vmatpush1.bf16.msra.mxu0 %v10845
    %11633 = vmatprep.subr.bf16.mxu0 %v10854
    %11634 = vmatpush1.bf16.msra.mxu0 %v10853
    %11635 = vmatprep.mubr.bf16.mxu0 %v8376
    %11636 = vmatmul.mubr.bf16.gmra.mrb[0].mxu0 %v8375
    %v11637 = vpop.f32.mrb[0].mxu0
    %v11638 = vadd.f32 %v11587, %v11637
    %v11639 = vpop.f32.mrb[0].mxu0
    %v11640 = vadd.f32 %v11589, %v11639
    %v11641 = vpop.f32.mrb[0].mxu0
    %v11642 = vadd.f32 %v11591, %v11641
    %v11643 = vpop.f32.mrb[0].mxu0
    %v11644 = vadd.f32 %v11593, %v11643
    %11645 = vmatprep.mubr.bf16.mxu0 %v8384
    %11646 = vmatmul.mubr.bf16.gmra.mrb[0].mxu0 %v8383
    %v11647 = vpop.f32.mrb[0].mxu0
    %v11648 = vadd.f32 %v11597, %v11647
    %v11649 = vpop.f32.mrb[0].mxu0
    %v11650 = vadd.f32 %v11599, %v11649
    %v11651 = vpop.f32.mrb[0].mxu0
    %v11652 = vpop.f32.mrb[0].mxu0
    %11653 = vdwg.mxu0
    %11654 = vmatprep.subr.bf16.mxu0 %v10862
    %11655 = vmatpush1.bf16.msra.mxu0 %v10861
    %11656 = vmatprep.subr.bf16.mxu0 %v10870
    %11657 = vmatpush1.bf16.msra.mxu0 %v10869
    %11658 = vmatprep.subr.bf16.mxu0 %v10878
    %11659 = vmatpush1.bf16.msra.mxu0 %v10877
    %11660 = vmatprep.subr.bf16.mxu0 %v10886
    %11661 = vmatpush1.bf16.msra.mxu0 %v10885
    %11662 = vmatprep.subr.bf16.mxu0 %v10894
    %11663 = vmatpush1.bf16.msra.mxu0 %v10893
    %11664 = vmatprep.subr.bf16.mxu0 %v10902
    %11665 = vmatpush1.bf16.msra.mxu0 %v10901
    %11666 = vmatprep.subr.bf16.mxu0 %v10910
    %11667 = vmatpush1.bf16.msra.mxu0 %v10909
    %11668 = vmatprep.subr.bf16.mxu0 %v10918
    %11669 = vmatpush1.bf16.msra.mxu0 %v10917
    %11670 = vmatprep.subr.bf16.mxu0 %v10926
    %11671 = vmatpush1.bf16.msra.mxu0 %v10925
    %11672 = vmatprep.subr.bf16.mxu0 %v10934
    %11673 = vmatpush1.bf16.msra.mxu0 %v10933
    %11674 = vmatprep.subr.bf16.mxu0 %v10942
    %11675 = vmatpush1.bf16.msra.mxu0 %v10941
    %11676 = vmatprep.subr.bf16.mxu0 %v10950
    %11677 = vmatpush1.bf16.msra.mxu0 %v10949
    %11678 = vmatprep.subr.bf16.mxu0 %v10958
    %11679 = vmatpush1.bf16.msra.mxu0 %v10957
    %11680 = vmatprep.subr.bf16.mxu0 %v10966
    %11681 = vmatpush1.bf16.msra.mxu0 %v10965
    %11682 = vmatprep.subr.bf16.mxu0 %v10974
    %11683 = vmatpush1.bf16.msra.mxu0 %v10973
    %11684 = vmatprep.subr.bf16.mxu0 %v10982
    %11685 = vmatpush1.bf16.msra.mxu0 %v10981
    %11686 = vmatprep.mubr.bf16.mxu0 %v8378
    %11687 = vmatmul.mubr.bf16.gmra.mrb[0].mxu0 %v8377
    %v11688 = vpop.f32.mrb[0].mxu0
    %v11689 = vadd.f32 %v11638, %v11688
    %v11690 = vpop.f32.mrb[0].mxu0
    %v11691 = vadd.f32 %v11640, %v11690
    %v11692 = vpop.f32.mrb[0].mxu0
    %v11693 = vadd.f32 %v11642, %v11692
    %v11694 = vpop.f32.mrb[0].mxu0
    %v11695 = vadd.f32 %v11644, %v11694
    %11696 = vmatprep.mubr.bf16.mxu0 %v8386
    %11697 = vmatmul.mubr.bf16.gmra.mrb[0].mxu0 %v8385
    %v11698 = vpop.f32.mrb[0].mxu0
    %v11699 = vadd.f32 %v11648, %v11698
    %v11700 = vpop.f32.mrb[0].mxu0
    %v11701 = vadd.f32 %v11650, %v11700
    %v11702 = vpop.f32.mrb[0].mxu0
    %v11703 = vpop.f32.mrb[0].mxu0
    %11704 = vdwg.mxu0
    %11705 = vmatprep.subr.bf16.mxu0 %v10480
    %11706 = vmatpush1.bf16.msra.mxu0 %v10479
    %11707 = vmatprep.subr.bf16.mxu0 %v10488
    %11708 = vmatpush1.bf16.msra.mxu0 %v10487
    %11709 = vmatprep.subr.bf16.mxu0 %v10496
    %11710 = vmatpush1.bf16.msra.mxu0 %v10495
    %11711 = vmatprep.subr.bf16.mxu0 %v10504
    %11712 = vmatpush1.bf16.msra.mxu0 %v10503
    %11713 = vmatprep.subr.bf16.mxu0 %v10512
    %11714 = vmatpush1.bf16.msra.mxu0 %v10511
    %11715 = vmatprep.subr.bf16.mxu0 %v10520
    %11716 = vmatpush1.bf16.msra.mxu0 %v10519
    %11717 = vmatprep.subr.bf16.mxu0 %v10528
    %11718 = vmatpush1.bf16.msra.mxu0 %v10527
    %11719 = vmatprep.subr.bf16.mxu0 %v10536
    %11720 = vmatpush1.bf16.msra.mxu0 %v10535
    %11721 = vmatprep.subr.bf16.mxu0 %v10544
    %11722 = vmatpush1.bf16.msra.mxu0 %v10543
    %11723 = vmatprep.subr.bf16.mxu0 %v10552
    %11724 = vmatpush1.bf16.msra.mxu0 %v10551
    %11725 = vmatprep.subr.bf16.mxu0 %v10560
    %11726 = vmatpush1.bf16.msra.mxu0 %v10559
    %11727 = vmatprep.subr.bf16.mxu0 %v10568
    %11728 = vmatpush1.bf16.msra.mxu0 %v10567
    %11729 = vmatprep.subr.bf16.mxu0 %v10576
    %11730 = vmatpush1.bf16.msra.mxu0 %v10575
    %11731 = vmatprep.subr.bf16.mxu0 %v10584
    %11732 = vmatpush1.bf16.msra.mxu0 %v10583
    %11733 = vmatprep.subr.bf16.mxu0 %v10592
    %11734 = vmatpush1.bf16.msra.mxu0 %v10591
    %11735 = vmatprep.subr.bf16.mxu0 %v10600
    %11736 = vmatpush1.bf16.msra.mxu0 %v10599
    %11737 = vmatprep.mubr.bf16.mxu0 %v8372
    %11738 = vmatmul.mubr.bf16.gmra.mrb[0].mxu0 %v8371
    %v11739 = vpop.f32.mrb[0].mxu0
    %v11740 = vadd.f32 %v8912, %v11739
    %v11741 = vpop.f32.mrb[0].mxu0
    %v11742 = vadd.f32 %v8916, %v11741
    %v11743 = vpop.f32.mrb[0].mxu0
    %v11744 = vadd.f32 %v8912, %v11743
    %v11745 = vpop.f32.mrb[0].mxu0
    %v11746 = vadd.f32 %v8916, %v11745
    %11747 = vmatprep.mubr.bf16.mxu0 %v8380
    %11748 = vmatmul.mubr.bf16.gmra.mrb[0].mxu0 %v8379
    %v11749 = vpop.f32.mrb[0].mxu0
    %v11750 = vadd.f32 %v8912, %v11749
    %v11751 = vpop.f32.mrb[0].mxu0
    %v11752 = vadd.f32 %v8916, %v11751
    %v11753 = vpop.f32.mrb[0].mxu0
    %v11754 = vpop.f32.mrb[0].mxu0
    %11755 = vdwg.mxu0
    %11756 = vmatprep.subr.bf16.mxu0 %v10608
    %11757 = vmatpush1.bf16.msra.mxu0 %v10607
    %11758 = vmatprep.subr.bf16.mxu0 %v10616
    %11759 = vmatpush1.bf16.msra.mxu0 %v10615
    %11760 = vmatprep.subr.bf16.mxu0 %v10624
    %11761 = vmatpush1.bf16.msra.mxu0 %v10623
    %11762 = vmatprep.subr.bf16.mxu0 %v10632
    %11763 = vmatpush1.bf16.msra.mxu0 %v10631
    %11764 = vmatprep.subr.bf16.mxu0 %v10640
    %11765 = vmatpush1.bf16.msra.mxu0 %v10639
    %11766 = vmatprep.subr.bf16.mxu0 %v10648
    %11767 = vmatpush1.bf16.msra.mxu0 %v10647
    %11768 = vmatprep.subr.bf16.mxu0 %v10656
    %11769 = vmatpush1.bf16.msra.mxu0 %v10655
    %11770 = vmatprep.subr.bf16.mxu0 %v10664
    %11771 = vmatpush1.bf16.msra.mxu0 %v10663
    %11772 = vmatprep.subr.bf16.mxu0 %v10672
    %11773 = vmatpush1.bf16.msra.mxu0 %v10671
    %11774 = vmatprep.subr.bf16.mxu0 %v10680
    %11775 = vmatpush1.bf16.msra.mxu0 %v10679
    %11776 = vmatprep.subr.bf16.mxu0 %v10688
    %11777 = vmatpush1.bf16.msra.mxu0 %v10687
    %11778 = vmatprep.subr.bf16.mxu0 %v10696
    %11779 = vmatpush1.bf16.msra.mxu0 %v10695
    %11780 = vmatprep.subr.bf16.mxu0 %v10704
    %11781 = vmatpush1.bf16.msra.mxu0 %v10703
    %11782 = vmatprep.subr.bf16.mxu0 %v10712
    %11783 = vmatpush1.bf16.msra.mxu0 %v10711
    %11784 = vmatprep.subr.bf16.mxu0 %v10720
    %11785 = vmatpush1.bf16.msra.mxu0 %v10719
    %11786 = vmatprep.subr.bf16.mxu0 %v10728
    %11787 = vmatpush1.bf16.msra.mxu0 %v10727
    %11788 = vmatprep.mubr.bf16.mxu0 %v8374
    %11789 = vmatmul.mubr.bf16.gmra.mrb[0].mxu0 %v8373
    %v11790 = vpop.f32.mrb[0].mxu0
    %v11791 = vadd.f32 %v11740, %v11790
    %v11792 = vpop.f32.mrb[0].mxu0
    %v11793 = vadd.f32 %v11742, %v11792
    %v11794 = vpop.f32.mrb[0].mxu0
    %v11795 = vadd.f32 %v11744, %v11794
    %v11796 = vpop.f32.mrb[0].mxu0
    %v11797 = vadd.f32 %v11746, %v11796
    %11798 = vmatprep.mubr.bf16.mxu0 %v8382
    %11799 = vmatmul.mubr.bf16.gmra.mrb[0].mxu0 %v8381
    %v11800 = vpop.f32.mrb[0].mxu0
    %v11801 = vadd.f32 %v11750, %v11800
    %v11802 = vpop.f32.mrb[0].mxu0
    %v11803 = vadd.f32 %v11752, %v11802
    %v11804 = vpop.f32.mrb[0].mxu0
    %v11805 = vpop.f32.mrb[0].mxu0
    %11806 = vdwg.mxu0
    %11807 = vmatprep.subr.bf16.mxu0 %v10736
    %11808 = vmatpush1.bf16.msra.mxu0 %v10735
    %11809 = vmatprep.subr.bf16.mxu0 %v10744
    %11810 = vmatpush1.bf16.msra.mxu0 %v10743
    %11811 = vmatprep.subr.bf16.mxu0 %v10752
    %11812 = vmatpush1.bf16.msra.mxu0 %v10751
    %11813 = vmatprep.subr.bf16.mxu0 %v10760
    %11814 = vmatpush1.bf16.msra.mxu0 %v10759
    %11815 = vmatprep.subr.bf16.mxu0 %v10768
    %11816 = vmatpush1.bf16.msra.mxu0 %v10767
    %11817 = vmatprep.subr.bf16.mxu0 %v10776
    %11818 = vmatpush1.bf16.msra.mxu0 %v10775
    %11819 = vmatprep.subr.bf16.mxu0 %v10784
    %11820 = vmatpush1.bf16.msra.mxu0 %v10783
    %11821 = vmatprep.subr.bf16.mxu0 %v10792
    %11822 = vmatpush1.bf16.msra.mxu0 %v10791
    %11823 = vmatprep.subr.bf16.mxu0 %v10800
    %11824 = vmatpush1.bf16.msra.mxu0 %v10799
    %11825 = vmatprep.subr.bf16.mxu0 %v10808
    %11826 = vmatpush1.bf16.msra.mxu0 %v10807
    %11827 = vmatprep.subr.bf16.mxu0 %v10816
    %11828 = vmatpush1.bf16.msra.mxu0 %v10815
    %11829 = vmatprep.subr.bf16.mxu0 %v10824
    %11830 = vmatpush1.bf16.msra.mxu0 %v10823
    %11831 = vmatprep.subr.bf16.mxu0 %v10832
    %11832 = vmatpush1.bf16.msra.mxu0 %v10831
    %11833 = vmatprep.subr.bf16.mxu0 %v10840
    %11834 = vmatpush1.bf16.msra.mxu0 %v10839
    %11835 = vmatprep.subr.bf16.mxu0 %v10848
    %11836 = vmatpush1.bf16.msra.mxu0 %v10847
    %11837 = vmatprep.subr.bf16.mxu0 %v10856
    %11838 = vmatpush1.bf16.msra.mxu0 %v10855
    %11839 = vmatprep.mubr.bf16.mxu0 %v8376
    %11840 = vmatmul.mubr.bf16.gmra.mrb[0].mxu0 %v8375
    %v11841 = vpop.f32.mrb[0].mxu0
    %v11842 = vadd.f32 %v11791, %v11841
    %v11843 = vpop.f32.mrb[0].mxu0
    %v11844 = vadd.f32 %v11793, %v11843
    %v11845 = vpop.f32.mrb[0].mxu0
    %v11846 = vadd.f32 %v11795, %v11845
    %v11847 = vpop.f32.mrb[0].mxu0
    %v11848 = vadd.f32 %v11797, %v11847
    %11849 = vmatprep.mubr.bf16.mxu0 %v8384
    %11850 = vmatmul.mubr.bf16.gmra.mrb[0].mxu0 %v8383
    %v11851 = vpop.f32.mrb[0].mxu0
    %v11852 = vadd.f32 %v11801, %v11851
    %v11853 = vpop.f32.mrb[0].mxu0
    %v11854 = vadd.f32 %v11803, %v11853
    %v11855 = vpop.f32.mrb[0].mxu0
    %v11856 = vpop.f32.mrb[0].mxu0
    %11857 = vdwg.mxu0
    %11858 = vmatprep.subr.bf16.mxu0 %v10864
    %11859 = vmatpush1.bf16.msra.mxu0 %v10863
    %11860 = vmatprep.subr.bf16.mxu0 %v10872
    %11861 = vmatpush1.bf16.msra.mxu0 %v10871
    %11862 = vmatprep.subr.bf16.mxu0 %v10880
    %11863 = vmatpush1.bf16.msra.mxu0 %v10879
    %11864 = vmatprep.subr.bf16.mxu0 %v10888
    %11865 = vmatpush1.bf16.msra.mxu0 %v10887
    %11866 = vmatprep.subr.bf16.mxu0 %v10896
    %11867 = vmatpush1.bf16.msra.mxu0 %v10895
    %11868 = vmatprep.subr.bf16.mxu0 %v10904
    %11869 = vmatpush1.bf16.msra.mxu0 %v10903
    %11870 = vmatprep.subr.bf16.mxu0 %v10912
    %11871 = vmatpush1.bf16.msra.mxu0 %v10911
    %11872 = vmatprep.subr.bf16.mxu0 %v10920
    %11873 = vmatpush1.bf16.msra.mxu0 %v10919
    %11874 = vmatprep.subr.bf16.mxu0 %v10928
    %11875 = vmatpush1.bf16.msra.mxu0 %v10927
    %11876 = vmatprep.subr.bf16.mxu0 %v10936
    %11877 = vmatpush1.bf16.msra.mxu0 %v10935
    %11878 = vmatprep.subr.bf16.mxu0 %v10944
    %11879 = vmatpush1.bf16.msra.mxu0 %v10943
    %11880 = vmatprep.subr.bf16.mxu0 %v10952
    %11881 = vmatpush1.bf16.msra.mxu0 %v10951
    %11882 = vmatprep.subr.bf16.mxu0 %v10960
    %11883 = vmatpush1.bf16.msra.mxu0 %v10959
    %11884 = vmatprep.subr.bf16.mxu0 %v10968
    %11885 = vmatpush1.bf16.msra.mxu0 %v10967
    %11886 = vmatprep.subr.bf16.mxu0 %v10976
    %11887 = vmatpush1.bf16.msra.mxu0 %v10975
    %11888 = vmatprep.subr.bf16.mxu0 %v10984
    %11889 = vmatpush1.bf16.msra.mxu0 %v10983
    %11890 = vmatprep.mubr.bf16.mxu0 %v8378
    %11891 = vmatmul.mubr.bf16.gmra.mrb[0].mxu0 %v8377
    %v11892 = vpop.f32.mrb[0].mxu0
    %v11893 = vadd.f32 %v11842, %v11892
    %v11894 = vpop.f32.mrb[0].mxu0
    %v11895 = vadd.f32 %v11844, %v11894
    %v11896 = vpop.f32.mrb[0].mxu0
    %v11897 = vadd.f32 %v11846, %v11896
    %v11898 = vpop.f32.mrb[0].mxu0
    %v11899 = vadd.f32 %v11848, %v11898
    %11900 = vmatprep.mubr.bf16.mxu0 %v8386
    %11901 = vmatmul.mubr.bf16.gmra.mrb[0].mxu0 %v8385
    %v11902 = vpop.f32.mrb[0].mxu0
    %v11903 = vadd.f32 %v11852, %v11902
    %v11904 = vpop.f32.mrb[0].mxu0
    %v11905 = vadd.f32 %v11854, %v11904
    %v11906 = vpop.f32.mrb[0].mxu0
    %v11907 = vpop.f32.mrb[0].mxu0
    %11908 = vdwg.mxu0
    %11909 = vmatprep.subr.bf16.mxu0 %v10482
    %11910 = vmatpush1.bf16.msra.mxu0 %v10481
    %11911 = vmatprep.subr.bf16.mxu0 %v10490
    %11912 = vmatpush1.bf16.msra.mxu0 %v10489
    %11913 = vmatprep.subr.bf16.mxu0 %v10498
    %11914 = vmatpush1.bf16.msra.mxu0 %v10497
    %11915 = vmatprep.subr.bf16.mxu0 %v10506
    %11916 = vmatpush1.bf16.msra.mxu0 %v10505
    %11917 = vmatprep.subr.bf16.mxu0 %v10514
    %11918 = vmatpush1.bf16.msra.mxu0 %v10513
    %11919 = vmatprep.subr.bf16.mxu0 %v10522
    %11920 = vmatpush1.bf16.msra.mxu0 %v10521
    %11921 = vmatprep.subr.bf16.mxu0 %v10530
    %11922 = vmatpush1.bf16.msra.mxu0 %v10529
    %11923 = vmatprep.subr.bf16.mxu0 %v10538
    %11924 = vmatpush1.bf16.msra.mxu0 %v10537
    %11925 = vmatprep.subr.bf16.mxu0 %v10546
    %11926 = vmatpush1.bf16.msra.mxu0 %v10545
    %11927 = vmatprep.subr.bf16.mxu0 %v10554
    %11928 = vmatpush1.bf16.msra.mxu0 %v10553
    %11929 = vmatprep.subr.bf16.mxu0 %v10562
    %11930 = vmatpush1.bf16.msra.mxu0 %v10561
    %11931 = vmatprep.subr.bf16.mxu0 %v10570
    %11932 = vmatpush1.bf16.msra.mxu0 %v10569
    %11933 = vmatprep.subr.bf16.mxu0 %v10578
    %11934 = vmatpush1.bf16.msra.mxu0 %v10577
    %11935 = vmatprep.subr.bf16.mxu0 %v10586
    %11936 = vmatpush1.bf16.msra.mxu0 %v10585
    %11937 = vmatprep.subr.bf16.mxu0 %v10594
    %11938 = vmatpush1.bf16.msra.mxu0 %v10593
    %11939 = vmatprep.subr.bf16.mxu0 %v10602
    %11940 = vmatpush1.bf16.msra.mxu0 %v10601
    %11941 = vmatprep.mubr.bf16.mxu0 %v8372
    %11942 = vmatmul.mubr.bf16.gmra.mrb[0].mxu0 %v8371
    %v11943 = vpop.f32.mrb[0].mxu0
    %v11944 = vadd.f32 %v8920, %v11943
    %v11945 = vpop.f32.mrb[0].mxu0
    %v11946 = vadd.f32 %v8924, %v11945
    %v11947 = vpop.f32.mrb[0].mxu0
    %v11948 = vadd.f32 %v8920, %v11947
    %v11949 = vpop.f32.mrb[0].mxu0
    %v11950 = vadd.f32 %v8924, %v11949
    %11951 = vmatprep.mubr.bf16.mxu0 %v8380
    %11952 = vmatmul.mubr.bf16.gmra.mrb[0].mxu0 %v8379
    %v11953 = vpop.f32.mrb[0].mxu0
    %v11954 = vadd.f32 %v8920, %v11953
    %v11955 = vpop.f32.mrb[0].mxu0
    %v11956 = vadd.f32 %v8924, %v11955
    %v11957 = vpop.f32.mrb[0].mxu0
    %v11958 = vpop.f32.mrb[0].mxu0
    %11959 = vdwg.mxu0
    %11960 = vmatprep.subr.bf16.mxu0 %v10610
    %11961 = vmatpush1.bf16.msra.mxu0 %v10609
    %11962 = vmatprep.subr.bf16.mxu0 %v10618
    %11963 = vmatpush1.bf16.msra.mxu0 %v10617
    %11964 = vmatprep.subr.bf16.mxu0 %v10626
    %11965 = vmatpush1.bf16.msra.mxu0 %v10625
    %11966 = vmatprep.subr.bf16.mxu0 %v10634
    %11967 = vmatpush1.bf16.msra.mxu0 %v10633
    %11968 = vmatprep.subr.bf16.mxu0 %v10642
    %11969 = vmatpush1.bf16.msra.mxu0 %v10641
    %11970 = vmatprep.subr.bf16.mxu0 %v10650
    %11971 = vmatpush1.bf16.msra.mxu0 %v10649
    %11972 = vmatprep.subr.bf16.mxu0 %v10658
    %11973 = vmatpush1.bf16.msra.mxu0 %v10657
    %11974 = vmatprep.subr.bf16.mxu0 %v10666
    %11975 = vmatpush1.bf16.msra.mxu0 %v10665
    %11976 = vmatprep.subr.bf16.mxu0 %v10674
    %11977 = vmatpush1.bf16.msra.mxu0 %v10673
    %11978 = vmatprep.subr.bf16.mxu0 %v10682
    %11979 = vmatpush1.bf16.msra.mxu0 %v10681
    %11980 = vmatprep.subr.bf16.mxu0 %v10690
    %11981 = vmatpush1.bf16.msra.mxu0 %v10689
    %11982 = vmatprep.subr.bf16.mxu0 %v10698
    %11983 = vmatpush1.bf16.msra.mxu0 %v10697
    %11984 = vmatprep.subr.bf16.mxu0 %v10706
    %11985 = vmatpush1.bf16.msra.mxu0 %v10705
    %11986 = vmatprep.subr.bf16.mxu0 %v10714
    %11987 = vmatpush1.bf16.msra.mxu0 %v10713
    %11988 = vmatprep.subr.bf16.mxu0 %v10722
    %11989 = vmatpush1.bf16.msra.mxu0 %v10721
    %11990 = vmatprep.subr.bf16.mxu0 %v10730
    %11991 = vmatpush1.bf16.msra.mxu0 %v10729
    %11992 = vmatprep.mubr.bf16.mxu0 %v8374
    %11993 = vmatmul.mubr.bf16.gmra.mrb[0].mxu0 %v8373
    %v11994 = vpop.f32.mrb[0].mxu0
    %v11995 = vadd.f32 %v11944, %v11994
    %v11996 = vpop.f32.mrb[0].mxu0
    %v11997 = vadd.f32 %v11946, %v11996
    %v11998 = vpop.f32.mrb[0].mxu0
    %v11999 = vadd.f32 %v11948, %v11998
    %v12000 = vpop.f32.mrb[0].mxu0
    %v12001 = vadd.f32 %v11950, %v12000
    %12002 = vmatprep.mubr.bf16.mxu0 %v8382
    %12003 = vmatmul.mubr.bf16.gmra.mrb[0].mxu0 %v8381
    %v12004 = vpop.f32.mrb[0].mxu0
    %v12005 = vadd.f32 %v11954, %v12004
    %v12006 = vpop.f32.mrb[0].mxu0
    %v12007 = vadd.f32 %v11956, %v12006
    %v12008 = vpop.f32.mrb[0].mxu0
    %v12009 = vpop.f32.mrb[0].mxu0
    %12010 = vdwg.mxu0
    %12011 = vmatprep.subr.bf16.mxu0 %v10738
    %12012 = vmatpush1.bf16.msra.mxu0 %v10737
    %12013 = vmatprep.subr.bf16.mxu0 %v10746
    %12014 = vmatpush1.bf16.msra.mxu0 %v10745
    %12015 = vmatprep.subr.bf16.mxu0 %v10754
    %12016 = vmatpush1.bf16.msra.mxu0 %v10753
    %12017 = vmatprep.subr.bf16.mxu0 %v10762
    %12018 = vmatpush1.bf16.msra.mxu0 %v10761
    %12019 = vmatprep.subr.bf16.mxu0 %v10770
    %12020 = vmatpush1.bf16.msra.mxu0 %v10769
    %12021 = vmatprep.subr.bf16.mxu0 %v10778
    %12022 = vmatpush1.bf16.msra.mxu0 %v10777
    %12023 = vmatprep.subr.bf16.mxu0 %v10786
    %12024 = vmatpush1.bf16.msra.mxu0 %v10785
    %12025 = vmatprep.subr.bf16.mxu0 %v10794
    %12026 = vmatpush1.bf16.msra.mxu0 %v10793
    %12027 = vmatprep.subr.bf16.mxu0 %v10802
    %12028 = vmatpush1.bf16.msra.mxu0 %v10801
    %12029 = vmatprep.subr.bf16.mxu0 %v10810
    %12030 = vmatpush1.bf16.msra.mxu0 %v10809
    %12031 = vmatprep.subr.bf16.mxu0 %v10818
    %12032 = vmatpush1.bf16.msra.mxu0 %v10817
    %12033 = vmatprep.subr.bf16.mxu0 %v10826
    %12034 = vmatpush1.bf16.msra.mxu0 %v10825
    %12035 = vmatprep.subr.bf16.mxu0 %v10834
    %12036 = vmatpush1.bf16.msra.mxu0 %v10833
    %12037 = vmatprep.subr.bf16.mxu0 %v10842
    %12038 = vmatpush1.bf16.msra.mxu0 %v10841
    %12039 = vmatprep.subr.bf16.mxu0 %v10850
    %12040 = vmatpush1.bf16.msra.mxu0 %v10849
    %12041 = vmatprep.subr.bf16.mxu0 %v10858
    %12042 = vmatpush1.bf16.msra.mxu0 %v10857
    %12043 = vmatprep.mubr.bf16.mxu0 %v8376
    %12044 = vmatmul.mubr.bf16.gmra.mrb[0].mxu0 %v8375
    %v12045 = vpop.f32.mrb[0].mxu0
    %v12046 = vadd.f32 %v11995, %v12045
    %v12047 = vpop.f32.mrb[0].mxu0
    %v12048 = vadd.f32 %v11997, %v12047
    %v12049 = vpop.f32.mrb[0].mxu0
    %v12050 = vadd.f32 %v11999, %v12049
    %v12051 = vpop.f32.mrb[0].mxu0
    %v12052 = vadd.f32 %v12001, %v12051
    %12053 = vmatprep.mubr.bf16.mxu0 %v8384
    %12054 = vmatmul.mubr.bf16.gmra.mrb[0].mxu0 %v8383
    %v12055 = vpop.f32.mrb[0].mxu0
    %v12056 = vadd.f32 %v12005, %v12055
    %v12057 = vpop.f32.mrb[0].mxu0
    %v12058 = vadd.f32 %v12007, %v12057
    %v12059 = vpop.f32.mrb[0].mxu0
    %v12060 = vpop.f32.mrb[0].mxu0
    %12061 = vdwg.mxu0
    %12062 = vmatprep.subr.bf16.mxu0 %v10866
    %12063 = vmatpush1.bf16.msra.mxu0 %v10865
    %12064 = vmatprep.subr.bf16.mxu0 %v10874
    %12065 = vmatpush1.bf16.msra.mxu0 %v10873
    %12066 = vmatprep.subr.bf16.mxu0 %v10882
    %12067 = vmatpush1.bf16.msra.mxu0 %v10881
    %12068 = vmatprep.subr.bf16.mxu0 %v10890
    %12069 = vmatpush1.bf16.msra.mxu0 %v10889
    %12070 = vmatprep.subr.bf16.mxu0 %v10898
    %12071 = vmatpush1.bf16.msra.mxu0 %v10897
    %12072 = vmatprep.subr.bf16.mxu0 %v10906
    %12073 = vmatpush1.bf16.msra.mxu0 %v10905
    %12074 = vmatprep.subr.bf16.mxu0 %v10914
    %12075 = vmatpush1.bf16.msra.mxu0 %v10913
    %12076 = vmatprep.subr.bf16.mxu0 %v10922
    %12077 = vmatpush1.bf16.msra.mxu0 %v10921
    %12078 = vmatprep.subr.bf16.mxu0 %v10930
    %12079 = vmatpush1.bf16.msra.mxu0 %v10929
    %12080 = vmatprep.subr.bf16.mxu0 %v10938
    %12081 = vmatpush1.bf16.msra.mxu0 %v10937
    %12082 = vmatprep.subr.bf16.mxu0 %v10946
    %12083 = vmatpush1.bf16.msra.mxu0 %v10945
    %12084 = vmatprep.subr.bf16.mxu0 %v10954
    %12085 = vmatpush1.bf16.msra.mxu0 %v10953
    %12086 = vmatprep.subr.bf16.mxu0 %v10962
    %12087 = vmatpush1.bf16.msra.mxu0 %v10961
    %12088 = vmatprep.subr.bf16.mxu0 %v10970
    %12089 = vmatpush1.bf16.msra.mxu0 %v10969
    %12090 = vmatprep.subr.bf16.mxu0 %v10978
    %12091 = vmatpush1.bf16.msra.mxu0 %v10977
    %12092 = vmatprep.subr.bf16.mxu0 %v10986
    %12093 = vmatpush1.bf16.msra.mxu0 %v10985
    %12094 = vmatprep.mubr.bf16.mxu0 %v8378
    %12095 = vmatmul.mubr.bf16.gmra.mrb[0].mxu0 %v8377
    %v12096 = vpop.f32.mrb[0].mxu0
    %v12097 = vadd.f32 %v12046, %v12096
    %v12098 = vpop.f32.mrb[0].mxu0
    %v12099 = vadd.f32 %v12048, %v12098
    %v12100 = vpop.f32.mrb[0].mxu0
    %v12101 = vadd.f32 %v12050, %v12100
    %v12102 = vpop.f32.mrb[0].mxu0
    %v12103 = vadd.f32 %v12052, %v12102
    %12104 = vmatprep.mubr.bf16.mxu0 %v8386
    %12105 = vmatmul.mubr.bf16.gmra.mrb[0].mxu0 %v8385
    %v12106 = vpop.f32.mrb[0].mxu0
    %v12107 = vadd.f32 %v12056, %v12106
    %v12108 = vpop.f32.mrb[0].mxu0
    %v12109 = vadd.f32 %v12058, %v12108
    %v12110 = vpop.f32.mrb[0].mxu0
    %v12111 = vpop.f32.mrb[0].mxu0
    %12112 = vdwg.mxu0
    %12113 = vmatprep.subr.bf16.mxu0 %v10484
    %12114 = vmatpush1.bf16.msra.mxu0 %v10483
    %12115 = vmatprep.subr.bf16.mxu0 %v10492
    %12116 = vmatpush1.bf16.msra.mxu0 %v10491
    %12117 = vmatprep.subr.bf16.mxu0 %v10500
    %12118 = vmatpush1.bf16.msra.mxu0 %v10499
    %12119 = vmatprep.subr.bf16.mxu0 %v10508
    %12120 = vmatpush1.bf16.msra.mxu0 %v10507
    %12121 = vmatprep.subr.bf16.mxu0 %v10516
    %12122 = vmatpush1.bf16.msra.mxu0 %v10515
    %12123 = vmatprep.subr.bf16.mxu0 %v10524
    %12124 = vmatpush1.bf16.msra.mxu0 %v10523
    %12125 = vmatprep.subr.bf16.mxu0 %v10532
    %12126 = vmatpush1.bf16.msra.mxu0 %v10531
    %12127 = vmatprep.subr.bf16.mxu0 %v10540
    %12128 = vmatpush1.bf16.msra.mxu0 %v10539
    %12129 = vmatprep.subr.bf16.mxu0 %v10548
    %12130 = vmatpush1.bf16.msra.mxu0 %v10547
    %12131 = vmatprep.subr.bf16.mxu0 %v10556
    %12132 = vmatpush1.bf16.msra.mxu0 %v10555
    %12133 = vmatprep.subr.bf16.mxu0 %v10564
    %12134 = vmatpush1.bf16.msra.mxu0 %v10563
    %12135 = vmatprep.subr.bf16.mxu0 %v10572
    %12136 = vmatpush1.bf16.msra.mxu0 %v10571
    %12137 = vmatprep.subr.bf16.mxu0 %v10580
    %12138 = vmatpush1.bf16.msra.mxu0 %v10579
    %12139 = vmatprep.subr.bf16.mxu0 %v10588
    %12140 = vmatpush1.bf16.msra.mxu0 %v10587
    %12141 = vmatprep.subr.bf16.mxu0 %v10596
    %12142 = vmatpush1.bf16.msra.mxu0 %v10595
    %12143 = vmatprep.subr.bf16.mxu0 %v10604
    %12144 = vmatpush1.bf16.msra.mxu0 %v10603
    %12145 = vmatprep.mubr.bf16.mxu0 %v8372
    %12146 = vmatmul.mubr.bf16.gmra.mrb[0].mxu0 %v8371
    %v12147 = vpop.f32.mrb[0].mxu0
    %v12148 = vadd.f32 %v8928, %v12147
    %v12149 = vpop.f32.mrb[0].mxu0
    %v12150 = vadd.f32 %v8932, %v12149
    %v12151 = vpop.f32.mrb[0].mxu0
    %v12152 = vadd.f32 %v8928, %v12151
    %v12153 = vpop.f32.mrb[0].mxu0
    %v12154 = vadd.f32 %v8932, %v12153
    %12155 = vmatprep.mubr.bf16.mxu0 %v8380
    %12156 = vmatmul.mubr.bf16.gmra.mrb[0].mxu0 %v8379
    %v12157 = vpop.f32.mrb[0].mxu0
    %v12158 = vadd.f32 %v8928, %v12157
    %v12159 = vpop.f32.mrb[0].mxu0
    %v12160 = vadd.f32 %v8932, %v12159
    %v12161 = vpop.f32.mrb[0].mxu0
    %v12162 = vpop.f32.mrb[0].mxu0
    %12163 = vdwg.mxu0
    %12164 = vmatprep.subr.bf16.mxu0 %v10612
    %12165 = vmatpush1.bf16.msra.mxu0 %v10611
    %12166 = vmatprep.subr.bf16.mxu0 %v10620
    %12167 = vmatpush1.bf16.msra.mxu0 %v10619
    %12168 = vmatprep.subr.bf16.mxu0 %v10628
    %12169 = vmatpush1.bf16.msra.mxu0 %v10627
    %12170 = vmatprep.subr.bf16.mxu0 %v10636
    %12171 = vmatpush1.bf16.msra.mxu0 %v10635
    %12172 = vmatprep.subr.bf16.mxu0 %v10644
    %12173 = vmatpush1.bf16.msra.mxu0 %v10643
    %12174 = vmatprep.subr.bf16.mxu0 %v10652
    %12175 = vmatpush1.bf16.msra.mxu0 %v10651
    %12176 = vmatprep.subr.bf16.mxu0 %v10660
    %12177 = vmatpush1.bf16.msra.mxu0 %v10659
    %12178 = vmatprep.subr.bf16.mxu0 %v10668
    %12179 = vmatpush1.bf16.msra.mxu0 %v10667
    %12180 = vmatprep.subr.bf16.mxu0 %v10676
    %12181 = vmatpush1.bf16.msra.mxu0 %v10675
    %12182 = vmatprep.subr.bf16.mxu0 %v10684
    %12183 = vmatpush1.bf16.msra.mxu0 %v10683
    %12184 = vmatprep.subr.bf16.mxu0 %v10692
    %12185 = vmatpush1.bf16.msra.mxu0 %v10691
    %12186 = vmatprep.subr.bf16.mxu0 %v10700
    %12187 = vmatpush1.bf16.msra.mxu0 %v10699
    %12188 = vmatprep.subr.bf16.mxu0 %v10708
    %12189 = vmatpush1.bf16.msra.mxu0 %v10707
    %12190 = vmatprep.subr.bf16.mxu0 %v10716
    %12191 = vmatpush1.bf16.msra.mxu0 %v10715
    %12192 = vmatprep.subr.bf16.mxu0 %v10724
    %12193 = vmatpush1.bf16.msra.mxu0 %v10723
    %12194 = vmatprep.subr.bf16.mxu0 %v10732
    %12195 = vmatpush1.bf16.msra.mxu0 %v10731
    %12196 = vmatprep.mubr.bf16.mxu0 %v8374
    %12197 = vmatmul.mubr.bf16.gmra.mrb[0].mxu0 %v8373
    %v12198 = vpop.f32.mrb[0].mxu0
    %v12199 = vadd.f32 %v12148, %v12198
    %v12200 = vpop.f32.mrb[0].mxu0
    %v12201 = vadd.f32 %v12150, %v12200
    %v12202 = vpop.f32.mrb[0].mxu0
    %v12203 = vadd.f32 %v12152, %v12202
    %v12204 = vpop.f32.mrb[0].mxu0
    %v12205 = vadd.f32 %v12154, %v12204
    %12206 = vmatprep.mubr.bf16.mxu0 %v8382
    %12207 = vmatmul.mubr.bf16.gmra.mrb[0].mxu0 %v8381
    %v12208 = vpop.f32.mrb[0].mxu0
    %v12209 = vadd.f32 %v12158, %v12208
    %v12210 = vpop.f32.mrb[0].mxu0
    %v12211 = vadd.f32 %v12160, %v12210
    %v12212 = vpop.f32.mrb[0].mxu0
    %v12213 = vpop.f32.mrb[0].mxu0
    %12214 = vdwg.mxu0
    %12215 = vmatprep.subr.bf16.mxu0 %v10740
    %12216 = vmatpush1.bf16.msra.mxu0 %v10739
    %12217 = vmatprep.subr.bf16.mxu0 %v10748
    %12218 = vmatpush1.bf16.msra.mxu0 %v10747
    %12219 = vmatprep.subr.bf16.mxu0 %v10756
    %12220 = vmatpush1.bf16.msra.mxu0 %v10755
    %12221 = vmatprep.subr.bf16.mxu0 %v10764
    %12222 = vmatpush1.bf16.msra.mxu0 %v10763
    %12223 = vmatprep.subr.bf16.mxu0 %v10772
    %12224 = vmatpush1.bf16.msra.mxu0 %v10771
    %12225 = vmatprep.subr.bf16.mxu0 %v10780
    %12226 = vmatpush1.bf16.msra.mxu0 %v10779
    %12227 = vmatprep.subr.bf16.mxu0 %v10788
    %12228 = vmatpush1.bf16.msra.mxu0 %v10787
    %12229 = vmatprep.subr.bf16.mxu0 %v10796
    %12230 = vmatpush1.bf16.msra.mxu0 %v10795
    %12231 = vmatprep.subr.bf16.mxu0 %v10804
    %12232 = vmatpush1.bf16.msra.mxu0 %v10803
    %12233 = vmatprep.subr.bf16.mxu0 %v10812
    %12234 = vmatpush1.bf16.msra.mxu0 %v10811
    %12235 = vmatprep.subr.bf16.mxu0 %v10820
    %12236 = vmatpush1.bf16.msra.mxu0 %v10819
    %12237 = vmatprep.subr.bf16.mxu0 %v10828
    %12238 = vmatpush1.bf16.msra.mxu0 %v10827
    %12239 = vmatprep.subr.bf16.mxu0 %v10836
    %12240 = vmatpush1.bf16.msra.mxu0 %v10835
    %12241 = vmatprep.subr.bf16.mxu0 %v10844
    %12242 = vmatpush1.bf16.msra.mxu0 %v10843
    %12243 = vmatprep.subr.bf16.mxu0 %v10852
    %12244 = vmatpush1.bf16.msra.mxu0 %v10851
    %12245 = vmatprep.subr.bf16.mxu0 %v10860
    %12246 = vmatpush1.bf16.msra.mxu0 %v10859
    %12247 = vmatprep.mubr.bf16.mxu0 %v8376
    %12248 = vmatmul.mubr.bf16.gmra.mrb[0].mxu0 %v8375
    %v12249 = vpop.f32.mrb[0].mxu0
    %v12250 = vadd.f32 %v12199, %v12249
    %v12251 = vpop.f32.mrb[0].mxu0
    %v12252 = vadd.f32 %v12201, %v12251
    %v12253 = vpop.f32.mrb[0].mxu0
    %v12254 = vadd.f32 %v12203, %v12253
    %v12255 = vpop.f32.mrb[0].mxu0
    %v12256 = vadd.f32 %v12205, %v12255
    %12257 = vmatprep.mubr.bf16.mxu0 %v8384
    %12258 = vmatmul.mubr.bf16.gmra.mrb[0].mxu0 %v8383
    %v12259 = vpop.f32.mrb[0].mxu0
    %v12260 = vadd.f32 %v12209, %v12259
    %v12261 = vpop.f32.mrb[0].mxu0
    %v12262 = vadd.f32 %v12211, %v12261
    %v12263 = vpop.f32.mrb[0].mxu0
    %v12264 = vpop.f32.mrb[0].mxu0
    %12265 = vdwg.mxu0
    %12266 = vmatprep.subr.bf16.mxu0 %v10868
    %12267 = vmatpush1.bf16.msra.mxu0 %v10867
    %12268 = vmatprep.subr.bf16.mxu0 %v10876
    %12269 = vmatpush1.bf16.msra.mxu0 %v10875
    %12270 = vmatprep.subr.bf16.mxu0 %v10884
    %12271 = vmatpush1.bf16.msra.mxu0 %v10883
    %12272 = vmatprep.subr.bf16.mxu0 %v10892
    %12273 = vmatpush1.bf16.msra.mxu0 %v10891
    %12274 = vmatprep.subr.bf16.mxu0 %v10900
    %12275 = vmatpush1.bf16.msra.mxu0 %v10899
    %12276 = vmatprep.subr.bf16.mxu0 %v10908
    %12277 = vmatpush1.bf16.msra.mxu0 %v10907
    %12278 = vmatprep.subr.bf16.mxu0 %v10916
    %12279 = vmatpush1.bf16.msra.mxu0 %v10915
    %12280 = vmatprep.subr.bf16.mxu0 %v10924
    %12281 = vmatpush1.bf16.msra.mxu0 %v10923
    %12282 = vmatprep.subr.bf16.mxu0 %v10932
    %12283 = vmatpush1.bf16.msra.mxu0 %v10931
    %12284 = vmatprep.subr.bf16.mxu0 %v10940
    %12285 = vmatpush1.bf16.msra.mxu0 %v10939
    %12286 = vmatprep.subr.bf16.mxu0 %v10948
    %12287 = vmatpush1.bf16.msra.mxu0 %v10947
    %12288 = vmatprep.subr.bf16.mxu0 %v10956
    %12289 = vmatpush1.bf16.msra.mxu0 %v10955
    %12290 = vmatprep.subr.bf16.mxu0 %v10964
    %12291 = vmatpush1.bf16.msra.mxu0 %v10963
    %12292 = vmatprep.subr.bf16.mxu0 %v10972
    %12293 = vmatpush1.bf16.msra.mxu0 %v10971
    %12294 = vmatprep.subr.bf16.mxu0 %v10980
    %12295 = vmatpush1.bf16.msra.mxu0 %v10979
    %12296 = vmatprep.subr.bf16.mxu0 %v10988
    %12297 = vmatpush1.bf16.msra.mxu0 %v10987
    %12298 = vmatprep.mubr.bf16.mxu0 %v8378
    %12299 = vmatmul.mubr.bf16.gmra.mrb[0].mxu0 %v8377
    %v12300 = vpop.f32.mrb[0].mxu0
    %v12301 = vadd.f32 %v12250, %v12300
    %v12302 = vpop.f32.mrb[0].mxu0
    %v12303 = vadd.f32 %v12252, %v12302
    %v12304 = vpop.f32.mrb[0].mxu0
    %v12305 = vadd.f32 %v12254, %v12304
    %v12306 = vpop.f32.mrb[0].mxu0
    %v12307 = vadd.f32 %v12256, %v12306
    %12308 = vmatprep.mubr.bf16.mxu0 %v8386
    %12309 = vmatmul.mubr.bf16.gmra.mrb[0].mxu0 %v8385
    %v12310 = vpop.f32.mrb[0].mxu0
    %v12311 = vadd.f32 %v12260, %v12310
    %v12312 = vpop.f32.mrb[0].mxu0
    %v12313 = vadd.f32 %v12262, %v12312
    %v12314 = vpop.f32.mrb[0].mxu0
    %v12315 = vpop.f32.mrb[0].mxu0
    %12316 = vdwg.mxu0
    %v12317 = vmin.f32 %v11689, 0.0
    %v12318 = vmin.f32 %v11691, 0.0
    %v12319 = vmin.f32 %v11893, 0.0
    %v12320 = vmin.f32 %v11895, 0.0
    %v12321 = vmin.f32 %v12097, 0.0
    %v12322 = vmin.f32 %v12099, 0.0
    %v12323 = vmin.f32 %v12301, 0.0
    %v12324 = vmin.f32 %v12303, 0.0
    %v12325 = vmin.f32 %v11693, 0.0
    %v12326 = vmin.f32 %v11695, 0.0
    %v12327 = vmin.f32 %v11897, 0.0
    %v12328 = vmin.f32 %v11899, 0.0
    %v12329 = vmin.f32 %v12101, 0.0
    %v12330 = vmin.f32 %v12103, 0.0
    %v12331 = vmin.f32 %v12305, 0.0
    %v12332 = vmin.f32 %v12307, 0.0
    %v12333 = vmin.f32 %v11699, 0.0
    %v12334 = vmin.f32 %v11701, 0.0
    %v12335 = vmin.f32 %v11903, 0.0
    %v12336 = vmin.f32 %v11905, 0.0
    %v12337 = vmin.f32 %v12107, 0.0
    %v12338 = vmin.f32 %v12109, 0.0
    %v12339 = vmin.f32 %v12311, 0.0
    %v12340 = vmin.f32 %v12313, 0.0
    %v12341 = vmul.f32 %v12317, 1.442695
    %v12342 = vpow.pop %v12341
    %v12343 = vmul.f32 %v12318, 1.442695
    %v12344 = vpow.pop %v12343
    %v12345 = vmul.f32 %v12319, 1.442695
    %v12346 = vpow.pop %v12345
    %v12347 = vmul.f32 %v12320, 1.442695
    %v12348 = vpow.pop %v12347
    %v12349 = vmul.f32 %v12321, 1.442695
    %v12350 = vpow.pop %v12349
    %v12351 = vmul.f32 %v12322, 1.442695
    %v12352 = vpow.pop %v12351
    %v12353 = vmul.f32 %v12323, 1.442695
    %v12354 = vpow.pop %v12353
    %v12355 = vmul.f32 %v12324, 1.442695
    %v12356 = vpow.pop %v12355
    %v12357 = vmul.f32 %v12325, 1.442695
    %v12358 = vpow.pop %v12357
    %v12359 = vmul.f32 %v12326, 1.442695
    %v12360 = vpow.pop %v12359
    %v12361 = vmul.f32 %v12327, 1.442695
    %v12362 = vpow.pop %v12361
    %v12363 = vmul.f32 %v12328, 1.442695
    %v12364 = vpow.pop %v12363
    %v12365 = vmul.f32 %v12329, 1.442695
    %v12366 = vpow.pop %v12365
    %v12367 = vmul.f32 %v12330, 1.442695
    %v12368 = vpow.pop %v12367
    %v12369 = vmul.f32 %v12331, 1.442695
    %v12370 = vpow.pop %v12369
    %v12371 = vmul.f32 %v12332, 1.442695
    %v12372 = vpow.pop %v12371
    %v12373 = vmul.f32 %v12333, 1.442695
    %v12374 = vpow.pop %v12373
    %v12375 = vmul.f32 %v12334, 1.442695
    %v12376 = vpow.pop %v12375
    %v12377 = vmul.f32 %v12335, 1.442695
    %v12378 = vpow.pop %v12377
    %v12379 = vmul.f32 %v12336, 1.442695
    %v12380 = vpow.pop %v12379
    %v12381 = vmul.f32 %v12337, 1.442695
    %v12382 = vpow.pop %v12381
    %v12383 = vmul.f32 %v12338, 1.442695
    %v12384 = vpow.pop %v12383
    %v12385 = vmul.f32 %v12339, 1.442695
    %v12386 = vpow.pop %v12385
    %v12387 = vmul.f32 %v12340, 1.442695
    %v12388 = vpow.pop %v12387
    %v12389 = vsub.f32 %v12342, 1.0
    %v12390 = vsub.f32 %v12344, 1.0
    %v12391 = vsub.f32 %v12346, 1.0
    %v12392 = vsub.f32 %v12348, 1.0
    %v12393 = vsub.f32 %v12350, 1.0
    %v12394 = vsub.f32 %v12352, 1.0
    %v12395 = vsub.f32 %v12354, 1.0
    %v12396 = vsub.f32 %v12356, 1.0
    %v12397 = vsub.f32 %v12358, 1.0
    %v12398 = vsub.f32 %v12360, 1.0
    %v12399 = vsub.f32 %v12362, 1.0
    %v12400 = vsub.f32 %v12364, 1.0
    %v12401 = vsub.f32 %v12366, 1.0
    %v12402 = vsub.f32 %v12368, 1.0
    %v12403 = vsub.f32 %v12370, 1.0
    %v12404 = vsub.f32 %v12372, 1.0
    %v12405 = vsub.f32 %v12374, 1.0
    %v12406 = vsub.f32 %v12376, 1.0
    %v12407 = vsub.f32 %v12378, 1.0
    %v12408 = vsub.f32 %v12380, 1.0
    %v12409 = vsub.f32 %v12382, 1.0
    %v12410 = vsub.f32 %v12384, 1.0
    %v12411 = vsub.f32 %v12386, 1.0
    %v12412 = vsub.f32 %v12388, 1.0
    %v12413 = vmul.f32 %v12317, 0.16666667
    %v12414 = vmul.f32 %v12318, 0.16666667
    %v12415 = vmul.f32 %v12319, 0.16666667
    %v12416 = vmul.f32 %v12320, 0.16666667
    %v12417 = vmul.f32 %v12321, 0.16666667
    %v12418 = vmul.f32 %v12322, 0.16666667
    %v12419 = vmul.f32 %v12323, 0.16666667
    %v12420 = vmul.f32 %v12324, 0.16666667
    %v12421 = vmul.f32 %v12325, 0.16666667
    %v12422 = vmul.f32 %v12326, 0.16666667
    %v12423 = vmul.f32 %v12327, 0.16666667
    %v12424 = vmul.f32 %v12328, 0.16666667
    %v12425 = vmul.f32 %v12329, 0.16666667
    %v12426 = vmul.f32 %v12330, 0.16666667
    %v12427 = vmul.f32 %v12331, 0.16666667
    %v12428 = vmul.f32 %v12332, 0.16666667
    %v12429 = vmul.f32 %v12333, 0.16666667
    %v12430 = vmul.f32 %v12334, 0.16666667
    %v12431 = vmul.f32 %v12335, 0.16666667
    %v12432 = vmul.f32 %v12336, 0.16666667
    %v12433 = vmul.f32 %v12337, 0.16666667
    %v12434 = vmul.f32 %v12338, 0.16666667
    %v12435 = vmul.f32 %v12339, 0.16666667
    %v12436 = vmul.f32 %v12340, 0.16666667
    %v12437 = vadd.f32 %v12413, 0.5
    %v12438 = vadd.f32 %v12414, 0.5
    %v12439 = vadd.f32 %v12415, 0.5
    %v12440 = vadd.f32 %v12416, 0.5
    %v12441 = vadd.f32 %v12417, 0.5
    %v12442 = vadd.f32 %v12418, 0.5
    %v12443 = vadd.f32 %v12419, 0.5
    %v12444 = vadd.f32 %v12420, 0.5
    %v12445 = vadd.f32 %v12421, 0.5
    %v12446 = vadd.f32 %v12422, 0.5
    %v12447 = vadd.f32 %v12423, 0.5
    %v12448 = vadd.f32 %v12424, 0.5
    %v12449 = vadd.f32 %v12425, 0.5
    %v12450 = vadd.f32 %v12426, 0.5
    %v12451 = vadd.f32 %v12427, 0.5
    %v12452 = vadd.f32 %v12428, 0.5
    %v12453 = vadd.f32 %v12429, 0.5
    %v12454 = vadd.f32 %v12430, 0.5
    %v12455 = vadd.f32 %v12431, 0.5
    %v12456 = vadd.f32 %v12432, 0.5
    %v12457 = vadd.f32 %v12433, 0.5
    %v12458 = vadd.f32 %v12434, 0.5
    %v12459 = vadd.f32 %v12435, 0.5
    %v12460 = vadd.f32 %v12436, 0.5
    %v12461 = vmul.f32 %v12317, %v12437
    %v12462 = vmul.f32 %v12318, %v12438
    %v12463 = vmul.f32 %v12319, %v12439
    %v12464 = vmul.f32 %v12320, %v12440
    %v12465 = vmul.f32 %v12321, %v12441
    %v12466 = vmul.f32 %v12322, %v12442
    %v12467 = vmul.f32 %v12323, %v12443
    %v12468 = vmul.f32 %v12324, %v12444
    %v12469 = vmul.f32 %v12325, %v12445
    %v12470 = vmul.f32 %v12326, %v12446
    %v12471 = vmul.f32 %v12327, %v12447
    %v12472 = vmul.f32 %v12328, %v12448
    %v12473 = vmul.f32 %v12329, %v12449
    %v12474 = vmul.f32 %v12330, %v12450
    %v12475 = vmul.f32 %v12331, %v12451
    %v12476 = vmul.f32 %v12332, %v12452
    %v12477 = vmul.f32 %v12333, %v12453
    %v12478 = vmul.f32 %v12334, %v12454
    %v12479 = vmul.f32 %v12335, %v12455
    %v12480 = vmul.f32 %v12336, %v12456
    %v12481 = vmul.f32 %v12337, %v12457
    %v12482 = vmul.f32 %v12338, %v12458
    %v12483 = vmul.f32 %v12339, %v12459
    %v12484 = vmul.f32 %v12340, %v12460
    %v12485 = vadd.f32 %v12461, 1.0
    %v12486 = vadd.f32 %v12462, 1.0
    %v12487 = vadd.f32 %v12463, 1.0
    %v12488 = vadd.f32 %v12464, 1.0
    %v12489 = vadd.f32 %v12465, 1.0
    %v12490 = vadd.f32 %v12466, 1.0
    %v12491 = vadd.f32 %v12467, 1.0
    %v12492 = vadd.f32 %v12468, 1.0
    %v12493 = vadd.f32 %v12469, 1.0
    %v12494 = vadd.f32 %v12470, 1.0
    %v12495 = vadd.f32 %v12471, 1.0
    %v12496 = vadd.f32 %v12472, 1.0
    %v12497 = vadd.f32 %v12473, 1.0
    %v12498 = vadd.f32 %v12474, 1.0
    %v12499 = vadd.f32 %v12475, 1.0
    %v12500 = vadd.f32 %v12476, 1.0
    %v12501 = vadd.f32 %v12477, 1.0
    %v12502 = vadd.f32 %v12478, 1.0
    %v12503 = vadd.f32 %v12479, 1.0
    %v12504 = vadd.f32 %v12480, 1.0
    %v12505 = vadd.f32 %v12481, 1.0
    %v12506 = vadd.f32 %v12482, 1.0
    %v12507 = vadd.f32 %v12483, 1.0
    %v12508 = vadd.f32 %v12484, 1.0
    %v12509 = vmul.f32 %v12317, %v12485
    %v12510 = vmul.f32 %v12318, %v12486
    %v12511 = vmul.f32 %v12319, %v12487
    %v12512 = vmul.f32 %v12320, %v12488
    %v12513 = vmul.f32 %v12321, %v12489
    %v12514 = vmul.f32 %v12322, %v12490
    %v12515 = vmul.f32 %v12323, %v12491
    %v12516 = vmul.f32 %v12324, %v12492
    %v12517 = vmul.f32 %v12325, %v12493
    %v12518 = vmul.f32 %v12326, %v12494
    %v12519 = vmul.f32 %v12327, %v12495
    %v12520 = vmul.f32 %v12328, %v12496
    %v12521 = vmul.f32 %v12329, %v12497
    %v12522 = vmul.f32 %v12330, %v12498
    %v12523 = vmul.f32 %v12331, %v12499
    %v12524 = vmul.f32 %v12332, %v12500
    %v12525 = vmul.f32 %v12333, %v12501
    %v12526 = vmul.f32 %v12334, %v12502
    %v12527 = vmul.f32 %v12335, %v12503
    %v12528 = vmul.f32 %v12336, %v12504
    %v12529 = vmul.f32 %v12337, %v12505
    %v12530 = vmul.f32 %v12338, %v12506
    %v12531 = vmul.f32 %v12339, %v12507
    %v12532 = vmul.f32 %v12340, %v12508
    %vm12533 = vcmp.gt.f32.partialorder %v12317, -0.02
    %vm12534 = vcmp.gt.f32.partialorder %v12318, -0.02
    %vm12535 = vcmp.gt.f32.partialorder %v12319, -0.02
    %vm12536 = vcmp.gt.f32.partialorder %v12320, -0.02
    %vm12537 = vcmp.gt.f32.partialorder %v12321, -0.02
    %vm12538 = vcmp.gt.f32.partialorder %v12322, -0.02
    %vm12539 = vcmp.gt.f32.partialorder %v12323, -0.02
    %vm12540 = vcmp.gt.f32.partialorder %v12324, -0.02
    %vm12541 = vcmp.gt.f32.partialorder %v12325, -0.02
    %vm12542 = vcmp.gt.f32.partialorder %v12326, -0.02
    %vm12543 = vcmp.gt.f32.partialorder %v12327, -0.02
    %vm12544 = vcmp.gt.f32.partialorder %v12328, -0.02
    %vm12545 = vcmp.gt.f32.partialorder %v12329, -0.02
    %vm12546 = vcmp.gt.f32.partialorder %v12330, -0.02
    %vm12547 = vcmp.gt.f32.partialorder %v12331, -0.02
    %vm12548 = vcmp.gt.f32.partialorder %v12332, -0.02
    %vm12549 = vcmp.gt.f32.partialorder %v12333, -0.02
    %vm12550 = vcmp.gt.f32.partialorder %v12334, -0.02
    %vm12551 = vcmp.gt.f32.partialorder %v12335, -0.02
    %vm12552 = vcmp.gt.f32.partialorder %v12336, -0.02
    %vm12553 = vcmp.gt.f32.partialorder %v12337, -0.02
    %vm12554 = vcmp.gt.f32.partialorder %v12338, -0.02
    %vm12555 = vcmp.gt.f32.partialorder %v12339, -0.02
    %vm12556 = vcmp.gt.f32.partialorder %v12340, -0.02
    %v12557 = vsel %vm12533, %v12509, %v12389
    %v12558 = vsel %vm12534, %v12510, %v12390
    %v12559 = vsel %vm12535, %v12511, %v12391
    %v12560 = vsel %vm12536, %v12512, %v12392
    %v12561 = vsel %vm12537, %v12513, %v12393
    %v12562 = vsel %vm12538, %v12514, %v12394
    %v12563 = vsel %vm12539, %v12515, %v12395
    %v12564 = vsel %vm12540, %v12516, %v12396
    %v12565 = vsel %vm12541, %v12517, %v12397
    %v12566 = vsel %vm12542, %v12518, %v12398
    %v12567 = vsel %vm12543, %v12519, %v12399
    %v12568 = vsel %vm12544, %v12520, %v12400
    %v12569 = vsel %vm12545, %v12521, %v12401
    %v12570 = vsel %vm12546, %v12522, %v12402
    %v12571 = vsel %vm12547, %v12523, %v12403
    %v12572 = vsel %vm12548, %v12524, %v12404
    %v12573 = vsel %vm12549, %v12525, %v12405
    %v12574 = vsel %vm12550, %v12526, %v12406
    %v12575 = vsel %vm12551, %v12527, %v12407
    %v12576 = vsel %vm12552, %v12528, %v12408
    %v12577 = vsel %vm12553, %v12529, %v12409
    %v12578 = vsel %vm12554, %v12530, %v12410
    %v12579 = vsel %vm12555, %v12531, %v12411
    %v12580 = vsel %vm12556, %v12532, %v12412
    %vm12581 = vcmp.gt.f32.partialorder %v11689, 0.0
    %vm12582 = vcmp.gt.f32.partialorder %v11691, 0.0
    %vm12583 = vcmp.gt.f32.partialorder %v11893, 0.0
    %vm12584 = vcmp.gt.f32.partialorder %v11895, 0.0
    %vm12585 = vcmp.gt.f32.partialorder %v12097, 0.0
    %vm12586 = vcmp.gt.f32.partialorder %v12099, 0.0
    %vm12587 = vcmp.gt.f32.partialorder %v12301, 0.0
    %vm12588 = vcmp.gt.f32.partialorder %v12303, 0.0
    %vm12589 = vcmp.gt.f32.partialorder %v11693, 0.0
    %vm12590 = vcmp.gt.f32.partialorder %v11695, 0.0
    %vm12591 = vcmp.gt.f32.partialorder %v11897, 0.0
    %vm12592 = vcmp.gt.f32.partialorder %v11899, 0.0
    %vm12593 = vcmp.gt.f32.partialorder %v12101, 0.0
    %vm12594 = vcmp.gt.f32.partialorder %v12103, 0.0
    %vm12595 = vcmp.gt.f32.partialorder %v12305, 0.0
    %vm12596 = vcmp.gt.f32.partialorder %v12307, 0.0
    %vm12597 = vcmp.gt.f32.partialorder %v11699, 0.0
    %vm12598 = vcmp.gt.f32.partialorder %v11701, 0.0
    %vm12599 = vcmp.gt.f32.partialorder %v11903, 0.0
    %vm12600 = vcmp.gt.f32.partialorder %v11905, 0.0
    %vm12601 = vcmp.gt.f32.partialorder %v12107, 0.0
    %vm12602 = vcmp.gt.f32.partialorder %v12109, 0.0
    %vm12603 = vcmp.gt.f32.partialorder %v12311, 0.0
    %vm12604 = vcmp.gt.f32.partialorder %v12313, 0.0
    %v12605 = vsel %vm12581, %v11689, %v12557
    %v12606 = vsel %vm12582, %v11691, %v12558
    %v12607 = vsel %vm12583, %v11893, %v12559
    %v12608 = vsel %vm12584, %v11895, %v12560
    %v12609 = vsel %vm12585, %v12097, %v12561
    %v12610 = vsel %vm12586, %v12099, %v12562
    %v12611 = vsel %vm12587, %v12301, %v12563
    %v12612 = vsel %vm12588, %v12303, %v12564
    %v12613 = vsel %vm12589, %v11693, %v12565
    %v12614 = vsel %vm12590, %v11695, %v12566
    %v12615 = vsel %vm12591, %v11897, %v12567
    %v12616 = vsel %vm12592, %v11899, %v12568
    %v12617 = vsel %vm12593, %v12101, %v12569
    %v12618 = vsel %vm12594, %v12103, %v12570
    %v12619 = vsel %vm12595, %v12305, %v12571
    %v12620 = vsel %vm12596, %v12307, %v12572
    %v12621 = vsel %vm12597, %v11699, %v12573
    %v12622 = vsel %vm12598, %v11701, %v12574
    %v12623 = vsel %vm12599, %v11903, %v12575
    %v12624 = vsel %vm12600, %v11905, %v12576
    %v12625 = vsel %vm12601, %v12107, %v12577
    %v12626 = vsel %vm12602, %v12109, %v12578
    %v12627 = vsel %vm12603, %v12311, %v12579
    %v12628 = vsel %vm12604, %v12313, %v12580
    %v12629 = vld [vmem:[#allocation14] sm:$0xff]
    %v12631 = vlaneseq
    %v12632 = vshrl.u32 %v12631, 7
    %v12633 = vsub.s32 0, %v12632
    %v12634 = vrot.slane %v12629, %v12633
    %v12635 = vlaneseq
    %v12636 = vshrl.u32 %v12635, 7
    %v12637 = vsub.s32 1, %v12636
    %v12638 = vrot.slane %v12629, %v12637
    %v12639 = vlaneseq
    %v12640 = vshrl.u32 %v12639, 7
    %v12641 = vsub.s32 2, %v12640
    %v12642 = vrot.slane %v12629, %v12641
    %v12643 = vlaneseq
    %v12644 = vshrl.u32 %v12643, 7
    %v12645 = vsub.s32 3, %v12644
    %v12646 = vrot.slane %v12629, %v12645
    %v12647 = vlaneseq
    %v12648 = vshrl.u32 %v12647, 7
    %v12649 = vsub.s32 4, %v12648
    %v12650 = vrot.slane %v12629, %v12649
    %v12651 = vlaneseq
    %v12652 = vshrl.u32 %v12651, 7
    %v12653 = vsub.s32 5, %v12652
    %v12654 = vrot.slane %v12629, %v12653
    %v12655 = vlaneseq
    %v12656 = vshrl.u32 %v12655, 7
    %v12657 = vsub.s32 6, %v12656
    %v12658 = vrot.slane %v12629, %v12657
    %v12659 = vlaneseq
    %v12660 = vshrl.u32 %v12659, 7
    %v12661 = vsub.s32 7, %v12660
    %v12662 = vrot.slane %v12629, %v12661
    %v12671 = vmul.f32 %v12605, %v12634
    %v12672 = vmul.f32 %v12606, %v12638
    %v12673 = vmul.f32 %v12607, %v12642
    %v12674 = vmul.f32 %v12608, %v12646
    %v12675 = vmul.f32 %v12609, %v12650
    %v12676 = vmul.f32 %v12610, %v12654
    %v12677 = vmul.f32 %v12611, %v12658
    %v12678 = vmul.f32 %v12612, %v12662
    %v12679 = vmul.f32 %v12613, %v12634
    %v12680 = vmul.f32 %v12614, %v12638
    %v12681 = vmul.f32 %v12615, %v12642
    %v12682 = vmul.f32 %v12616, %v12646
    %v12683 = vmul.f32 %v12617, %v12650
    %v12684 = vmul.f32 %v12618, %v12654
    %v12685 = vmul.f32 %v12619, %v12658
    %v12686 = vmul.f32 %v12620, %v12662
    %v12687 = vmul.f32 %v12621, %v12634
    %v12688 = vmul.f32 %v12622, %v12638
    %v12689 = vmul.f32 %v12623, %v12642
    %v12690 = vmul.f32 %v12624, %v12646
    %v12691 = vmul.f32 %v12625, %v12650
    %v12692 = vmul.f32 %v12626, %v12654
    %v12693 = vmul.f32 %v12627, %v12658
    %v12694 = vmul.f32 %v12628, %v12662
    %v12695 = vadd.f32 %v12671, %v12672
    %v12696 = vadd.f32 %v12695, %v12673
    %v12697 = vadd.f32 %v12696, %v12674
    %v12698 = vadd.f32 %v12697, %v12675
    %v12699 = vadd.f32 %v12698, %v12676
    %v12700 = vadd.f32 %v12699, %v12677
    %v12701 = vadd.f32 %v12700, %v12678
    %12702 = vadd.xlane.f32.xlu0 %v12701
    %v12703 = vpop.xlane.xlu0 %12702
    %v12704 = vadd.f32 %v12679, %v12680
    %v12705 = vadd.f32 %v12704, %v12681
    %v12706 = vadd.f32 %v12705, %v12682
    %v12707 = vadd.f32 %v12706, %v12683
    %v12708 = vadd.f32 %v12707, %v12684
    %v12709 = vadd.f32 %v12708, %v12685
    %v12710 = vadd.f32 %v12709, %v12686
    %12711 = vadd.xlane.f32.xlu0 %v12710
    %v12712 = vpop.xlane.xlu0 %12711
    %v12713 = vadd.f32 %v12687, %v12688
    %v12714 = vadd.f32 %v12713, %v12689
    %v12715 = vadd.f32 %v12714, %v12690
    %v12716 = vadd.f32 %v12715, %v12691
    %v12717 = vadd.f32 %v12716, %v12692
    %v12718 = vadd.f32 %v12717, %v12693
    %v12719 = vadd.f32 %v12718, %v12694
    %12720 = vadd.xlane.f32.xlu0 %v12719
    %v12721 = vpop.xlane.xlu0 %12720
    %v12722 = vld [vmem:[#allocation2] sm:$0x1]
    %v12724 = vlaneseq
    %v12725 = vshrl.u32 %v12724, 7
    %v12726 = vsub.s32 0, %v12725
    %v12727 = vrot.slane %v12722, %v12726
    %v12729 = vadd.f32 %v12703, %v12727
    %v12730 = vadd.f32 %v12712, %v12727
    %v12731 = vadd.f32 %v12721, %v12727
    %vm12732 = vcmask 7168
    %12733 = vst.msk [vmem:[%s9] sm:$0xff] %vm12732, %v12729
    %12734 = vst.msk [vmem:[%s9 + $0x8] sm:$0xff] %vm12732, %v12730
    %12735 = vst.msk [vmem:[%s9 + $0x10] sm:$0xff] %vm12732, %v12731
    // Predicated region
    $region70: #{tpu_custom_call.1} parent=1 // pred_check
      _
    $region71: #{tpu_custom_call.1} parent=1 // pred_check_branch
      %12737 = sbr.rel (0) target = $region73
    $region72: #{tpu_custom_call.1} parent=1 // pred_region
      _
    $region73: #{tpu_custom_call.1} parent=1 // pred_fallthru
      _
    // Predicated region
    $region74: #{tpu_custom_call.1} parent=1 // pred_check
      _
    $region75: #{tpu_custom_call.1} parent=1 // pred_check_branch
      %12739 = sbr.rel (0) target = $region77
    $region76: #{tpu_custom_call.1} parent=1 // pred_region
      _
    $region77: #{tpu_custom_call.1} parent=1 // pred_fallthru
      _
    %12740 = vsyncpa [#allocation4], 1
    %12741 = vsyncpa [#allocation6], 1
    %12742 = vsyncpa [#allocation9], 1
    %12743 = vsyncpa [#allocation12], 1
    %12744 = vsyncpa [#allocation15], 1

</llo_original>
